<compile_context>
chip_gen: v5e
topology: v5e:2x2
jax: 0.10.0
libtpu: 0.0.40
codegen_flags: <defaults>
</compile_context>

<pallas_src>
import functools
import math

import jax
import jax.numpy as jnp
from jax import lax
from jax.experimental import pallas as pl
from jax.experimental.pallas import tpu as pltpu


# ------------------------------ small helpers --------------------------------

def _mish(x):
    return x * jnp.tanh(jax.nn.softplus(x))


def _layernorm(z, g, b, eps=1e-5):
    mu = jnp.mean(z, axis=-1, keepdims=True)
    var = jnp.mean((z - mu) ** 2, axis=-1, keepdims=True)
    return (z - mu) * lax.rsqrt(var + eps) * g + b


def _mm(a_f32, w_bf16):
    """bf16 MXU matmul with f32 accumulation."""
    return jnp.dot(a_f32.astype(jnp.bfloat16), w_bf16,
                   preferred_element_type=jnp.float32)


def _conv3_mish(x, w_ref, b_ref, pad, dil):
    """'same' Conv1d(kernel=3, stride=1) + Mish, entirely in VMEM/registers.

    x:     (T, Cin) f32 value
    w_ref: (3, Cin, Cout) bf16 ref (tap-major, i.e. torch weight permuted (2,1,0))
    b_ref: (1, Cout) f32 ref
    """
    T, Cin = x.shape
    zp = jnp.zeros((pad, Cin), jnp.float32)
    xp = jnp.concatenate([zp, x, zp], axis=0).astype(jnp.bfloat16)  # (T+2p, Cin)
    y = b_ref[...]
    for k in range(3):
        tap = xp[k * dil:k * dil + T, :]
        y = y + jnp.dot(tap, w_ref[k], preferred_element_type=jnp.float32)
    return _mish(y)


# -------------------------------- the kernel ---------------------------------

def _forward_kernel(
    # data
    state_ref, goal_ref, loc_raw_ref, x_ref, temb_ref,
    # embedding weights (resident; used only at layer 0)
    s1w_ref, s1b_ref, s2w_ref, s2b_ref,
    c1w_ref, c1b_ref, c2w_ref, c2b_ref, c3w_ref, c3b_ref,
    x1w_ref, x1b_ref, x2w_ref, x2b_ref,
    p1w_ref, p1b_ref, p2w_ref, p2b_ref,
    vw_ref,
    # per-layer transformer weights (streamed along the layer grid axis)
    wq_ref, bq_ref, wk_ref, bk_ref, wv_ref, bv_ref,
    wo_ref, bo_ref, ln1w_ref, ln1b_ref,
    l1w_ref, l1b_ref, l2w_ref, l2b_ref, ln2w_ref, ln2b_ref,
    # output
    out_ref,
    # scratch (persist across the layer grid)
    cond_scr, loc_scr,
    *, nh, n_layers, exclude_first):

    layer = pl.program_id(0)
    B, Lq, H = loc_scr.shape
    Tx = x_ref.shape[1]
    hd = H // nh
    scale = 1.0 / math.sqrt(hd)
    ex = exclude_first

    # ------------------ layer 0: all embeddings -> VMEM scratch -----------------
    @pl.when(layer == 0)
    def _embed():
        for b in range(B):
            # state_embedding: Conv(3->2H,k3,p1) Mish, Conv(2H->H,k3,p2,d2) Mish
            s = _conv3_mish(state_ref[b], s1w_ref, s1b_ref, pad=1, dil=1)
            s = _conv3_mish(s, s2w_ref, s2b_ref, pad=2, dil=2)            # (ex, H)
            # contact_embedding(goal): Conv(3->2H,p1) + 2x Conv(p3,d3), all Mish
            g = _conv3_mish(goal_ref[b], c1w_ref, c1b_ref, pad=1, dil=1)
            g = _conv3_mish(g, c2w_ref, c2b_ref, pad=3, dil=3)
            g = _conv3_mish(g, c3w_ref, c3b_ref, pad=3, dil=3)            # (4, H)
            # x_embedding: Linear(3->2H) Mish, Linear(2H->H) Mish
            xe = _mish(_mm(x_ref[b], x1w_ref[...]) + x1b_ref[...])
            xe = _mish(_mm(xe, x2w_ref[...]) + x2b_ref[...])              # (Tx, H)
            # pose_embedding MLP (sinusoidal part precomputed in the wrapper)
            te = _mish(_mm(temb_ref[b], p1w_ref[...]) + p1b_ref[...])
            te = _mm(te, p2w_ref[...]) + p2b_ref[...]                     # (1, H)

            # t_state_x = [ t | state[0:4] | contact(goal) | state[8:ex] | x ]
            cond_scr[b, 0:1, :] = te
            cond_scr[b, 1:5, :] = s[0:4, :]
            cond_scr[b, 5:9, :] = g
            if ex > 8:
                cond_scr[b, 9:1 + ex, :] = s[8:ex, :]
            cond_scr[b, 1 + ex:1 + ex + Tx, :] = xe

            # contact_embedding(locations) -> query stream for the transformer
            le = _conv3_mish(loc_raw_ref[b], c1w_ref, c1b_ref, pad=1, dil=1)
            le = _conv3_mish(le, c2w_ref, c2b_ref, pad=3, dil=3)
            le = _conv3_mish(le, c3w_ref, c3b_ref, pad=3, dil=3)          # (Lq, H)
            loc_scr[b] = le

    # ----------------- transformer layer `layer` (cross-attn + FF) ---------------
    Wq = wq_ref[0]; Wk = wk_ref[0]; Wv = wv_ref[0]        # (H, H) bf16
    Bq = bq_ref[0]; Bk = bk_ref[0]; Bv = bv_ref[0]        # (1, H) f32
    Wo = wo_ref[0]                                        # (nh, hd, H) bf16
    Bo = bo_ref[0]
    G1 = ln1w_ref[0]; Be1 = ln1b_ref[0]
    W1 = l1w_ref[0]; Wb1 = l1b_ref[0]
    W2 = l2w_ref[0]; Wb2 = l2b_ref[0]
    G2 = ln2w_ref[0]; Be2 = ln2b_ref[0]

    for b in range(B):
        xq = loc_scr[b]                                   # (Lq, H) f32
        cd = cond_scr[b]                                  # (Lk, H) f32
        # hoist scaling + bf16 casts out of the head loop
        qb = ((_mm(xq, Wq) + Bq) * scale).astype(jnp.bfloat16)   # (Lq, H)
        kb = (_mm(cd, Wk) + Bk).astype(jnp.bfloat16)             # (Lk, H)
        vb = (_mm(cd, Wv) + Bv).astype(jnp.bfloat16)             # (Lk, H)

        attn = None
        for h in range(nh):
            sl = slice(h * hd, (h + 1) * hd)
            qh = qb[:, sl]; kh = kb[:, sl]; vh = vb[:, sl]
            sc = lax.dot_general(qh, kh, (((1,), (1,)), ((), ())),
                                 preferred_element_type=jnp.float32)   # (Lq, Lk)
            sc = sc - jnp.max(sc, axis=-1, keepdims=True)
            p = jnp.exp(sc)
            p = p * pl.reciprocal(jnp.sum(p, axis=-1, keepdims=True), approx=True)
            oh = jnp.dot(p.astype(jnp.bfloat16), vh,
                         preferred_element_type=jnp.float32)            # (Lq, hd)
            # fold the out-projection into the head loop -> no lane-axis concat
            contrib = jnp.dot(oh.astype(jnp.bfloat16), Wo[h],
                              preferred_element_type=jnp.float32)       # (Lq, H)
            attn = contrib if attn is None else attn + contrib
        attn = attn + Bo

        y = _layernorm(xq + attn, G1, Be1)
        # _ff_block: linear2(dropout(relu(linear1(y)))) ; dropout is identity (eval)
        ff = jnp.maximum(_mm(y, W1) + Wb1, 0.0)
        ff = _mm(ff, W2) + Wb2
        y = _layernorm(y + ff, G2, Be2)
        loc_scr[b] = y

    # --------- last layer: V_logits -> softmax over sequence -> expectation -------
    @pl.when(layer == n_layers - 1)
    def _head():
        for b in range(B):
            lb = loc_scr[b]                                             # (Lq, H)
            logits = _mm(lb, vw_ref[...])                               # (Lq, O)
            m = jnp.max(logits, axis=0, keepdims=True)                  # softmax over seq
            p = jnp.exp(logits - m)
            p = p * pl.reciprocal(jnp.sum(p, axis=0, keepdims=True), approx=True)
            # expectation[o, c] = sum_q p[q, o] * locations_copy[q, c]
            e = lax.dot_general(p, loc_raw_ref[b], (((0,), (0,)), ((), ())),
                                preferred_element_type=jnp.float32)     # (O, 3)
            out_ref[b] = e.astype(out_ref.dtype)

    # TODO(synk): self_conditioning path, fill_logits/-inf concat, max_probs /
    # pointers / selected side-effect state and return_logits=True branch are not
    # materialized; the module's default return value (expectation) is reproduced.


# --------------------------------- wrapper ------------------------------------

def forward(params, x, t, condition, exclude_first, nh, H, n_layers):
    B, Tx, _ = x.shape
    cond = condition.reshape(B, -1, 3)                    # b (l c) -> b l c
    state = cond[:, :exclude_first, :]
    locations = cond[:, exclude_first:, :]                # also = locations_copy
    goal = cond[:, 4:8, :]
    Lq = locations.shape[1]
    Lk = 1 + exclude_first + Tx
    O = params['vw'].shape[1]

    # SinusoidalPosEmb(H) of t (tiny, precomputed outside the kernel)
    half = H // 2
    freqs = jnp.exp(jnp.arange(half, dtype=jnp.float32) *
                    -(math.log(10000.0) / (half - 1)))
    ang = t[:, None] * freqs[None, :]
    temb = jnp.concatenate([jnp.sin(ang), jnp.cos(ang)], axis=-1).reshape(B, 1, H)

    def full_spec(a):
        nd = a.ndim
        return pl.BlockSpec(a.shape, lambda l, nd=nd: (0,) * nd)

    def layer_spec(a):
        nd = a.ndim
        return pl.BlockSpec((1,) + tuple(a.shape[1:]),
                            lambda l, nd=nd: (l,) + (0,) * (nd - 1))

    data_args = [state, goal, locations, x, temb]
    emb_keys = ('s1_w', 's1_b', 's2_w', 's2_b', 'c1_w', 'c1_b', 'c2_w', 'c2_b',
                'c3_w', 'c3_b', 'x1_w', 'x1_b', 'x2_w', 'x2_b',
                'p1_w', 'p1_b', 'p2_w', 'p2_b', 'vw')
    layer_keys = ('wq', 'bq', 'wk', 'bk', 'wv', 'bv', 'wo', 'bo',
                  'ln1w', 'ln1b', 'l1w', 'l1b', 'l2w', 'l2b', 'ln2w', 'ln2b')
    emb_args = [params[k] for k in emb_keys]
    layer_args = [params[k] for k in layer_keys]

    in_specs = ([full_spec(a) for a in data_args]
                + [full_spec(a) for a in emb_args]
                + [layer_spec(a) for a in layer_args])

    return pl.pallas_call(
        functools.partial(_forward_kernel, nh=nh, n_layers=n_layers,
                          exclude_first=exclude_first),
        out_shape=jax.ShapeDtypeStruct((B, O, 3), jnp.float32),
        grid=(n_layers,),
        in_specs=in_specs,
        out_specs=pl.BlockSpec((B, O, 3), lambda l: (0, 0, 0)),
        scratch_shapes=[pltpu.VMEM((B, Lk, H), jnp.float32),   # t_state_x
                        pltpu.VMEM((B, Lq, H), jnp.float32)],  # locations stream
        compiler_params=pltpu.CompilerParams(
            dimension_semantics=("arbitrary",)),
    )(*data_args, *emb_args, *layer_args)


# ------------------------------ parameter init --------------------------------

def init_params(key, H, O, n_layers, nh):
    keys = iter(jax.random.split(key, 128))
    hd = H // nh

    def w(shape, scale=0.1):
        # matmul weights live in bf16 (MXU-native operands, f32 accumulation)
        return (jax.random.normal(next(keys), shape, jnp.float32) * scale
                ).astype(jnp.bfloat16)

    def bias(shape, scale=0.01):
        return jax.random.normal(next(keys), shape, jnp.float32) * scale

    params = dict(
        # conv weights stored tap-major: (K=3, Cin, Cout)
        s1_w=w((3, 3, 2 * H)), s1_b=bias((1, 2 * H)),
        s2_w=w((3, 2 * H, H)), s2_b=bias((1, H)),
        c1_w=w((3, 3, 2 * H)), c1_b=bias((1, 2 * H)),
        c2_w=w((3, 2 * H, H)), c2_b=bias((1, H)),
        c3_w=w((3, H, H)), c3_b=bias((1, H)),
        # x_embedding MLP
        x1_w=w((3, 2 * H)), x1_b=bias((1, 2 * H)),
        x2_w=w((2 * H, H)), x2_b=bias((1, H)),
        # pose_embedding MLP
        p1_w=w((H, 4 * H)), p1_b=bias((1, 4 * H)),
        p2_w=w((4 * H, H)), p2_b=bias((1, H)),
        # V_logits (no bias)
        vw=w((H, O)),
        # transformer blocks: stacked per-layer, q/k/v pre-split, out-proj per-head
        wq=w((n_layers, H, H)), bq=bias((n_layers, 1, H)),
        wk=w((n_layers, H, H)), bk=bias((n_layers, 1, H)),
        wv=w((n_layers, H, H)), bv=bias((n_layers, 1, H)),
        wo=w((n_layers, nh, hd, H)), bo=bias((n_layers, 1, H)),
        ln1w=jnp.ones((n_layers, 1, H), jnp.float32),
        ln1b=jnp.zeros((n_layers, 1, H), jnp.float32),
        l1w=w((n_layers, H, H)), l1b=bias((n_layers, 1, H)),
        l2w=w((n_layers, H, H)), l2b=bias((n_layers, 1, H)),
        ln2w=jnp.ones((n_layers, 1, H), jnp.float32),
        ln2b=jnp.zeros((n_layers, 1, H), jnp.float32),
    )
    return params


# ----------------------------------- main -------------------------------------

if __name__ == "__main__":
    H = 32                  # hidden_dim
    O = 16                  # output_length
    exclude_first = 8
    n_layers = 2
    nh = min(H // 8, 8)     # num_heads default from the module
    B = 2
    Tx = 16                 # length of x
    L = 24                  # condition sequence length (8 state + 16 locations)

    key = jax.random.PRNGKey(0)
    kp, kx, kt, kc = jax.random.split(key, 4)
    params = init_params(kp, H, O, n_layers, nh)

    x = jax.random.normal(kx, (B, Tx, 3), jnp.float32)
    t = jax.random.uniform(kt, (B,), jnp.float32) * 100.0
    condition = jax.random.normal(kc, (B, L * 3), jnp.float32)

    fwd = jax.jit(functools.partial(forward, exclude_first=exclude_first,
                                    nh=nh, H=H, n_layers=n_layers))
    out = fwd(params, x, t, condition)
    jax.block_until_ready(out)
    assert out.shape == (B, O, 3), out.shape
    assert bool(jnp.all(jnp.isfinite(out)))
    print("KERNEL_OK")
</pallas_src>

<mosaic_0001>
module attributes {stable_mosaic.version = 11 : i64} {
  func.func @_forward_kernel(%arg0: i32, %arg1: memref<2x8x3xf32, #tpu.memory_space<vmem>>, %arg2: memref<2x4x3xf32, #tpu.memory_space<vmem>>, %arg3: memref<2x16x3xf32, #tpu.memory_space<vmem>>, %arg4: memref<2x16x3xf32, #tpu.memory_space<vmem>>, %arg5: memref<2x1x32xf32, #tpu.memory_space<vmem>>, %arg6: memref<3x3x64xbf16, #tpu.memory_space<vmem>>, %arg7: memref<1x64xf32, #tpu.memory_space<vmem>>, %arg8: memref<3x64x32xbf16, #tpu.memory_space<vmem>>, %arg9: memref<1x32xf32, #tpu.memory_space<vmem>>, %arg10: memref<3x3x64xbf16, #tpu.memory_space<vmem>>, %arg11: memref<1x64xf32, #tpu.memory_space<vmem>>, %arg12: memref<3x64x32xbf16, #tpu.memory_space<vmem>>, %arg13: memref<1x32xf32, #tpu.memory_space<vmem>>, %arg14: memref<3x32x32xbf16, #tpu.memory_space<vmem>>, %arg15: memref<1x32xf32, #tpu.memory_space<vmem>>, %arg16: memref<3x64xbf16, #tpu.memory_space<vmem>>, %arg17: memref<1x64xf32, #tpu.memory_space<vmem>>, %arg18: memref<64x32xbf16, #tpu.memory_space<vmem>>, %arg19: memref<1x32xf32, #tpu.memory_space<vmem>>, %arg20: memref<32x128xbf16, #tpu.memory_space<vmem>>, %arg21: memref<1x128xf32, #tpu.memory_space<vmem>>, %arg22: memref<128x32xbf16, #tpu.memory_space<vmem>>, %arg23: memref<1x32xf32, #tpu.memory_space<vmem>>, %arg24: memref<32x16xbf16, #tpu.memory_space<vmem>>, %arg25: memref<1x32x32xbf16, #tpu.memory_space<vmem>>, %arg26: memref<1x1x32xf32, #tpu.memory_space<vmem>>, %arg27: memref<1x32x32xbf16, #tpu.memory_space<vmem>>, %arg28: memref<1x1x32xf32, #tpu.memory_space<vmem>>, %arg29: memref<1x32x32xbf16, #tpu.memory_space<vmem>>, %arg30: memref<1x1x32xf32, #tpu.memory_space<vmem>>, %arg31: memref<1x4x8x32xbf16, #tpu.memory_space<vmem>>, %arg32: memref<1x1x32xf32, #tpu.memory_space<vmem>>, %arg33: memref<1x1x32xf32, #tpu.memory_space<vmem>>, %arg34: memref<1x1x32xf32, #tpu.memory_space<vmem>>, %arg35: memref<1x32x32xbf16, #tpu.memory_space<vmem>>, %arg36: memref<1x1x32xf32, #tpu.memory_space<vmem>>, %arg37: memref<1x32x32xbf16, #tpu.memory_space<vmem>>, %arg38: memref<1x1x32xf32, #tpu.memory_space<vmem>>, %arg39: memref<1x1x32xf32, #tpu.memory_space<vmem>>, %arg40: memref<1x1x32xf32, #tpu.memory_space<vmem>>, %arg41: memref<2x16x3xf32, #tpu.memory_space<vmem>>, %arg42: memref<2x25x32xf32, #tpu.memory_space<vmem>>, %arg43: memref<2x16x32xf32, #tpu.memory_space<vmem>>) attributes {dimension_semantics = [#tpu.dimension_semantics<arbitrary>], iteration_bounds = array<i64: 2>, scalar_prefetch = 0 : i64, scratch_operands = 2 : i64, tpu.core_type = #tpu.core_type<tc>, window_params = [{pipeline_mode = #tpu.pipeline_mode<synchronous>, transform_indices = @transform_0, window_bounds = array<i64: 2, 8, 3>}, {pipeline_mode = #tpu.pipeline_mode<synchronous>, transform_indices = @transform_1, window_bounds = array<i64: 2, 4, 3>}, {pipeline_mode = #tpu.pipeline_mode<synchronous>, transform_indices = @transform_2, window_bounds = array<i64: 2, 16, 3>}, {pipeline_mode = #tpu.pipeline_mode<synchronous>, transform_indices = @transform_3, window_bounds = array<i64: 2, 16, 3>}, {pipeline_mode = #tpu.pipeline_mode<synchronous>, transform_indices = @transform_4, window_bounds = array<i64: 2, 1, 32>}, {pipeline_mode = #tpu.pipeline_mode<synchronous>, transform_indices = @transform_5, window_bounds = array<i64: 3, 3, 64>}, {pipeline_mode = #tpu.pipeline_mode<synchronous>, transform_indices = @transform_6, window_bounds = array<i64: 1, 64>}, {pipeline_mode = #tpu.pipeline_mode<synchronous>, transform_indices = @transform_7, window_bounds = array<i64: 3, 64, 32>}, {pipeline_mode = #tpu.pipeline_mode<synchronous>, transform_indices = @transform_8, window_bounds = array<i64: 1, 32>}, {pipeline_mode = #tpu.pipeline_mode<synchronous>, transform_indices = @transform_9, window_bounds = array<i64: 3, 3, 64>}, {pipeline_mode = #tpu.pipeline_mode<synchronous>, transform_indices = @transform_10, window_bounds = array<i64: 1, 64>}, {pipeline_mode = #tpu.pipeline_mode<synchronous>, transform_indices = @transform_11, window_bounds = array<i64: 3, 64, 32>}, {pipeline_mode = #tpu.pipeline_mode<synchronous>, transform_indices = @transform_12, window_bounds = array<i64: 1, 32>}, {pipeline_mode = #tpu.pipeline_mode<synchronous>, transform_indices = @transform_13, window_bounds = array<i64: 3, 32, 32>}, {pipeline_mode = #tpu.pipeline_mode<synchronous>, transform_indices = @transform_14, window_bounds = array<i64: 1, 32>}, {pipeline_mode = #tpu.pipeline_mode<synchronous>, transform_indices = @transform_15, window_bounds = array<i64: 3, 64>}, {pipeline_mode = #tpu.pipeline_mode<synchronous>, transform_indices = @transform_16, window_bounds = array<i64: 1, 64>}, {pipeline_mode = #tpu.pipeline_mode<synchronous>, transform_indices = @transform_17, window_bounds = array<i64: 64, 32>}, {pipeline_mode = #tpu.pipeline_mode<synchronous>, transform_indices = @transform_18, window_bounds = array<i64: 1, 32>}, {pipeline_mode = #tpu.pipeline_mode<synchronous>, transform_indices = @transform_19, window_bounds = array<i64: 32, 128>}, {pipeline_mode = #tpu.pipeline_mode<synchronous>, transform_indices = @transform_20, window_bounds = array<i64: 1, 128>}, {pipeline_mode = #tpu.pipeline_mode<synchronous>, transform_indices = @transform_21, window_bounds = array<i64: 128, 32>}, {pipeline_mode = #tpu.pipeline_mode<synchronous>, transform_indices = @transform_22, window_bounds = array<i64: 1, 32>}, {pipeline_mode = #tpu.pipeline_mode<synchronous>, transform_indices = @transform_23, window_bounds = array<i64: 32, 16>}, {transform_indices = @transform_24, window_bounds = array<i64: 1, 32, 32>}, {transform_indices = @transform_25, window_bounds = array<i64: 1, 1, 32>}, {transform_indices = @transform_26, window_bounds = array<i64: 1, 32, 32>}, {transform_indices = @transform_27, window_bounds = array<i64: 1, 1, 32>}, {transform_indices = @transform_28, window_bounds = array<i64: 1, 32, 32>}, {transform_indices = @transform_29, window_bounds = array<i64: 1, 1, 32>}, {transform_indices = @transform_30, window_bounds = array<i64: 1, 4, 8, 32>}, {transform_indices = @transform_31, window_bounds = array<i64: 1, 1, 32>}, {transform_indices = @transform_32, window_bounds = array<i64: 1, 1, 32>}, {transform_indices = @transform_33, window_bounds = array<i64: 1, 1, 32>}, {transform_indices = @transform_34, window_bounds = array<i64: 1, 32, 32>}, {transform_indices = @transform_35, window_bounds = array<i64: 1, 1, 32>}, {transform_indices = @transform_36, window_bounds = array<i64: 1, 32, 32>}, {transform_indices = @transform_37, window_bounds = array<i64: 1, 1, 32>}, {transform_indices = @transform_38, window_bounds = array<i64: 1, 1, 32>}, {transform_indices = @transform_39, window_bounds = array<i64: 1, 1, 32>}, {pipeline_mode = #tpu.pipeline_mode<synchronous>, transform_indices = @transform_40, window_bounds = array<i64: 2, 16, 3>}]} {
    %c0_i32 = arith.constant 0 : i32
    %0 = arith.cmpi eq, %arg0, %c0_i32 : i32
    %1 = arith.extui %0 : i1 to i32
    %c0_i32_0 = arith.constant 0 : i32
    %2 = arith.cmpi ne, %1, %c0_i32_0 : i32
    scf.if %2 {
      %c0_140 = arith.constant 0 : index
      %c0_141 = arith.constant 0 : index
      %c0_142 = arith.constant 0 : index
      %368 = vector.load %arg1[%c0_140, %c0_141, %c0_142] : memref<2x8x3xf32, #tpu.memory_space<vmem>>, vector<1x8x3xf32>
      %369 = vector.shape_cast %368 : vector<1x8x3xf32> to vector<8x3xf32>
      %cst_143 = arith.constant 0.000000e+00 : f32
      %370 = vector.broadcast %cst_143 : f32 to vector<1x3xf32>
      %371 = tpu.concatenate %370, %369, %370 in 0 : vector<1x3xf32>, vector<8x3xf32>, vector<1x3xf32> -> vector<10x3xf32>
      %372 = arith.truncf %371 : vector<10x3xf32> to vector<10x3xbf16>
      %c0_144 = arith.constant 0 : index
      %c0_145 = arith.constant 0 : index
      %373 = vector.load %arg7[%c0_144, %c0_145] : memref<1x64xf32, #tpu.memory_space<vmem>>, vector<1x64xf32>
      %374 = vector.extract_strided_slice %372 {offsets = [0, 0], sizes = [8, 3], strides = [1, 1]} : vector<10x3xbf16> to vector<8x3xbf16>
      %c0_146 = arith.constant 0 : index
      %c0_147 = arith.constant 0 : index
      %c0_148 = arith.constant 0 : index
      %375 = vector.load %arg6[%c0_146, %c0_147, %c0_148] : memref<3x3x64xbf16, #tpu.memory_space<vmem>>, vector<1x3x64xbf16>
      %376 = vector.shape_cast %375 : vector<1x3x64xbf16> to vector<3x64xbf16>
      %cst_149 = arith.constant dense<0.000000e+00> : vector<8x64xf32>
      %377 = tpu.matmul %374, %376, %cst_149 {dimension_numbers = #tpu.dot_dimension_numbers<[1], [0], [0], [1], [0, 0, 1, 1], [], []>} : vector<8x3xbf16>, vector<3x64xbf16>, vector<8x64xf32> -> vector<8x64xf32>
      %378 = vector.broadcast %373 : vector<1x64xf32> to vector<8x64xf32>
      %379 = arith.addf %378, %377 : vector<8x64xf32>
      %380 = vector.extract_strided_slice %372 {offsets = [1, 0], sizes = [8, 3], strides = [1, 1]} : vector<10x3xbf16> to vector<8x3xbf16>
      %c1_150 = arith.constant 1 : index
      %c0_151 = arith.constant 0 : index
      %c0_152 = arith.constant 0 : index
      %381 = vector.load %arg6[%c1_150, %c0_151, %c0_152] : memref<3x3x64xbf16, #tpu.memory_space<vmem>>, vector<1x3x64xbf16>
      %382 = vector.shape_cast %381 : vector<1x3x64xbf16> to vector<3x64xbf16>
      %cst_153 = arith.constant dense<0.000000e+00> : vector<8x64xf32>
      %383 = tpu.matmul %380, %382, %cst_153 {dimension_numbers = #tpu.dot_dimension_numbers<[1], [0], [0], [1], [0, 0, 1, 1], [], []>} : vector<8x3xbf16>, vector<3x64xbf16>, vector<8x64xf32> -> vector<8x64xf32>
      %384 = arith.addf %379, %383 : vector<8x64xf32>
      %385 = vector.extract_strided_slice %372 {offsets = [2, 0], sizes = [8, 3], strides = [1, 1]} : vector<10x3xbf16> to vector<8x3xbf16>
      %c2 = arith.constant 2 : index
      %c0_154 = arith.constant 0 : index
      %c0_155 = arith.constant 0 : index
      %386 = vector.load %arg6[%c2, %c0_154, %c0_155] : memref<3x3x64xbf16, #tpu.memory_space<vmem>>, vector<1x3x64xbf16>
      %387 = vector.shape_cast %386 : vector<1x3x64xbf16> to vector<3x64xbf16>
      %cst_156 = arith.constant dense<0.000000e+00> : vector<8x64xf32>
      %388 = tpu.matmul %385, %387, %cst_156 {dimension_numbers = #tpu.dot_dimension_numbers<[1], [0], [0], [1], [0, 0, 1, 1], [], []>} : vector<8x3xbf16>, vector<3x64xbf16>, vector<8x64xf32> -> vector<8x64xf32>
      %389 = arith.addf %384, %388 : vector<8x64xf32>
      %cst_157 = arith.constant 0.000000e+00 : f32
      %390 = vector.broadcast %cst_157 : f32 to vector<8x64xf32>
      %391 = arith.maximumf %389, %390 : vector<8x64xf32>
      %392 = vector.broadcast %cst_157 : f32 to vector<8x64xf32>
      %393 = arith.subf %389, %392 : vector<8x64xf32>
      %394 = arith.cmpf one, %393, %393 : vector<8x64xf32>
      %395 = vector.broadcast %cst_157 : f32 to vector<8x64xf32>
      %396 = arith.addf %389, %395 : vector<8x64xf32>
      %397 = math.absf %393 : vector<8x64xf32>
      %cst_158 = arith.constant 0.000000e+00 : f32
      %398 = vector.broadcast %cst_158 : f32 to vector<8x64xf32>
      %399 = arith.subf %398, %397 : vector<8x64xf32>
      %400 = math.exp %399 : vector<8x64xf32>
      %401 = math.log1p %400 : vector<8x64xf32>
      %402 = arith.addf %391, %401 : vector<8x64xf32>
      %403 = arith.select %394, %396, %402 : vector<8x64xi1>, vector<8x64xf32>
      %404 = math.tanh %403 : vector<8x64xf32>
      %405 = arith.mulf %389, %404 : vector<8x64xf32>
      %cst_159 = arith.constant 0.000000e+00 : f32
      %406 = vector.broadcast %cst_159 : f32 to vector<2x64xf32>
      %407 = tpu.concatenate %406, %405, %406 in 0 : vector<2x64xf32>, vector<8x64xf32>, vector<2x64xf32> -> vector<12x64xf32>
      %408 = arith.truncf %407 : vector<12x64xf32> to vector<12x64xbf16>
      %c0_160 = arith.constant 0 : index
      %c0_161 = arith.constant 0 : index
      %409 = vector.load %arg9[%c0_160, %c0_161] : memref<1x32xf32, #tpu.memory_space<vmem>>, vector<1x32xf32>
      %410 = vector.extract_strided_slice %408 {offsets = [0, 0], sizes = [8, 64], strides = [1, 1]} : vector<12x64xbf16> to vector<8x64xbf16>
      %c0_162 = arith.constant 0 : index
      %c0_163 = arith.constant 0 : index
      %c0_164 = arith.constant 0 : index
      %411 = vector.load %arg8[%c0_162, %c0_163, %c0_164] : memref<3x64x32xbf16, #tpu.memory_space<vmem>>, vector<1x64x32xbf16>
      %412 = vector.shape_cast %411 : vector<1x64x32xbf16> to vector<64x32xbf16>
      %cst_165 = arith.constant dense<0.000000e+00> : vector<8x32xf32>
      %413 = tpu.matmul %410, %412, %cst_165 {dimension_numbers = #tpu.dot_dimension_numbers<[1], [0], [0], [1], [0, 0, 1, 1], [], []>} : vector<8x64xbf16>, vector<64x32xbf16>, vector<8x32xf32> -> vector<8x32xf32>
      %414 = vector.broadcast %409 : vector<1x32xf32> to vector<8x32xf32>
      %415 = arith.addf %414, %413 : vector<8x32xf32>
      %416 = vector.extract_strided_slice %408 {offsets = [2, 0], sizes = [8, 64], strides = [1, 1]} : vector<12x64xbf16> to vector<8x64xbf16>
      %c1_166 = arith.constant 1 : index
      %c0_167 = arith.constant 0 : index
      %c0_168 = arith.constant 0 : index
      %417 = vector.load %arg8[%c1_166, %c0_167, %c0_168] : memref<3x64x32xbf16, #tpu.memory_space<vmem>>, vector<1x64x32xbf16>
      %418 = vector.shape_cast %417 : vector<1x64x32xbf16> to vector<64x32xbf16>
      %cst_169 = arith.constant dense<0.000000e+00> : vector<8x32xf32>
      %419 = tpu.matmul %416, %418, %cst_169 {dimension_numbers = #tpu.dot_dimension_numbers<[1], [0], [0], [1], [0, 0, 1, 1], [], []>} : vector<8x64xbf16>, vector<64x32xbf16>, vector<8x32xf32> -> vector<8x32xf32>
      %420 = arith.addf %415, %419 : vector<8x32xf32>
      %421 = vector.extract_strided_slice %408 {offsets = [4, 0], sizes = [8, 64], strides = [1, 1]} : vector<12x64xbf16> to vector<8x64xbf16>
      %c2_170 = arith.constant 2 : index
      %c0_171 = arith.constant 0 : index
      %c0_172 = arith.constant 0 : index
      %422 = vector.load %arg8[%c2_170, %c0_171, %c0_172] : memref<3x64x32xbf16, #tpu.memory_space<vmem>>, vector<1x64x32xbf16>
      %423 = vector.shape_cast %422 : vector<1x64x32xbf16> to vector<64x32xbf16>
      %cst_173 = arith.constant dense<0.000000e+00> : vector<8x32xf32>
      %424 = tpu.matmul %421, %423, %cst_173 {dimension_numbers = #tpu.dot_dimension_numbers<[1], [0], [0], [1], [0, 0, 1, 1], [], []>} : vector<8x64xbf16>, vector<64x32xbf16>, vector<8x32xf32> -> vector<8x32xf32>
      %425 = arith.addf %420, %424 : vector<8x32xf32>
      %cst_174 = arith.constant 0.000000e+00 : f32
      %426 = vector.broadcast %cst_174 : f32 to vector<8x32xf32>
      %427 = arith.maximumf %425, %426 : vector<8x32xf32>
      %428 = vector.broadcast %cst_174 : f32 to vector<8x32xf32>
      %429 = arith.subf %425, %428 : vector<8x32xf32>
      %430 = arith.cmpf one, %429, %429 : vector<8x32xf32>
      %431 = vector.broadcast %cst_174 : f32 to vector<8x32xf32>
      %432 = arith.addf %425, %431 : vector<8x32xf32>
      %433 = math.absf %429 : vector<8x32xf32>
      %cst_175 = arith.constant 0.000000e+00 : f32
      %434 = vector.broadcast %cst_175 : f32 to vector<8x32xf32>
      %435 = arith.subf %434, %433 : vector<8x32xf32>
      %436 = math.exp %435 : vector<8x32xf32>
      %437 = math.log1p %436 : vector<8x32xf32>
      %438 = arith.addf %427, %437 : vector<8x32xf32>
      %439 = arith.select %430, %432, %438 : vector<8x32xi1>, vector<8x32xf32>
      %440 = math.tanh %439 : vector<8x32xf32>
      %441 = arith.mulf %425, %440 : vector<8x32xf32>
      %c0_176 = arith.constant 0 : index
      %c0_177 = arith.constant 0 : index
      %c0_178 = arith.constant 0 : index
      %442 = vector.load %arg2[%c0_176, %c0_177, %c0_178] : memref<2x4x3xf32, #tpu.memory_space<vmem>>, vector<1x4x3xf32>
      %443 = vector.shape_cast %442 : vector<1x4x3xf32> to vector<4x3xf32>
      %cst_179 = arith.constant 0.000000e+00 : f32
      %444 = vector.broadcast %cst_179 : f32 to vector<1x3xf32>
      %445 = tpu.concatenate %444, %443, %444 in 0 : vector<1x3xf32>, vector<4x3xf32>, vector<1x3xf32> -> vector<6x3xf32>
      %446 = arith.truncf %445 : vector<6x3xf32> to vector<6x3xbf16>
      %c0_180 = arith.constant 0 : index
      %c0_181 = arith.constant 0 : index
      %447 = vector.load %arg11[%c0_180, %c0_181] : memref<1x64xf32, #tpu.memory_space<vmem>>, vector<1x64xf32>
      %448 = vector.extract_strided_slice %446 {offsets = [0, 0], sizes = [4, 3], strides = [1, 1]} : vector<6x3xbf16> to vector<4x3xbf16>
      %c0_182 = arith.constant 0 : index
      %c0_183 = arith.constant 0 : index
      %c0_184 = arith.constant 0 : index
      %449 = vector.load %arg10[%c0_182, %c0_183, %c0_184] : memref<3x3x64xbf16, #tpu.memory_space<vmem>>, vector<1x3x64xbf16>
      %450 = vector.shape_cast %449 : vector<1x3x64xbf16> to vector<3x64xbf16>
      %cst_185 = arith.constant dense<0.000000e+00> : vector<4x64xf32>
      %451 = tpu.matmul %448, %450, %cst_185 {dimension_numbers = #tpu.dot_dimension_numbers<[1], [0], [0], [1], [0, 0, 1, 1], [], []>} : vector<4x3xbf16>, vector<3x64xbf16>, vector<4x64xf32> -> vector<4x64xf32>
      %452 = vector.broadcast %447 : vector<1x64xf32> to vector<4x64xf32>
      %453 = arith.addf %452, %451 : vector<4x64xf32>
      %454 = vector.extract_strided_slice %446 {offsets = [1, 0], sizes = [4, 3], strides = [1, 1]} : vector<6x3xbf16> to vector<4x3xbf16>
      %c1_186 = arith.constant 1 : index
      %c0_187 = arith.constant 0 : index
      %c0_188 = arith.constant 0 : index
      %455 = vector.load %arg10[%c1_186, %c0_187, %c0_188] : memref<3x3x64xbf16, #tpu.memory_space<vmem>>, vector<1x3x64xbf16>
      %456 = vector.shape_cast %455 : vector<1x3x64xbf16> to vector<3x64xbf16>
      %cst_189 = arith.constant dense<0.000000e+00> : vector<4x64xf32>
      %457 = tpu.matmul %454, %456, %cst_189 {dimension_numbers = #tpu.dot_dimension_numbers<[1], [0], [0], [1], [0, 0, 1, 1], [], []>} : vector<4x3xbf16>, vector<3x64xbf16>, vector<4x64xf32> -> vector<4x64xf32>
      %458 = arith.addf %453, %457 : vector<4x64xf32>
      %459 = vector.extract_strided_slice %446 {offsets = [2, 0], sizes = [4, 3], strides = [1, 1]} : vector<6x3xbf16> to vector<4x3xbf16>
      %c2_190 = arith.constant 2 : index
      %c0_191 = arith.constant 0 : index
      %c0_192 = arith.constant 0 : index
      %460 = vector.load %arg10[%c2_190, %c0_191, %c0_192] : memref<3x3x64xbf16, #tpu.memory_space<vmem>>, vector<1x3x64xbf16>
      %461 = vector.shape_cast %460 : vector<1x3x64xbf16> to vector<3x64xbf16>
      %cst_193 = arith.constant dense<0.000000e+00> : vector<4x64xf32>
      %462 = tpu.matmul %459, %461, %cst_193 {dimension_numbers = #tpu.dot_dimension_numbers<[1], [0], [0], [1], [0, 0, 1, 1], [], []>} : vector<4x3xbf16>, vector<3x64xbf16>, vector<4x64xf32> -> vector<4x64xf32>
      %463 = arith.addf %458, %462 : vector<4x64xf32>
      %cst_194 = arith.constant 0.000000e+00 : f32
      %464 = vector.broadcast %cst_194 : f32 to vector<4x64xf32>
      %465 = arith.maximumf %463, %464 : vector<4x64xf32>
      %466 = vector.broadcast %cst_194 : f32 to vector<4x64xf32>
      %467 = arith.subf %463, %466 : vector<4x64xf32>
      %468 = arith.cmpf one, %467, %467 : vector<4x64xf32>
      %469 = vector.broadcast %cst_194 : f32 to vector<4x64xf32>
      %470 = arith.addf %463, %469 : vector<4x64xf32>
      %471 = math.absf %467 : vector<4x64xf32>
      %cst_195 = arith.constant 0.000000e+00 : f32
      %472 = vector.broadcast %cst_195 : f32 to vector<4x64xf32>
      %473 = arith.subf %472, %471 : vector<4x64xf32>
      %474 = math.exp %473 : vector<4x64xf32>
      %475 = math.log1p %474 : vector<4x64xf32>
      %476 = arith.addf %465, %475 : vector<4x64xf32>
      %477 = arith.select %468, %470, %476 : vector<4x64xi1>, vector<4x64xf32>
      %478 = math.tanh %477 : vector<4x64xf32>
      %479 = arith.mulf %463, %478 : vector<4x64xf32>
      %cst_196 = arith.constant 0.000000e+00 : f32
      %480 = vector.broadcast %cst_196 : f32 to vector<3x64xf32>
      %481 = tpu.concatenate %480, %479, %480 in 0 : vector<3x64xf32>, vector<4x64xf32>, vector<3x64xf32> -> vector<10x64xf32>
      %482 = arith.truncf %481 : vector<10x64xf32> to vector<10x64xbf16>
      %c0_197 = arith.constant 0 : index
      %c0_198 = arith.constant 0 : index
      %483 = vector.load %arg13[%c0_197, %c0_198] : memref<1x32xf32, #tpu.memory_space<vmem>>, vector<1x32xf32>
      %484 = vector.extract_strided_slice %482 {offsets = [0, 0], sizes = [4, 64], strides = [1, 1]} : vector<10x64xbf16> to vector<4x64xbf16>
      %c0_199 = arith.constant 0 : index
      %c0_200 = arith.constant 0 : index
      %c0_201 = arith.constant 0 : index
      %485 = vector.load %arg12[%c0_199, %c0_200, %c0_201] : memref<3x64x32xbf16, #tpu.memory_space<vmem>>, vector<1x64x32xbf16>
      %486 = vector.shape_cast %485 : vector<1x64x32xbf16> to vector<64x32xbf16>
      %cst_202 = arith.constant dense<0.000000e+00> : vector<4x32xf32>
      %487 = tpu.matmul %484, %486, %cst_202 {dimension_numbers = #tpu.dot_dimension_numbers<[1], [0], [0], [1], [0, 0, 1, 1], [], []>} : vector<4x64xbf16>, vector<64x32xbf16>, vector<4x32xf32> -> vector<4x32xf32>
      %488 = vector.broadcast %483 : vector<1x32xf32> to vector<4x32xf32>
      %489 = arith.addf %488, %487 : vector<4x32xf32>
      %490 = vector.extract_strided_slice %482 {offsets = [3, 0], sizes = [4, 64], strides = [1, 1]} : vector<10x64xbf16> to vector<4x64xbf16>
      %c1_203 = arith.constant 1 : index
      %c0_204 = arith.constant 0 : index
      %c0_205 = arith.constant 0 : index
      %491 = vector.load %arg12[%c1_203, %c0_204, %c0_205] : memref<3x64x32xbf16, #tpu.memory_space<vmem>>, vector<1x64x32xbf16>
      %492 = vector.shape_cast %491 : vector<1x64x32xbf16> to vector<64x32xbf16>
      %cst_206 = arith.constant dense<0.000000e+00> : vector<4x32xf32>
      %493 = tpu.matmul %490, %492, %cst_206 {dimension_numbers = #tpu.dot_dimension_numbers<[1], [0], [0], [1], [0, 0, 1, 1], [], []>} : vector<4x64xbf16>, vector<64x32xbf16>, vector<4x32xf32> -> vector<4x32xf32>
      %494 = arith.addf %489, %493 : vector<4x32xf32>
      %495 = vector.extract_strided_slice %482 {offsets = [6, 0], sizes = [4, 64], strides = [1, 1]} : vector<10x64xbf16> to vector<4x64xbf16>
      %c2_207 = arith.constant 2 : index
      %c0_208 = arith.constant 0 : index
      %c0_209 = arith.constant 0 : index
      %496 = vector.load %arg12[%c2_207, %c0_208, %c0_209] : memref<3x64x32xbf16, #tpu.memory_space<vmem>>, vector<1x64x32xbf16>
      %497 = vector.shape_cast %496 : vector<1x64x32xbf16> to vector<64x32xbf16>
      %cst_210 = arith.constant dense<0.000000e+00> : vector<4x32xf32>
      %498 = tpu.matmul %495, %497, %cst_210 {dimension_numbers = #tpu.dot_dimension_numbers<[1], [0], [0], [1], [0, 0, 1, 1], [], []>} : vector<4x64xbf16>, vector<64x32xbf16>, vector<4x32xf32> -> vector<4x32xf32>
      %499 = arith.addf %494, %498 : vector<4x32xf32>
      %cst_211 = arith.constant 0.000000e+00 : f32
      %500 = vector.broadcast %cst_211 : f32 to vector<4x32xf32>
      %501 = arith.maximumf %499, %500 : vector<4x32xf32>
      %502 = vector.broadcast %cst_211 : f32 to vector<4x32xf32>
      %503 = arith.subf %499, %502 : vector<4x32xf32>
      %504 = arith.cmpf one, %503, %503 : vector<4x32xf32>
      %505 = vector.broadcast %cst_211 : f32 to vector<4x32xf32>
      %506 = arith.addf %499, %505 : vector<4x32xf32>
      %507 = math.absf %503 : vector<4x32xf32>
      %cst_212 = arith.constant 0.000000e+00 : f32
      %508 = vector.broadcast %cst_212 : f32 to vector<4x32xf32>
      %509 = arith.subf %508, %507 : vector<4x32xf32>
      %510 = math.exp %509 : vector<4x32xf32>
      %511 = math.log1p %510 : vector<4x32xf32>
      %512 = arith.addf %501, %511 : vector<4x32xf32>
      %513 = arith.select %504, %506, %512 : vector<4x32xi1>, vector<4x32xf32>
      %514 = math.tanh %513 : vector<4x32xf32>
      %515 = arith.mulf %499, %514 : vector<4x32xf32>
      %cst_213 = arith.constant 0.000000e+00 : f32
      %516 = vector.broadcast %cst_213 : f32 to vector<3x32xf32>
      %517 = tpu.concatenate %516, %515, %516 in 0 : vector<3x32xf32>, vector<4x32xf32>, vector<3x32xf32> -> vector<10x32xf32>
      %518 = arith.truncf %517 : vector<10x32xf32> to vector<10x32xbf16>
      %c0_214 = arith.constant 0 : index
      %c0_215 = arith.constant 0 : index
      %519 = vector.load %arg15[%c0_214, %c0_215] : memref<1x32xf32, #tpu.memory_space<vmem>>, vector<1x32xf32>
      %520 = vector.extract_strided_slice %518 {offsets = [0, 0], sizes = [4, 32], strides = [1, 1]} : vector<10x32xbf16> to vector<4x32xbf16>
      %c0_216 = arith.constant 0 : index
      %c0_217 = arith.constant 0 : index
      %c0_218 = arith.constant 0 : index
      %521 = vector.load %arg14[%c0_216, %c0_217, %c0_218] : memref<3x32x32xbf16, #tpu.memory_space<vmem>>, vector<1x32x32xbf16>
      %522 = vector.shape_cast %521 : vector<1x32x32xbf16> to vector<32x32xbf16>
      %cst_219 = arith.constant dense<0.000000e+00> : vector<4x32xf32>
      %523 = tpu.matmul %520, %522, %cst_219 {dimension_numbers = #tpu.dot_dimension_numbers<[1], [0], [0], [1], [0, 0, 1, 1], [], []>} : vector<4x32xbf16>, vector<32x32xbf16>, vector<4x32xf32> -> vector<4x32xf32>
      %524 = vector.broadcast %519 : vector<1x32xf32> to vector<4x32xf32>
      %525 = arith.addf %524, %523 : vector<4x32xf32>
      %526 = vector.extract_strided_slice %518 {offsets = [3, 0], sizes = [4, 32], strides = [1, 1]} : vector<10x32xbf16> to vector<4x32xbf16>
      %c1_220 = arith.constant 1 : index
      %c0_221 = arith.constant 0 : index
      %c0_222 = arith.constant 0 : index
      %527 = vector.load %arg14[%c1_220, %c0_221, %c0_222] : memref<3x32x32xbf16, #tpu.memory_space<vmem>>, vector<1x32x32xbf16>
      %528 = vector.shape_cast %527 : vector<1x32x32xbf16> to vector<32x32xbf16>
      %cst_223 = arith.constant dense<0.000000e+00> : vector<4x32xf32>
      %529 = tpu.matmul %526, %528, %cst_223 {dimension_numbers = #tpu.dot_dimension_numbers<[1], [0], [0], [1], [0, 0, 1, 1], [], []>} : vector<4x32xbf16>, vector<32x32xbf16>, vector<4x32xf32> -> vector<4x32xf32>
      %530 = arith.addf %525, %529 : vector<4x32xf32>
      %531 = vector.extract_strided_slice %518 {offsets = [6, 0], sizes = [4, 32], strides = [1, 1]} : vector<10x32xbf16> to vector<4x32xbf16>
      %c2_224 = arith.constant 2 : index
      %c0_225 = arith.constant 0 : index
      %c0_226 = arith.constant 0 : index
      %532 = vector.load %arg14[%c2_224, %c0_225, %c0_226] : memref<3x32x32xbf16, #tpu.memory_space<vmem>>, vector<1x32x32xbf16>
      %533 = vector.shape_cast %532 : vector<1x32x32xbf16> to vector<32x32xbf16>
      %cst_227 = arith.constant dense<0.000000e+00> : vector<4x32xf32>
      %534 = tpu.matmul %531, %533, %cst_227 {dimension_numbers = #tpu.dot_dimension_numbers<[1], [0], [0], [1], [0, 0, 1, 1], [], []>} : vector<4x32xbf16>, vector<32x32xbf16>, vector<4x32xf32> -> vector<4x32xf32>
      %535 = arith.addf %530, %534 : vector<4x32xf32>
      %cst_228 = arith.constant 0.000000e+00 : f32
      %536 = vector.broadcast %cst_228 : f32 to vector<4x32xf32>
      %537 = arith.maximumf %535, %536 : vector<4x32xf32>
      %538 = vector.broadcast %cst_228 : f32 to vector<4x32xf32>
      %539 = arith.subf %535, %538 : vector<4x32xf32>
      %540 = arith.cmpf one, %539, %539 : vector<4x32xf32>
      %541 = vector.broadcast %cst_228 : f32 to vector<4x32xf32>
      %542 = arith.addf %535, %541 : vector<4x32xf32>
      %543 = math.absf %539 : vector<4x32xf32>
      %cst_229 = arith.constant 0.000000e+00 : f32
      %544 = vector.broadcast %cst_229 : f32 to vector<4x32xf32>
      %545 = arith.subf %544, %543 : vector<4x32xf32>
      %546 = math.exp %545 : vector<4x32xf32>
      %547 = math.log1p %546 : vector<4x32xf32>
      %548 = arith.addf %537, %547 : vector<4x32xf32>
      %549 = arith.select %540, %542, %548 : vector<4x32xi1>, vector<4x32xf32>
      %550 = math.tanh %549 : vector<4x32xf32>
      %551 = arith.mulf %535, %550 : vector<4x32xf32>
      %c0_230 = arith.constant 0 : index
      %c0_231 = arith.constant 0 : index
      %c0_232 = arith.constant 0 : index
      %552 = vector.load %arg4[%c0_230, %c0_231, %c0_232] : memref<2x16x3xf32, #tpu.memory_space<vmem>>, vector<1x16x3xf32>
      %553 = vector.shape_cast %552 : vector<1x16x3xf32> to vector<16x3xf32>
      %c0_233 = arith.constant 0 : index
      %c0_234 = arith.constant 0 : index
      %554 = vector.load %arg16[%c0_233, %c0_234] : memref<3x64xbf16, #tpu.memory_space<vmem>>, vector<3x64xbf16>
      %555 = arith.truncf %553 : vector<16x3xf32> to vector<16x3xbf16>
      %cst_235 = arith.constant dense<0.000000e+00> : vector<16x64xf32>
      %556 = tpu.matmul %555, %554, %cst_235 {dimension_numbers = #tpu.dot_dimension_numbers<[1], [0], [0], [1], [0, 0, 1, 1], [], []>} : vector<16x3xbf16>, vector<3x64xbf16>, vector<16x64xf32> -> vector<16x64xf32>
      %c0_236 = arith.constant 0 : index
      %c0_237 = arith.constant 0 : index
      %557 = vector.load %arg17[%c0_236, %c0_237] : memref<1x64xf32, #tpu.memory_space<vmem>>, vector<1x64xf32>
      %558 = vector.broadcast %557 : vector<1x64xf32> to vector<16x64xf32>
      %559 = arith.addf %556, %558 : vector<16x64xf32>
      %cst_238 = arith.constant 0.000000e+00 : f32
      %560 = vector.broadcast %cst_238 : f32 to vector<16x64xf32>
      %561 = arith.maximumf %559, %560 : vector<16x64xf32>
      %562 = vector.broadcast %cst_238 : f32 to vector<16x64xf32>
      %563 = arith.subf %559, %562 : vector<16x64xf32>
      %564 = arith.cmpf one, %563, %563 : vector<16x64xf32>
      %565 = vector.broadcast %cst_238 : f32 to vector<16x64xf32>
      %566 = arith.addf %559, %565 : vector<16x64xf32>
      %567 = math.absf %563 : vector<16x64xf32>
      %cst_239 = arith.constant 0.000000e+00 : f32
      %568 = vector.broadcast %cst_239 : f32 to vector<16x64xf32>
      %569 = arith.subf %568, %567 : vector<16x64xf32>
      %570 = math.exp %569 : vector<16x64xf32>
      %571 = math.log1p %570 : vector<16x64xf32>
      %572 = arith.addf %561, %571 : vector<16x64xf32>
      %573 = arith.select %564, %566, %572 : vector<16x64xi1>, vector<16x64xf32>
      %574 = math.tanh %573 : vector<16x64xf32>
      %575 = arith.mulf %559, %574 : vector<16x64xf32>
      %c0_240 = arith.constant 0 : index
      %c0_241 = arith.constant 0 : index
      %576 = vector.load %arg18[%c0_240, %c0_241] : memref<64x32xbf16, #tpu.memory_space<vmem>>, vector<64x32xbf16>
      %577 = arith.truncf %575 : vector<16x64xf32> to vector<16x64xbf16>
      %cst_242 = arith.constant dense<0.000000e+00> : vector<16x32xf32>
      %578 = tpu.matmul %577, %576, %cst_242 {dimension_numbers = #tpu.dot_dimension_numbers<[1], [0], [0], [1], [0, 0, 1, 1], [], []>} : vector<16x64xbf16>, vector<64x32xbf16>, vector<16x32xf32> -> vector<16x32xf32>
      %c0_243 = arith.constant 0 : index
      %c0_244 = arith.constant 0 : index
      %579 = vector.load %arg19[%c0_243, %c0_244] : memref<1x32xf32, #tpu.memory_space<vmem>>, vector<1x32xf32>
      %580 = vector.broadcast %579 : vector<1x32xf32> to vector<16x32xf32>
      %581 = arith.addf %578, %580 : vector<16x32xf32>
      %cst_245 = arith.constant 0.000000e+00 : f32
      %582 = vector.broadcast %cst_245 : f32 to vector<16x32xf32>
      %583 = arith.maximumf %581, %582 : vector<16x32xf32>
      %584 = vector.broadcast %cst_245 : f32 to vector<16x32xf32>
      %585 = arith.subf %581, %584 : vector<16x32xf32>
      %586 = arith.cmpf one, %585, %585 : vector<16x32xf32>
      %587 = vector.broadcast %cst_245 : f32 to vector<16x32xf32>
      %588 = arith.addf %581, %587 : vector<16x32xf32>
      %589 = math.absf %585 : vector<16x32xf32>
      %cst_246 = arith.constant 0.000000e+00 : f32
      %590 = vector.broadcast %cst_246 : f32 to vector<16x32xf32>
      %591 = arith.subf %590, %589 : vector<16x32xf32>
      %592 = math.exp %591 : vector<16x32xf32>
      %593 = math.log1p %592 : vector<16x32xf32>
      %594 = arith.addf %583, %593 : vector<16x32xf32>
      %595 = arith.select %586, %588, %594 : vector<16x32xi1>, vector<16x32xf32>
      %596 = math.tanh %595 : vector<16x32xf32>
      %597 = arith.mulf %581, %596 : vector<16x32xf32>
      %c0_247 = arith.constant 0 : index
      %c0_248 = arith.constant 0 : index
      %c0_249 = arith.constant 0 : index
      %598 = vector.load %arg5[%c0_247, %c0_248, %c0_249] : memref<2x1x32xf32, #tpu.memory_space<vmem>>, vector<1x1x32xf32>
      %599 = vector.shape_cast %598 : vector<1x1x32xf32> to vector<1x32xf32>
      %c0_250 = arith.constant 0 : index
      %c0_251 = arith.constant 0 : index
      %600 = vector.load %arg20[%c0_250, %c0_251] : memref<32x128xbf16, #tpu.memory_space<vmem>>, vector<32x128xbf16>
      %601 = arith.truncf %599 : vector<1x32xf32> to vector<1x32xbf16>
      %cst_252 = arith.constant dense<0.000000e+00> : vector<1x128xf32>
      %602 = tpu.matmul %601, %600, %cst_252 {dimension_numbers = #tpu.dot_dimension_numbers<[1], [0], [0], [1], [0, 0, 1, 1], [], []>} : vector<1x32xbf16>, vector<32x128xbf16>, vector<1x128xf32> -> vector<1x128xf32>
      %c0_253 = arith.constant 0 : index
      %c0_254 = arith.constant 0 : index
      %603 = vector.load %arg21[%c0_253, %c0_254] : memref<1x128xf32, #tpu.memory_space<vmem>>, vector<1x128xf32>
      %604 = arith.addf %602, %603 : vector<1x128xf32>
      %cst_255 = arith.constant 0.000000e+00 : f32
      %605 = vector.broadcast %cst_255 : f32 to vector<1x128xf32>
      %606 = arith.maximumf %604, %605 : vector<1x128xf32>
      %607 = vector.broadcast %cst_255 : f32 to vector<1x128xf32>
      %608 = arith.subf %604, %607 : vector<1x128xf32>
      %609 = arith.cmpf one, %608, %608 : vector<1x128xf32>
      %610 = vector.broadcast %cst_255 : f32 to vector<1x128xf32>
      %611 = arith.addf %604, %610 : vector<1x128xf32>
      %612 = math.absf %608 : vector<1x128xf32>
      %cst_256 = arith.constant 0.000000e+00 : f32
      %613 = vector.broadcast %cst_256 : f32 to vector<1x128xf32>
      %614 = arith.subf %613, %612 : vector<1x128xf32>
      %615 = math.exp %614 : vector<1x128xf32>
      %616 = math.log1p %615 : vector<1x128xf32>
      %617 = arith.addf %606, %616 : vector<1x128xf32>
      %618 = arith.select %609, %611, %617 : vector<1x128xi1>, vector<1x128xf32>
      %619 = math.tanh %618 : vector<1x128xf32>
      %620 = arith.mulf %604, %619 : vector<1x128xf32>
      %c0_257 = arith.constant 0 : index
      %c0_258 = arith.constant 0 : index
      %621 = vector.load %arg22[%c0_257, %c0_258] : memref<128x32xbf16, #tpu.memory_space<vmem>>, vector<128x32xbf16>
      %622 = arith.truncf %620 : vector<1x128xf32> to vector<1x128xbf16>
      %cst_259 = arith.constant dense<0.000000e+00> : vector<1x32xf32>
      %623 = tpu.matmul %622, %621, %cst_259 {dimension_numbers = #tpu.dot_dimension_numbers<[1], [0], [0], [1], [0, 0, 1, 1], [], []>} : vector<1x128xbf16>, vector<128x32xbf16>, vector<1x32xf32> -> vector<1x32xf32>
      %c0_260 = arith.constant 0 : index
      %c0_261 = arith.constant 0 : index
      %624 = vector.load %arg23[%c0_260, %c0_261] : memref<1x32xf32, #tpu.memory_space<vmem>>, vector<1x32xf32>
      %625 = arith.addf %623, %624 : vector<1x32xf32>
      %c0_262 = arith.constant 0 : index
      %c0_263 = arith.constant 0 : index
      %c0_264 = arith.constant 0 : index
      %626 = vector.load %arg42[%c0_262, %c0_263, %c0_264] : memref<2x25x32xf32, #tpu.memory_space<vmem>>, vector<1x1x32xf32>
      %627 = vector.shape_cast %626 : vector<1x1x32xf32> to vector<1x32xf32>
      %628 = vector.shape_cast %625 : vector<1x32xf32> to vector<1x1x32xf32>
      tpu.vector_store %arg42[%c0_262, %c0_263, %c0_264], %628 {strides = array<i32>} : memref<2x25x32xf32, #tpu.memory_space<vmem>>, vector<1x1x32xf32>,
      %629 = vector.extract_strided_slice %441 {offsets = [0, 0], sizes = [4, 32], strides = [1, 1]} : vector<8x32xf32> to vector<4x32xf32>
      %c0_265 = arith.constant 0 : index
      %c1_266 = arith.constant 1 : index
      %c0_267 = arith.constant 0 : index
      %630 = vector.load %arg42[%c0_265, %c1_266, %c0_267] : memref<2x25x32xf32, #tpu.memory_space<vmem>>, vector<1x4x32xf32>
      %631 = vector.shape_cast %630 : vector<1x4x32xf32> to vector<4x32xf32>
      %632 = vector.shape_cast %629 : vector<4x32xf32> to vector<1x4x32xf32>
      tpu.vector_store %arg42[%c0_265, %c1_266, %c0_267], %632 {strides = array<i32>} : memref<2x25x32xf32, #tpu.memory_space<vmem>>, vector<1x4x32xf32>,
      %c0_268 = arith.constant 0 : index
      %c5 = arith.constant 5 : index
      %c0_269 = arith.constant 0 : index
      %633 = vector.load %arg42[%c0_268, %c5, %c0_269] : memref<2x25x32xf32, #tpu.memory_space<vmem>>, vector<1x4x32xf32>
      %634 = vector.shape_cast %633 : vector<1x4x32xf32> to vector<4x32xf32>
      %635 = vector.shape_cast %551 : vector<4x32xf32> to vector<1x4x32xf32>
      tpu.vector_store %arg42[%c0_268, %c5, %c0_269], %635 {strides = array<i32>} : memref<2x25x32xf32, #tpu.memory_space<vmem>>, vector<1x4x32xf32>,
      %c0_270 = arith.constant 0 : index
      %c9 = arith.constant 9 : index
      %c0_271 = arith.constant 0 : index
      %636 = vector.load %arg42[%c0_270, %c9, %c0_271] : memref<2x25x32xf32, #tpu.memory_space<vmem>>, vector<1x16x32xf32>
      %637 = vector.shape_cast %636 : vector<1x16x32xf32> to vector<16x32xf32>
      %638 = vector.shape_cast %597 : vector<16x32xf32> to vector<1x16x32xf32>
      tpu.vector_store %arg42[%c0_270, %c9, %c0_271], %638 {strides = array<i32>} : memref<2x25x32xf32, #tpu.memory_space<vmem>>, vector<1x16x32xf32>,
      %c0_272 = arith.constant 0 : index
      %c0_273 = arith.constant 0 : index
      %c0_274 = arith.constant 0 : index
      %639 = vector.load %arg3[%c0_272, %c0_273, %c0_274] : memref<2x16x3xf32, #tpu.memory_space<vmem>>, vector<1x16x3xf32>
      %640 = vector.shape_cast %639 : vector<1x16x3xf32> to vector<16x3xf32>
      %cst_275 = arith.constant 0.000000e+00 : f32
      %641 = vector.broadcast %cst_275 : f32 to vector<1x3xf32>
      %642 = tpu.concatenate %641, %640, %641 in 0 : vector<1x3xf32>, vector<16x3xf32>, vector<1x3xf32> -> vector<18x3xf32>
      %643 = arith.truncf %642 : vector<18x3xf32> to vector<18x3xbf16>
      %c0_276 = arith.constant 0 : index
      %c0_277 = arith.constant 0 : index
      %644 = vector.load %arg11[%c0_276, %c0_277] : memref<1x64xf32, #tpu.memory_space<vmem>>, vector<1x64xf32>
      %645 = vector.extract_strided_slice %643 {offsets = [0, 0], sizes = [16, 3], strides = [1, 1]} : vector<18x3xbf16> to vector<16x3xbf16>
      %c0_278 = arith.constant 0 : index
      %c0_279 = arith.constant 0 : index
      %c0_280 = arith.constant 0 : index
      %646 = vector.load %arg10[%c0_278, %c0_279, %c0_280] : memref<3x3x64xbf16, #tpu.memory_space<vmem>>, vector<1x3x64xbf16>
      %647 = vector.shape_cast %646 : vector<1x3x64xbf16> to vector<3x64xbf16>
      %cst_281 = arith.constant dense<0.000000e+00> : vector<16x64xf32>
      %648 = tpu.matmul %645, %647, %cst_281 {dimension_numbers = #tpu.dot_dimension_numbers<[1], [0], [0], [1], [0, 0, 1, 1], [], []>} : vector<16x3xbf16>, vector<3x64xbf16>, vector<16x64xf32> -> vector<16x64xf32>
      %649 = vector.broadcast %644 : vector<1x64xf32> to vector<16x64xf32>
      %650 = arith.addf %649, %648 : vector<16x64xf32>
      %651 = vector.extract_strided_slice %643 {offsets = [1, 0], sizes = [16, 3], strides = [1, 1]} : vector<18x3xbf16> to vector<16x3xbf16>
      %c1_282 = arith.constant 1 : index
      %c0_283 = arith.constant 0 : index
      %c0_284 = arith.constant 0 : index
      %652 = vector.load %arg10[%c1_282, %c0_283, %c0_284] : memref<3x3x64xbf16, #tpu.memory_space<vmem>>, vector<1x3x64xbf16>
      %653 = vector.shape_cast %652 : vector<1x3x64xbf16> to vector<3x64xbf16>
      %cst_285 = arith.constant dense<0.000000e+00> : vector<16x64xf32>
      %654 = tpu.matmul %651, %653, %cst_285 {dimension_numbers = #tpu.dot_dimension_numbers<[1], [0], [0], [1], [0, 0, 1, 1], [], []>} : vector<16x3xbf16>, vector<3x64xbf16>, vector<16x64xf32> -> vector<16x64xf32>
      %655 = arith.addf %650, %654 : vector<16x64xf32>
      %656 = vector.extract_strided_slice %643 {offsets = [2, 0], sizes = [16, 3], strides = [1, 1]} : vector<18x3xbf16> to vector<16x3xbf16>
      %c2_286 = arith.constant 2 : index
      %c0_287 = arith.constant 0 : index
      %c0_288 = arith.constant 0 : index
      %657 = vector.load %arg10[%c2_286, %c0_287, %c0_288] : memref<3x3x64xbf16, #tpu.memory_space<vmem>>, vector<1x3x64xbf16>
      %658 = vector.shape_cast %657 : vector<1x3x64xbf16> to vector<3x64xbf16>
      %cst_289 = arith.constant dense<0.000000e+00> : vector<16x64xf32>
      %659 = tpu.matmul %656, %658, %cst_289 {dimension_numbers = #tpu.dot_dimension_numbers<[1], [0], [0], [1], [0, 0, 1, 1], [], []>} : vector<16x3xbf16>, vector<3x64xbf16>, vector<16x64xf32> -> vector<16x64xf32>
      %660 = arith.addf %655, %659 : vector<16x64xf32>
      %cst_290 = arith.constant 0.000000e+00 : f32
      %661 = vector.broadcast %cst_290 : f32 to vector<16x64xf32>
      %662 = arith.maximumf %660, %661 : vector<16x64xf32>
      %663 = vector.broadcast %cst_290 : f32 to vector<16x64xf32>
      %664 = arith.subf %660, %663 : vector<16x64xf32>
      %665 = arith.cmpf one, %664, %664 : vector<16x64xf32>
      %666 = vector.broadcast %cst_290 : f32 to vector<16x64xf32>
      %667 = arith.addf %660, %666 : vector<16x64xf32>
      %668 = math.absf %664 : vector<16x64xf32>
      %cst_291 = arith.constant 0.000000e+00 : f32
      %669 = vector.broadcast %cst_291 : f32 to vector<16x64xf32>
      %670 = arith.subf %669, %668 : vector<16x64xf32>
      %671 = math.exp %670 : vector<16x64xf32>
      %672 = math.log1p %671 : vector<16x64xf32>
      %673 = arith.addf %662, %672 : vector<16x64xf32>
      %674 = arith.select %665, %667, %673 : vector<16x64xi1>, vector<16x64xf32>
      %675 = math.tanh %674 : vector<16x64xf32>
      %676 = arith.mulf %660, %675 : vector<16x64xf32>
      %cst_292 = arith.constant 0.000000e+00 : f32
      %677 = vector.broadcast %cst_292 : f32 to vector<3x64xf32>
      %678 = tpu.concatenate %677, %676, %677 in 0 : vector<3x64xf32>, vector<16x64xf32>, vector<3x64xf32> -> vector<22x64xf32>
      %679 = arith.truncf %678 : vector<22x64xf32> to vector<22x64xbf16>
      %c0_293 = arith.constant 0 : index
      %c0_294 = arith.constant 0 : index
      %680 = vector.load %arg13[%c0_293, %c0_294] : memref<1x32xf32, #tpu.memory_space<vmem>>, vector<1x32xf32>
      %681 = vector.extract_strided_slice %679 {offsets = [0, 0], sizes = [16, 64], strides = [1, 1]} : vector<22x64xbf16> to vector<16x64xbf16>
      %c0_295 = arith.constant 0 : index
      %c0_296 = arith.constant 0 : index
      %c0_297 = arith.constant 0 : index
      %682 = vector.load %arg12[%c0_295, %c0_296, %c0_297] : memref<3x64x32xbf16, #tpu.memory_space<vmem>>, vector<1x64x32xbf16>
      %683 = vector.shape_cast %682 : vector<1x64x32xbf16> to vector<64x32xbf16>
      %cst_298 = arith.constant dense<0.000000e+00> : vector<16x32xf32>
      %684 = tpu.matmul %681, %683, %cst_298 {dimension_numbers = #tpu.dot_dimension_numbers<[1], [0], [0], [1], [0, 0, 1, 1], [], []>} : vector<16x64xbf16>, vector<64x32xbf16>, vector<16x32xf32> -> vector<16x32xf32>
      %685 = vector.broadcast %680 : vector<1x32xf32> to vector<16x32xf32>
      %686 = arith.addf %685, %684 : vector<16x32xf32>
      %687 = vector.extract_strided_slice %679 {offsets = [3, 0], sizes = [16, 64], strides = [1, 1]} : vector<22x64xbf16> to vector<16x64xbf16>
      %c1_299 = arith.constant 1 : index
      %c0_300 = arith.constant 0 : index
      %c0_301 = arith.constant 0 : index
      %688 = vector.load %arg12[%c1_299, %c0_300, %c0_301] : memref<3x64x32xbf16, #tpu.memory_space<vmem>>, vector<1x64x32xbf16>
      %689 = vector.shape_cast %688 : vector<1x64x32xbf16> to vector<64x32xbf16>
      %cst_302 = arith.constant dense<0.000000e+00> : vector<16x32xf32>
      %690 = tpu.matmul %687, %689, %cst_302 {dimension_numbers = #tpu.dot_dimension_numbers<[1], [0], [0], [1], [0, 0, 1, 1], [], []>} : vector<16x64xbf16>, vector<64x32xbf16>, vector<16x32xf32> -> vector<16x32xf32>
      %691 = arith.addf %686, %690 : vector<16x32xf32>
      %692 = vector.extract_strided_slice %679 {offsets = [6, 0], sizes = [16, 64], strides = [1, 1]} : vector<22x64xbf16> to vector<16x64xbf16>
      %c2_303 = arith.constant 2 : index
      %c0_304 = arith.constant 0 : index
      %c0_305 = arith.constant 0 : index
      %693 = vector.load %arg12[%c2_303, %c0_304, %c0_305] : memref<3x64x32xbf16, #tpu.memory_space<vmem>>, vector<1x64x32xbf16>
      %694 = vector.shape_cast %693 : vector<1x64x32xbf16> to vector<64x32xbf16>
      %cst_306 = arith.constant dense<0.000000e+00> : vector<16x32xf32>
      %695 = tpu.matmul %692, %694, %cst_306 {dimension_numbers = #tpu.dot_dimension_numbers<[1], [0], [0], [1], [0, 0, 1, 1], [], []>} : vector<16x64xbf16>, vector<64x32xbf16>, vector<16x32xf32> -> vector<16x32xf32>
      %696 = arith.addf %691, %695 : vector<16x32xf32>
      %cst_307 = arith.constant 0.000000e+00 : f32
      %697 = vector.broadcast %cst_307 : f32 to vector<16x32xf32>
      %698 = arith.maximumf %696, %697 : vector<16x32xf32>
      %699 = vector.broadcast %cst_307 : f32 to vector<16x32xf32>
      %700 = arith.subf %696, %699 : vector<16x32xf32>
      %701 = arith.cmpf one, %700, %700 : vector<16x32xf32>
      %702 = vector.broadcast %cst_307 : f32 to vector<16x32xf32>
      %703 = arith.addf %696, %702 : vector<16x32xf32>
      %704 = math.absf %700 : vector<16x32xf32>
      %cst_308 = arith.constant 0.000000e+00 : f32
      %705 = vector.broadcast %cst_308 : f32 to vector<16x32xf32>
      %706 = arith.subf %705, %704 : vector<16x32xf32>
      %707 = math.exp %706 : vector<16x32xf32>
      %708 = math.log1p %707 : vector<16x32xf32>
      %709 = arith.addf %698, %708 : vector<16x32xf32>
      %710 = arith.select %701, %703, %709 : vector<16x32xi1>, vector<16x32xf32>
      %711 = math.tanh %710 : vector<16x32xf32>
      %712 = arith.mulf %696, %711 : vector<16x32xf32>
      %cst_309 = arith.constant 0.000000e+00 : f32
      %713 = vector.broadcast %cst_309 : f32 to vector<3x32xf32>
      %714 = tpu.concatenate %713, %712, %713 in 0 : vector<3x32xf32>, vector<16x32xf32>, vector<3x32xf32> -> vector<22x32xf32>
      %715 = arith.truncf %714 : vector<22x32xf32> to vector<22x32xbf16>
      %c0_310 = arith.constant 0 : index
      %c0_311 = arith.constant 0 : index
      %716 = vector.load %arg15[%c0_310, %c0_311] : memref<1x32xf32, #tpu.memory_space<vmem>>, vector<1x32xf32>
      %717 = vector.extract_strided_slice %715 {offsets = [0, 0], sizes = [16, 32], strides = [1, 1]} : vector<22x32xbf16> to vector<16x32xbf16>
      %c0_312 = arith.constant 0 : index
      %c0_313 = arith.constant 0 : index
      %c0_314 = arith.constant 0 : index
      %718 = vector.load %arg14[%c0_312, %c0_313, %c0_314] : memref<3x32x32xbf16, #tpu.memory_space<vmem>>, vector<1x32x32xbf16>
      %719 = vector.shape_cast %718 : vector<1x32x32xbf16> to vector<32x32xbf16>
      %cst_315 = arith.constant dense<0.000000e+00> : vector<16x32xf32>
      %720 = tpu.matmul %717, %719, %cst_315 {dimension_numbers = #tpu.dot_dimension_numbers<[1], [0], [0], [1], [0, 0, 1, 1], [], []>} : vector<16x32xbf16>, vector<32x32xbf16>, vector<16x32xf32> -> vector<16x32xf32>
      %721 = vector.broadcast %716 : vector<1x32xf32> to vector<16x32xf32>
      %722 = arith.addf %721, %720 : vector<16x32xf32>
      %723 = vector.extract_strided_slice %715 {offsets = [3, 0], sizes = [16, 32], strides = [1, 1]} : vector<22x32xbf16> to vector<16x32xbf16>
      %c1_316 = arith.constant 1 : index
      %c0_317 = arith.constant 0 : index
      %c0_318 = arith.constant 0 : index
      %724 = vector.load %arg14[%c1_316, %c0_317, %c0_318] : memref<3x32x32xbf16, #tpu.memory_space<vmem>>, vector<1x32x32xbf16>
      %725 = vector.shape_cast %724 : vector<1x32x32xbf16> to vector<32x32xbf16>
      %cst_319 = arith.constant dense<0.000000e+00> : vector<16x32xf32>
      %726 = tpu.matmul %723, %725, %cst_319 {dimension_numbers = #tpu.dot_dimension_numbers<[1], [0], [0], [1], [0, 0, 1, 1], [], []>} : vector<16x32xbf16>, vector<32x32xbf16>, vector<16x32xf32> -> vector<16x32xf32>
      %727 = arith.addf %722, %726 : vector<16x32xf32>
      %728 = vector.extract_strided_slice %715 {offsets = [6, 0], sizes = [16, 32], strides = [1, 1]} : vector<22x32xbf16> to vector<16x32xbf16>
      %c2_320 = arith.constant 2 : index
      %c0_321 = arith.constant 0 : index
      %c0_322 = arith.constant 0 : index
      %729 = vector.load %arg14[%c2_320, %c0_321, %c0_322] : memref<3x32x32xbf16, #tpu.memory_space<vmem>>, vector<1x32x32xbf16>
      %730 = vector.shape_cast %729 : vector<1x32x32xbf16> to vector<32x32xbf16>
      %cst_323 = arith.constant dense<0.000000e+00> : vector<16x32xf32>
      %731 = tpu.matmul %728, %730, %cst_323 {dimension_numbers = #tpu.dot_dimension_numbers<[1], [0], [0], [1], [0, 0, 1, 1], [], []>} : vector<16x32xbf16>, vector<32x32xbf16>, vector<16x32xf32> -> vector<16x32xf32>
      %732 = arith.addf %727, %731 : vector<16x32xf32>
      %cst_324 = arith.constant 0.000000e+00 : f32
      %733 = vector.broadcast %cst_324 : f32 to vector<16x32xf32>
      %734 = arith.maximumf %732, %733 : vector<16x32xf32>
      %735 = vector.broadcast %cst_324 : f32 to vector<16x32xf32>
      %736 = arith.subf %732, %735 : vector<16x32xf32>
      %737 = arith.cmpf one, %736, %736 : vector<16x32xf32>
      %738 = vector.broadcast %cst_324 : f32 to vector<16x32xf32>
      %739 = arith.addf %732, %738 : vector<16x32xf32>
      %740 = math.absf %736 : vector<16x32xf32>
      %cst_325 = arith.constant 0.000000e+00 : f32
      %741 = vector.broadcast %cst_325 : f32 to vector<16x32xf32>
      %742 = arith.subf %741, %740 : vector<16x32xf32>
      %743 = math.exp %742 : vector<16x32xf32>
      %744 = math.log1p %743 : vector<16x32xf32>
      %745 = arith.addf %734, %744 : vector<16x32xf32>
      %746 = arith.select %737, %739, %745 : vector<16x32xi1>, vector<16x32xf32>
      %747 = math.tanh %746 : vector<16x32xf32>
      %748 = arith.mulf %732, %747 : vector<16x32xf32>
      %c0_326 = arith.constant 0 : index
      %c0_327 = arith.constant 0 : index
      %c0_328 = arith.constant 0 : index
      %749 = vector.load %arg43[%c0_326, %c0_327, %c0_328] : memref<2x16x32xf32, #tpu.memory_space<vmem>>, vector<1x16x32xf32>
      %750 = vector.shape_cast %749 : vector<1x16x32xf32> to vector<16x32xf32>
      %751 = vector.shape_cast %748 : vector<16x32xf32> to vector<1x16x32xf32>
      tpu.vector_store %arg43[%c0_326, %c0_327, %c0_328], %751 {strides = array<i32>} : memref<2x16x32xf32, #tpu.memory_space<vmem>>, vector<1x16x32xf32>,
      %c1_329 = arith.constant 1 : index
      %c0_330 = arith.constant 0 : index
      %c0_331 = arith.constant 0 : index
      %752 = vector.load %arg1[%c1_329, %c0_330, %c0_331] : memref<2x8x3xf32, #tpu.memory_space<vmem>>, vector<1x8x3xf32>
      %753 = vector.shape_cast %752 : vector<1x8x3xf32> to vector<8x3xf32>
      %cst_332 = arith.constant 0.000000e+00 : f32
      %754 = vector.broadcast %cst_332 : f32 to vector<1x3xf32>
      %755 = tpu.concatenate %754, %753, %754 in 0 : vector<1x3xf32>, vector<8x3xf32>, vector<1x3xf32> -> vector<10x3xf32>
      %756 = arith.truncf %755 : vector<10x3xf32> to vector<10x3xbf16>
      %c0_333 = arith.constant 0 : index
      %c0_334 = arith.constant 0 : index
      %757 = vector.load %arg7[%c0_333, %c0_334] : memref<1x64xf32, #tpu.memory_space<vmem>>, vector<1x64xf32>
      %758 = vector.extract_strided_slice %756 {offsets = [0, 0], sizes = [8, 3], strides = [1, 1]} : vector<10x3xbf16> to vector<8x3xbf16>
      %c0_335 = arith.constant 0 : index
      %c0_336 = arith.constant 0 : index
      %c0_337 = arith.constant 0 : index
      %759 = vector.load %arg6[%c0_335, %c0_336, %c0_337] : memref<3x3x64xbf16, #tpu.memory_space<vmem>>, vector<1x3x64xbf16>
      %760 = vector.shape_cast %759 : vector<1x3x64xbf16> to vector<3x64xbf16>
      %cst_338 = arith.constant dense<0.000000e+00> : vector<8x64xf32>
      %761 = tpu.matmul %758, %760, %cst_338 {dimension_numbers = #tpu.dot_dimension_numbers<[1], [0], [0], [1], [0, 0, 1, 1], [], []>} : vector<8x3xbf16>, vector<3x64xbf16>, vector<8x64xf32> -> vector<8x64xf32>
      %762 = vector.broadcast %757 : vector<1x64xf32> to vector<8x64xf32>
      %763 = arith.addf %762, %761 : vector<8x64xf32>
      %764 = vector.extract_strided_slice %756 {offsets = [1, 0], sizes = [8, 3], strides = [1, 1]} : vector<10x3xbf16> to vector<8x3xbf16>
      %c1_339 = arith.constant 1 : index
      %c0_340 = arith.constant 0 : index
      %c0_341 = arith.constant 0 : index
      %765 = vector.load %arg6[%c1_339, %c0_340, %c0_341] : memref<3x3x64xbf16, #tpu.memory_space<vmem>>, vector<1x3x64xbf16>
      %766 = vector.shape_cast %765 : vector<1x3x64xbf16> to vector<3x64xbf16>
      %cst_342 = arith.constant dense<0.000000e+00> : vector<8x64xf32>
      %767 = tpu.matmul %764, %766, %cst_342 {dimension_numbers = #tpu.dot_dimension_numbers<[1], [0], [0], [1], [0, 0, 1, 1], [], []>} : vector<8x3xbf16>, vector<3x64xbf16>, vector<8x64xf32> -> vector<8x64xf32>
      %768 = arith.addf %763, %767 : vector<8x64xf32>
      %769 = vector.extract_strided_slice %756 {offsets = [2, 0], sizes = [8, 3], strides = [1, 1]} : vector<10x3xbf16> to vector<8x3xbf16>
      %c2_343 = arith.constant 2 : index
      %c0_344 = arith.constant 0 : index
      %c0_345 = arith.constant 0 : index
      %770 = vector.load %arg6[%c2_343, %c0_344, %c0_345] : memref<3x3x64xbf16, #tpu.memory_space<vmem>>, vector<1x3x64xbf16>
      %771 = vector.shape_cast %770 : vector<1x3x64xbf16> to vector<3x64xbf16>
      %cst_346 = arith.constant dense<0.000000e+00> : vector<8x64xf32>
      %772 = tpu.matmul %769, %771, %cst_346 {dimension_numbers = #tpu.dot_dimension_numbers<[1], [0], [0], [1], [0, 0, 1, 1], [], []>} : vector<8x3xbf16>, vector<3x64xbf16>, vector<8x64xf32> -> vector<8x64xf32>
      %773 = arith.addf %768, %772 : vector<8x64xf32>
      %cst_347 = arith.constant 0.000000e+00 : f32
      %774 = vector.broadcast %cst_347 : f32 to vector<8x64xf32>
      %775 = arith.maximumf %773, %774 : vector<8x64xf32>
      %776 = vector.broadcast %cst_347 : f32 to vector<8x64xf32>
      %777 = arith.subf %773, %776 : vector<8x64xf32>
      %778 = arith.cmpf one, %777, %777 : vector<8x64xf32>
      %779 = vector.broadcast %cst_347 : f32 to vector<8x64xf32>
      %780 = arith.addf %773, %779 : vector<8x64xf32>
      %781 = math.absf %777 : vector<8x64xf32>
      %cst_348 = arith.constant 0.000000e+00 : f32
      %782 = vector.broadcast %cst_348 : f32 to vector<8x64xf32>
      %783 = arith.subf %782, %781 : vector<8x64xf32>
      %784 = math.exp %783 : vector<8x64xf32>
      %785 = math.log1p %784 : vector<8x64xf32>
      %786 = arith.addf %775, %785 : vector<8x64xf32>
      %787 = arith.select %778, %780, %786 : vector<8x64xi1>, vector<8x64xf32>
      %788 = math.tanh %787 : vector<8x64xf32>
      %789 = arith.mulf %773, %788 : vector<8x64xf32>
      %cst_349 = arith.constant 0.000000e+00 : f32
      %790 = vector.broadcast %cst_349 : f32 to vector<2x64xf32>
      %791 = tpu.concatenate %790, %789, %790 in 0 : vector<2x64xf32>, vector<8x64xf32>, vector<2x64xf32> -> vector<12x64xf32>
      %792 = arith.truncf %791 : vector<12x64xf32> to vector<12x64xbf16>
      %c0_350 = arith.constant 0 : index
      %c0_351 = arith.constant 0 : index
      %793 = vector.load %arg9[%c0_350, %c0_351] : memref<1x32xf32, #tpu.memory_space<vmem>>, vector<1x32xf32>
      %794 = vector.extract_strided_slice %792 {offsets = [0, 0], sizes = [8, 64], strides = [1, 1]} : vector<12x64xbf16> to vector<8x64xbf16>
      %c0_352 = arith.constant 0 : index
      %c0_353 = arith.constant 0 : index
      %c0_354 = arith.constant 0 : index
      %795 = vector.load %arg8[%c0_352, %c0_353, %c0_354] : memref<3x64x32xbf16, #tpu.memory_space<vmem>>, vector<1x64x32xbf16>
      %796 = vector.shape_cast %795 : vector<1x64x32xbf16> to vector<64x32xbf16>
      %cst_355 = arith.constant dense<0.000000e+00> : vector<8x32xf32>
      %797 = tpu.matmul %794, %796, %cst_355 {dimension_numbers = #tpu.dot_dimension_numbers<[1], [0], [0], [1], [0, 0, 1, 1], [], []>} : vector<8x64xbf16>, vector<64x32xbf16>, vector<8x32xf32> -> vector<8x32xf32>
      %798 = vector.broadcast %793 : vector<1x32xf32> to vector<8x32xf32>
      %799 = arith.addf %798, %797 : vector<8x32xf32>
      %800 = vector.extract_strided_slice %792 {offsets = [2, 0], sizes = [8, 64], strides = [1, 1]} : vector<12x64xbf16> to vector<8x64xbf16>
      %c1_356 = arith.constant 1 : index
      %c0_357 = arith.constant 0 : index
      %c0_358 = arith.constant 0 : index
      %801 = vector.load %arg8[%c1_356, %c0_357, %c0_358] : memref<3x64x32xbf16, #tpu.memory_space<vmem>>, vector<1x64x32xbf16>
      %802 = vector.shape_cast %801 : vector<1x64x32xbf16> to vector<64x32xbf16>
      %cst_359 = arith.constant dense<0.000000e+00> : vector<8x32xf32>
      %803 = tpu.matmul %800, %802, %cst_359 {dimension_numbers = #tpu.dot_dimension_numbers<[1], [0], [0], [1], [0, 0, 1, 1], [], []>} : vector<8x64xbf16>, vector<64x32xbf16>, vector<8x32xf32> -> vector<8x32xf32>
      %804 = arith.addf %799, %803 : vector<8x32xf32>
      %805 = vector.extract_strided_slice %792 {offsets = [4, 0], sizes = [8, 64], strides = [1, 1]} : vector<12x64xbf16> to vector<8x64xbf16>
      %c2_360 = arith.constant 2 : index
      %c0_361 = arith.constant 0 : index
      %c0_362 = arith.constant 0 : index
      %806 = vector.load %arg8[%c2_360, %c0_361, %c0_362] : memref<3x64x32xbf16, #tpu.memory_space<vmem>>, vector<1x64x32xbf16>
      %807 = vector.shape_cast %806 : vector<1x64x32xbf16> to vector<64x32xbf16>
      %cst_363 = arith.constant dense<0.000000e+00> : vector<8x32xf32>
      %808 = tpu.matmul %805, %807, %cst_363 {dimension_numbers = #tpu.dot_dimension_numbers<[1], [0], [0], [1], [0, 0, 1, 1], [], []>} : vector<8x64xbf16>, vector<64x32xbf16>, vector<8x32xf32> -> vector<8x32xf32>
      %809 = arith.addf %804, %808 : vector<8x32xf32>
      %cst_364 = arith.constant 0.000000e+00 : f32
      %810 = vector.broadcast %cst_364 : f32 to vector<8x32xf32>
      %811 = arith.maximumf %809, %810 : vector<8x32xf32>
      %812 = vector.broadcast %cst_364 : f32 to vector<8x32xf32>
      %813 = arith.subf %809, %812 : vector<8x32xf32>
      %814 = arith.cmpf one, %813, %813 : vector<8x32xf32>
      %815 = vector.broadcast %cst_364 : f32 to vector<8x32xf32>
      %816 = arith.addf %809, %815 : vector<8x32xf32>
      %817 = math.absf %813 : vector<8x32xf32>
      %cst_365 = arith.constant 0.000000e+00 : f32
      %818 = vector.broadcast %cst_365 : f32 to vector<8x32xf32>
      %819 = arith.subf %818, %817 : vector<8x32xf32>
      %820 = math.exp %819 : vector<8x32xf32>
      %821 = math.log1p %820 : vector<8x32xf32>
      %822 = arith.addf %811, %821 : vector<8x32xf32>
      %823 = arith.select %814, %816, %822 : vector<8x32xi1>, vector<8x32xf32>
      %824 = math.tanh %823 : vector<8x32xf32>
      %825 = arith.mulf %809, %824 : vector<8x32xf32>
      %c1_366 = arith.constant 1 : index
      %c0_367 = arith.constant 0 : index
      %c0_368 = arith.constant 0 : index
      %826 = vector.load %arg2[%c1_366, %c0_367, %c0_368] : memref<2x4x3xf32, #tpu.memory_space<vmem>>, vector<1x4x3xf32>
      %827 = vector.shape_cast %826 : vector<1x4x3xf32> to vector<4x3xf32>
      %cst_369 = arith.constant 0.000000e+00 : f32
      %828 = vector.broadcast %cst_369 : f32 to vector<1x3xf32>
      %829 = tpu.concatenate %828, %827, %828 in 0 : vector<1x3xf32>, vector<4x3xf32>, vector<1x3xf32> -> vector<6x3xf32>
      %830 = arith.truncf %829 : vector<6x3xf32> to vector<6x3xbf16>
      %c0_370 = arith.constant 0 : index
      %c0_371 = arith.constant 0 : index
      %831 = vector.load %arg11[%c0_370, %c0_371] : memref<1x64xf32, #tpu.memory_space<vmem>>, vector<1x64xf32>
      %832 = vector.extract_strided_slice %830 {offsets = [0, 0], sizes = [4, 3], strides = [1, 1]} : vector<6x3xbf16> to vector<4x3xbf16>
      %c0_372 = arith.constant 0 : index
      %c0_373 = arith.constant 0 : index
      %c0_374 = arith.constant 0 : index
      %833 = vector.load %arg10[%c0_372, %c0_373, %c0_374] : memref<3x3x64xbf16, #tpu.memory_space<vmem>>, vector<1x3x64xbf16>
      %834 = vector.shape_cast %833 : vector<1x3x64xbf16> to vector<3x64xbf16>
      %cst_375 = arith.constant dense<0.000000e+00> : vector<4x64xf32>
      %835 = tpu.matmul %832, %834, %cst_375 {dimension_numbers = #tpu.dot_dimension_numbers<[1], [0], [0], [1], [0, 0, 1, 1], [], []>} : vector<4x3xbf16>, vector<3x64xbf16>, vector<4x64xf32> -> vector<4x64xf32>
      %836 = vector.broadcast %831 : vector<1x64xf32> to vector<4x64xf32>
      %837 = arith.addf %836, %835 : vector<4x64xf32>
      %838 = vector.extract_strided_slice %830 {offsets = [1, 0], sizes = [4, 3], strides = [1, 1]} : vector<6x3xbf16> to vector<4x3xbf16>
      %c1_376 = arith.constant 1 : index
      %c0_377 = arith.constant 0 : index
      %c0_378 = arith.constant 0 : index
      %839 = vector.load %arg10[%c1_376, %c0_377, %c0_378] : memref<3x3x64xbf16, #tpu.memory_space<vmem>>, vector<1x3x64xbf16>
      %840 = vector.shape_cast %839 : vector<1x3x64xbf16> to vector<3x64xbf16>
      %cst_379 = arith.constant dense<0.000000e+00> : vector<4x64xf32>
      %841 = tpu.matmul %838, %840, %cst_379 {dimension_numbers = #tpu.dot_dimension_numbers<[1], [0], [0], [1], [0, 0, 1, 1], [], []>} : vector<4x3xbf16>, vector<3x64xbf16>, vector<4x64xf32> -> vector<4x64xf32>
      %842 = arith.addf %837, %841 : vector<4x64xf32>
      %843 = vector.extract_strided_slice %830 {offsets = [2, 0], sizes = [4, 3], strides = [1, 1]} : vector<6x3xbf16> to vector<4x3xbf16>
      %c2_380 = arith.constant 2 : index
      %c0_381 = arith.constant 0 : index
      %c0_382 = arith.constant 0 : index
      %844 = vector.load %arg10[%c2_380, %c0_381, %c0_382] : memref<3x3x64xbf16, #tpu.memory_space<vmem>>, vector<1x3x64xbf16>
      %845 = vector.shape_cast %844 : vector<1x3x64xbf16> to vector<3x64xbf16>
      %cst_383 = arith.constant dense<0.000000e+00> : vector<4x64xf32>
      %846 = tpu.matmul %843, %845, %cst_383 {dimension_numbers = #tpu.dot_dimension_numbers<[1], [0], [0], [1], [0, 0, 1, 1], [], []>} : vector<4x3xbf16>, vector<3x64xbf16>, vector<4x64xf32> -> vector<4x64xf32>
      %847 = arith.addf %842, %846 : vector<4x64xf32>
      %cst_384 = arith.constant 0.000000e+00 : f32
      %848 = vector.broadcast %cst_384 : f32 to vector<4x64xf32>
      %849 = arith.maximumf %847, %848 : vector<4x64xf32>
      %850 = vector.broadcast %cst_384 : f32 to vector<4x64xf32>
      %851 = arith.subf %847, %850 : vector<4x64xf32>
      %852 = arith.cmpf one, %851, %851 : vector<4x64xf32>
      %853 = vector.broadcast %cst_384 : f32 to vector<4x64xf32>
      %854 = arith.addf %847, %853 : vector<4x64xf32>
      %855 = math.absf %851 : vector<4x64xf32>
      %cst_385 = arith.constant 0.000000e+00 : f32
      %856 = vector.broadcast %cst_385 : f32 to vector<4x64xf32>
      %857 = arith.subf %856, %855 : vector<4x64xf32>
      %858 = math.exp %857 : vector<4x64xf32>
      %859 = math.log1p %858 : vector<4x64xf32>
      %860 = arith.addf %849, %859 : vector<4x64xf32>
      %861 = arith.select %852, %854, %860 : vector<4x64xi1>, vector<4x64xf32>
      %862 = math.tanh %861 : vector<4x64xf32>
      %863 = arith.mulf %847, %862 : vector<4x64xf32>
      %cst_386 = arith.constant 0.000000e+00 : f32
      %864 = vector.broadcast %cst_386 : f32 to vector<3x64xf32>
      %865 = tpu.concatenate %864, %863, %864 in 0 : vector<3x64xf32>, vector<4x64xf32>, vector<3x64xf32> -> vector<10x64xf32>
      %866 = arith.truncf %865 : vector<10x64xf32> to vector<10x64xbf16>
      %c0_387 = arith.constant 0 : index
      %c0_388 = arith.constant 0 : index
      %867 = vector.load %arg13[%c0_387, %c0_388] : memref<1x32xf32, #tpu.memory_space<vmem>>, vector<1x32xf32>
      %868 = vector.extract_strided_slice %866 {offsets = [0, 0], sizes = [4, 64], strides = [1, 1]} : vector<10x64xbf16> to vector<4x64xbf16>
      %c0_389 = arith.constant 0 : index
      %c0_390 = arith.constant 0 : index
      %c0_391 = arith.constant 0 : index
      %869 = vector.load %arg12[%c0_389, %c0_390, %c0_391] : memref<3x64x32xbf16, #tpu.memory_space<vmem>>, vector<1x64x32xbf16>
      %870 = vector.shape_cast %869 : vector<1x64x32xbf16> to vector<64x32xbf16>
      %cst_392 = arith.constant dense<0.000000e+00> : vector<4x32xf32>
      %871 = tpu.matmul %868, %870, %cst_392 {dimension_numbers = #tpu.dot_dimension_numbers<[1], [0], [0], [1], [0, 0, 1, 1], [], []>} : vector<4x64xbf16>, vector<64x32xbf16>, vector<4x32xf32> -> vector<4x32xf32>
      %872 = vector.broadcast %867 : vector<1x32xf32> to vector<4x32xf32>
      %873 = arith.addf %872, %871 : vector<4x32xf32>
      %874 = vector.extract_strided_slice %866 {offsets = [3, 0], sizes = [4, 64], strides = [1, 1]} : vector<10x64xbf16> to vector<4x64xbf16>
      %c1_393 = arith.constant 1 : index
      %c0_394 = arith.constant 0 : index
      %c0_395 = arith.constant 0 : index
      %875 = vector.load %arg12[%c1_393, %c0_394, %c0_395] : memref<3x64x32xbf16, #tpu.memory_space<vmem>>, vector<1x64x32xbf16>
      %876 = vector.shape_cast %875 : vector<1x64x32xbf16> to vector<64x32xbf16>
      %cst_396 = arith.constant dense<0.000000e+00> : vector<4x32xf32>
      %877 = tpu.matmul %874, %876, %cst_396 {dimension_numbers = #tpu.dot_dimension_numbers<[1], [0], [0], [1], [0, 0, 1, 1], [], []>} : vector<4x64xbf16>, vector<64x32xbf16>, vector<4x32xf32> -> vector<4x32xf32>
      %878 = arith.addf %873, %877 : vector<4x32xf32>
      %879 = vector.extract_strided_slice %866 {offsets = [6, 0], sizes = [4, 64], strides = [1, 1]} : vector<10x64xbf16> to vector<4x64xbf16>
      %c2_397 = arith.constant 2 : index
      %c0_398 = arith.constant 0 : index
      %c0_399 = arith.constant 0 : index
      %880 = vector.load %arg12[%c2_397, %c0_398, %c0_399] : memref<3x64x32xbf16, #tpu.memory_space<vmem>>, vector<1x64x32xbf16>
      %881 = vector.shape_cast %880 : vector<1x64x32xbf16> to vector<64x32xbf16>
      %cst_400 = arith.constant dense<0.000000e+00> : vector<4x32xf32>
      %882 = tpu.matmul %879, %881, %cst_400 {dimension_numbers = #tpu.dot_dimension_numbers<[1], [0], [0], [1], [0, 0, 1, 1], [], []>} : vector<4x64xbf16>, vector<64x32xbf16>, vector<4x32xf32> -> vector<4x32xf32>
      %883 = arith.addf %878, %882 : vector<4x32xf32>
      %cst_401 = arith.constant 0.000000e+00 : f32
      %884 = vector.broadcast %cst_401 : f32 to vector<4x32xf32>
      %885 = arith.maximumf %883, %884 : vector<4x32xf32>
      %886 = vector.broadcast %cst_401 : f32 to vector<4x32xf32>
      %887 = arith.subf %883, %886 : vector<4x32xf32>
      %888 = arith.cmpf one, %887, %887 : vector<4x32xf32>
      %889 = vector.broadcast %cst_401 : f32 to vector<4x32xf32>
      %890 = arith.addf %883, %889 : vector<4x32xf32>
      %891 = math.absf %887 : vector<4x32xf32>
      %cst_402 = arith.constant 0.000000e+00 : f32
      %892 = vector.broadcast %cst_402 : f32 to vector<4x32xf32>
      %893 = arith.subf %892, %891 : vector<4x32xf32>
      %894 = math.exp %893 : vector<4x32xf32>
      %895 = math.log1p %894 : vector<4x32xf32>
      %896 = arith.addf %885, %895 : vector<4x32xf32>
      %897 = arith.select %888, %890, %896 : vector<4x32xi1>, vector<4x32xf32>
      %898 = math.tanh %897 : vector<4x32xf32>
      %899 = arith.mulf %883, %898 : vector<4x32xf32>
      %cst_403 = arith.constant 0.000000e+00 : f32
      %900 = vector.broadcast %cst_403 : f32 to vector<3x32xf32>
      %901 = tpu.concatenate %900, %899, %900 in 0 : vector<3x32xf32>, vector<4x32xf32>, vector<3x32xf32> -> vector<10x32xf32>
      %902 = arith.truncf %901 : vector<10x32xf32> to vector<10x32xbf16>
      %c0_404 = arith.constant 0 : index
      %c0_405 = arith.constant 0 : index
      %903 = vector.load %arg15[%c0_404, %c0_405] : memref<1x32xf32, #tpu.memory_space<vmem>>, vector<1x32xf32>
      %904 = vector.extract_strided_slice %902 {offsets = [0, 0], sizes = [4, 32], strides = [1, 1]} : vector<10x32xbf16> to vector<4x32xbf16>
      %c0_406 = arith.constant 0 : index
      %c0_407 = arith.constant 0 : index
      %c0_408 = arith.constant 0 : index
      %905 = vector.load %arg14[%c0_406, %c0_407, %c0_408] : memref<3x32x32xbf16, #tpu.memory_space<vmem>>, vector<1x32x32xbf16>
      %906 = vector.shape_cast %905 : vector<1x32x32xbf16> to vector<32x32xbf16>
      %cst_409 = arith.constant dense<0.000000e+00> : vector<4x32xf32>
      %907 = tpu.matmul %904, %906, %cst_409 {dimension_numbers = #tpu.dot_dimension_numbers<[1], [0], [0], [1], [0, 0, 1, 1], [], []>} : vector<4x32xbf16>, vector<32x32xbf16>, vector<4x32xf32> -> vector<4x32xf32>
      %908 = vector.broadcast %903 : vector<1x32xf32> to vector<4x32xf32>
      %909 = arith.addf %908, %907 : vector<4x32xf32>
      %910 = vector.extract_strided_slice %902 {offsets = [3, 0], sizes = [4, 32], strides = [1, 1]} : vector<10x32xbf16> to vector<4x32xbf16>
      %c1_410 = arith.constant 1 : index
      %c0_411 = arith.constant 0 : index
      %c0_412 = arith.constant 0 : index
      %911 = vector.load %arg14[%c1_410, %c0_411, %c0_412] : memref<3x32x32xbf16, #tpu.memory_space<vmem>>, vector<1x32x32xbf16>
      %912 = vector.shape_cast %911 : vector<1x32x32xbf16> to vector<32x32xbf16>
      %cst_413 = arith.constant dense<0.000000e+00> : vector<4x32xf32>
      %913 = tpu.matmul %910, %912, %cst_413 {dimension_numbers = #tpu.dot_dimension_numbers<[1], [0], [0], [1], [0, 0, 1, 1], [], []>} : vector<4x32xbf16>, vector<32x32xbf16>, vector<4x32xf32> -> vector<4x32xf32>
      %914 = arith.addf %909, %913 : vector<4x32xf32>
      %915 = vector.extract_strided_slice %902 {offsets = [6, 0], sizes = [4, 32], strides = [1, 1]} : vector<10x32xbf16> to vector<4x32xbf16>
      %c2_414 = arith.constant 2 : index
      %c0_415 = arith.constant 0 : index
      %c0_416 = arith.constant 0 : index
      %916 = vector.load %arg14[%c2_414, %c0_415, %c0_416] : memref<3x32x32xbf16, #tpu.memory_space<vmem>>, vector<1x32x32xbf16>
      %917 = vector.shape_cast %916 : vector<1x32x32xbf16> to vector<32x32xbf16>
      %cst_417 = arith.constant dense<0.000000e+00> : vector<4x32xf32>
      %918 = tpu.matmul %915, %917, %cst_417 {dimension_numbers = #tpu.dot_dimension_numbers<[1], [0], [0], [1], [0, 0, 1, 1], [], []>} : vector<4x32xbf16>, vector<32x32xbf16>, vector<4x32xf32> -> vector<4x32xf32>
      %919 = arith.addf %914, %918 : vector<4x32xf32>
      %cst_418 = arith.constant 0.000000e+00 : f32
      %920 = vector.broadcast %cst_418 : f32 to vector<4x32xf32>
      %921 = arith.maximumf %919, %920 : vector<4x32xf32>
      %922 = vector.broadcast %cst_418 : f32 to vector<4x32xf32>
      %923 = arith.subf %919, %922 : vector<4x32xf32>
      %924 = arith.cmpf one, %923, %923 : vector<4x32xf32>
      %925 = vector.broadcast %cst_418 : f32 to vector<4x32xf32>
      %926 = arith.addf %919, %925 : vector<4x32xf32>
      %927 = math.absf %923 : vector<4x32xf32>
      %cst_419 = arith.constant 0.000000e+00 : f32
      %928 = vector.broadcast %cst_419 : f32 to vector<4x32xf32>
      %929 = arith.subf %928, %927 : vector<4x32xf32>
      %930 = math.exp %929 : vector<4x32xf32>
      %931 = math.log1p %930 : vector<4x32xf32>
      %932 = arith.addf %921, %931 : vector<4x32xf32>
      %933 = arith.select %924, %926, %932 : vector<4x32xi1>, vector<4x32xf32>
      %934 = math.tanh %933 : vector<4x32xf32>
      %935 = arith.mulf %919, %934 : vector<4x32xf32>
      %c1_420 = arith.constant 1 : index
      %c0_421 = arith.constant 0 : index
      %c0_422 = arith.constant 0 : index
      %936 = vector.load %arg4[%c1_420, %c0_421, %c0_422] : memref<2x16x3xf32, #tpu.memory_space<vmem>>, vector<1x16x3xf32>
      %937 = vector.shape_cast %936 : vector<1x16x3xf32> to vector<16x3xf32>
      %c0_423 = arith.constant 0 : index
      %c0_424 = arith.constant 0 : index
      %938 = vector.load %arg16[%c0_423, %c0_424] : memref<3x64xbf16, #tpu.memory_space<vmem>>, vector<3x64xbf16>
      %939 = arith.truncf %937 : vector<16x3xf32> to vector<16x3xbf16>
      %cst_425 = arith.constant dense<0.000000e+00> : vector<16x64xf32>
      %940 = tpu.matmul %939, %938, %cst_425 {dimension_numbers = #tpu.dot_dimension_numbers<[1], [0], [0], [1], [0, 0, 1, 1], [], []>} : vector<16x3xbf16>, vector<3x64xbf16>, vector<16x64xf32> -> vector<16x64xf32>
      %c0_426 = arith.constant 0 : index
      %c0_427 = arith.constant 0 : index
      %941 = vector.load %arg17[%c0_426, %c0_427] : memref<1x64xf32, #tpu.memory_space<vmem>>, vector<1x64xf32>
      %942 = vector.broadcast %941 : vector<1x64xf32> to vector<16x64xf32>
      %943 = arith.addf %940, %942 : vector<16x64xf32>
      %cst_428 = arith.constant 0.000000e+00 : f32
      %944 = vector.broadcast %cst_428 : f32 to vector<16x64xf32>
      %945 = arith.maximumf %943, %944 : vector<16x64xf32>
      %946 = vector.broadcast %cst_428 : f32 to vector<16x64xf32>
      %947 = arith.subf %943, %946 : vector<16x64xf32>
      %948 = arith.cmpf one, %947, %947 : vector<16x64xf32>
      %949 = vector.broadcast %cst_428 : f32 to vector<16x64xf32>
      %950 = arith.addf %943, %949 : vector<16x64xf32>
      %951 = math.absf %947 : vector<16x64xf32>
      %cst_429 = arith.constant 0.000000e+00 : f32
      %952 = vector.broadcast %cst_429 : f32 to vector<16x64xf32>
      %953 = arith.subf %952, %951 : vector<16x64xf32>
      %954 = math.exp %953 : vector<16x64xf32>
      %955 = math.log1p %954 : vector<16x64xf32>
      %956 = arith.addf %945, %955 : vector<16x64xf32>
      %957 = arith.select %948, %950, %956 : vector<16x64xi1>, vector<16x64xf32>
      %958 = math.tanh %957 : vector<16x64xf32>
      %959 = arith.mulf %943, %958 : vector<16x64xf32>
      %c0_430 = arith.constant 0 : index
      %c0_431 = arith.constant 0 : index
      %960 = vector.load %arg18[%c0_430, %c0_431] : memref<64x32xbf16, #tpu.memory_space<vmem>>, vector<64x32xbf16>
      %961 = arith.truncf %959 : vector<16x64xf32> to vector<16x64xbf16>
      %cst_432 = arith.constant dense<0.000000e+00> : vector<16x32xf32>
      %962 = tpu.matmul %961, %960, %cst_432 {dimension_numbers = #tpu.dot_dimension_numbers<[1], [0], [0], [1], [0, 0, 1, 1], [], []>} : vector<16x64xbf16>, vector<64x32xbf16>, vector<16x32xf32> -> vector<16x32xf32>
      %c0_433 = arith.constant 0 : index
      %c0_434 = arith.constant 0 : index
      %963 = vector.load %arg19[%c0_433, %c0_434] : memref<1x32xf32, #tpu.memory_space<vmem>>, vector<1x32xf32>
      %964 = vector.broadcast %963 : vector<1x32xf32> to vector<16x32xf32>
      %965 = arith.addf %962, %964 : vector<16x32xf32>
      %cst_435 = arith.constant 0.000000e+00 : f32
      %966 = vector.broadcast %cst_435 : f32 to vector<16x32xf32>
      %967 = arith.maximumf %965, %966 : vector<16x32xf32>
      %968 = vector.broadcast %cst_435 : f32 to vector<16x32xf32>
      %969 = arith.subf %965, %968 : vector<16x32xf32>
      %970 = arith.cmpf one, %969, %969 : vector<16x32xf32>
      %971 = vector.broadcast %cst_435 : f32 to vector<16x32xf32>
      %972 = arith.addf %965, %971 : vector<16x32xf32>
      %973 = math.absf %969 : vector<16x32xf32>
      %cst_436 = arith.constant 0.000000e+00 : f32
      %974 = vector.broadcast %cst_436 : f32 to vector<16x32xf32>
      %975 = arith.subf %974, %973 : vector<16x32xf32>
      %976 = math.exp %975 : vector<16x32xf32>
      %977 = math.log1p %976 : vector<16x32xf32>
      %978 = arith.addf %967, %977 : vector<16x32xf32>
      %979 = arith.select %970, %972, %978 : vector<16x32xi1>, vector<16x32xf32>
      %980 = math.tanh %979 : vector<16x32xf32>
      %981 = arith.mulf %965, %980 : vector<16x32xf32>
      %c1_437 = arith.constant 1 : index
      %c0_438 = arith.constant 0 : index
      %c0_439 = arith.constant 0 : index
      %982 = vector.load %arg5[%c1_437, %c0_438, %c0_439] : memref<2x1x32xf32, #tpu.memory_space<vmem>>, vector<1x1x32xf32>
      %983 = vector.shape_cast %982 : vector<1x1x32xf32> to vector<1x32xf32>
      %c0_440 = arith.constant 0 : index
      %c0_441 = arith.constant 0 : index
      %984 = vector.load %arg20[%c0_440, %c0_441] : memref<32x128xbf16, #tpu.memory_space<vmem>>, vector<32x128xbf16>
      %985 = arith.truncf %983 : vector<1x32xf32> to vector<1x32xbf16>
      %cst_442 = arith.constant dense<0.000000e+00> : vector<1x128xf32>
      %986 = tpu.matmul %985, %984, %cst_442 {dimension_numbers = #tpu.dot_dimension_numbers<[1], [0], [0], [1], [0, 0, 1, 1], [], []>} : vector<1x32xbf16>, vector<32x128xbf16>, vector<1x128xf32> -> vector<1x128xf32>
      %c0_443 = arith.constant 0 : index
      %c0_444 = arith.constant 0 : index
      %987 = vector.load %arg21[%c0_443, %c0_444] : memref<1x128xf32, #tpu.memory_space<vmem>>, vector<1x128xf32>
      %988 = arith.addf %986, %987 : vector<1x128xf32>
      %cst_445 = arith.constant 0.000000e+00 : f32
      %989 = vector.broadcast %cst_445 : f32 to vector<1x128xf32>
      %990 = arith.maximumf %988, %989 : vector<1x128xf32>
      %991 = vector.broadcast %cst_445 : f32 to vector<1x128xf32>
      %992 = arith.subf %988, %991 : vector<1x128xf32>
      %993 = arith.cmpf one, %992, %992 : vector<1x128xf32>
      %994 = vector.broadcast %cst_445 : f32 to vector<1x128xf32>
      %995 = arith.addf %988, %994 : vector<1x128xf32>
      %996 = math.absf %992 : vector<1x128xf32>
      %cst_446 = arith.constant 0.000000e+00 : f32
      %997 = vector.broadcast %cst_446 : f32 to vector<1x128xf32>
      %998 = arith.subf %997, %996 : vector<1x128xf32>
      %999 = math.exp %998 : vector<1x128xf32>
      %1000 = math.log1p %999 : vector<1x128xf32>
      %1001 = arith.addf %990, %1000 : vector<1x128xf32>
      %1002 = arith.select %993, %995, %1001 : vector<1x128xi1>, vector<1x128xf32>
      %1003 = math.tanh %1002 : vector<1x128xf32>
      %1004 = arith.mulf %988, %1003 : vector<1x128xf32>
      %c0_447 = arith.constant 0 : index
      %c0_448 = arith.constant 0 : index
      %1005 = vector.load %arg22[%c0_447, %c0_448] : memref<128x32xbf16, #tpu.memory_space<vmem>>, vector<128x32xbf16>
      %1006 = arith.truncf %1004 : vector<1x128xf32> to vector<1x128xbf16>
      %cst_449 = arith.constant dense<0.000000e+00> : vector<1x32xf32>
      %1007 = tpu.matmul %1006, %1005, %cst_449 {dimension_numbers = #tpu.dot_dimension_numbers<[1], [0], [0], [1], [0, 0, 1, 1], [], []>} : vector<1x128xbf16>, vector<128x32xbf16>, vector<1x32xf32> -> vector<1x32xf32>
      %c0_450 = arith.constant 0 : index
      %c0_451 = arith.constant 0 : index
      %1008 = vector.load %arg23[%c0_450, %c0_451] : memref<1x32xf32, #tpu.memory_space<vmem>>, vector<1x32xf32>
      %1009 = arith.addf %1007, %1008 : vector<1x32xf32>
      %c1_452 = arith.constant 1 : index
      %c0_453 = arith.constant 0 : index
      %c0_454 = arith.constant 0 : index
      %1010 = vector.load %arg42[%c1_452, %c0_453, %c0_454] : memref<2x25x32xf32, #tpu.memory_space<vmem>>, vector<1x1x32xf32>
      %1011 = vector.shape_cast %1010 : vector<1x1x32xf32> to vector<1x32xf32>
      %1012 = vector.shape_cast %1009 : vector<1x32xf32> to vector<1x1x32xf32>
      tpu.vector_store %arg42[%c1_452, %c0_453, %c0_454], %1012 {strides = array<i32>} : memref<2x25x32xf32, #tpu.memory_space<vmem>>, vector<1x1x32xf32>,
      %1013 = vector.extract_strided_slice %825 {offsets = [0, 0], sizes = [4, 32], strides = [1, 1]} : vector<8x32xf32> to vector<4x32xf32>
      %c1_455 = arith.constant 1 : index
      %c1_456 = arith.constant 1 : index
      %c0_457 = arith.constant 0 : index
      %1014 = vector.load %arg42[%c1_455, %c1_456, %c0_457] : memref<2x25x32xf32, #tpu.memory_space<vmem>>, vector<1x4x32xf32>
      %1015 = vector.shape_cast %1014 : vector<1x4x32xf32> to vector<4x32xf32>
      %1016 = vector.shape_cast %1013 : vector<4x32xf32> to vector<1x4x32xf32>
      tpu.vector_store %arg42[%c1_455, %c1_456, %c0_457], %1016 {strides = array<i32>} : memref<2x25x32xf32, #tpu.memory_space<vmem>>, vector<1x4x32xf32>,
      %c1_458 = arith.constant 1 : index
      %c5_459 = arith.constant 5 : index
      %c0_460 = arith.constant 0 : index
      %1017 = vector.load %arg42[%c1_458, %c5_459, %c0_460] : memref<2x25x32xf32, #tpu.memory_space<vmem>>, vector<1x4x32xf32>
      %1018 = vector.shape_cast %1017 : vector<1x4x32xf32> to vector<4x32xf32>
      %1019 = vector.shape_cast %935 : vector<4x32xf32> to vector<1x4x32xf32>
      tpu.vector_store %arg42[%c1_458, %c5_459, %c0_460], %1019 {strides = array<i32>} : memref<2x25x32xf32, #tpu.memory_space<vmem>>, vector<1x4x32xf32>,
      %c1_461 = arith.constant 1 : index
      %c9_462 = arith.constant 9 : index
      %c0_463 = arith.constant 0 : index
      %1020 = vector.load %arg42[%c1_461, %c9_462, %c0_463] : memref<2x25x32xf32, #tpu.memory_space<vmem>>, vector<1x16x32xf32>
      %1021 = vector.shape_cast %1020 : vector<1x16x32xf32> to vector<16x32xf32>
      %1022 = vector.shape_cast %981 : vector<16x32xf32> to vector<1x16x32xf32>
      tpu.vector_store %arg42[%c1_461, %c9_462, %c0_463], %1022 {strides = array<i32>} : memref<2x25x32xf32, #tpu.memory_space<vmem>>, vector<1x16x32xf32>,
      %c1_464 = arith.constant 1 : index
      %c0_465 = arith.constant 0 : index
      %c0_466 = arith.constant 0 : index
      %1023 = vector.load %arg3[%c1_464, %c0_465, %c0_466] : memref<2x16x3xf32, #tpu.memory_space<vmem>>, vector<1x16x3xf32>
      %1024 = vector.shape_cast %1023 : vector<1x16x3xf32> to vector<16x3xf32>
      %cst_467 = arith.constant 0.000000e+00 : f32
      %1025 = vector.broadcast %cst_467 : f32 to vector<1x3xf32>
      %1026 = tpu.concatenate %1025, %1024, %1025 in 0 : vector<1x3xf32>, vector<16x3xf32>, vector<1x3xf32> -> vector<18x3xf32>
      %1027 = arith.truncf %1026 : vector<18x3xf32> to vector<18x3xbf16>
      %c0_468 = arith.constant 0 : index
      %c0_469 = arith.constant 0 : index
      %1028 = vector.load %arg11[%c0_468, %c0_469] : memref<1x64xf32, #tpu.memory_space<vmem>>, vector<1x64xf32>
      %1029 = vector.extract_strided_slice %1027 {offsets = [0, 0], sizes = [16, 3], strides = [1, 1]} : vector<18x3xbf16> to vector<16x3xbf16>
      %c0_470 = arith.constant 0 : index
      %c0_471 = arith.constant 0 : index
      %c0_472 = arith.constant 0 : index
      %1030 = vector.load %arg10[%c0_470, %c0_471, %c0_472] : memref<3x3x64xbf16, #tpu.memory_space<vmem>>, vector<1x3x64xbf16>
      %1031 = vector.shape_cast %1030 : vector<1x3x64xbf16> to vector<3x64xbf16>
      %cst_473 = arith.constant dense<0.000000e+00> : vector<16x64xf32>
      %1032 = tpu.matmul %1029, %1031, %cst_473 {dimension_numbers = #tpu.dot_dimension_numbers<[1], [0], [0], [1], [0, 0, 1, 1], [], []>} : vector<16x3xbf16>, vector<3x64xbf16>, vector<16x64xf32> -> vector<16x64xf32>
      %1033 = vector.broadcast %1028 : vector<1x64xf32> to vector<16x64xf32>
      %1034 = arith.addf %1033, %1032 : vector<16x64xf32>
      %1035 = vector.extract_strided_slice %1027 {offsets = [1, 0], sizes = [16, 3], strides = [1, 1]} : vector<18x3xbf16> to vector<16x3xbf16>
      %c1_474 = arith.constant 1 : index
      %c0_475 = arith.constant 0 : index
      %c0_476 = arith.constant 0 : index
      %1036 = vector.load %arg10[%c1_474, %c0_475, %c0_476] : memref<3x3x64xbf16, #tpu.memory_space<vmem>>, vector<1x3x64xbf16>
      %1037 = vector.shape_cast %1036 : vector<1x3x64xbf16> to vector<3x64xbf16>
      %cst_477 = arith.constant dense<0.000000e+00> : vector<16x64xf32>
      %1038 = tpu.matmul %1035, %1037, %cst_477 {dimension_numbers = #tpu.dot_dimension_numbers<[1], [0], [0], [1], [0, 0, 1, 1], [], []>} : vector<16x3xbf16>, vector<3x64xbf16>, vector<16x64xf32> -> vector<16x64xf32>
      %1039 = arith.addf %1034, %1038 : vector<16x64xf32>
      %1040 = vector.extract_strided_slice %1027 {offsets = [2, 0], sizes = [16, 3], strides = [1, 1]} : vector<18x3xbf16> to vector<16x3xbf16>
      %c2_478 = arith.constant 2 : index
      %c0_479 = arith.constant 0 : index
      %c0_480 = arith.constant 0 : index
      %1041 = vector.load %arg10[%c2_478, %c0_479, %c0_480] : memref<3x3x64xbf16, #tpu.memory_space<vmem>>, vector<1x3x64xbf16>
      %1042 = vector.shape_cast %1041 : vector<1x3x64xbf16> to vector<3x64xbf16>
      %cst_481 = arith.constant dense<0.000000e+00> : vector<16x64xf32>
      %1043 = tpu.matmul %1040, %1042, %cst_481 {dimension_numbers = #tpu.dot_dimension_numbers<[1], [0], [0], [1], [0, 0, 1, 1], [], []>} : vector<16x3xbf16>, vector<3x64xbf16>, vector<16x64xf32> -> vector<16x64xf32>
      %1044 = arith.addf %1039, %1043 : vector<16x64xf32>
      %cst_482 = arith.constant 0.000000e+00 : f32
      %1045 = vector.broadcast %cst_482 : f32 to vector<16x64xf32>
      %1046 = arith.maximumf %1044, %1045 : vector<16x64xf32>
      %1047 = vector.broadcast %cst_482 : f32 to vector<16x64xf32>
      %1048 = arith.subf %1044, %1047 : vector<16x64xf32>
      %1049 = arith.cmpf one, %1048, %1048 : vector<16x64xf32>
      %1050 = vector.broadcast %cst_482 : f32 to vector<16x64xf32>
      %1051 = arith.addf %1044, %1050 : vector<16x64xf32>
      %1052 = math.absf %1048 : vector<16x64xf32>
      %cst_483 = arith.constant 0.000000e+00 : f32
      %1053 = vector.broadcast %cst_483 : f32 to vector<16x64xf32>
      %1054 = arith.subf %1053, %1052 : vector<16x64xf32>
      %1055 = math.exp %1054 : vector<16x64xf32>
      %1056 = math.log1p %1055 : vector<16x64xf32>
      %1057 = arith.addf %1046, %1056 : vector<16x64xf32>
      %1058 = arith.select %1049, %1051, %1057 : vector<16x64xi1>, vector<16x64xf32>
      %1059 = math.tanh %1058 : vector<16x64xf32>
      %1060 = arith.mulf %1044, %1059 : vector<16x64xf32>
      %cst_484 = arith.constant 0.000000e+00 : f32
      %1061 = vector.broadcast %cst_484 : f32 to vector<3x64xf32>
      %1062 = tpu.concatenate %1061, %1060, %1061 in 0 : vector<3x64xf32>, vector<16x64xf32>, vector<3x64xf32> -> vector<22x64xf32>
      %1063 = arith.truncf %1062 : vector<22x64xf32> to vector<22x64xbf16>
      %c0_485 = arith.constant 0 : index
      %c0_486 = arith.constant 0 : index
      %1064 = vector.load %arg13[%c0_485, %c0_486] : memref<1x32xf32, #tpu.memory_space<vmem>>, vector<1x32xf32>
      %1065 = vector.extract_strided_slice %1063 {offsets = [0, 0], sizes = [16, 64], strides = [1, 1]} : vector<22x64xbf16> to vector<16x64xbf16>
      %c0_487 = arith.constant 0 : index
      %c0_488 = arith.constant 0 : index
      %c0_489 = arith.constant 0 : index
      %1066 = vector.load %arg12[%c0_487, %c0_488, %c0_489] : memref<3x64x32xbf16, #tpu.memory_space<vmem>>, vector<1x64x32xbf16>
      %1067 = vector.shape_cast %1066 : vector<1x64x32xbf16> to vector<64x32xbf16>
      %cst_490 = arith.constant dense<0.000000e+00> : vector<16x32xf32>
      %1068 = tpu.matmul %1065, %1067, %cst_490 {dimension_numbers = #tpu.dot_dimension_numbers<[1], [0], [0], [1], [0, 0, 1, 1], [], []>} : vector<16x64xbf16>, vector<64x32xbf16>, vector<16x32xf32> -> vector<16x32xf32>
      %1069 = vector.broadcast %1064 : vector<1x32xf32> to vector<16x32xf32>
      %1070 = arith.addf %1069, %1068 : vector<16x32xf32>
      %1071 = vector.extract_strided_slice %1063 {offsets = [3, 0], sizes = [16, 64], strides = [1, 1]} : vector<22x64xbf16> to vector<16x64xbf16>
      %c1_491 = arith.constant 1 : index
      %c0_492 = arith.constant 0 : index
      %c0_493 = arith.constant 0 : index
      %1072 = vector.load %arg12[%c1_491, %c0_492, %c0_493] : memref<3x64x32xbf16, #tpu.memory_space<vmem>>, vector<1x64x32xbf16>
      %1073 = vector.shape_cast %1072 : vector<1x64x32xbf16> to vector<64x32xbf16>
      %cst_494 = arith.constant dense<0.000000e+00> : vector<16x32xf32>
      %1074 = tpu.matmul %1071, %1073, %cst_494 {dimension_numbers = #tpu.dot_dimension_numbers<[1], [0], [0], [1], [0, 0, 1, 1], [], []>} : vector<16x64xbf16>, vector<64x32xbf16>, vector<16x32xf32> -> vector<16x32xf32>
      %1075 = arith.addf %1070, %1074 : vector<16x32xf32>
      %1076 = vector.extract_strided_slice %1063 {offsets = [6, 0], sizes = [16, 64], strides = [1, 1]} : vector<22x64xbf16> to vector<16x64xbf16>
      %c2_495 = arith.constant 2 : index
      %c0_496 = arith.constant 0 : index
      %c0_497 = arith.constant 0 : index
      %1077 = vector.load %arg12[%c2_495, %c0_496, %c0_497] : memref<3x64x32xbf16, #tpu.memory_space<vmem>>, vector<1x64x32xbf16>
      %1078 = vector.shape_cast %1077 : vector<1x64x32xbf16> to vector<64x32xbf16>
      %cst_498 = arith.constant dense<0.000000e+00> : vector<16x32xf32>
      %1079 = tpu.matmul %1076, %1078, %cst_498 {dimension_numbers = #tpu.dot_dimension_numbers<[1], [0], [0], [1], [0, 0, 1, 1], [], []>} : vector<16x64xbf16>, vector<64x32xbf16>, vector<16x32xf32> -> vector<16x32xf32>
      %1080 = arith.addf %1075, %1079 : vector<16x32xf32>
      %cst_499 = arith.constant 0.000000e+00 : f32
      %1081 = vector.broadcast %cst_499 : f32 to vector<16x32xf32>
      %1082 = arith.maximumf %1080, %1081 : vector<16x32xf32>
      %1083 = vector.broadcast %cst_499 : f32 to vector<16x32xf32>
      %1084 = arith.subf %1080, %1083 : vector<16x32xf32>
      %1085 = arith.cmpf one, %1084, %1084 : vector<16x32xf32>
      %1086 = vector.broadcast %cst_499 : f32 to vector<16x32xf32>
      %1087 = arith.addf %1080, %1086 : vector<16x32xf32>
      %1088 = math.absf %1084 : vector<16x32xf32>
      %cst_500 = arith.constant 0.000000e+00 : f32
      %1089 = vector.broadcast %cst_500 : f32 to vector<16x32xf32>
      %1090 = arith.subf %1089, %1088 : vector<16x32xf32>
      %1091 = math.exp %1090 : vector<16x32xf32>
      %1092 = math.log1p %1091 : vector<16x32xf32>
      %1093 = arith.addf %1082, %1092 : vector<16x32xf32>
      %1094 = arith.select %1085, %1087, %1093 : vector<16x32xi1>, vector<16x32xf32>
      %1095 = math.tanh %1094 : vector<16x32xf32>
      %1096 = arith.mulf %1080, %1095 : vector<16x32xf32>
      %cst_501 = arith.constant 0.000000e+00 : f32
      %1097 = vector.broadcast %cst_501 : f32 to vector<3x32xf32>
      %1098 = tpu.concatenate %1097, %1096, %1097 in 0 : vector<3x32xf32>, vector<16x32xf32>, vector<3x32xf32> -> vector<22x32xf32>
      %1099 = arith.truncf %1098 : vector<22x32xf32> to vector<22x32xbf16>
      %c0_502 = arith.constant 0 : index
      %c0_503 = arith.constant 0 : index
      %1100 = vector.load %arg15[%c0_502, %c0_503] : memref<1x32xf32, #tpu.memory_space<vmem>>, vector<1x32xf32>
      %1101 = vector.extract_strided_slice %1099 {offsets = [0, 0], sizes = [16, 32], strides = [1, 1]} : vector<22x32xbf16> to vector<16x32xbf16>
      %c0_504 = arith.constant 0 : index
      %c0_505 = arith.constant 0 : index
      %c0_506 = arith.constant 0 : index
      %1102 = vector.load %arg14[%c0_504, %c0_505, %c0_506] : memref<3x32x32xbf16, #tpu.memory_space<vmem>>, vector<1x32x32xbf16>
      %1103 = vector.shape_cast %1102 : vector<1x32x32xbf16> to vector<32x32xbf16>
      %cst_507 = arith.constant dense<0.000000e+00> : vector<16x32xf32>
      %1104 = tpu.matmul %1101, %1103, %cst_507 {dimension_numbers = #tpu.dot_dimension_numbers<[1], [0], [0], [1], [0, 0, 1, 1], [], []>} : vector<16x32xbf16>, vector<32x32xbf16>, vector<16x32xf32> -> vector<16x32xf32>
      %1105 = vector.broadcast %1100 : vector<1x32xf32> to vector<16x32xf32>
      %1106 = arith.addf %1105, %1104 : vector<16x32xf32>
      %1107 = vector.extract_strided_slice %1099 {offsets = [3, 0], sizes = [16, 32], strides = [1, 1]} : vector<22x32xbf16> to vector<16x32xbf16>
      %c1_508 = arith.constant 1 : index
      %c0_509 = arith.constant 0 : index
      %c0_510 = arith.constant 0 : index
      %1108 = vector.load %arg14[%c1_508, %c0_509, %c0_510] : memref<3x32x32xbf16, #tpu.memory_space<vmem>>, vector<1x32x32xbf16>
      %1109 = vector.shape_cast %1108 : vector<1x32x32xbf16> to vector<32x32xbf16>
      %cst_511 = arith.constant dense<0.000000e+00> : vector<16x32xf32>
      %1110 = tpu.matmul %1107, %1109, %cst_511 {dimension_numbers = #tpu.dot_dimension_numbers<[1], [0], [0], [1], [0, 0, 1, 1], [], []>} : vector<16x32xbf16>, vector<32x32xbf16>, vector<16x32xf32> -> vector<16x32xf32>
      %1111 = arith.addf %1106, %1110 : vector<16x32xf32>
      %1112 = vector.extract_strided_slice %1099 {offsets = [6, 0], sizes = [16, 32], strides = [1, 1]} : vector<22x32xbf16> to vector<16x32xbf16>
      %c2_512 = arith.constant 2 : index
      %c0_513 = arith.constant 0 : index
      %c0_514 = arith.constant 0 : index
      %1113 = vector.load %arg14[%c2_512, %c0_513, %c0_514] : memref<3x32x32xbf16, #tpu.memory_space<vmem>>, vector<1x32x32xbf16>
      %1114 = vector.shape_cast %1113 : vector<1x32x32xbf16> to vector<32x32xbf16>
      %cst_515 = arith.constant dense<0.000000e+00> : vector<16x32xf32>
      %1115 = tpu.matmul %1112, %1114, %cst_515 {dimension_numbers = #tpu.dot_dimension_numbers<[1], [0], [0], [1], [0, 0, 1, 1], [], []>} : vector<16x32xbf16>, vector<32x32xbf16>, vector<16x32xf32> -> vector<16x32xf32>
      %1116 = arith.addf %1111, %1115 : vector<16x32xf32>
      %cst_516 = arith.constant 0.000000e+00 : f32
      %1117 = vector.broadcast %cst_516 : f32 to vector<16x32xf32>
      %1118 = arith.maximumf %1116, %1117 : vector<16x32xf32>
      %1119 = vector.broadcast %cst_516 : f32 to vector<16x32xf32>
      %1120 = arith.subf %1116, %1119 : vector<16x32xf32>
      %1121 = arith.cmpf one, %1120, %1120 : vector<16x32xf32>
      %1122 = vector.broadcast %cst_516 : f32 to vector<16x32xf32>
      %1123 = arith.addf %1116, %1122 : vector<16x32xf32>
      %1124 = math.absf %1120 : vector<16x32xf32>
      %cst_517 = arith.constant 0.000000e+00 : f32
      %1125 = vector.broadcast %cst_517 : f32 to vector<16x32xf32>
      %1126 = arith.subf %1125, %1124 : vector<16x32xf32>
      %1127 = math.exp %1126 : vector<16x32xf32>
      %1128 = math.log1p %1127 : vector<16x32xf32>
      %1129 = arith.addf %1118, %1128 : vector<16x32xf32>
      %1130 = arith.select %1121, %1123, %1129 : vector<16x32xi1>, vector<16x32xf32>
      %1131 = math.tanh %1130 : vector<16x32xf32>
      %1132 = arith.mulf %1116, %1131 : vector<16x32xf32>
      %c1_518 = arith.constant 1 : index
      %c0_519 = arith.constant 0 : index
      %c0_520 = arith.constant 0 : index
      %1133 = vector.load %arg43[%c1_518, %c0_519, %c0_520] : memref<2x16x32xf32, #tpu.memory_space<vmem>>, vector<1x16x32xf32>
      %1134 = vector.shape_cast %1133 : vector<1x16x32xf32> to vector<16x32xf32>
      %1135 = vector.shape_cast %1132 : vector<16x32xf32> to vector<1x16x32xf32>
      tpu.vector_store %arg43[%c1_518, %c0_519, %c0_520], %1135 {strides = array<i32>} : memref<2x16x32xf32, #tpu.memory_space<vmem>>, vector<1x16x32xf32>,
    } else {
    }
    %c0 = arith.constant 0 : index
    %c0_1 = arith.constant 0 : index
    %c0_2 = arith.constant 0 : index
    %3 = vector.load %arg25[%c0, %c0_1, %c0_2] : memref<1x32x32xbf16, #tpu.memory_space<vmem>>, vector<1x32x32xbf16>
    %4 = vector.shape_cast %3 : vector<1x32x32xbf16> to vector<32x32xbf16>
    %c0_3 = arith.constant 0 : index
    %c0_4 = arith.constant 0 : index
    %c0_5 = arith.constant 0 : index
    %5 = vector.load %arg27[%c0_3, %c0_4, %c0_5] : memref<1x32x32xbf16, #tpu.memory_space<vmem>>, vector<1x32x32xbf16>
    %6 = vector.shape_cast %5 : vector<1x32x32xbf16> to vector<32x32xbf16>
    %c0_6 = arith.constant 0 : index
    %c0_7 = arith.constant 0 : index
    %c0_8 = arith.constant 0 : index
    %7 = vector.load %arg29[%c0_6, %c0_7, %c0_8] : memref<1x32x32xbf16, #tpu.memory_space<vmem>>, vector<1x32x32xbf16>
    %8 = vector.shape_cast %7 : vector<1x32x32xbf16> to vector<32x32xbf16>
    %c0_9 = arith.constant 0 : index
    %c0_10 = arith.constant 0 : index
    %c0_11 = arith.constant 0 : index
    %9 = vector.load %arg26[%c0_9, %c0_10, %c0_11] : memref<1x1x32xf32, #tpu.memory_space<vmem>>, vector<1x1x32xf32>
    %10 = vector.shape_cast %9 : vector<1x1x32xf32> to vector<1x32xf32>
    %c0_12 = arith.constant 0 : index
    %c0_13 = arith.constant 0 : index
    %c0_14 = arith.constant 0 : index
    %11 = vector.load %arg28[%c0_12, %c0_13, %c0_14] : memref<1x1x32xf32, #tpu.memory_space<vmem>>, vector<1x1x32xf32>
    %12 = vector.shape_cast %11 : vector<1x1x32xf32> to vector<1x32xf32>
    %c0_15 = arith.constant 0 : index
    %c0_16 = arith.constant 0 : index
    %c0_17 = arith.constant 0 : index
    %13 = vector.load %arg30[%c0_15, %c0_16, %c0_17] : memref<1x1x32xf32, #tpu.memory_space<vmem>>, vector<1x1x32xf32>
    %14 = vector.shape_cast %13 : vector<1x1x32xf32> to vector<1x32xf32>
    %c0_18 = arith.constant 0 : index
    %c0_19 = arith.constant 0 : index
    %c0_20 = arith.constant 0 : index
    %c0_21 = arith.constant 0 : index
    %15 = vector.load %arg31[%c0_18, %c0_19, %c0_20, %c0_21] : memref<1x4x8x32xbf16, #tpu.memory_space<vmem>>, vector<1x4x8x32xbf16>
    %16 = vector.shape_cast %15 : vector<1x4x8x32xbf16> to vector<4x8x32xbf16>
    %c0_22 = arith.constant 0 : index
    %c0_23 = arith.constant 0 : index
    %c0_24 = arith.constant 0 : index
    %17 = vector.load %arg32[%c0_22, %c0_23, %c0_24] : memref<1x1x32xf32, #tpu.memory_space<vmem>>, vector<1x1x32xf32>
    %18 = vector.shape_cast %17 : vector<1x1x32xf32> to vector<1x32xf32>
    %c0_25 = arith.constant 0 : index
    %c0_26 = arith.constant 0 : index
    %c0_27 = arith.constant 0 : index
    %19 = vector.load %arg33[%c0_25, %c0_26, %c0_27] : memref<1x1x32xf32, #tpu.memory_space<vmem>>, vector<1x1x32xf32>
    %20 = vector.shape_cast %19 : vector<1x1x32xf32> to vector<1x32xf32>
    %c0_28 = arith.constant 0 : index
    %c0_29 = arith.constant 0 : index
    %c0_30 = arith.constant 0 : index
    %21 = vector.load %arg34[%c0_28, %c0_29, %c0_30] : memref<1x1x32xf32, #tpu.memory_space<vmem>>, vector<1x1x32xf32>
    %22 = vector.shape_cast %21 : vector<1x1x32xf32> to vector<1x32xf32>
    %c0_31 = arith.constant 0 : index
    %c0_32 = arith.constant 0 : index
    %c0_33 = arith.constant 0 : index
    %23 = vector.load %arg35[%c0_31, %c0_32, %c0_33] : memref<1x32x32xbf16, #tpu.memory_space<vmem>>, vector<1x32x32xbf16>
    %24 = vector.shape_cast %23 : vector<1x32x32xbf16> to vector<32x32xbf16>
    %c0_34 = arith.constant 0 : index
    %c0_35 = arith.constant 0 : index
    %c0_36 = arith.constant 0 : index
    %25 = vector.load %arg36[%c0_34, %c0_35, %c0_36] : memref<1x1x32xf32, #tpu.memory_space<vmem>>, vector<1x1x32xf32>
    %26 = vector.shape_cast %25 : vector<1x1x32xf32> to vector<1x32xf32>
    %c0_37 = arith.constant 0 : index
    %c0_38 = arith.constant 0 : index
    %c0_39 = arith.constant 0 : index
    %27 = vector.load %arg37[%c0_37, %c0_38, %c0_39] : memref<1x32x32xbf16, #tpu.memory_space<vmem>>, vector<1x32x32xbf16>
    %28 = vector.shape_cast %27 : vector<1x32x32xbf16> to vector<32x32xbf16>
    %c0_40 = arith.constant 0 : index
    %c0_41 = arith.constant 0 : index
    %c0_42 = arith.constant 0 : index
    %29 = vector.load %arg38[%c0_40, %c0_41, %c0_42] : memref<1x1x32xf32, #tpu.memory_space<vmem>>, vector<1x1x32xf32>
    %30 = vector.shape_cast %29 : vector<1x1x32xf32> to vector<1x32xf32>
    %c0_43 = arith.constant 0 : index
    %c0_44 = arith.constant 0 : index
    %c0_45 = arith.constant 0 : index
    %31 = vector.load %arg39[%c0_43, %c0_44, %c0_45] : memref<1x1x32xf32, #tpu.memory_space<vmem>>, vector<1x1x32xf32>
    %32 = vector.shape_cast %31 : vector<1x1x32xf32> to vector<1x32xf32>
    %c0_46 = arith.constant 0 : index
    %c0_47 = arith.constant 0 : index
    %c0_48 = arith.constant 0 : index
    %33 = vector.load %arg40[%c0_46, %c0_47, %c0_48] : memref<1x1x32xf32, #tpu.memory_space<vmem>>, vector<1x1x32xf32>
    %34 = vector.shape_cast %33 : vector<1x1x32xf32> to vector<1x32xf32>
    %c0_49 = arith.constant 0 : index
    %c0_50 = arith.constant 0 : index
    %c0_51 = arith.constant 0 : index
    %35 = vector.load %arg43[%c0_49, %c0_50, %c0_51] : memref<2x16x32xf32, #tpu.memory_space<vmem>>, vector<1x16x32xf32>
    %36 = vector.shape_cast %35 : vector<1x16x32xf32> to vector<16x32xf32>
    %c0_52 = arith.constant 0 : index
    %c0_53 = arith.constant 0 : index
    %c0_54 = arith.constant 0 : index
    %37 = vector.load %arg42[%c0_52, %c0_53, %c0_54] : memref<2x25x32xf32, #tpu.memory_space<vmem>>, vector<1x25x32xf32>
    %38 = vector.shape_cast %37 : vector<1x25x32xf32> to vector<25x32xf32>
    %39 = arith.truncf %36 : vector<16x32xf32> to vector<16x32xbf16>
    %cst = arith.constant dense<0.000000e+00> : vector<16x32xf32>
    %40 = tpu.matmul %39, %4, %cst {dimension_numbers = #tpu.dot_dimension_numbers<[1], [0], [0], [1], [0, 0, 1, 1], [], []>} : vector<16x32xbf16>, vector<32x32xbf16>, vector<16x32xf32> -> vector<16x32xf32>
    %41 = vector.broadcast %10 : vector<1x32xf32> to vector<16x32xf32>
    %42 = arith.addf %40, %41 : vector<16x32xf32>
    %cst_55 = arith.constant 0.353553385 : f32
    %43 = vector.broadcast %cst_55 : f32 to vector<16x32xf32>
    %44 = arith.mulf %42, %43 : vector<16x32xf32>
    %45 = arith.truncf %44 : vector<16x32xf32> to vector<16x32xbf16>
    %46 = arith.truncf %38 : vector<25x32xf32> to vector<25x32xbf16>
    %cst_56 = arith.constant dense<0.000000e+00> : vector<25x32xf32>
    %47 = tpu.matmul %46, %6, %cst_56 {dimension_numbers = #tpu.dot_dimension_numbers<[1], [0], [0], [1], [0, 0, 1, 1], [], []>} : vector<25x32xbf16>, vector<32x32xbf16>, vector<25x32xf32> -> vector<25x32xf32>
    %48 = vector.broadcast %12 : vector<1x32xf32> to vector<25x32xf32>
    %49 = arith.addf %47, %48 : vector<25x32xf32>
    %50 = arith.truncf %49 : vector<25x32xf32> to vector<25x32xbf16>
    %51 = arith.truncf %38 : vector<25x32xf32> to vector<25x32xbf16>
    %cst_57 = arith.constant dense<0.000000e+00> : vector<25x32xf32>
    %52 = tpu.matmul %51, %8, %cst_57 {dimension_numbers = #tpu.dot_dimension_numbers<[1], [0], [0], [1], [0, 0, 1, 1], [], []>} : vector<25x32xbf16>, vector<32x32xbf16>, vector<25x32xf32> -> vector<25x32xf32>
    %53 = vector.broadcast %14 : vector<1x32xf32> to vector<25x32xf32>
    %54 = arith.addf %52, %53 : vector<25x32xf32>
    %55 = arith.truncf %54 : vector<25x32xf32> to vector<25x32xbf16>
    %56 = vector.extract_strided_slice %45 {offsets = [0, 0], sizes = [16, 8], strides = [1, 1]} : vector<16x32xbf16> to vector<16x8xbf16>
    %57 = vector.extract_strided_slice %50 {offsets = [0, 0], sizes = [25, 8], strides = [1, 1]} : vector<25x32xbf16> to vector<25x8xbf16>
    %58 = vector.extract_strided_slice %55 {offsets = [0, 0], sizes = [25, 8], strides = [1, 1]} : vector<25x32xbf16> to vector<25x8xbf16>
    %cst_58 = arith.constant dense<0.000000e+00> : vector<16x25xf32>
    %59 = tpu.matmul %56, %57, %cst_58 {dimension_numbers = #tpu.dot_dimension_numbers<[1], [1], [0], [0], [0, 0, 1, 0], [], []>} : vector<16x8xbf16>, vector<25x8xbf16>, vector<16x25xf32> -> vector<16x25xf32>
    %cst_59 = arith.constant dense<0xFF800000> : vector<16xf32>
    %60 = vector.multi_reduction <maximumf>, %59, %cst_59 [1] : vector<16x25xf32> to vector<16xf32>
    %61 = vector.shape_cast %60 : vector<16xf32> to vector<16x1xf32>
    %62 = vector.broadcast %61 : vector<16x1xf32> to vector<16x25xf32>
    %63 = arith.subf %59, %62 : vector<16x25xf32>
    %64 = math.exp %63 : vector<16x25xf32>
    %cst_60 = arith.constant dense<0.000000e+00> : vector<16xf32>
    %65 = vector.multi_reduction <add>, %64, %cst_60 [1] : vector<16x25xf32> to vector<16xf32>
    %66 = vector.shape_cast %65 : vector<16xf32> to vector<16x1xf32>
    %67 = tpu.reciprocal %66 {approx = true} : vector<16x1xf32> -> vector<16x1xf32>
    %68 = vector.broadcast %67 : vector<16x1xf32> to vector<16x25xf32>
    %69 = arith.mulf %64, %68 : vector<16x25xf32>
    %70 = arith.truncf %69 : vector<16x25xf32> to vector<16x25xbf16>
    %cst_61 = arith.constant dense<0.000000e+00> : vector<16x8xf32>
    %71 = tpu.matmul %70, %58, %cst_61 {dimension_numbers = #tpu.dot_dimension_numbers<[1], [0], [0], [1], [0, 0, 1, 1], [], []>} : vector<16x25xbf16>, vector<25x8xbf16>, vector<16x8xf32> -> vector<16x8xf32>
    %72 = arith.truncf %71 : vector<16x8xf32> to vector<16x8xbf16>
    %73 = vector.extract_strided_slice %16 {offsets = [0, 0, 0], sizes = [1, 8, 32], strides = [1, 1, 1]} : vector<4x8x32xbf16> to vector<1x8x32xbf16>
    %74 = vector.shape_cast %73 : vector<1x8x32xbf16> to vector<8x32xbf16>
    %cst_62 = arith.constant dense<0.000000e+00> : vector<16x32xf32>
    %75 = tpu.matmul %72, %74, %cst_62 {dimension_numbers = #tpu.dot_dimension_numbers<[1], [0], [0], [1], [0, 0, 1, 1], [], []>} : vector<16x8xbf16>, vector<8x32xbf16>, vector<16x32xf32> -> vector<16x32xf32>
    %76 = vector.extract_strided_slice %45 {offsets = [0, 8], sizes = [16, 8], strides = [1, 1]} : vector<16x32xbf16> to vector<16x8xbf16>
    %77 = vector.extract_strided_slice %50 {offsets = [0, 8], sizes = [25, 8], strides = [1, 1]} : vector<25x32xbf16> to vector<25x8xbf16>
    %78 = vector.extract_strided_slice %55 {offsets = [0, 8], sizes = [25, 8], strides = [1, 1]} : vector<25x32xbf16> to vector<25x8xbf16>
    %cst_63 = arith.constant dense<0.000000e+00> : vector<16x25xf32>
    %79 = tpu.matmul %76, %77, %cst_63 {dimension_numbers = #tpu.dot_dimension_numbers<[1], [1], [0], [0], [0, 0, 1, 0], [], []>} : vector<16x8xbf16>, vector<25x8xbf16>, vector<16x25xf32> -> vector<16x25xf32>
    %cst_64 = arith.constant dense<0xFF800000> : vector<16xf32>
    %80 = vector.multi_reduction <maximumf>, %79, %cst_64 [1] : vector<16x25xf32> to vector<16xf32>
    %81 = vector.shape_cast %80 : vector<16xf32> to vector<16x1xf32>
    %82 = vector.broadcast %81 : vector<16x1xf32> to vector<16x25xf32>
    %83 = arith.subf %79, %82 : vector<16x25xf32>
    %84 = math.exp %83 : vector<16x25xf32>
    %cst_65 = arith.constant dense<0.000000e+00> : vector<16xf32>
    %85 = vector.multi_reduction <add>, %84, %cst_65 [1] : vector<16x25xf32> to vector<16xf32>
    %86 = vector.shape_cast %85 : vector<16xf32> to vector<16x1xf32>
    %87 = tpu.reciprocal %86 {approx = true} : vector<16x1xf32> -> vector<16x1xf32>
    %88 = vector.broadcast %87 : vector<16x1xf32> to vector<16x25xf32>
    %89 = arith.mulf %84, %88 : vector<16x25xf32>
    %90 = arith.truncf %89 : vector<16x25xf32> to vector<16x25xbf16>
    %cst_66 = arith.constant dense<0.000000e+00> : vector<16x8xf32>
    %91 = tpu.matmul %90, %78, %cst_66 {dimension_numbers = #tpu.dot_dimension_numbers<[1], [0], [0], [1], [0, 0, 1, 1], [], []>} : vector<16x25xbf16>, vector<25x8xbf16>, vector<16x8xf32> -> vector<16x8xf32>
    %92 = arith.truncf %91 : vector<16x8xf32> to vector<16x8xbf16>
    %93 = vector.extract_strided_slice %16 {offsets = [1, 0, 0], sizes = [1, 8, 32], strides = [1, 1, 1]} : vector<4x8x32xbf16> to vector<1x8x32xbf16>
    %94 = vector.shape_cast %93 : vector<1x8x32xbf16> to vector<8x32xbf16>
    %cst_67 = arith.constant dense<0.000000e+00> : vector<16x32xf32>
    %95 = tpu.matmul %92, %94, %cst_67 {dimension_numbers = #tpu.dot_dimension_numbers<[1], [0], [0], [1], [0, 0, 1, 1], [], []>} : vector<16x8xbf16>, vector<8x32xbf16>, vector<16x32xf32> -> vector<16x32xf32>
    %96 = arith.addf %75, %95 : vector<16x32xf32>
    %97 = vector.extract_strided_slice %45 {offsets = [0, 16], sizes = [16, 8], strides = [1, 1]} : vector<16x32xbf16> to vector<16x8xbf16>
    %98 = vector.extract_strided_slice %50 {offsets = [0, 16], sizes = [25, 8], strides = [1, 1]} : vector<25x32xbf16> to vector<25x8xbf16>
    %99 = vector.extract_strided_slice %55 {offsets = [0, 16], sizes = [25, 8], strides = [1, 1]} : vector<25x32xbf16> to vector<25x8xbf16>
    %cst_68 = arith.constant dense<0.000000e+00> : vector<16x25xf32>
    %100 = tpu.matmul %97, %98, %cst_68 {dimension_numbers = #tpu.dot_dimension_numbers<[1], [1], [0], [0], [0, 0, 1, 0], [], []>} : vector<16x8xbf16>, vector<25x8xbf16>, vector<16x25xf32> -> vector<16x25xf32>
    %cst_69 = arith.constant dense<0xFF800000> : vector<16xf32>
    %101 = vector.multi_reduction <maximumf>, %100, %cst_69 [1] : vector<16x25xf32> to vector<16xf32>
    %102 = vector.shape_cast %101 : vector<16xf32> to vector<16x1xf32>
    %103 = vector.broadcast %102 : vector<16x1xf32> to vector<16x25xf32>
    %104 = arith.subf %100, %103 : vector<16x25xf32>
    %105 = math.exp %104 : vector<16x25xf32>
    %cst_70 = arith.constant dense<0.000000e+00> : vector<16xf32>
    %106 = vector.multi_reduction <add>, %105, %cst_70 [1] : vector<16x25xf32> to vector<16xf32>
    %107 = vector.shape_cast %106 : vector<16xf32> to vector<16x1xf32>
    %108 = tpu.reciprocal %107 {approx = true} : vector<16x1xf32> -> vector<16x1xf32>
    %109 = vector.broadcast %108 : vector<16x1xf32> to vector<16x25xf32>
    %110 = arith.mulf %105, %109 : vector<16x25xf32>
    %111 = arith.truncf %110 : vector<16x25xf32> to vector<16x25xbf16>
    %cst_71 = arith.constant dense<0.000000e+00> : vector<16x8xf32>
    %112 = tpu.matmul %111, %99, %cst_71 {dimension_numbers = #tpu.dot_dimension_numbers<[1], [0], [0], [1], [0, 0, 1, 1], [], []>} : vector<16x25xbf16>, vector<25x8xbf16>, vector<16x8xf32> -> vector<16x8xf32>
    %113 = arith.truncf %112 : vector<16x8xf32> to vector<16x8xbf16>
    %114 = vector.extract_strided_slice %16 {offsets = [2, 0, 0], sizes = [1, 8, 32], strides = [1, 1, 1]} : vector<4x8x32xbf16> to vector<1x8x32xbf16>
    %115 = vector.shape_cast %114 : vector<1x8x32xbf16> to vector<8x32xbf16>
    %cst_72 = arith.constant dense<0.000000e+00> : vector<16x32xf32>
    %116 = tpu.matmul %113, %115, %cst_72 {dimension_numbers = #tpu.dot_dimension_numbers<[1], [0], [0], [1], [0, 0, 1, 1], [], []>} : vector<16x8xbf16>, vector<8x32xbf16>, vector<16x32xf32> -> vector<16x32xf32>
    %117 = arith.addf %96, %116 : vector<16x32xf32>
    %118 = vector.extract_strided_slice %45 {offsets = [0, 24], sizes = [16, 8], strides = [1, 1]} : vector<16x32xbf16> to vector<16x8xbf16>
    %119 = vector.extract_strided_slice %50 {offsets = [0, 24], sizes = [25, 8], strides = [1, 1]} : vector<25x32xbf16> to vector<25x8xbf16>
    %120 = vector.extract_strided_slice %55 {offsets = [0, 24], sizes = [25, 8], strides = [1, 1]} : vector<25x32xbf16> to vector<25x8xbf16>
    %cst_73 = arith.constant dense<0.000000e+00> : vector<16x25xf32>
    %121 = tpu.matmul %118, %119, %cst_73 {dimension_numbers = #tpu.dot_dimension_numbers<[1], [1], [0], [0], [0, 0, 1, 0], [], []>} : vector<16x8xbf16>, vector<25x8xbf16>, vector<16x25xf32> -> vector<16x25xf32>
    %cst_74 = arith.constant dense<0xFF800000> : vector<16xf32>
    %122 = vector.multi_reduction <maximumf>, %121, %cst_74 [1] : vector<16x25xf32> to vector<16xf32>
    %123 = vector.shape_cast %122 : vector<16xf32> to vector<16x1xf32>
    %124 = vector.broadcast %123 : vector<16x1xf32> to vector<16x25xf32>
    %125 = arith.subf %121, %124 : vector<16x25xf32>
    %126 = math.exp %125 : vector<16x25xf32>
    %cst_75 = arith.constant dense<0.000000e+00> : vector<16xf32>
    %127 = vector.multi_reduction <add>, %126, %cst_75 [1] : vector<16x25xf32> to vector<16xf32>
    %128 = vector.shape_cast %127 : vector<16xf32> to vector<16x1xf32>
    %129 = tpu.reciprocal %128 {approx = true} : vector<16x1xf32> -> vector<16x1xf32>
    %130 = vector.broadcast %129 : vector<16x1xf32> to vector<16x25xf32>
    %131 = arith.mulf %126, %130 : vector<16x25xf32>
    %132 = arith.truncf %131 : vector<16x25xf32> to vector<16x25xbf16>
    %cst_76 = arith.constant dense<0.000000e+00> : vector<16x8xf32>
    %133 = tpu.matmul %132, %120, %cst_76 {dimension_numbers = #tpu.dot_dimension_numbers<[1], [0], [0], [1], [0, 0, 1, 1], [], []>} : vector<16x25xbf16>, vector<25x8xbf16>, vector<16x8xf32> -> vector<16x8xf32>
    %134 = arith.truncf %133 : vector<16x8xf32> to vector<16x8xbf16>
    %135 = vector.extract_strided_slice %16 {offsets = [3, 0, 0], sizes = [1, 8, 32], strides = [1, 1, 1]} : vector<4x8x32xbf16> to vector<1x8x32xbf16>
    %136 = vector.shape_cast %135 : vector<1x8x32xbf16> to vector<8x32xbf16>
    %cst_77 = arith.constant dense<0.000000e+00> : vector<16x32xf32>
    %137 = tpu.matmul %134, %136, %cst_77 {dimension_numbers = #tpu.dot_dimension_numbers<[1], [0], [0], [1], [0, 0, 1, 1], [], []>} : vector<16x8xbf16>, vector<8x32xbf16>, vector<16x32xf32> -> vector<16x32xf32>
    %138 = arith.addf %117, %137 : vector<16x32xf32>
    %139 = vector.broadcast %18 : vector<1x32xf32> to vector<16x32xf32>
    %140 = arith.addf %138, %139 : vector<16x32xf32>
    %141 = arith.addf %36, %140 : vector<16x32xf32>
    %cst_78 = arith.constant dense<0.000000e+00> : vector<16xf32>
    %142 = vector.multi_reduction <add>, %141, %cst_78 [1] : vector<16x32xf32> to vector<16xf32>
    %143 = vector.shape_cast %142 : vector<16xf32> to vector<16x1xf32>
    %cst_79 = arith.constant 3.200000e+01 : f32
    %144 = vector.broadcast %cst_79 : f32 to vector<16x1xf32>
    %145 = arith.divf %143, %144 : vector<16x1xf32>
    %146 = vector.broadcast %145 : vector<16x1xf32> to vector<16x32xf32>
    %147 = arith.subf %141, %146 : vector<16x32xf32>
    %148 = arith.mulf %147, %147 : vector<16x32xf32>
    %cst_80 = arith.constant dense<0.000000e+00> : vector<16xf32>
    %149 = vector.multi_reduction <add>, %148, %cst_80 [1] : vector<16x32xf32> to vector<16xf32>
    %150 = vector.shape_cast %149 : vector<16xf32> to vector<16x1xf32>
    %cst_81 = arith.constant 3.200000e+01 : f32
    %151 = vector.broadcast %cst_81 : f32 to vector<16x1xf32>
    %152 = arith.divf %150, %151 : vector<16x1xf32>
    %153 = vector.broadcast %145 : vector<16x1xf32> to vector<16x32xf32>
    %154 = arith.subf %141, %153 : vector<16x32xf32>
    %cst_82 = arith.constant 9.99999974E-6 : f32
    %155 = vector.broadcast %cst_82 : f32 to vector<16x1xf32>
    %156 = arith.addf %152, %155 : vector<16x1xf32>
    %157 = math.rsqrt %156 : vector<16x1xf32>
    %158 = vector.broadcast %157 : vector<16x1xf32> to vector<16x32xf32>
    %159 = arith.mulf %154, %158 : vector<16x32xf32>
    %160 = vector.broadcast %20 : vector<1x32xf32> to vector<16x32xf32>
    %161 = arith.mulf %159, %160 : vector<16x32xf32>
    %162 = vector.broadcast %22 : vector<1x32xf32> to vector<16x32xf32>
    %163 = arith.addf %161, %162 : vector<16x32xf32>
    %164 = arith.truncf %163 : vector<16x32xf32> to vector<16x32xbf16>
    %cst_83 = arith.constant dense<0.000000e+00> : vector<16x32xf32>
    %165 = tpu.matmul %164, %24, %cst_83 {dimension_numbers = #tpu.dot_dimension_numbers<[1], [0], [0], [1], [0, 0, 1, 1], [], []>} : vector<16x32xbf16>, vector<32x32xbf16>, vector<16x32xf32> -> vector<16x32xf32>
    %166 = vector.broadcast %26 : vector<1x32xf32> to vector<16x32xf32>
    %167 = arith.addf %165, %166 : vector<16x32xf32>
    %cst_84 = arith.constant 0.000000e+00 : f32
    %168 = vector.broadcast %cst_84 : f32 to vector<16x32xf32>
    %169 = arith.maximumf %167, %168 : vector<16x32xf32>
    %170 = arith.truncf %169 : vector<16x32xf32> to vector<16x32xbf16>
    %cst_85 = arith.constant dense<0.000000e+00> : vector<16x32xf32>
    %171 = tpu.matmul %170, %28, %cst_85 {dimension_numbers = #tpu.dot_dimension_numbers<[1], [0], [0], [1], [0, 0, 1, 1], [], []>} : vector<16x32xbf16>, vector<32x32xbf16>, vector<16x32xf32> -> vector<16x32xf32>
    %172 = vector.broadcast %30 : vector<1x32xf32> to vector<16x32xf32>
    %173 = arith.addf %171, %172 : vector<16x32xf32>
    %174 = arith.addf %163, %173 : vector<16x32xf32>
    %cst_86 = arith.constant dense<0.000000e+00> : vector<16xf32>
    %175 = vector.multi_reduction <add>, %174, %cst_86 [1] : vector<16x32xf32> to vector<16xf32>
    %176 = vector.shape_cast %175 : vector<16xf32> to vector<16x1xf32>
    %cst_87 = arith.constant 3.200000e+01 : f32
    %177 = vector.broadcast %cst_87 : f32 to vector<16x1xf32>
    %178 = arith.divf %176, %177 : vector<16x1xf32>
    %179 = vector.broadcast %178 : vector<16x1xf32> to vector<16x32xf32>
    %180 = arith.subf %174, %179 : vector<16x32xf32>
    %181 = arith.mulf %180, %180 : vector<16x32xf32>
    %cst_88 = arith.constant dense<0.000000e+00> : vector<16xf32>
    %182 = vector.multi_reduction <add>, %181, %cst_88 [1] : vector<16x32xf32> to vector<16xf32>
    %183 = vector.shape_cast %182 : vector<16xf32> to vector<16x1xf32>
    %cst_89 = arith.constant 3.200000e+01 : f32
    %184 = vector.broadcast %cst_89 : f32 to vector<16x1xf32>
    %185 = arith.divf %183, %184 : vector<16x1xf32>
    %186 = vector.broadcast %178 : vector<16x1xf32> to vector<16x32xf32>
    %187 = arith.subf %174, %186 : vector<16x32xf32>
    %cst_90 = arith.constant 9.99999974E-6 : f32
    %188 = vector.broadcast %cst_90 : f32 to vector<16x1xf32>
    %189 = arith.addf %185, %188 : vector<16x1xf32>
    %190 = math.rsqrt %189 : vector<16x1xf32>
    %191 = vector.broadcast %190 : vector<16x1xf32> to vector<16x32xf32>
    %192 = arith.mulf %187, %191 : vector<16x32xf32>
    %193 = vector.broadcast %32 : vector<1x32xf32> to vector<16x32xf32>
    %194 = arith.mulf %192, %193 : vector<16x32xf32>
    %195 = vector.broadcast %34 : vector<1x32xf32> to vector<16x32xf32>
    %196 = arith.addf %194, %195 : vector<16x32xf32>
    %c0_91 = arith.constant 0 : index
    %c0_92 = arith.constant 0 : index
    %c0_93 = arith.constant 0 : index
    %197 = vector.load %arg43[%c0_91, %c0_92, %c0_93] : memref<2x16x32xf32, #tpu.memory_space<vmem>>, vector<1x16x32xf32>
    %198 = vector.shape_cast %197 : vector<1x16x32xf32> to vector<16x32xf32>
    %199 = vector.shape_cast %196 : vector<16x32xf32> to vector<1x16x32xf32>
    tpu.vector_store %arg43[%c0_91, %c0_92, %c0_93], %199 {strides = array<i32>} : memref<2x16x32xf32, #tpu.memory_space<vmem>>, vector<1x16x32xf32>,
    %c1 = arith.constant 1 : index
    %c0_94 = arith.constant 0 : index
    %c0_95 = arith.constant 0 : index
    %200 = vector.load %arg43[%c1, %c0_94, %c0_95] : memref<2x16x32xf32, #tpu.memory_space<vmem>>, vector<1x16x32xf32>
    %201 = vector.shape_cast %200 : vector<1x16x32xf32> to vector<16x32xf32>
    %c1_96 = arith.constant 1 : index
    %c0_97 = arith.constant 0 : index
    %c0_98 = arith.constant 0 : index
    %202 = vector.load %arg42[%c1_96, %c0_97, %c0_98] : memref<2x25x32xf32, #tpu.memory_space<vmem>>, vector<1x25x32xf32>
    %203 = vector.shape_cast %202 : vector<1x25x32xf32> to vector<25x32xf32>
    %204 = arith.truncf %201 : vector<16x32xf32> to vector<16x32xbf16>
    %cst_99 = arith.constant dense<0.000000e+00> : vector<16x32xf32>
    %205 = tpu.matmul %204, %4, %cst_99 {dimension_numbers = #tpu.dot_dimension_numbers<[1], [0], [0], [1], [0, 0, 1, 1], [], []>} : vector<16x32xbf16>, vector<32x32xbf16>, vector<16x32xf32> -> vector<16x32xf32>
    %206 = vector.broadcast %10 : vector<1x32xf32> to vector<16x32xf32>
    %207 = arith.addf %205, %206 : vector<16x32xf32>
    %cst_100 = arith.constant 0.353553385 : f32
    %208 = vector.broadcast %cst_100 : f32 to vector<16x32xf32>
    %209 = arith.mulf %207, %208 : vector<16x32xf32>
    %210 = arith.truncf %209 : vector<16x32xf32> to vector<16x32xbf16>
    %211 = arith.truncf %203 : vector<25x32xf32> to vector<25x32xbf16>
    %cst_101 = arith.constant dense<0.000000e+00> : vector<25x32xf32>
    %212 = tpu.matmul %211, %6, %cst_101 {dimension_numbers = #tpu.dot_dimension_numbers<[1], [0], [0], [1], [0, 0, 1, 1], [], []>} : vector<25x32xbf16>, vector<32x32xbf16>, vector<25x32xf32> -> vector<25x32xf32>
    %213 = vector.broadcast %12 : vector<1x32xf32> to vector<25x32xf32>
    %214 = arith.addf %212, %213 : vector<25x32xf32>
    %215 = arith.truncf %214 : vector<25x32xf32> to vector<25x32xbf16>
    %216 = arith.truncf %203 : vector<25x32xf32> to vector<25x32xbf16>
    %cst_102 = arith.constant dense<0.000000e+00> : vector<25x32xf32>
    %217 = tpu.matmul %216, %8, %cst_102 {dimension_numbers = #tpu.dot_dimension_numbers<[1], [0], [0], [1], [0, 0, 1, 1], [], []>} : vector<25x32xbf16>, vector<32x32xbf16>, vector<25x32xf32> -> vector<25x32xf32>
    %218 = vector.broadcast %14 : vector<1x32xf32> to vector<25x32xf32>
    %219 = arith.addf %217, %218 : vector<25x32xf32>
    %220 = arith.truncf %219 : vector<25x32xf32> to vector<25x32xbf16>
    %221 = vector.extract_strided_slice %210 {offsets = [0, 0], sizes = [16, 8], strides = [1, 1]} : vector<16x32xbf16> to vector<16x8xbf16>
    %222 = vector.extract_strided_slice %215 {offsets = [0, 0], sizes = [25, 8], strides = [1, 1]} : vector<25x32xbf16> to vector<25x8xbf16>
    %223 = vector.extract_strided_slice %220 {offsets = [0, 0], sizes = [25, 8], strides = [1, 1]} : vector<25x32xbf16> to vector<25x8xbf16>
    %cst_103 = arith.constant dense<0.000000e+00> : vector<16x25xf32>
    %224 = tpu.matmul %221, %222, %cst_103 {dimension_numbers = #tpu.dot_dimension_numbers<[1], [1], [0], [0], [0, 0, 1, 0], [], []>} : vector<16x8xbf16>, vector<25x8xbf16>, vector<16x25xf32> -> vector<16x25xf32>
    %cst_104 = arith.constant dense<0xFF800000> : vector<16xf32>
    %225 = vector.multi_reduction <maximumf>, %224, %cst_104 [1] : vector<16x25xf32> to vector<16xf32>
    %226 = vector.shape_cast %225 : vector<16xf32> to vector<16x1xf32>
    %227 = vector.broadcast %226 : vector<16x1xf32> to vector<16x25xf32>
    %228 = arith.subf %224, %227 : vector<16x25xf32>
    %229 = math.exp %228 : vector<16x25xf32>
    %cst_105 = arith.constant dense<0.000000e+00> : vector<16xf32>
    %230 = vector.multi_reduction <add>, %229, %cst_105 [1] : vector<16x25xf32> to vector<16xf32>
    %231 = vector.shape_cast %230 : vector<16xf32> to vector<16x1xf32>
    %232 = tpu.reciprocal %231 {approx = true} : vector<16x1xf32> -> vector<16x1xf32>
    %233 = vector.broadcast %232 : vector<16x1xf32> to vector<16x25xf32>
    %234 = arith.mulf %229, %233 : vector<16x25xf32>
    %235 = arith.truncf %234 : vector<16x25xf32> to vector<16x25xbf16>
    %cst_106 = arith.constant dense<0.000000e+00> : vector<16x8xf32>
    %236 = tpu.matmul %235, %223, %cst_106 {dimension_numbers = #tpu.dot_dimension_numbers<[1], [0], [0], [1], [0, 0, 1, 1], [], []>} : vector<16x25xbf16>, vector<25x8xbf16>, vector<16x8xf32> -> vector<16x8xf32>
    %237 = arith.truncf %236 : vector<16x8xf32> to vector<16x8xbf16>
    %238 = vector.extract_strided_slice %16 {offsets = [0, 0, 0], sizes = [1, 8, 32], strides = [1, 1, 1]} : vector<4x8x32xbf16> to vector<1x8x32xbf16>
    %239 = vector.shape_cast %238 : vector<1x8x32xbf16> to vector<8x32xbf16>
    %cst_107 = arith.constant dense<0.000000e+00> : vector<16x32xf32>
    %240 = tpu.matmul %237, %239, %cst_107 {dimension_numbers = #tpu.dot_dimension_numbers<[1], [0], [0], [1], [0, 0, 1, 1], [], []>} : vector<16x8xbf16>, vector<8x32xbf16>, vector<16x32xf32> -> vector<16x32xf32>
    %241 = vector.extract_strided_slice %210 {offsets = [0, 8], sizes = [16, 8], strides = [1, 1]} : vector<16x32xbf16> to vector<16x8xbf16>
    %242 = vector.extract_strided_slice %215 {offsets = [0, 8], sizes = [25, 8], strides = [1, 1]} : vector<25x32xbf16> to vector<25x8xbf16>
    %243 = vector.extract_strided_slice %220 {offsets = [0, 8], sizes = [25, 8], strides = [1, 1]} : vector<25x32xbf16> to vector<25x8xbf16>
    %cst_108 = arith.constant dense<0.000000e+00> : vector<16x25xf32>
    %244 = tpu.matmul %241, %242, %cst_108 {dimension_numbers = #tpu.dot_dimension_numbers<[1], [1], [0], [0], [0, 0, 1, 0], [], []>} : vector<16x8xbf16>, vector<25x8xbf16>, vector<16x25xf32> -> vector<16x25xf32>
    %cst_109 = arith.constant dense<0xFF800000> : vector<16xf32>
    %245 = vector.multi_reduction <maximumf>, %244, %cst_109 [1] : vector<16x25xf32> to vector<16xf32>
    %246 = vector.shape_cast %245 : vector<16xf32> to vector<16x1xf32>
    %247 = vector.broadcast %246 : vector<16x1xf32> to vector<16x25xf32>
    %248 = arith.subf %244, %247 : vector<16x25xf32>
    %249 = math.exp %248 : vector<16x25xf32>
    %cst_110 = arith.constant dense<0.000000e+00> : vector<16xf32>
    %250 = vector.multi_reduction <add>, %249, %cst_110 [1] : vector<16x25xf32> to vector<16xf32>
    %251 = vector.shape_cast %250 : vector<16xf32> to vector<16x1xf32>
    %252 = tpu.reciprocal %251 {approx = true} : vector<16x1xf32> -> vector<16x1xf32>
    %253 = vector.broadcast %252 : vector<16x1xf32> to vector<16x25xf32>
    %254 = arith.mulf %249, %253 : vector<16x25xf32>
    %255 = arith.truncf %254 : vector<16x25xf32> to vector<16x25xbf16>
    %cst_111 = arith.constant dense<0.000000e+00> : vector<16x8xf32>
    %256 = tpu.matmul %255, %243, %cst_111 {dimension_numbers = #tpu.dot_dimension_numbers<[1], [0], [0], [1], [0, 0, 1, 1], [], []>} : vector<16x25xbf16>, vector<25x8xbf16>, vector<16x8xf32> -> vector<16x8xf32>
    %257 = arith.truncf %256 : vector<16x8xf32> to vector<16x8xbf16>
    %258 = vector.extract_strided_slice %16 {offsets = [1, 0, 0], sizes = [1, 8, 32], strides = [1, 1, 1]} : vector<4x8x32xbf16> to vector<1x8x32xbf16>
    %259 = vector.shape_cast %258 : vector<1x8x32xbf16> to vector<8x32xbf16>
    %cst_112 = arith.constant dense<0.000000e+00> : vector<16x32xf32>
    %260 = tpu.matmul %257, %259, %cst_112 {dimension_numbers = #tpu.dot_dimension_numbers<[1], [0], [0], [1], [0, 0, 1, 1], [], []>} : vector<16x8xbf16>, vector<8x32xbf16>, vector<16x32xf32> -> vector<16x32xf32>
    %261 = arith.addf %240, %260 : vector<16x32xf32>
    %262 = vector.extract_strided_slice %210 {offsets = [0, 16], sizes = [16, 8], strides = [1, 1]} : vector<16x32xbf16> to vector<16x8xbf16>
    %263 = vector.extract_strided_slice %215 {offsets = [0, 16], sizes = [25, 8], strides = [1, 1]} : vector<25x32xbf16> to vector<25x8xbf16>
    %264 = vector.extract_strided_slice %220 {offsets = [0, 16], sizes = [25, 8], strides = [1, 1]} : vector<25x32xbf16> to vector<25x8xbf16>
    %cst_113 = arith.constant dense<0.000000e+00> : vector<16x25xf32>
    %265 = tpu.matmul %262, %263, %cst_113 {dimension_numbers = #tpu.dot_dimension_numbers<[1], [1], [0], [0], [0, 0, 1, 0], [], []>} : vector<16x8xbf16>, vector<25x8xbf16>, vector<16x25xf32> -> vector<16x25xf32>
    %cst_114 = arith.constant dense<0xFF800000> : vector<16xf32>
    %266 = vector.multi_reduction <maximumf>, %265, %cst_114 [1] : vector<16x25xf32> to vector<16xf32>
    %267 = vector.shape_cast %266 : vector<16xf32> to vector<16x1xf32>
    %268 = vector.broadcast %267 : vector<16x1xf32> to vector<16x25xf32>
    %269 = arith.subf %265, %268 : vector<16x25xf32>
    %270 = math.exp %269 : vector<16x25xf32>
    %cst_115 = arith.constant dense<0.000000e+00> : vector<16xf32>
    %271 = vector.multi_reduction <add>, %270, %cst_115 [1] : vector<16x25xf32> to vector<16xf32>
    %272 = vector.shape_cast %271 : vector<16xf32> to vector<16x1xf32>
    %273 = tpu.reciprocal %272 {approx = true} : vector<16x1xf32> -> vector<16x1xf32>
    %274 = vector.broadcast %273 : vector<16x1xf32> to vector<16x25xf32>
    %275 = arith.mulf %270, %274 : vector<16x25xf32>
    %276 = arith.truncf %275 : vector<16x25xf32> to vector<16x25xbf16>
    %cst_116 = arith.constant dense<0.000000e+00> : vector<16x8xf32>
    %277 = tpu.matmul %276, %264, %cst_116 {dimension_numbers = #tpu.dot_dimension_numbers<[1], [0], [0], [1], [0, 0, 1, 1], [], []>} : vector<16x25xbf16>, vector<25x8xbf16>, vector<16x8xf32> -> vector<16x8xf32>
    %278 = arith.truncf %277 : vector<16x8xf32> to vector<16x8xbf16>
    %279 = vector.extract_strided_slice %16 {offsets = [2, 0, 0], sizes = [1, 8, 32], strides = [1, 1, 1]} : vector<4x8x32xbf16> to vector<1x8x32xbf16>
    %280 = vector.shape_cast %279 : vector<1x8x32xbf16> to vector<8x32xbf16>
    %cst_117 = arith.constant dense<0.000000e+00> : vector<16x32xf32>
    %281 = tpu.matmul %278, %280, %cst_117 {dimension_numbers = #tpu.dot_dimension_numbers<[1], [0], [0], [1], [0, 0, 1, 1], [], []>} : vector<16x8xbf16>, vector<8x32xbf16>, vector<16x32xf32> -> vector<16x32xf32>
    %282 = arith.addf %261, %281 : vector<16x32xf32>
    %283 = vector.extract_strided_slice %210 {offsets = [0, 24], sizes = [16, 8], strides = [1, 1]} : vector<16x32xbf16> to vector<16x8xbf16>
    %284 = vector.extract_strided_slice %215 {offsets = [0, 24], sizes = [25, 8], strides = [1, 1]} : vector<25x32xbf16> to vector<25x8xbf16>
    %285 = vector.extract_strided_slice %220 {offsets = [0, 24], sizes = [25, 8], strides = [1, 1]} : vector<25x32xbf16> to vector<25x8xbf16>
    %cst_118 = arith.constant dense<0.000000e+00> : vector<16x25xf32>
    %286 = tpu.matmul %283, %284, %cst_118 {dimension_numbers = #tpu.dot_dimension_numbers<[1], [1], [0], [0], [0, 0, 1, 0], [], []>} : vector<16x8xbf16>, vector<25x8xbf16>, vector<16x25xf32> -> vector<16x25xf32>
    %cst_119 = arith.constant dense<0xFF800000> : vector<16xf32>
    %287 = vector.multi_reduction <maximumf>, %286, %cst_119 [1] : vector<16x25xf32> to vector<16xf32>
    %288 = vector.shape_cast %287 : vector<16xf32> to vector<16x1xf32>
    %289 = vector.broadcast %288 : vector<16x1xf32> to vector<16x25xf32>
    %290 = arith.subf %286, %289 : vector<16x25xf32>
    %291 = math.exp %290 : vector<16x25xf32>
    %cst_120 = arith.constant dense<0.000000e+00> : vector<16xf32>
    %292 = vector.multi_reduction <add>, %291, %cst_120 [1] : vector<16x25xf32> to vector<16xf32>
    %293 = vector.shape_cast %292 : vector<16xf32> to vector<16x1xf32>
    %294 = tpu.reciprocal %293 {approx = true} : vector<16x1xf32> -> vector<16x1xf32>
    %295 = vector.broadcast %294 : vector<16x1xf32> to vector<16x25xf32>
    %296 = arith.mulf %291, %295 : vector<16x25xf32>
    %297 = arith.truncf %296 : vector<16x25xf32> to vector<16x25xbf16>
    %cst_121 = arith.constant dense<0.000000e+00> : vector<16x8xf32>
    %298 = tpu.matmul %297, %285, %cst_121 {dimension_numbers = #tpu.dot_dimension_numbers<[1], [0], [0], [1], [0, 0, 1, 1], [], []>} : vector<16x25xbf16>, vector<25x8xbf16>, vector<16x8xf32> -> vector<16x8xf32>
    %299 = arith.truncf %298 : vector<16x8xf32> to vector<16x8xbf16>
    %300 = vector.extract_strided_slice %16 {offsets = [3, 0, 0], sizes = [1, 8, 32], strides = [1, 1, 1]} : vector<4x8x32xbf16> to vector<1x8x32xbf16>
    %301 = vector.shape_cast %300 : vector<1x8x32xbf16> to vector<8x32xbf16>
    %cst_122 = arith.constant dense<0.000000e+00> : vector<16x32xf32>
    %302 = tpu.matmul %299, %301, %cst_122 {dimension_numbers = #tpu.dot_dimension_numbers<[1], [0], [0], [1], [0, 0, 1, 1], [], []>} : vector<16x8xbf16>, vector<8x32xbf16>, vector<16x32xf32> -> vector<16x32xf32>
    %303 = arith.addf %282, %302 : vector<16x32xf32>
    %304 = vector.broadcast %18 : vector<1x32xf32> to vector<16x32xf32>
    %305 = arith.addf %303, %304 : vector<16x32xf32>
    %306 = arith.addf %201, %305 : vector<16x32xf32>
    %cst_123 = arith.constant dense<0.000000e+00> : vector<16xf32>
    %307 = vector.multi_reduction <add>, %306, %cst_123 [1] : vector<16x32xf32> to vector<16xf32>
    %308 = vector.shape_cast %307 : vector<16xf32> to vector<16x1xf32>
    %cst_124 = arith.constant 3.200000e+01 : f32
    %309 = vector.broadcast %cst_124 : f32 to vector<16x1xf32>
    %310 = arith.divf %308, %309 : vector<16x1xf32>
    %311 = vector.broadcast %310 : vector<16x1xf32> to vector<16x32xf32>
    %312 = arith.subf %306, %311 : vector<16x32xf32>
    %313 = arith.mulf %312, %312 : vector<16x32xf32>
    %cst_125 = arith.constant dense<0.000000e+00> : vector<16xf32>
    %314 = vector.multi_reduction <add>, %313, %cst_125 [1] : vector<16x32xf32> to vector<16xf32>
    %315 = vector.shape_cast %314 : vector<16xf32> to vector<16x1xf32>
    %cst_126 = arith.constant 3.200000e+01 : f32
    %316 = vector.broadcast %cst_126 : f32 to vector<16x1xf32>
    %317 = arith.divf %315, %316 : vector<16x1xf32>
    %318 = vector.broadcast %310 : vector<16x1xf32> to vector<16x32xf32>
    %319 = arith.subf %306, %318 : vector<16x32xf32>
    %cst_127 = arith.constant 9.99999974E-6 : f32
    %320 = vector.broadcast %cst_127 : f32 to vector<16x1xf32>
    %321 = arith.addf %317, %320 : vector<16x1xf32>
    %322 = math.rsqrt %321 : vector<16x1xf32>
    %323 = vector.broadcast %322 : vector<16x1xf32> to vector<16x32xf32>
    %324 = arith.mulf %319, %323 : vector<16x32xf32>
    %325 = vector.broadcast %20 : vector<1x32xf32> to vector<16x32xf32>
    %326 = arith.mulf %324, %325 : vector<16x32xf32>
    %327 = vector.broadcast %22 : vector<1x32xf32> to vector<16x32xf32>
    %328 = arith.addf %326, %327 : vector<16x32xf32>
    %329 = arith.truncf %328 : vector<16x32xf32> to vector<16x32xbf16>
    %cst_128 = arith.constant dense<0.000000e+00> : vector<16x32xf32>
    %330 = tpu.matmul %329, %24, %cst_128 {dimension_numbers = #tpu.dot_dimension_numbers<[1], [0], [0], [1], [0, 0, 1, 1], [], []>} : vector<16x32xbf16>, vector<32x32xbf16>, vector<16x32xf32> -> vector<16x32xf32>
    %331 = vector.broadcast %26 : vector<1x32xf32> to vector<16x32xf32>
    %332 = arith.addf %330, %331 : vector<16x32xf32>
    %cst_129 = arith.constant 0.000000e+00 : f32
    %333 = vector.broadcast %cst_129 : f32 to vector<16x32xf32>
    %334 = arith.maximumf %332, %333 : vector<16x32xf32>
    %335 = arith.truncf %334 : vector<16x32xf32> to vector<16x32xbf16>
    %cst_130 = arith.constant dense<0.000000e+00> : vector<16x32xf32>
    %336 = tpu.matmul %335, %28, %cst_130 {dimension_numbers = #tpu.dot_dimension_numbers<[1], [0], [0], [1], [0, 0, 1, 1], [], []>} : vector<16x32xbf16>, vector<32x32xbf16>, vector<16x32xf32> -> vector<16x32xf32>
    %337 = vector.broadcast %30 : vector<1x32xf32> to vector<16x32xf32>
    %338 = arith.addf %336, %337 : vector<16x32xf32>
    %339 = arith.addf %328, %338 : vector<16x32xf32>
    %cst_131 = arith.constant dense<0.000000e+00> : vector<16xf32>
    %340 = vector.multi_reduction <add>, %339, %cst_131 [1] : vector<16x32xf32> to vector<16xf32>
    %341 = vector.shape_cast %340 : vector<16xf32> to vector<16x1xf32>
    %cst_132 = arith.constant 3.200000e+01 : f32
    %342 = vector.broadcast %cst_132 : f32 to vector<16x1xf32>
    %343 = arith.divf %341, %342 : vector<16x1xf32>
    %344 = vector.broadcast %343 : vector<16x1xf32> to vector<16x32xf32>
    %345 = arith.subf %339, %344 : vector<16x32xf32>
    %346 = arith.mulf %345, %345 : vector<16x32xf32>
    %cst_133 = arith.constant dense<0.000000e+00> : vector<16xf32>
    %347 = vector.multi_reduction <add>, %346, %cst_133 [1] : vector<16x32xf32> to vector<16xf32>
    %348 = vector.shape_cast %347 : vector<16xf32> to vector<16x1xf32>
    %cst_134 = arith.constant 3.200000e+01 : f32
    %349 = vector.broadcast %cst_134 : f32 to vector<16x1xf32>
    %350 = arith.divf %348, %349 : vector<16x1xf32>
    %351 = vector.broadcast %343 : vector<16x1xf32> to vector<16x32xf32>
    %352 = arith.subf %339, %351 : vector<16x32xf32>
    %cst_135 = arith.constant 9.99999974E-6 : f32
    %353 = vector.broadcast %cst_135 : f32 to vector<16x1xf32>
    %354 = arith.addf %350, %353 : vector<16x1xf32>
    %355 = math.rsqrt %354 : vector<16x1xf32>
    %356 = vector.broadcast %355 : vector<16x1xf32> to vector<16x32xf32>
    %357 = arith.mulf %352, %356 : vector<16x32xf32>
    %358 = vector.broadcast %32 : vector<1x32xf32> to vector<16x32xf32>
    %359 = arith.mulf %357, %358 : vector<16x32xf32>
    %360 = vector.broadcast %34 : vector<1x32xf32> to vector<16x32xf32>
    %361 = arith.addf %359, %360 : vector<16x32xf32>
    %c1_136 = arith.constant 1 : index
    %c0_137 = arith.constant 0 : index
    %c0_138 = arith.constant 0 : index
    %362 = vector.load %arg43[%c1_136, %c0_137, %c0_138] : memref<2x16x32xf32, #tpu.memory_space<vmem>>, vector<1x16x32xf32>
    %363 = vector.shape_cast %362 : vector<1x16x32xf32> to vector<16x32xf32>
    %364 = vector.shape_cast %361 : vector<16x32xf32> to vector<1x16x32xf32>
    tpu.vector_store %arg43[%c1_136, %c0_137, %c0_138], %364 {strides = array<i32>} : memref<2x16x32xf32, #tpu.memory_space<vmem>>, vector<1x16x32xf32>,
    %c1_i32 = arith.constant 1 : i32
    %365 = arith.cmpi eq, %arg0, %c1_i32 : i32
    %366 = arith.extui %365 : i1 to i32
    %c0_i32_139 = arith.constant 0 : i32
    %367 = arith.cmpi ne, %366, %c0_i32_139 : i32
    scf.if %367 {
      %c0_140 = arith.constant 0 : index
      %c0_141 = arith.constant 0 : index
      %c0_142 = arith.constant 0 : index
      %368 = vector.load %arg43[%c0_140, %c0_141, %c0_142] : memref<2x16x32xf32, #tpu.memory_space<vmem>>, vector<1x16x32xf32>
      %369 = vector.shape_cast %368 : vector<1x16x32xf32> to vector<16x32xf32>
      %c0_143 = arith.constant 0 : index
      %c0_144 = arith.constant 0 : index
      %370 = vector.load %arg24[%c0_143, %c0_144] : memref<32x16xbf16, #tpu.memory_space<vmem>>, vector<32x16xbf16>
      %371 = arith.truncf %369 : vector<16x32xf32> to vector<16x32xbf16>
      %cst_145 = arith.constant dense<0.000000e+00> : vector<16x16xf32>
      %372 = tpu.matmul %371, %370, %cst_145 {dimension_numbers = #tpu.dot_dimension_numbers<[1], [0], [0], [1], [0, 0, 1, 1], [], []>} : vector<16x32xbf16>, vector<32x16xbf16>, vector<16x16xf32> -> vector<16x16xf32>
      %cst_146 = arith.constant dense<0xFF800000> : vector<16xf32>
      %373 = vector.multi_reduction <maximumf>, %372, %cst_146 [0] : vector<16x16xf32> to vector<16xf32>
      %374 = vector.shape_cast %373 : vector<16xf32> to vector<1x16xf32>
      %375 = vector.broadcast %374 : vector<1x16xf32> to vector<16x16xf32>
      %376 = arith.subf %372, %375 : vector<16x16xf32>
      %377 = math.exp %376 : vector<16x16xf32>
      %cst_147 = arith.constant dense<0.000000e+00> : vector<16xf32>
      %378 = vector.multi_reduction <add>, %377, %cst_147 [0] : vector<16x16xf32> to vector<16xf32>
      %379 = vector.shape_cast %378 : vector<16xf32> to vector<1x16xf32>
      %380 = tpu.reciprocal %379 {approx = true} : vector<1x16xf32> -> vector<1x16xf32>
      %381 = vector.broadcast %380 : vector<1x16xf32> to vector<16x16xf32>
      %382 = arith.mulf %377, %381 : vector<16x16xf32>
      %c0_148 = arith.constant 0 : index
      %c0_149 = arith.constant 0 : index
      %c0_150 = arith.constant 0 : index
      %383 = vector.load %arg3[%c0_148, %c0_149, %c0_150] : memref<2x16x3xf32, #tpu.memory_space<vmem>>, vector<1x16x3xf32>
      %384 = vector.shape_cast %383 : vector<1x16x3xf32> to vector<16x3xf32>
      %cst_151 = arith.constant dense<0.000000e+00> : vector<16x3xf32>
      %385 = tpu.matmul %382, %384, %cst_151 {dimension_numbers = #tpu.dot_dimension_numbers<[0], [0], [1], [1], [0, 1, 1, 1], [], []>} : vector<16x16xf32>, vector<16x3xf32>, vector<16x3xf32> -> vector<16x3xf32>
      %c0_152 = arith.constant 0 : index
      %c0_153 = arith.constant 0 : index
      %c0_154 = arith.constant 0 : index
      %386 = vector.load %arg41[%c0_152, %c0_153, %c0_154] : memref<2x16x3xf32, #tpu.memory_space<vmem>>, vector<1x16x3xf32>
      %387 = vector.shape_cast %386 : vector<1x16x3xf32> to vector<16x3xf32>
      %388 = vector.shape_cast %385 : vector<16x3xf32> to vector<1x16x3xf32>
      tpu.vector_store %arg41[%c0_152, %c0_153, %c0_154], %388 {strides = array<i32>} : memref<2x16x3xf32, #tpu.memory_space<vmem>>, vector<1x16x3xf32>,
      %c1_155 = arith.constant 1 : index
      %c0_156 = arith.constant 0 : index
      %c0_157 = arith.constant 0 : index
      %389 = vector.load %arg43[%c1_155, %c0_156, %c0_157] : memref<2x16x32xf32, #tpu.memory_space<vmem>>, vector<1x16x32xf32>
      %390 = vector.shape_cast %389 : vector<1x16x32xf32> to vector<16x32xf32>
      %c0_158 = arith.constant 0 : index
      %c0_159 = arith.constant 0 : index
      %391 = vector.load %arg24[%c0_158, %c0_159] : memref<32x16xbf16, #tpu.memory_space<vmem>>, vector<32x16xbf16>
      %392 = arith.truncf %390 : vector<16x32xf32> to vector<16x32xbf16>
      %cst_160 = arith.constant dense<0.000000e+00> : vector<16x16xf32>
      %393 = tpu.matmul %392, %391, %cst_160 {dimension_numbers = #tpu.dot_dimension_numbers<[1], [0], [0], [1], [0, 0, 1, 1], [], []>} : vector<16x32xbf16>, vector<32x16xbf16>, vector<16x16xf32> -> vector<16x16xf32>
      %cst_161 = arith.constant dense<0xFF800000> : vector<16xf32>
      %394 = vector.multi_reduction <maximumf>, %393, %cst_161 [0] : vector<16x16xf32> to vector<16xf32>
      %395 = vector.shape_cast %394 : vector<16xf32> to vector<1x16xf32>
      %396 = vector.broadcast %395 : vector<1x16xf32> to vector<16x16xf32>
      %397 = arith.subf %393, %396 : vector<16x16xf32>
      %398 = math.exp %397 : vector<16x16xf32>
      %cst_162 = arith.constant dense<0.000000e+00> : vector<16xf32>
      %399 = vector.multi_reduction <add>, %398, %cst_162 [0] : vector<16x16xf32> to vector<16xf32>
      %400 = vector.shape_cast %399 : vector<16xf32> to vector<1x16xf32>
      %401 = tpu.reciprocal %400 {approx = true} : vector<1x16xf32> -> vector<1x16xf32>
      %402 = vector.broadcast %401 : vector<1x16xf32> to vector<16x16xf32>
      %403 = arith.mulf %398, %402 : vector<16x16xf32>
      %c1_163 = arith.constant 1 : index
      %c0_164 = arith.constant 0 : index
      %c0_165 = arith.constant 0 : index
      %404 = vector.load %arg3[%c1_163, %c0_164, %c0_165] : memref<2x16x3xf32, #tpu.memory_space<vmem>>, vector<1x16x3xf32>
      %405 = vector.shape_cast %404 : vector<1x16x3xf32> to vector<16x3xf32>
      %cst_166 = arith.constant dense<0.000000e+00> : vector<16x3xf32>
      %406 = tpu.matmul %403, %405, %cst_166 {dimension_numbers = #tpu.dot_dimension_numbers<[0], [0], [1], [1], [0, 1, 1, 1], [], []>} : vector<16x16xf32>, vector<16x3xf32>, vector<16x3xf32> -> vector<16x3xf32>
      %c1_167 = arith.constant 1 : index
      %c0_168 = arith.constant 0 : index
      %c0_169 = arith.constant 0 : index
      %407 = vector.load %arg41[%c1_167, %c0_168, %c0_169] : memref<2x16x3xf32, #tpu.memory_space<vmem>>, vector<1x16x3xf32>
      %408 = vector.shape_cast %407 : vector<1x16x3xf32> to vector<16x3xf32>
      %409 = vector.shape_cast %406 : vector<16x3xf32> to vector<1x16x3xf32>
      tpu.vector_store %arg41[%c1_167, %c0_168, %c0_169], %409 {strides = array<i32>} : memref<2x16x3xf32, #tpu.memory_space<vmem>>, vector<1x16x3xf32>,
    } else {
    }
    return
  }
  func.func @transform_0(%arg0: i32) -> (i32, i32, i32) {
    %c0_i32 = arith.constant 0 : i32
    %c0_i32_0 = arith.constant 0 : i32
    %c0_i32_1 = arith.constant 0 : i32
    %c0_i32_2 = arith.constant 0 : i32
    return %c0_i32, %c0_i32_0, %c0_i32_1 : i32, i32, i32
  }
  func.func @transform_1(%arg0: i32) -> (i32, i32, i32) {
    %c0_i32 = arith.constant 0 : i32
    %c0_i32_0 = arith.constant 0 : i32
    %c0_i32_1 = arith.constant 0 : i32
    %c0_i32_2 = arith.constant 0 : i32
    return %c0_i32, %c0_i32_0, %c0_i32_1 : i32, i32, i32
  }
  func.func @transform_2(%arg0: i32) -> (i32, i32, i32) {
    %c0_i32 = arith.constant 0 : i32
    %c0_i32_0 = arith.constant 0 : i32
    %c0_i32_1 = arith.constant 0 : i32
    %c0_i32_2 = arith.constant 0 : i32
    return %c0_i32, %c0_i32_0, %c0_i32_1 : i32, i32, i32
  }
  func.func @transform_3(%arg0: i32) -> (i32, i32, i32) {
    %c0_i32 = arith.constant 0 : i32
    %c0_i32_0 = arith.constant 0 : i32
    %c0_i32_1 = arith.constant 0 : i32
    %c0_i32_2 = arith.constant 0 : i32
    return %c0_i32, %c0_i32_0, %c0_i32_1 : i32, i32, i32
  }
  func.func @transform_4(%arg0: i32) -> (i32, i32, i32) {
    %c0_i32 = arith.constant 0 : i32
    %c0_i32_0 = arith.constant 0 : i32
    %c0_i32_1 = arith.constant 0 : i32
    %c0_i32_2 = arith.constant 0 : i32
    return %c0_i32, %c0_i32_0, %c0_i32_1 : i32, i32, i32
  }
  func.func @transform_5(%arg0: i32) -> (i32, i32, i32) {
    %c0_i32 = arith.constant 0 : i32
    %c0_i32_0 = arith.constant 0 : i32
    %c0_i32_1 = arith.constant 0 : i32
    %c0_i32_2 = arith.constant 0 : i32
    return %c0_i32, %c0_i32_0, %c0_i32_1 : i32, i32, i32
  }
  func.func @transform_6(%arg0: i32) -> (i32, i32) {
    %c0_i32 = arith.constant 0 : i32
    %c0_i32_0 = arith.constant 0 : i32
    %c0_i32_1 = arith.constant 0 : i32
    return %c0_i32, %c0_i32_0 : i32, i32
  }
  func.func @transform_7(%arg0: i32) -> (i32, i32, i32) {
    %c0_i32 = arith.constant 0 : i32
    %c0_i32_0 = arith.constant 0 : i32
    %c0_i32_1 = arith.constant 0 : i32
    %c0_i32_2 = arith.constant 0 : i32
    return %c0_i32, %c0_i32_0, %c0_i32_1 : i32, i32, i32
  }
  func.func @transform_8(%arg0: i32) -> (i32, i32) {
    %c0_i32 = arith.constant 0 : i32
    %c0_i32_0 = arith.constant 0 : i32
    %c0_i32_1 = arith.constant 0 : i32
    return %c0_i32, %c0_i32_0 : i32, i32
  }
  func.func @transform_9(%arg0: i32) -> (i32, i32, i32) {
    %c0_i32 = arith.constant 0 : i32
    %c0_i32_0 = arith.constant 0 : i32
    %c0_i32_1 = arith.constant 0 : i32
    %c0_i32_2 = arith.constant 0 : i32
    return %c0_i32, %c0_i32_0, %c0_i32_1 : i32, i32, i32
  }
  func.func @transform_10(%arg0: i32) -> (i32, i32) {
    %c0_i32 = arith.constant 0 : i32
    %c0_i32_0 = arith.constant 0 : i32
    %c0_i32_1 = arith.constant 0 : i32
    return %c0_i32, %c0_i32_0 : i32, i32
  }
  func.func @transform_11(%arg0: i32) -> (i32, i32, i32) {
    %c0_i32 = arith.constant 0 : i32
    %c0_i32_0 = arith.constant 0 : i32
    %c0_i32_1 = arith.constant 0 : i32
    %c0_i32_2 = arith.constant 0 : i32
    return %c0_i32, %c0_i32_0, %c0_i32_1 : i32, i32, i32
  }
  func.func @transform_12(%arg0: i32) -> (i32, i32) {
    %c0_i32 = arith.constant 0 : i32
    %c0_i32_0 = arith.constant 0 : i32
    %c0_i32_1 = arith.constant 0 : i32
    return %c0_i32, %c0_i32_0 : i32, i32
  }
  func.func @transform_13(%arg0: i32) -> (i32, i32, i32) {
    %c0_i32 = arith.constant 0 : i32
    %c0_i32_0 = arith.constant 0 : i32
    %c0_i32_1 = arith.constant 0 : i32
    %c0_i32_2 = arith.constant 0 : i32
    return %c0_i32, %c0_i32_0, %c0_i32_1 : i32, i32, i32
  }
  func.func @transform_14(%arg0: i32) -> (i32, i32) {
    %c0_i32 = arith.constant 0 : i32
    %c0_i32_0 = arith.constant 0 : i32
    %c0_i32_1 = arith.constant 0 : i32
    return %c0_i32, %c0_i32_0 : i32, i32
  }
  func.func @transform_15(%arg0: i32) -> (i32, i32) {
    %c0_i32 = arith.constant 0 : i32
    %c0_i32_0 = arith.constant 0 : i32
    %c0_i32_1 = arith.constant 0 : i32
    return %c0_i32, %c0_i32_0 : i32, i32
  }
  func.func @transform_16(%arg0: i32) -> (i32, i32) {
    %c0_i32 = arith.constant 0 : i32
    %c0_i32_0 = arith.constant 0 : i32
    %c0_i32_1 = arith.constant 0 : i32
    return %c0_i32, %c0_i32_0 : i32, i32
  }
  func.func @transform_17(%arg0: i32) -> (i32, i32) {
    %c0_i32 = arith.constant 0 : i32
    %c0_i32_0 = arith.constant 0 : i32
    %c0_i32_1 = arith.constant 0 : i32
    return %c0_i32, %c0_i32_0 : i32, i32
  }
  func.func @transform_18(%arg0: i32) -> (i32, i32) {
    %c0_i32 = arith.constant 0 : i32
    %c0_i32_0 = arith.constant 0 : i32
    %c0_i32_1 = arith.constant 0 : i32
    return %c0_i32, %c0_i32_0 : i32, i32
  }
  func.func @transform_19(%arg0: i32) -> (i32, i32) {
    %c0_i32 = arith.constant 0 : i32
    %c0_i32_0 = arith.constant 0 : i32
    %c0_i32_1 = arith.constant 0 : i32
    return %c0_i32, %c0_i32_0 : i32, i32
  }
  func.func @transform_20(%arg0: i32) -> (i32, i32) {
    %c0_i32 = arith.constant 0 : i32
    %c0_i32_0 = arith.constant 0 : i32
    %c0_i32_1 = arith.constant 0 : i32
    return %c0_i32, %c0_i32_0 : i32, i32
  }
  func.func @transform_21(%arg0: i32) -> (i32, i32) {
    %c0_i32 = arith.constant 0 : i32
    %c0_i32_0 = arith.constant 0 : i32
    %c0_i32_1 = arith.constant 0 : i32
    return %c0_i32, %c0_i32_0 : i32, i32
  }
  func.func @transform_22(%arg0: i32) -> (i32, i32) {
    %c0_i32 = arith.constant 0 : i32
    %c0_i32_0 = arith.constant 0 : i32
    %c0_i32_1 = arith.constant 0 : i32
    return %c0_i32, %c0_i32_0 : i32, i32
  }
  func.func @transform_23(%arg0: i32) -> (i32, i32) {
    %c0_i32 = arith.constant 0 : i32
    %c0_i32_0 = arith.constant 0 : i32
    %c0_i32_1 = arith.constant 0 : i32
    return %c0_i32, %c0_i32_0 : i32, i32
  }
  func.func @transform_24(%arg0: i32) -> (i32, i32, i32) {
    %c0_i32 = arith.constant 0 : i32
    %c0_i32_0 = arith.constant 0 : i32
    %c0_i32_1 = arith.constant 0 : i32
    return %arg0, %c0_i32, %c0_i32_0 : i32, i32, i32
  }
  func.func @transform_25(%arg0: i32) -> (i32, i32, i32) {
    %c0_i32 = arith.constant 0 : i32
    %c0_i32_0 = arith.constant 0 : i32
    %c0_i32_1 = arith.constant 0 : i32
    return %arg0, %c0_i32, %c0_i32_0 : i32, i32, i32
  }
  func.func @transform_26(%arg0: i32) -> (i32, i32, i32) {
    %c0_i32 = arith.constant 0 : i32
    %c0_i32_0 = arith.constant 0 : i32
    %c0_i32_1 = arith.constant 0 : i32
    return %arg0, %c0_i32, %c0_i32_0 : i32, i32, i32
  }
  func.func @transform_27(%arg0: i32) -> (i32, i32, i32) {
    %c0_i32 = arith.constant 0 : i32
    %c0_i32_0 = arith.constant 0 : i32
    %c0_i32_1 = arith.constant 0 : i32
    return %arg0, %c0_i32, %c0_i32_0 : i32, i32, i32
  }
  func.func @transform_28(%arg0: i32) -> (i32, i32, i32) {
    %c0_i32 = arith.constant 0 : i32
    %c0_i32_0 = arith.constant 0 : i32
    %c0_i32_1 = arith.constant 0 : i32
    return %arg0, %c0_i32, %c0_i32_0 : i32, i32, i32
  }
  func.func @transform_29(%arg0: i32) -> (i32, i32, i32) {
    %c0_i32 = arith.constant 0 : i32
    %c0_i32_0 = arith.constant 0 : i32
    %c0_i32_1 = arith.constant 0 : i32
    return %arg0, %c0_i32, %c0_i32_0 : i32, i32, i32
  }
  func.func @transform_30(%arg0: i32) -> (i32, i32, i32, i32) {
    %c0_i32 = arith.constant 0 : i32
    %c0_i32_0 = arith.constant 0 : i32
    %c0_i32_1 = arith.constant 0 : i32
    %c0_i32_2 = arith.constant 0 : i32
    return %arg0, %c0_i32, %c0_i32_0, %c0_i32_1 : i32, i32, i32, i32
  }
  func.func @transform_31(%arg0: i32) -> (i32, i32, i32) {
    %c0_i32 = arith.constant 0 : i32
    %c0_i32_0 = arith.constant 0 : i32
    %c0_i32_1 = arith.constant 0 : i32
    return %arg0, %c0_i32, %c0_i32_0 : i32, i32, i32
  }
  func.func @transform_32(%arg0: i32) -> (i32, i32, i32) {
    %c0_i32 = arith.constant 0 : i32
    %c0_i32_0 = arith.constant 0 : i32
    %c0_i32_1 = arith.constant 0 : i32
    return %arg0, %c0_i32, %c0_i32_0 : i32, i32, i32
  }
  func.func @transform_33(%arg0: i32) -> (i32, i32, i32) {
    %c0_i32 = arith.constant 0 : i32
    %c0_i32_0 = arith.constant 0 : i32
    %c0_i32_1 = arith.constant 0 : i32
    return %arg0, %c0_i32, %c0_i32_0 : i32, i32, i32
  }
  func.func @transform_34(%arg0: i32) -> (i32, i32, i32) {
    %c0_i32 = arith.constant 0 : i32
    %c0_i32_0 = arith.constant 0 : i32
    %c0_i32_1 = arith.constant 0 : i32
    return %arg0, %c0_i32, %c0_i32_0 : i32, i32, i32
  }
  func.func @transform_35(%arg0: i32) -> (i32, i32, i32) {
    %c0_i32 = arith.constant 0 : i32
    %c0_i32_0 = arith.constant 0 : i32
    %c0_i32_1 = arith.constant 0 : i32
    return %arg0, %c0_i32, %c0_i32_0 : i32, i32, i32
  }
  func.func @transform_36(%arg0: i32) -> (i32, i32, i32) {
    %c0_i32 = arith.constant 0 : i32
    %c0_i32_0 = arith.constant 0 : i32
    %c0_i32_1 = arith.constant 0 : i32
    return %arg0, %c0_i32, %c0_i32_0 : i32, i32, i32
  }
  func.func @transform_37(%arg0: i32) -> (i32, i32, i32) {
    %c0_i32 = arith.constant 0 : i32
    %c0_i32_0 = arith.constant 0 : i32
    %c0_i32_1 = arith.constant 0 : i32
    return %arg0, %c0_i32, %c0_i32_0 : i32, i32, i32
  }
  func.func @transform_38(%arg0: i32) -> (i32, i32, i32) {
    %c0_i32 = arith.constant 0 : i32
    %c0_i32_0 = arith.constant 0 : i32
    %c0_i32_1 = arith.constant 0 : i32
    return %arg0, %c0_i32, %c0_i32_0 : i32, i32, i32
  }
  func.func @transform_39(%arg0: i32) -> (i32, i32, i32) {
    %c0_i32 = arith.constant 0 : i32
    %c0_i32_0 = arith.constant 0 : i32
    %c0_i32_1 = arith.constant 0 : i32
    return %arg0, %c0_i32, %c0_i32_0 : i32, i32, i32
  }
  func.func @transform_40(%arg0: i32) -> (i32, i32, i32) {
    %c0_i32 = arith.constant 0 : i32
    %c0_i32_0 = arith.constant 0 : i32
    %c0_i32_1 = arith.constant 0 : i32
    %c0_i32_2 = arith.constant 0 : i32
    return %c0_i32, %c0_i32_0, %c0_i32_1 : i32, i32, i32
  }
}

</mosaic_0001>

<llo_original>
// kernel: forward.1
$region0: #{forward.1}
  #allocation0 [shape = 'u32[]', space=smem, size = 0x4, offset = 0x4, fixed_abs, tag = 'smem constant byte address 0x4 - core index']
  #allocation1 [shape = 'u32[72,128]{1,0:T(1,128)}', space=vmem, size = 0x9000, scoped, tag = 'internal scratch']
  #allocation2 [shape = 'f32[2,25,32]{2,1,0:T(8,128)}', space=vmem, size = 0x8000, scoped, tag = 'scratch operand']
  #allocation3 [shape = 'f32[2,16,32]{2,1,0:T(8,128)}', space=vmem, size = 0x4000, scoped, tag = 'scratch operand']
  %s0 = inlined_call_operand.smem [shape: u32[41], index: -1, kind: input, shape index: {}]
  %s1 = sld [smem:[%s0]]
  %s2 = scalar_lea.smem %s0, 1
  %s3 = sld [smem:[%s2]]
  %s4 = scalar_lea.smem %s0, 2
  %s5 = sld [smem:[%s4]]
  %s6 = scalar_lea.smem %s0, 3
  %s7 = sld [smem:[%s6]]
  %s8 = scalar_lea.smem %s0, 4
  %s9 = sld [smem:[%s8]]
  %s10 = scalar_lea.smem %s0, 5
  %s11 = sld [smem:[%s10]]
  %s12 = scalar_lea.smem %s0, 6
  %s13 = sld [smem:[%s12]]
  %s14 = scalar_lea.smem %s0, 7
  %s15 = sld [smem:[%s14]]
  %s16 = scalar_lea.smem %s0, 8
  %s17 = sld [smem:[%s16]]
  %s18 = scalar_lea.smem %s0, 9
  %s19 = sld [smem:[%s18]]
  %s20 = scalar_lea.smem %s0, 10
  %s21 = sld [smem:[%s20]]
  %s22 = scalar_lea.smem %s0, 11
  %s23 = sld [smem:[%s22]]
  %s24 = scalar_lea.smem %s0, 12
  %s25 = sld [smem:[%s24]]
  %s26 = scalar_lea.smem %s0, 13
  %s27 = sld [smem:[%s26]]
  %s28 = scalar_lea.smem %s0, 14
  %s29 = sld [smem:[%s28]]
  %s30 = scalar_lea.smem %s0, 15
  %s31 = sld [smem:[%s30]]
  %s32 = scalar_lea.smem %s0, 16
  %s33 = sld [smem:[%s32]]
  %s34 = scalar_lea.smem %s0, 17
  %s35 = sld [smem:[%s34]]
  %s36 = scalar_lea.smem %s0, 18
  %s37 = sld [smem:[%s36]]
  %s38 = scalar_lea.smem %s0, 19
  %s39 = sld [smem:[%s38]]
  %s40 = scalar_lea.smem %s0, 20
  %s41 = sld [smem:[%s40]]
  %s42 = scalar_lea.smem %s0, 21
  %s43 = sld [smem:[%s42]]
  %s44 = scalar_lea.smem %s0, 22
  %s45 = sld [smem:[%s44]]
  %s46 = scalar_lea.smem %s0, 23
  %s47 = sld [smem:[%s46]]
  %s48 = scalar_lea.smem %s0, 24
  %s49 = sld [smem:[%s48]]
  %s50 = scalar_lea.smem %s0, 25
  %s51 = sld [smem:[%s50]]
  %s52 = scalar_lea.smem %s0, 26
  %s53 = sld [smem:[%s52]]
  %s54 = scalar_lea.smem %s0, 27
  %s55 = sld [smem:[%s54]]
  %s56 = scalar_lea.smem %s0, 28
  %s57 = sld [smem:[%s56]]
  %s58 = scalar_lea.smem %s0, 29
  %s59 = sld [smem:[%s58]]
  %s60 = scalar_lea.smem %s0, 30
  %s61 = sld [smem:[%s60]]
  %s62 = scalar_lea.smem %s0, 31
  %s63 = sld [smem:[%s62]]
  %s64 = scalar_lea.smem %s0, 32
  %s65 = sld [smem:[%s64]]
  %s66 = scalar_lea.smem %s0, 33
  %s67 = sld [smem:[%s66]]
  %s68 = scalar_lea.smem %s0, 34
  %s69 = sld [smem:[%s68]]
  %s70 = scalar_lea.smem %s0, 35
  %s71 = sld [smem:[%s70]]
  %s72 = scalar_lea.smem %s0, 36
  %s73 = sld [smem:[%s72]]
  %s74 = scalar_lea.smem %s0, 37
  %s75 = sld [smem:[%s74]]
  %s76 = scalar_lea.smem %s0, 38
  %s77 = sld [smem:[%s76]]
  %s78 = scalar_lea.smem %s0, 39
  %s79 = sld [smem:[%s78]]
  %s80 = scalar_lea.smem %s0, 40
  %s81 = sld [smem:[%s80]]
  %s82 = sld [smem:[#allocation0]]
  $region201: #{forward.1} parent=0
    _
  %s84 = ssub.s32 1, %s82
  %s85 = scalar_select 0, %s84, %s82
  loop: start=0, step=1, limit=4
  $region2: #{forward.1} parent=0 // loop_pre_header
    _
  $region3: #{forward.1} parent=0 // loop_header
    %s87 = sphi 0, %s91
    %p88 = scmp.ge.s32.totalorder %s87, 4
    %s95 = sphi 0, %s95
    %s97 = sphi 0, %s95
    %s98 = sphi 0, %s97
    %s112 = sphi 0, %s98
    %s116 = sphi 0, %s116
    %s118 = sphi 0, %s116
    %s119 = sphi 0, %s118
    %s133 = sphi 0, %s119
    %s137 = sphi 0, %s137
    %s139 = sphi 0, %s137
    %s140 = sphi 0, %s139
    %s154 = sphi 0, %s140
    %s158 = sphi 0, %s158
    %s160 = sphi 0, %s158
    %s161 = sphi 0, %s160
    %s175 = sphi 0, %s161
    %s179 = sphi 0, %s179
    %s181 = sphi 0, %s179
    %s182 = sphi 0, %s181
    %s196 = sphi 0, %s182
    %s200 = sphi 0, %s200
    %s202 = sphi 0, %s200
    %s203 = sphi 0, %s202
    %s217 = sphi 0, %s203
    %s221 = sphi 0, %s221
    %s223 = sphi 0, %s221
    %s224 = sphi 0, %s223
    %s238 = sphi 0, %s224
    %s242 = sphi 0, %s242
    %s244 = sphi 0, %s242
    %s245 = sphi 0, %s244
    %s259 = sphi 0, %s245
    %s263 = sphi 0, %s263
    %s265 = sphi 0, %s263
    %s266 = sphi 0, %s265
    %s280 = sphi 0, %s266
    %s284 = sphi 0, %s284
    %s286 = sphi 0, %s284
    %s287 = sphi 0, %s286
    %s301 = sphi 0, %s287
    %s305 = sphi 0, %s305
    %s307 = sphi 0, %s305
    %s308 = sphi 0, %s307
    %s322 = sphi 0, %s308
    %s326 = sphi 0, %s326
    %s328 = sphi 0, %s326
    %s329 = sphi 0, %s328
    %s343 = sphi 0, %s329
    %s347 = sphi 0, %s347
    %s349 = sphi 0, %s347
    %s350 = sphi 0, %s349
    %s364 = sphi 0, %s350
    %s368 = sphi 0, %s368
    %s370 = sphi 0, %s368
    %s371 = sphi 0, %s370
    %s385 = sphi 0, %s371
    %s389 = sphi 0, %s389
    %s391 = sphi 0, %s389
    %s392 = sphi 0, %s391
    %s406 = sphi 0, %s392
    %s410 = sphi 0, %s410
    %s412 = sphi 0, %s410
    %s413 = sphi 0, %s412
    %s427 = sphi 0, %s413
    %s431 = sphi 0, %s431
    %s433 = sphi 0, %s431
    %s434 = sphi 0, %s433
    %s448 = sphi 0, %s434
    %s452 = sphi 0, %s452
    %s454 = sphi 0, %s452
    %s455 = sphi 0, %s454
    %s469 = sphi 0, %s455
    %s473 = sphi 0, %s473
    %s475 = sphi 0, %s473
    %s476 = sphi 0, %s475
    %s490 = sphi 0, %s476
    %s494 = sphi 0, %s494
    %s496 = sphi 0, %s494
    %s497 = sphi 0, %s496
    %s511 = sphi 0, %s497
    %s515 = sphi 0, %s515
    %s517 = sphi 0, %s515
    %s518 = sphi 0, %s517
    %s532 = sphi 0, %s518
    %s536 = sphi 0, %s536
    %s538 = sphi 0, %s536
    %s539 = sphi 0, %s538
    %s553 = sphi 0, %s539
    %s557 = sphi 0, %s557
    %s559 = sphi 0, %s557
    %s560 = sphi 0, %s559
    %s574 = sphi 0, %s560
    %s578 = sphi 0, %s578
    %s580 = sphi 0, %s578
    %s581 = sphi 0, %s580
    %s595 = sphi 0, %s581
    %s601 = sphi 0, %s603
    %s604 = sphi 0, %s601
    %s605 = sphi 0, %s604
    %s621 = sphi 0, %s605
    %s627 = sphi 0, %s629
    %s630 = sphi 0, %s627
    %s631 = sphi 0, %s630
    %s647 = sphi 0, %s631
    %s653 = sphi 0, %s655
    %s656 = sphi 0, %s653
    %s657 = sphi 0, %s656
    %s673 = sphi 0, %s657
    %s679 = sphi 0, %s681
    %s682 = sphi 0, %s679
    %s683 = sphi 0, %s682
    %s699 = sphi 0, %s683
    %s705 = sphi 0, %s707
    %s708 = sphi 0, %s705
    %s709 = sphi 0, %s708
    %s725 = sphi 0, %s709
    %s731 = sphi 0, %s733
    %s734 = sphi 0, %s731
    %s735 = sphi 0, %s734
    %s751 = sphi 0, %s735
    %s757 = sphi 0, %s759
    %s760 = sphi 0, %s757
    %s761 = sphi 0, %s760
    %s777 = sphi 0, %s761
    %s783 = sphi 0, %s785
    %s786 = sphi 0, %s783
    %s787 = sphi 0, %s786
    %s803 = sphi 0, %s787
    %s809 = sphi 0, %s811
    %s812 = sphi 0, %s809
    %s813 = sphi 0, %s812
    %s829 = sphi 0, %s813
    %s835 = sphi 0, %s837
    %s838 = sphi 0, %s835
    %s839 = sphi 0, %s838
    %s855 = sphi 0, %s839
    %s861 = sphi 0, %s863
    %s864 = sphi 0, %s861
    %s865 = sphi 0, %s864
    %s881 = sphi 0, %s865
    %s887 = sphi 0, %s889
    %s890 = sphi 0, %s887
    %s891 = sphi 0, %s890
    %s907 = sphi 0, %s891
    %s913 = sphi 0, %s915
    %s916 = sphi 0, %s913
    %s917 = sphi 0, %s916
    %s933 = sphi 0, %s917
    %s939 = sphi 0, %s941
    %s942 = sphi 0, %s939
    %s943 = sphi 0, %s942
    %s959 = sphi 0, %s943
    %s965 = sphi 0, %s967
    %s968 = sphi 0, %s965
    %s969 = sphi 0, %s968
    %s985 = sphi 0, %s969
    %s991 = sphi 0, %s993
    %s994 = sphi 0, %s991
    %s995 = sphi 0, %s994
    %s1011 = sphi 0, %s995
    %s1015 = sphi 0, %s1015
    %s1017 = sphi 0, %s1015
    %s1018 = sphi 0, %s1017
    %s1032 = sphi 0, %s1018
  $region4: #{forward.1} parent=0 // loop_header_branch
    %90 = sbr.rel (%p88) target = $region8
  $region5: #{forward.1} parent=0 // loop_body
    %s92 = ssub.s32 %s87, 1
    %s93 = ssub.s32 %s87, 2
    %s94 = sadd.s32 %s87, 1
    %s96 = sadd.s32 %s95, 1
    %p99 = scmp.eq.s32.totalorder %s87, 1
    %p100 = scmp.ne.s32.totalorder %s95, %s97
    %p101 = scmp.eq.s32.totalorder %s87, 0
    %p102 = por %p100, %p101
    %p103 = scmp.ne.s32.totalorder %s95, %s97
    %p104 = scmp.eq.s32.totalorder %s92, 1
    %p105 = por %p103, %p104
    %p106 = scmp.ne.s32.totalorder %s97, %s98
    %p107 = scmp.eq.s32.totalorder %s92, 0
    %p108 = por %p106, %p107
    %p109 = scmp.ne.s32.totalorder %s97, %s98
    %p110 = scmp.eq.s32.totalorder %s93, 1
    %p111 = por %p109, %p110
    %p113 = scmp.ne.s32.totalorder %s98, %s112
    %p114 = scmp.eq.s32.totalorder %s93, 0
    %p115 = por %p113, %p114
    %s117 = sadd.s32 %s116, 1
    %p120 = scmp.eq.s32.totalorder %s87, 1
    %p121 = scmp.ne.s32.totalorder %s116, %s118
    %p122 = scmp.eq.s32.totalorder %s87, 0
    %p123 = por %p121, %p122
    %p124 = scmp.ne.s32.totalorder %s116, %s118
    %p125 = scmp.eq.s32.totalorder %s92, 1
    %p126 = por %p124, %p125
    %p127 = scmp.ne.s32.totalorder %s118, %s119
    %p128 = scmp.eq.s32.totalorder %s92, 0
    %p129 = por %p127, %p128
    %p130 = scmp.ne.s32.totalorder %s118, %s119
    %p131 = scmp.eq.s32.totalorder %s93, 1
    %p132 = por %p130, %p131
    %p134 = scmp.ne.s32.totalorder %s119, %s133
    %p135 = scmp.eq.s32.totalorder %s93, 0
    %p136 = por %p134, %p135
    %s138 = sadd.s32 %s137, 1
    %p141 = scmp.eq.s32.totalorder %s87, 1
    %p142 = scmp.ne.s32.totalorder %s137, %s139
    %p143 = scmp.eq.s32.totalorder %s87, 0
    %p144 = por %p142, %p143
    %p145 = scmp.ne.s32.totalorder %s137, %s139
    %p146 = scmp.eq.s32.totalorder %s92, 1
    %p147 = por %p145, %p146
    %p148 = scmp.ne.s32.totalorder %s139, %s140
    %p149 = scmp.eq.s32.totalorder %s92, 0
    %p150 = por %p148, %p149
    %p151 = scmp.ne.s32.totalorder %s139, %s140
    %p152 = scmp.eq.s32.totalorder %s93, 1
    %p153 = por %p151, %p152
    %p155 = scmp.ne.s32.totalorder %s140, %s154
    %p156 = scmp.eq.s32.totalorder %s93, 0
    %p157 = por %p155, %p156
    %s159 = sadd.s32 %s158, 1
    %p162 = scmp.eq.s32.totalorder %s87, 1
    %p163 = scmp.ne.s32.totalorder %s158, %s160
    %p164 = scmp.eq.s32.totalorder %s87, 0
    %p165 = por %p163, %p164
    %p166 = scmp.ne.s32.totalorder %s158, %s160
    %p167 = scmp.eq.s32.totalorder %s92, 1
    %p168 = por %p166, %p167
    %p169 = scmp.ne.s32.totalorder %s160, %s161
    %p170 = scmp.eq.s32.totalorder %s92, 0
    %p171 = por %p169, %p170
    %p172 = scmp.ne.s32.totalorder %s160, %s161
    %p173 = scmp.eq.s32.totalorder %s93, 1
    %p174 = por %p172, %p173
    %p176 = scmp.ne.s32.totalorder %s161, %s175
    %p177 = scmp.eq.s32.totalorder %s93, 0
    %p178 = por %p176, %p177
    %s180 = sadd.s32 %s179, 1
    %p183 = scmp.eq.s32.totalorder %s87, 1
    %p184 = scmp.ne.s32.totalorder %s179, %s181
    %p185 = scmp.eq.s32.totalorder %s87, 0
    %p186 = por %p184, %p185
    %p187 = scmp.ne.s32.totalorder %s179, %s181
    %p188 = scmp.eq.s32.totalorder %s92, 1
    %p189 = por %p187, %p188
    %p190 = scmp.ne.s32.totalorder %s181, %s182
    %p191 = scmp.eq.s32.totalorder %s92, 0
    %p192 = por %p190, %p191
    %p193 = scmp.ne.s32.totalorder %s181, %s182
    %p194 = scmp.eq.s32.totalorder %s93, 1
    %p195 = por %p193, %p194
    %p197 = scmp.ne.s32.totalorder %s182, %s196
    %p198 = scmp.eq.s32.totalorder %s93, 0
    %p199 = por %p197, %p198
    %s201 = sadd.s32 %s200, 1
    %p204 = scmp.eq.s32.totalorder %s87, 1
    %p205 = scmp.ne.s32.totalorder %s200, %s202
    %p206 = scmp.eq.s32.totalorder %s87, 0
    %p207 = por %p205, %p206
    %p208 = scmp.ne.s32.totalorder %s200, %s202
    %p209 = scmp.eq.s32.totalorder %s92, 1
    %p210 = por %p208, %p209
    %p211 = scmp.ne.s32.totalorder %s202, %s203
    %p212 = scmp.eq.s32.totalorder %s92, 0
    %p213 = por %p211, %p212
    %p214 = scmp.ne.s32.totalorder %s202, %s203
    %p215 = scmp.eq.s32.totalorder %s93, 1
    %p216 = por %p214, %p215
    %p218 = scmp.ne.s32.totalorder %s203, %s217
    %p219 = scmp.eq.s32.totalorder %s93, 0
    %p220 = por %p218, %p219
    %s222 = sadd.s32 %s221, 1
    %p225 = scmp.eq.s32.totalorder %s87, 1
    %p226 = scmp.ne.s32.totalorder %s221, %s223
    %p227 = scmp.eq.s32.totalorder %s87, 0
    %p228 = por %p226, %p227
    %p229 = scmp.ne.s32.totalorder %s221, %s223
    %p230 = scmp.eq.s32.totalorder %s92, 1
    %p231 = por %p229, %p230
    %p232 = scmp.ne.s32.totalorder %s223, %s224
    %p233 = scmp.eq.s32.totalorder %s92, 0
    %p234 = por %p232, %p233
    %p235 = scmp.ne.s32.totalorder %s223, %s224
    %p236 = scmp.eq.s32.totalorder %s93, 1
    %p237 = por %p235, %p236
    %p239 = scmp.ne.s32.totalorder %s224, %s238
    %p240 = scmp.eq.s32.totalorder %s93, 0
    %p241 = por %p239, %p240
    %s243 = sadd.s32 %s242, 1
    %p246 = scmp.eq.s32.totalorder %s87, 1
    %p247 = scmp.ne.s32.totalorder %s242, %s244
    %p248 = scmp.eq.s32.totalorder %s87, 0
    %p249 = por %p247, %p248
    %p250 = scmp.ne.s32.totalorder %s242, %s244
    %p251 = scmp.eq.s32.totalorder %s92, 1
    %p252 = por %p250, %p251
    %p253 = scmp.ne.s32.totalorder %s244, %s245
    %p254 = scmp.eq.s32.totalorder %s92, 0
    %p255 = por %p253, %p254
    %p256 = scmp.ne.s32.totalorder %s244, %s245
    %p257 = scmp.eq.s32.totalorder %s93, 1
    %p258 = por %p256, %p257
    %p260 = scmp.ne.s32.totalorder %s245, %s259
    %p261 = scmp.eq.s32.totalorder %s93, 0
    %p262 = por %p260, %p261
    %s264 = sadd.s32 %s263, 1
    %p267 = scmp.eq.s32.totalorder %s87, 1
    %p268 = scmp.ne.s32.totalorder %s263, %s265
    %p269 = scmp.eq.s32.totalorder %s87, 0
    %p270 = por %p268, %p269
    %p271 = scmp.ne.s32.totalorder %s263, %s265
    %p272 = scmp.eq.s32.totalorder %s92, 1
    %p273 = por %p271, %p272
    %p274 = scmp.ne.s32.totalorder %s265, %s266
    %p275 = scmp.eq.s32.totalorder %s92, 0
    %p276 = por %p274, %p275
    %p277 = scmp.ne.s32.totalorder %s265, %s266
    %p278 = scmp.eq.s32.totalorder %s93, 1
    %p279 = por %p277, %p278
    %p281 = scmp.ne.s32.totalorder %s266, %s280
    %p282 = scmp.eq.s32.totalorder %s93, 0
    %p283 = por %p281, %p282
    %s285 = sadd.s32 %s284, 1
    %p288 = scmp.eq.s32.totalorder %s87, 1
    %p289 = scmp.ne.s32.totalorder %s284, %s286
    %p290 = scmp.eq.s32.totalorder %s87, 0
    %p291 = por %p289, %p290
    %p292 = scmp.ne.s32.totalorder %s284, %s286
    %p293 = scmp.eq.s32.totalorder %s92, 1
    %p294 = por %p292, %p293
    %p295 = scmp.ne.s32.totalorder %s286, %s287
    %p296 = scmp.eq.s32.totalorder %s92, 0
    %p297 = por %p295, %p296
    %p298 = scmp.ne.s32.totalorder %s286, %s287
    %p299 = scmp.eq.s32.totalorder %s93, 1
    %p300 = por %p298, %p299
    %p302 = scmp.ne.s32.totalorder %s287, %s301
    %p303 = scmp.eq.s32.totalorder %s93, 0
    %p304 = por %p302, %p303
    %s306 = sadd.s32 %s305, 1
    %p309 = scmp.eq.s32.totalorder %s87, 1
    %p310 = scmp.ne.s32.totalorder %s305, %s307
    %p311 = scmp.eq.s32.totalorder %s87, 0
    %p312 = por %p310, %p311
    %p313 = scmp.ne.s32.totalorder %s305, %s307
    %p314 = scmp.eq.s32.totalorder %s92, 1
    %p315 = por %p313, %p314
    %p316 = scmp.ne.s32.totalorder %s307, %s308
    %p317 = scmp.eq.s32.totalorder %s92, 0
    %p318 = por %p316, %p317
    %p319 = scmp.ne.s32.totalorder %s307, %s308
    %p320 = scmp.eq.s32.totalorder %s93, 1
    %p321 = por %p319, %p320
    %p323 = scmp.ne.s32.totalorder %s308, %s322
    %p324 = scmp.eq.s32.totalorder %s93, 0
    %p325 = por %p323, %p324
    %s327 = sadd.s32 %s326, 1
    %p330 = scmp.eq.s32.totalorder %s87, 1
    %p331 = scmp.ne.s32.totalorder %s326, %s328
    %p332 = scmp.eq.s32.totalorder %s87, 0
    %p333 = por %p331, %p332
    %p334 = scmp.ne.s32.totalorder %s326, %s328
    %p335 = scmp.eq.s32.totalorder %s92, 1
    %p336 = por %p334, %p335
    %p337 = scmp.ne.s32.totalorder %s328, %s329
    %p338 = scmp.eq.s32.totalorder %s92, 0
    %p339 = por %p337, %p338
    %p340 = scmp.ne.s32.totalorder %s328, %s329
    %p341 = scmp.eq.s32.totalorder %s93, 1
    %p342 = por %p340, %p341
    %p344 = scmp.ne.s32.totalorder %s329, %s343
    %p345 = scmp.eq.s32.totalorder %s93, 0
    %p346 = por %p344, %p345
    %s348 = sadd.s32 %s347, 1
    %p351 = scmp.eq.s32.totalorder %s87, 1
    %p352 = scmp.ne.s32.totalorder %s347, %s349
    %p353 = scmp.eq.s32.totalorder %s87, 0
    %p354 = por %p352, %p353
    %p355 = scmp.ne.s32.totalorder %s347, %s349
    %p356 = scmp.eq.s32.totalorder %s92, 1
    %p357 = por %p355, %p356
    %p358 = scmp.ne.s32.totalorder %s349, %s350
    %p359 = scmp.eq.s32.totalorder %s92, 0
    %p360 = por %p358, %p359
    %p361 = scmp.ne.s32.totalorder %s349, %s350
    %p362 = scmp.eq.s32.totalorder %s93, 1
    %p363 = por %p361, %p362
    %p365 = scmp.ne.s32.totalorder %s350, %s364
    %p366 = scmp.eq.s32.totalorder %s93, 0
    %p367 = por %p365, %p366
    %s369 = sadd.s32 %s368, 1
    %p372 = scmp.eq.s32.totalorder %s87, 1
    %p373 = scmp.ne.s32.totalorder %s368, %s370
    %p374 = scmp.eq.s32.totalorder %s87, 0
    %p375 = por %p373, %p374
    %p376 = scmp.ne.s32.totalorder %s368, %s370
    %p377 = scmp.eq.s32.totalorder %s92, 1
    %p378 = por %p376, %p377
    %p379 = scmp.ne.s32.totalorder %s370, %s371
    %p380 = scmp.eq.s32.totalorder %s92, 0
    %p381 = por %p379, %p380
    %p382 = scmp.ne.s32.totalorder %s370, %s371
    %p383 = scmp.eq.s32.totalorder %s93, 1
    %p384 = por %p382, %p383
    %p386 = scmp.ne.s32.totalorder %s371, %s385
    %p387 = scmp.eq.s32.totalorder %s93, 0
    %p388 = por %p386, %p387
    %s390 = sadd.s32 %s389, 1
    %p393 = scmp.eq.s32.totalorder %s87, 1
    %p394 = scmp.ne.s32.totalorder %s389, %s391
    %p395 = scmp.eq.s32.totalorder %s87, 0
    %p396 = por %p394, %p395
    %p397 = scmp.ne.s32.totalorder %s389, %s391
    %p398 = scmp.eq.s32.totalorder %s92, 1
    %p399 = por %p397, %p398
    %p400 = scmp.ne.s32.totalorder %s391, %s392
    %p401 = scmp.eq.s32.totalorder %s92, 0
    %p402 = por %p400, %p401
    %p403 = scmp.ne.s32.totalorder %s391, %s392
    %p404 = scmp.eq.s32.totalorder %s93, 1
    %p405 = por %p403, %p404
    %p407 = scmp.ne.s32.totalorder %s392, %s406
    %p408 = scmp.eq.s32.totalorder %s93, 0
    %p409 = por %p407, %p408
    %s411 = sadd.s32 %s410, 1
    %p414 = scmp.eq.s32.totalorder %s87, 1
    %p415 = scmp.ne.s32.totalorder %s410, %s412
    %p416 = scmp.eq.s32.totalorder %s87, 0
    %p417 = por %p415, %p416
    %p418 = scmp.ne.s32.totalorder %s410, %s412
    %p419 = scmp.eq.s32.totalorder %s92, 1
    %p420 = por %p418, %p419
    %p421 = scmp.ne.s32.totalorder %s412, %s413
    %p422 = scmp.eq.s32.totalorder %s92, 0
    %p423 = por %p421, %p422
    %p424 = scmp.ne.s32.totalorder %s412, %s413
    %p425 = scmp.eq.s32.totalorder %s93, 1
    %p426 = por %p424, %p425
    %p428 = scmp.ne.s32.totalorder %s413, %s427
    %p429 = scmp.eq.s32.totalorder %s93, 0
    %p430 = por %p428, %p429
    %s432 = sadd.s32 %s431, 1
    %p435 = scmp.eq.s32.totalorder %s87, 1
    %p436 = scmp.ne.s32.totalorder %s431, %s433
    %p437 = scmp.eq.s32.totalorder %s87, 0
    %p438 = por %p436, %p437
    %p439 = scmp.ne.s32.totalorder %s431, %s433
    %p440 = scmp.eq.s32.totalorder %s92, 1
    %p441 = por %p439, %p440
    %p442 = scmp.ne.s32.totalorder %s433, %s434
    %p443 = scmp.eq.s32.totalorder %s92, 0
    %p444 = por %p442, %p443
    %p445 = scmp.ne.s32.totalorder %s433, %s434
    %p446 = scmp.eq.s32.totalorder %s93, 1
    %p447 = por %p445, %p446
    %p449 = scmp.ne.s32.totalorder %s434, %s448
    %p450 = scmp.eq.s32.totalorder %s93, 0
    %p451 = por %p449, %p450
    %s453 = sadd.s32 %s452, 1
    %p456 = scmp.eq.s32.totalorder %s87, 1
    %p457 = scmp.ne.s32.totalorder %s452, %s454
    %p458 = scmp.eq.s32.totalorder %s87, 0
    %p459 = por %p457, %p458
    %p460 = scmp.ne.s32.totalorder %s452, %s454
    %p461 = scmp.eq.s32.totalorder %s92, 1
    %p462 = por %p460, %p461
    %p463 = scmp.ne.s32.totalorder %s454, %s455
    %p464 = scmp.eq.s32.totalorder %s92, 0
    %p465 = por %p463, %p464
    %p466 = scmp.ne.s32.totalorder %s454, %s455
    %p467 = scmp.eq.s32.totalorder %s93, 1
    %p468 = por %p466, %p467
    %p470 = scmp.ne.s32.totalorder %s455, %s469
    %p471 = scmp.eq.s32.totalorder %s93, 0
    %p472 = por %p470, %p471
    %s474 = sadd.s32 %s473, 1
    %p477 = scmp.eq.s32.totalorder %s87, 1
    %p478 = scmp.ne.s32.totalorder %s473, %s475
    %p479 = scmp.eq.s32.totalorder %s87, 0
    %p480 = por %p478, %p479
    %p481 = scmp.ne.s32.totalorder %s473, %s475
    %p482 = scmp.eq.s32.totalorder %s92, 1
    %p483 = por %p481, %p482
    %p484 = scmp.ne.s32.totalorder %s475, %s476
    %p485 = scmp.eq.s32.totalorder %s92, 0
    %p486 = por %p484, %p485
    %p487 = scmp.ne.s32.totalorder %s475, %s476
    %p488 = scmp.eq.s32.totalorder %s93, 1
    %p489 = por %p487, %p488
    %p491 = scmp.ne.s32.totalorder %s476, %s490
    %p492 = scmp.eq.s32.totalorder %s93, 0
    %p493 = por %p491, %p492
    %s495 = sadd.s32 %s494, 1
    %p498 = scmp.eq.s32.totalorder %s87, 1
    %p499 = scmp.ne.s32.totalorder %s494, %s496
    %p500 = scmp.eq.s32.totalorder %s87, 0
    %p501 = por %p499, %p500
    %p502 = scmp.ne.s32.totalorder %s494, %s496
    %p503 = scmp.eq.s32.totalorder %s92, 1
    %p504 = por %p502, %p503
    %p505 = scmp.ne.s32.totalorder %s496, %s497
    %p506 = scmp.eq.s32.totalorder %s92, 0
    %p507 = por %p505, %p506
    %p508 = scmp.ne.s32.totalorder %s496, %s497
    %p509 = scmp.eq.s32.totalorder %s93, 1
    %p510 = por %p508, %p509
    %p512 = scmp.ne.s32.totalorder %s497, %s511
    %p513 = scmp.eq.s32.totalorder %s93, 0
    %p514 = por %p512, %p513
    %s516 = sadd.s32 %s515, 1
    %p519 = scmp.eq.s32.totalorder %s87, 1
    %p520 = scmp.ne.s32.totalorder %s515, %s517
    %p521 = scmp.eq.s32.totalorder %s87, 0
    %p522 = por %p520, %p521
    %p523 = scmp.ne.s32.totalorder %s515, %s517
    %p524 = scmp.eq.s32.totalorder %s92, 1
    %p525 = por %p523, %p524
    %p526 = scmp.ne.s32.totalorder %s517, %s518
    %p527 = scmp.eq.s32.totalorder %s92, 0
    %p528 = por %p526, %p527
    %p529 = scmp.ne.s32.totalorder %s517, %s518
    %p530 = scmp.eq.s32.totalorder %s93, 1
    %p531 = por %p529, %p530
    %p533 = scmp.ne.s32.totalorder %s518, %s532
    %p534 = scmp.eq.s32.totalorder %s93, 0
    %p535 = por %p533, %p534
    %s537 = sadd.s32 %s536, 1
    %p540 = scmp.eq.s32.totalorder %s87, 1
    %p541 = scmp.ne.s32.totalorder %s536, %s538
    %p542 = scmp.eq.s32.totalorder %s87, 0
    %p543 = por %p541, %p542
    %p544 = scmp.ne.s32.totalorder %s536, %s538
    %p545 = scmp.eq.s32.totalorder %s92, 1
    %p546 = por %p544, %p545
    %p547 = scmp.ne.s32.totalorder %s538, %s539
    %p548 = scmp.eq.s32.totalorder %s92, 0
    %p549 = por %p547, %p548
    %p550 = scmp.ne.s32.totalorder %s538, %s539
    %p551 = scmp.eq.s32.totalorder %s93, 1
    %p552 = por %p550, %p551
    %p554 = scmp.ne.s32.totalorder %s539, %s553
    %p555 = scmp.eq.s32.totalorder %s93, 0
    %p556 = por %p554, %p555
    %s558 = sadd.s32 %s557, 1
    %p561 = scmp.eq.s32.totalorder %s87, 1
    %p562 = scmp.ne.s32.totalorder %s557, %s559
    %p563 = scmp.eq.s32.totalorder %s87, 0
    %p564 = por %p562, %p563
    %p565 = scmp.ne.s32.totalorder %s557, %s559
    %p566 = scmp.eq.s32.totalorder %s92, 1
    %p567 = por %p565, %p566
    %p568 = scmp.ne.s32.totalorder %s559, %s560
    %p569 = scmp.eq.s32.totalorder %s92, 0
    %p570 = por %p568, %p569
    %p571 = scmp.ne.s32.totalorder %s559, %s560
    %p572 = scmp.eq.s32.totalorder %s93, 1
    %p573 = por %p571, %p572
    %p575 = scmp.ne.s32.totalorder %s560, %s574
    %p576 = scmp.eq.s32.totalorder %s93, 0
    %p577 = por %p575, %p576
    %s579 = sadd.s32 %s578, 1
    %p582 = scmp.eq.s32.totalorder %s87, 1
    %p583 = scmp.ne.s32.totalorder %s578, %s580
    %p584 = scmp.eq.s32.totalorder %s87, 0
    %p585 = por %p583, %p584
    %p586 = scmp.ne.s32.totalorder %s578, %s580
    %p587 = scmp.eq.s32.totalorder %s92, 1
    %p588 = por %p586, %p587
    %p589 = scmp.ne.s32.totalorder %s580, %s581
    %p590 = scmp.eq.s32.totalorder %s92, 0
    %p591 = por %p589, %p590
    %p592 = scmp.ne.s32.totalorder %s580, %s581
    %p593 = scmp.eq.s32.totalorder %s93, 1
    %p594 = por %p592, %p593
    %p596 = scmp.ne.s32.totalorder %s581, %s595
    %p597 = scmp.eq.s32.totalorder %s93, 0
    %p598 = por %p596, %p597
    %s599 = ssub.s32 %s87, %s94
    %p600 = scmp.eq.s32.totalorder %s599, 0
    %s602 = sadd.s32 %s601, 1
    %s603 = scalar_select %p600, %s601, %s602
    %p606 = pneg %p600
    %p607 = scmp.eq.s32.totalorder %s87, 1
    %p608 = por %p606, %p607
    %p609 = scmp.ne.s32.totalorder %s601, %s604
    %p610 = scmp.eq.s32.totalorder %s87, 0
    %p611 = por %p609, %p610
    %p612 = scmp.ne.s32.totalorder %s601, %s604
    %p613 = scmp.eq.s32.totalorder %s92, 1
    %p614 = por %p612, %p613
    %p615 = scmp.ne.s32.totalorder %s604, %s605
    %p616 = scmp.eq.s32.totalorder %s92, 0
    %p617 = por %p615, %p616
    %p618 = scmp.ne.s32.totalorder %s604, %s605
    %p619 = scmp.eq.s32.totalorder %s93, 1
    %p620 = por %p618, %p619
    %p622 = scmp.ne.s32.totalorder %s605, %s621
    %p623 = scmp.eq.s32.totalorder %s93, 0
    %p624 = por %p622, %p623
    %s625 = ssub.s32 %s87, %s94
    %p626 = scmp.eq.s32.totalorder %s625, 0
    %s628 = sadd.s32 %s627, 1
    %s629 = scalar_select %p626, %s627, %s628
    %p632 = pneg %p626
    %p633 = scmp.eq.s32.totalorder %s87, 1
    %p634 = por %p632, %p633
    %p635 = scmp.ne.s32.totalorder %s627, %s630
    %p636 = scmp.eq.s32.totalorder %s87, 0
    %p637 = por %p635, %p636
    %p638 = scmp.ne.s32.totalorder %s627, %s630
    %p639 = scmp.eq.s32.totalorder %s92, 1
    %p640 = por %p638, %p639
    %p641 = scmp.ne.s32.totalorder %s630, %s631
    %p642 = scmp.eq.s32.totalorder %s92, 0
    %p643 = por %p641, %p642
    %p644 = scmp.ne.s32.totalorder %s630, %s631
    %p645 = scmp.eq.s32.totalorder %s93, 1
    %p646 = por %p644, %p645
    %p648 = scmp.ne.s32.totalorder %s631, %s647
    %p649 = scmp.eq.s32.totalorder %s93, 0
    %p650 = por %p648, %p649
    %s651 = ssub.s32 %s87, %s94
    %p652 = scmp.eq.s32.totalorder %s651, 0
    %s654 = sadd.s32 %s653, 1
    %s655 = scalar_select %p652, %s653, %s654
    %p658 = pneg %p652
    %p659 = scmp.eq.s32.totalorder %s87, 1
    %p660 = por %p658, %p659
    %p661 = scmp.ne.s32.totalorder %s653, %s656
    %p662 = scmp.eq.s32.totalorder %s87, 0
    %p663 = por %p661, %p662
    %p664 = scmp.ne.s32.totalorder %s653, %s656
    %p665 = scmp.eq.s32.totalorder %s92, 1
    %p666 = por %p664, %p665
    %p667 = scmp.ne.s32.totalorder %s656, %s657
    %p668 = scmp.eq.s32.totalorder %s92, 0
    %p669 = por %p667, %p668
    %p670 = scmp.ne.s32.totalorder %s656, %s657
    %p671 = scmp.eq.s32.totalorder %s93, 1
    %p672 = por %p670, %p671
    %p674 = scmp.ne.s32.totalorder %s657, %s673
    %p675 = scmp.eq.s32.totalorder %s93, 0
    %p676 = por %p674, %p675
    %s677 = ssub.s32 %s87, %s94
    %p678 = scmp.eq.s32.totalorder %s677, 0
    %s680 = sadd.s32 %s679, 1
    %s681 = scalar_select %p678, %s679, %s680
    %p684 = pneg %p678
    %p685 = scmp.eq.s32.totalorder %s87, 1
    %p686 = por %p684, %p685
    %p687 = scmp.ne.s32.totalorder %s679, %s682
    %p688 = scmp.eq.s32.totalorder %s87, 0
    %p689 = por %p687, %p688
    %p690 = scmp.ne.s32.totalorder %s679, %s682
    %p691 = scmp.eq.s32.totalorder %s92, 1
    %p692 = por %p690, %p691
    %p693 = scmp.ne.s32.totalorder %s682, %s683
    %p694 = scmp.eq.s32.totalorder %s92, 0
    %p695 = por %p693, %p694
    %p696 = scmp.ne.s32.totalorder %s682, %s683
    %p697 = scmp.eq.s32.totalorder %s93, 1
    %p698 = por %p696, %p697
    %p700 = scmp.ne.s32.totalorder %s683, %s699
    %p701 = scmp.eq.s32.totalorder %s93, 0
    %p702 = por %p700, %p701
    %s703 = ssub.s32 %s87, %s94
    %p704 = scmp.eq.s32.totalorder %s703, 0
    %s706 = sadd.s32 %s705, 1
    %s707 = scalar_select %p704, %s705, %s706
    %p710 = pneg %p704
    %p711 = scmp.eq.s32.totalorder %s87, 1
    %p712 = por %p710, %p711
    %p713 = scmp.ne.s32.totalorder %s705, %s708
    %p714 = scmp.eq.s32.totalorder %s87, 0
    %p715 = por %p713, %p714
    %p716 = scmp.ne.s32.totalorder %s705, %s708
    %p717 = scmp.eq.s32.totalorder %s92, 1
    %p718 = por %p716, %p717
    %p719 = scmp.ne.s32.totalorder %s708, %s709
    %p720 = scmp.eq.s32.totalorder %s92, 0
    %p721 = por %p719, %p720
    %p722 = scmp.ne.s32.totalorder %s708, %s709
    %p723 = scmp.eq.s32.totalorder %s93, 1
    %p724 = por %p722, %p723
    %p726 = scmp.ne.s32.totalorder %s709, %s725
    %p727 = scmp.eq.s32.totalorder %s93, 0
    %p728 = por %p726, %p727
    %s729 = ssub.s32 %s87, %s94
    %p730 = scmp.eq.s32.totalorder %s729, 0
    %s732 = sadd.s32 %s731, 1
    %s733 = scalar_select %p730, %s731, %s732
    %p736 = pneg %p730
    %p737 = scmp.eq.s32.totalorder %s87, 1
    %p738 = por %p736, %p737
    %p739 = scmp.ne.s32.totalorder %s731, %s734
    %p740 = scmp.eq.s32.totalorder %s87, 0
    %p741 = por %p739, %p740
    %p742 = scmp.ne.s32.totalorder %s731, %s734
    %p743 = scmp.eq.s32.totalorder %s92, 1
    %p744 = por %p742, %p743
    %p745 = scmp.ne.s32.totalorder %s734, %s735
    %p746 = scmp.eq.s32.totalorder %s92, 0
    %p747 = por %p745, %p746
    %p748 = scmp.ne.s32.totalorder %s734, %s735
    %p749 = scmp.eq.s32.totalorder %s93, 1
    %p750 = por %p748, %p749
    %p752 = scmp.ne.s32.totalorder %s735, %s751
    %p753 = scmp.eq.s32.totalorder %s93, 0
    %p754 = por %p752, %p753
    %s755 = ssub.s32 %s87, %s94
    %p756 = scmp.eq.s32.totalorder %s755, 0
    %s758 = sadd.s32 %s757, 1
    %s759 = scalar_select %p756, %s757, %s758
    %p762 = pneg %p756
    %p763 = scmp.eq.s32.totalorder %s87, 1
    %p764 = por %p762, %p763
    %p765 = scmp.ne.s32.totalorder %s757, %s760
    %p766 = scmp.eq.s32.totalorder %s87, 0
    %p767 = por %p765, %p766
    %p768 = scmp.ne.s32.totalorder %s757, %s760
    %p769 = scmp.eq.s32.totalorder %s92, 1
    %p770 = por %p768, %p769
    %p771 = scmp.ne.s32.totalorder %s760, %s761
    %p772 = scmp.eq.s32.totalorder %s92, 0
    %p773 = por %p771, %p772
    %p774 = scmp.ne.s32.totalorder %s760, %s761
    %p775 = scmp.eq.s32.totalorder %s93, 1
    %p776 = por %p774, %p775
    %p778 = scmp.ne.s32.totalorder %s761, %s777
    %p779 = scmp.eq.s32.totalorder %s93, 0
    %p780 = por %p778, %p779
    %s781 = ssub.s32 %s87, %s94
    %p782 = scmp.eq.s32.totalorder %s781, 0
    %s784 = sadd.s32 %s783, 1
    %s785 = scalar_select %p782, %s783, %s784
    %p788 = pneg %p782
    %p789 = scmp.eq.s32.totalorder %s87, 1
    %p790 = por %p788, %p789
    %p791 = scmp.ne.s32.totalorder %s783, %s786
    %p792 = scmp.eq.s32.totalorder %s87, 0
    %p793 = por %p791, %p792
    %p794 = scmp.ne.s32.totalorder %s783, %s786
    %p795 = scmp.eq.s32.totalorder %s92, 1
    %p796 = por %p794, %p795
    %p797 = scmp.ne.s32.totalorder %s786, %s787
    %p798 = scmp.eq.s32.totalorder %s92, 0
    %p799 = por %p797, %p798
    %p800 = scmp.ne.s32.totalorder %s786, %s787
    %p801 = scmp.eq.s32.totalorder %s93, 1
    %p802 = por %p800, %p801
    %p804 = scmp.ne.s32.totalorder %s787, %s803
    %p805 = scmp.eq.s32.totalorder %s93, 0
    %p806 = por %p804, %p805
    %s807 = ssub.s32 %s87, %s94
    %p808 = scmp.eq.s32.totalorder %s807, 0
    %s810 = sadd.s32 %s809, 1
    %s811 = scalar_select %p808, %s809, %s810
    %p814 = pneg %p808
    %p815 = scmp.eq.s32.totalorder %s87, 1
    %p816 = por %p814, %p815
    %p817 = scmp.ne.s32.totalorder %s809, %s812
    %p818 = scmp.eq.s32.totalorder %s87, 0
    %p819 = por %p817, %p818
    %p820 = scmp.ne.s32.totalorder %s809, %s812
    %p821 = scmp.eq.s32.totalorder %s92, 1
    %p822 = por %p820, %p821
    %p823 = scmp.ne.s32.totalorder %s812, %s813
    %p824 = scmp.eq.s32.totalorder %s92, 0
    %p825 = por %p823, %p824
    %p826 = scmp.ne.s32.totalorder %s812, %s813
    %p827 = scmp.eq.s32.totalorder %s93, 1
    %p828 = por %p826, %p827
    %p830 = scmp.ne.s32.totalorder %s813, %s829
    %p831 = scmp.eq.s32.totalorder %s93, 0
    %p832 = por %p830, %p831
    %s833 = ssub.s32 %s87, %s94
    %p834 = scmp.eq.s32.totalorder %s833, 0
    %s836 = sadd.s32 %s835, 1
    %s837 = scalar_select %p834, %s835, %s836
    %p840 = pneg %p834
    %p841 = scmp.eq.s32.totalorder %s87, 1
    %p842 = por %p840, %p841
    %p843 = scmp.ne.s32.totalorder %s835, %s838
    %p844 = scmp.eq.s32.totalorder %s87, 0
    %p845 = por %p843, %p844
    %p846 = scmp.ne.s32.totalorder %s835, %s838
    %p847 = scmp.eq.s32.totalorder %s92, 1
    %p848 = por %p846, %p847
    %p849 = scmp.ne.s32.totalorder %s838, %s839
    %p850 = scmp.eq.s32.totalorder %s92, 0
    %p851 = por %p849, %p850
    %p852 = scmp.ne.s32.totalorder %s838, %s839
    %p853 = scmp.eq.s32.totalorder %s93, 1
    %p854 = por %p852, %p853
    %p856 = scmp.ne.s32.totalorder %s839, %s855
    %p857 = scmp.eq.s32.totalorder %s93, 0
    %p858 = por %p856, %p857
    %s859 = ssub.s32 %s87, %s94
    %p860 = scmp.eq.s32.totalorder %s859, 0
    %s862 = sadd.s32 %s861, 1
    %s863 = scalar_select %p860, %s861, %s862
    %p866 = pneg %p860
    %p867 = scmp.eq.s32.totalorder %s87, 1
    %p868 = por %p866, %p867
    %p869 = scmp.ne.s32.totalorder %s861, %s864
    %p870 = scmp.eq.s32.totalorder %s87, 0
    %p871 = por %p869, %p870
    %p872 = scmp.ne.s32.totalorder %s861, %s864
    %p873 = scmp.eq.s32.totalorder %s92, 1
    %p874 = por %p872, %p873
    %p875 = scmp.ne.s32.totalorder %s864, %s865
    %p876 = scmp.eq.s32.totalorder %s92, 0
    %p877 = por %p875, %p876
    %p878 = scmp.ne.s32.totalorder %s864, %s865
    %p879 = scmp.eq.s32.totalorder %s93, 1
    %p880 = por %p878, %p879
    %p882 = scmp.ne.s32.totalorder %s865, %s881
    %p883 = scmp.eq.s32.totalorder %s93, 0
    %p884 = por %p882, %p883
    %s885 = ssub.s32 %s87, %s94
    %p886 = scmp.eq.s32.totalorder %s885, 0
    %s888 = sadd.s32 %s887, 1
    %s889 = scalar_select %p886, %s887, %s888
    %p892 = pneg %p886
    %p893 = scmp.eq.s32.totalorder %s87, 1
    %p894 = por %p892, %p893
    %p895 = scmp.ne.s32.totalorder %s887, %s890
    %p896 = scmp.eq.s32.totalorder %s87, 0
    %p897 = por %p895, %p896
    %p898 = scmp.ne.s32.totalorder %s887, %s890
    %p899 = scmp.eq.s32.totalorder %s92, 1
    %p900 = por %p898, %p899
    %p901 = scmp.ne.s32.totalorder %s890, %s891
    %p902 = scmp.eq.s32.totalorder %s92, 0
    %p903 = por %p901, %p902
    %p904 = scmp.ne.s32.totalorder %s890, %s891
    %p905 = scmp.eq.s32.totalorder %s93, 1
    %p906 = por %p904, %p905
    %p908 = scmp.ne.s32.totalorder %s891, %s907
    %p909 = scmp.eq.s32.totalorder %s93, 0
    %p910 = por %p908, %p909
    %s911 = ssub.s32 %s87, %s94
    %p912 = scmp.eq.s32.totalorder %s911, 0
    %s914 = sadd.s32 %s913, 1
    %s915 = scalar_select %p912, %s913, %s914
    %p918 = pneg %p912
    %p919 = scmp.eq.s32.totalorder %s87, 1
    %p920 = por %p918, %p919
    %p921 = scmp.ne.s32.totalorder %s913, %s916
    %p922 = scmp.eq.s32.totalorder %s87, 0
    %p923 = por %p921, %p922
    %p924 = scmp.ne.s32.totalorder %s913, %s916
    %p925 = scmp.eq.s32.totalorder %s92, 1
    %p926 = por %p924, %p925
    %p927 = scmp.ne.s32.totalorder %s916, %s917
    %p928 = scmp.eq.s32.totalorder %s92, 0
    %p929 = por %p927, %p928
    %p930 = scmp.ne.s32.totalorder %s916, %s917
    %p931 = scmp.eq.s32.totalorder %s93, 1
    %p932 = por %p930, %p931
    %p934 = scmp.ne.s32.totalorder %s917, %s933
    %p935 = scmp.eq.s32.totalorder %s93, 0
    %p936 = por %p934, %p935
    %s937 = ssub.s32 %s87, %s94
    %p938 = scmp.eq.s32.totalorder %s937, 0
    %s940 = sadd.s32 %s939, 1
    %s941 = scalar_select %p938, %s939, %s940
    %p944 = pneg %p938
    %p945 = scmp.eq.s32.totalorder %s87, 1
    %p946 = por %p944, %p945
    %p947 = scmp.ne.s32.totalorder %s939, %s942
    %p948 = scmp.eq.s32.totalorder %s87, 0
    %p949 = por %p947, %p948
    %p950 = scmp.ne.s32.totalorder %s939, %s942
    %p951 = scmp.eq.s32.totalorder %s92, 1
    %p952 = por %p950, %p951
    %p953 = scmp.ne.s32.totalorder %s942, %s943
    %p954 = scmp.eq.s32.totalorder %s92, 0
    %p955 = por %p953, %p954
    %p956 = scmp.ne.s32.totalorder %s942, %s943
    %p957 = scmp.eq.s32.totalorder %s93, 1
    %p958 = por %p956, %p957
    %p960 = scmp.ne.s32.totalorder %s943, %s959
    %p961 = scmp.eq.s32.totalorder %s93, 0
    %p962 = por %p960, %p961
    %s963 = ssub.s32 %s87, %s94
    %p964 = scmp.eq.s32.totalorder %s963, 0
    %s966 = sadd.s32 %s965, 1
    %s967 = scalar_select %p964, %s965, %s966
    %p970 = pneg %p964
    %p971 = scmp.eq.s32.totalorder %s87, 1
    %p972 = por %p970, %p971
    %p973 = scmp.ne.s32.totalorder %s965, %s968
    %p974 = scmp.eq.s32.totalorder %s87, 0
    %p975 = por %p973, %p974
    %p976 = scmp.ne.s32.totalorder %s965, %s968
    %p977 = scmp.eq.s32.totalorder %s92, 1
    %p978 = por %p976, %p977
    %p979 = scmp.ne.s32.totalorder %s968, %s969
    %p980 = scmp.eq.s32.totalorder %s92, 0
    %p981 = por %p979, %p980
    %p982 = scmp.ne.s32.totalorder %s968, %s969
    %p983 = scmp.eq.s32.totalorder %s93, 1
    %p984 = por %p982, %p983
    %p986 = scmp.ne.s32.totalorder %s969, %s985
    %p987 = scmp.eq.s32.totalorder %s93, 0
    %p988 = por %p986, %p987
    %s989 = ssub.s32 %s87, %s94
    %p990 = scmp.eq.s32.totalorder %s989, 0
    %s992 = sadd.s32 %s991, 1
    %s993 = scalar_select %p990, %s991, %s992
    %p996 = pneg %p990
    %p997 = scmp.eq.s32.totalorder %s87, 1
    %p998 = por %p996, %p997
    %p999 = scmp.ne.s32.totalorder %s991, %s994
    %p1000 = scmp.eq.s32.totalorder %s87, 0
    %p1001 = por %p999, %p1000
    %p1002 = scmp.ne.s32.totalorder %s991, %s994
    %p1003 = scmp.eq.s32.totalorder %s92, 1
    %p1004 = por %p1002, %p1003
    %p1005 = scmp.ne.s32.totalorder %s994, %s995
    %p1006 = scmp.eq.s32.totalorder %s92, 0
    %p1007 = por %p1005, %p1006
    %p1008 = scmp.ne.s32.totalorder %s994, %s995
    %p1009 = scmp.eq.s32.totalorder %s93, 1
    %p1010 = por %p1008, %p1009
    %p1012 = scmp.ne.s32.totalorder %s995, %s1011
    %p1013 = scmp.eq.s32.totalorder %s93, 0
    %p1014 = por %p1012, %p1013
    %s1016 = sadd.s32 %s1015, 1
    %p1019 = scmp.eq.s32.totalorder %s87, 1
    %p1020 = scmp.ne.s32.totalorder %s1015, %s1017
    %p1021 = scmp.eq.s32.totalorder %s87, 0
    %p1022 = por %p1020, %p1021
    %p1023 = scmp.ne.s32.totalorder %s1015, %s1017
    %p1024 = scmp.eq.s32.totalorder %s92, 1
    %p1025 = por %p1023, %p1024
    %p1026 = scmp.ne.s32.totalorder %s1017, %s1018
    %p1027 = scmp.eq.s32.totalorder %s92, 0
    %p1028 = por %p1026, %p1027
    %p1029 = scmp.ne.s32.totalorder %s1017, %s1018
    %p1030 = scmp.eq.s32.totalorder %s93, 1
    %p1031 = por %p1029, %p1030
    %p1033 = scmp.ne.s32.totalorder %s1018, %s1032
    %p1034 = scmp.eq.s32.totalorder %s93, 0
    %p1035 = por %p1033, %p1034
    %p1036 = scmp.le.s32.totalorder 1, %s87
    %p1037 = scmp.lt.s32.totalorder %s87, 3
    %p1038 = pnand %p1036, %p1037
    %p1039 = pneg %p1038
    // Predicated region
    $region9: #{forward.1} parent=5 // pred_check
      _
    $region10: #{forward.1} parent=5 // pred_check_branch
      %1041 = sbr.rel (%p1038) target = $region12
    $region11: #{forward.1} parent=5 // pred_region
      %s1042 = ssub.s32 %s87, 1
      // Predicated region
      $region13: #{forward.1} parent=11 // pred_check
        %p1043 = pneg %p108
      $region14: #{forward.1} parent=11 // pred_check_branch
        %1045 = sbr.rel (%p1043) target = $region16
      $region15: #{forward.1} parent=11 // pred_region
        _
      $region16: #{forward.1} parent=11 // pred_fallthru
        _
      // Predicated region
      $region17: #{forward.1} parent=11 // pred_check
        %p1046 = pneg %p129
      $region18: #{forward.1} parent=11 // pred_check_branch
        %1048 = sbr.rel (%p1046) target = $region20
      $region19: #{forward.1} parent=11 // pred_region
        _
      $region20: #{forward.1} parent=11 // pred_fallthru
        _
      // Predicated region
      $region21: #{forward.1} parent=11 // pred_check
        %p1049 = pneg %p150
      $region22: #{forward.1} parent=11 // pred_check_branch
        %1051 = sbr.rel (%p1049) target = $region24
      $region23: #{forward.1} parent=11 // pred_region
        _
      $region24: #{forward.1} parent=11 // pred_fallthru
        _
      // Predicated region
      $region25: #{forward.1} parent=11 // pred_check
        %p1052 = pneg %p171
      $region26: #{forward.1} parent=11 // pred_check_branch
        %1054 = sbr.rel (%p1052) target = $region28
      $region27: #{forward.1} parent=11 // pred_region
        _
      $region28: #{forward.1} parent=11 // pred_fallthru
        _
      // Predicated region
      $region29: #{forward.1} parent=11 // pred_check
        %p1055 = pneg %p192
      $region30: #{forward.1} parent=11 // pred_check_branch
        %1057 = sbr.rel (%p1055) target = $region32
      $region31: #{forward.1} parent=11 // pred_region
        _
      $region32: #{forward.1} parent=11 // pred_fallthru
        _
      // Predicated region
      $region33: #{forward.1} parent=11 // pred_check
        %p1058 = pneg %p213
      $region34: #{forward.1} parent=11 // pred_check_branch
        %1060 = sbr.rel (%p1058) target = $region36
      $region35: #{forward.1} parent=11 // pred_region
        _
      $region36: #{forward.1} parent=11 // pred_fallthru
        _
      // Predicated region
      $region37: #{forward.1} parent=11 // pred_check
        %p1061 = pneg %p234
      $region38: #{forward.1} parent=11 // pred_check_branch
        %1063 = sbr.rel (%p1061) target = $region40
      $region39: #{forward.1} parent=11 // pred_region
        _
      $region40: #{forward.1} parent=11 // pred_fallthru
        _
      // Predicated region
      $region41: #{forward.1} parent=11 // pred_check
        %p1064 = pneg %p255
      $region42: #{forward.1} parent=11 // pred_check_branch
        %1066 = sbr.rel (%p1064) target = $region44
      $region43: #{forward.1} parent=11 // pred_region
        _
      $region44: #{forward.1} parent=11 // pred_fallthru
        _
      // Predicated region
      $region45: #{forward.1} parent=11 // pred_check
        %p1067 = pneg %p276
      $region46: #{forward.1} parent=11 // pred_check_branch
        %1069 = sbr.rel (%p1067) target = $region48
      $region47: #{forward.1} parent=11 // pred_region
        _
      $region48: #{forward.1} parent=11 // pred_fallthru
        _
      // Predicated region
      $region49: #{forward.1} parent=11 // pred_check
        %p1070 = pneg %p297
      $region50: #{forward.1} parent=11 // pred_check_branch
        %1072 = sbr.rel (%p1070) target = $region52
      $region51: #{forward.1} parent=11 // pred_region
        _
      $region52: #{forward.1} parent=11 // pred_fallthru
        _
      // Predicated region
      $region53: #{forward.1} parent=11 // pred_check
        %p1073 = pneg %p318
      $region54: #{forward.1} parent=11 // pred_check_branch
        %1075 = sbr.rel (%p1073) target = $region56
      $region55: #{forward.1} parent=11 // pred_region
        _
      $region56: #{forward.1} parent=11 // pred_fallthru
        _
      // Predicated region
      $region57: #{forward.1} parent=11 // pred_check
        %p1076 = pneg %p339
      $region58: #{forward.1} parent=11 // pred_check_branch
        %1078 = sbr.rel (%p1076) target = $region60
      $region59: #{forward.1} parent=11 // pred_region
        _
      $region60: #{forward.1} parent=11 // pred_fallthru
        _
      // Predicated region
      $region61: #{forward.1} parent=11 // pred_check
        %p1079 = pneg %p360
      $region62: #{forward.1} parent=11 // pred_check_branch
        %1081 = sbr.rel (%p1079) target = $region64
      $region63: #{forward.1} parent=11 // pred_region
        _
      $region64: #{forward.1} parent=11 // pred_fallthru
        _
      // Predicated region
      $region65: #{forward.1} parent=11 // pred_check
        %p1082 = pneg %p381
      $region66: #{forward.1} parent=11 // pred_check_branch
        %1084 = sbr.rel (%p1082) target = $region68
      $region67: #{forward.1} parent=11 // pred_region
        _
      $region68: #{forward.1} parent=11 // pred_fallthru
        _
      // Predicated region
      $region69: #{forward.1} parent=11 // pred_check
        %p1085 = pneg %p402
      $region70: #{forward.1} parent=11 // pred_check_branch
        %1087 = sbr.rel (%p1085) target = $region72
      $region71: #{forward.1} parent=11 // pred_region
        _
      $region72: #{forward.1} parent=11 // pred_fallthru
        _
      // Predicated region
      $region73: #{forward.1} parent=11 // pred_check
        %p1088 = pneg %p423
      $region74: #{forward.1} parent=11 // pred_check_branch
        %1090 = sbr.rel (%p1088) target = $region76
      $region75: #{forward.1} parent=11 // pred_region
        _
      $region76: #{forward.1} parent=11 // pred_fallthru
        _
      // Predicated region
      $region77: #{forward.1} parent=11 // pred_check
        %p1091 = pneg %p444
      $region78: #{forward.1} parent=11 // pred_check_branch
        %1093 = sbr.rel (%p1091) target = $region80
      $region79: #{forward.1} parent=11 // pred_region
        _
      $region80: #{forward.1} parent=11 // pred_fallthru
        _
      // Predicated region
      $region81: #{forward.1} parent=11 // pred_check
        %p1094 = pneg %p465
      $region82: #{forward.1} parent=11 // pred_check_branch
        %1096 = sbr.rel (%p1094) target = $region84
      $region83: #{forward.1} parent=11 // pred_region
        _
      $region84: #{forward.1} parent=11 // pred_fallthru
        _
      // Predicated region
      $region85: #{forward.1} parent=11 // pred_check
        %p1097 = pneg %p486
      $region86: #{forward.1} parent=11 // pred_check_branch
        %1099 = sbr.rel (%p1097) target = $region88
      $region87: #{forward.1} parent=11 // pred_region
        _
      $region88: #{forward.1} parent=11 // pred_fallthru
        _
      // Predicated region
      $region89: #{forward.1} parent=11 // pred_check
        %p1100 = pneg %p507
      $region90: #{forward.1} parent=11 // pred_check_branch
        %1102 = sbr.rel (%p1100) target = $region92
      $region91: #{forward.1} parent=11 // pred_region
        _
      $region92: #{forward.1} parent=11 // pred_fallthru
        _
      // Predicated region
      $region93: #{forward.1} parent=11 // pred_check
        %p1103 = pneg %p528
      $region94: #{forward.1} parent=11 // pred_check_branch
        %1105 = sbr.rel (%p1103) target = $region96
      $region95: #{forward.1} parent=11 // pred_region
        _
      $region96: #{forward.1} parent=11 // pred_fallthru
        _
      // Predicated region
      $region97: #{forward.1} parent=11 // pred_check
        %p1106 = pneg %p549
      $region98: #{forward.1} parent=11 // pred_check_branch
        %1108 = sbr.rel (%p1106) target = $region100
      $region99: #{forward.1} parent=11 // pred_region
        _
      $region100: #{forward.1} parent=11 // pred_fallthru
        _
      // Predicated region
      $region101: #{forward.1} parent=11 // pred_check
        %p1109 = pneg %p570
      $region102: #{forward.1} parent=11 // pred_check_branch
        %1111 = sbr.rel (%p1109) target = $region104
      $region103: #{forward.1} parent=11 // pred_region
        _
      $region104: #{forward.1} parent=11 // pred_fallthru
        _
      // Predicated region
      $region105: #{forward.1} parent=11 // pred_check
        %p1112 = pneg %p591
      $region106: #{forward.1} parent=11 // pred_check_branch
        %1114 = sbr.rel (%p1112) target = $region108
      $region107: #{forward.1} parent=11 // pred_region
        _
      $region108: #{forward.1} parent=11 // pred_fallthru
        _
    $region12: #{forward.1} parent=5 // pred_fallthru
      _
    %p1115 = scmp.lt.s32.totalorder %s87, 2
    // Predicated region
    $region109: #{forward.1} parent=5 // pred_check
      %p1116 = pneg %p1115
    $region110: #{forward.1} parent=5 // pred_check_branch
      %1118 = sbr.rel (%p1116) target = $region112
    $region111: #{forward.1} parent=5 // pred_region
      // Predicated region
      $region113: #{forward.1} parent=111 // pred_check
        %p1119 = pneg %p611
      $region114: #{forward.1} parent=111 // pred_check_branch
        %1121 = sbr.rel (%p1119) target = $region116
      $region115: #{forward.1} parent=111 // pred_region
        %p1122 = scmp.lt.s32.totalorder %s87, 1
        %s1123 = scalar_select %p1122, %s87, 1
        %s1124 = smul.addr %s1123, 4
        %s1125 = smul.addr %s1124, 4
        %s1126 = scalar_lea.vmem %s49, %s1125
      $region116: #{forward.1} parent=111 // pred_fallthru
        _
      // Predicated region
      $region117: #{forward.1} parent=111 // pred_check
        %p1127 = pneg %p637
      $region118: #{forward.1} parent=111 // pred_check_branch
        %1129 = sbr.rel (%p1127) target = $region120
      $region119: #{forward.1} parent=111 // pred_region
        %p1130 = scmp.lt.s32.totalorder %s87, 1
        %s1131 = scalar_select %p1130, %s87, 1
        %s1132 = scalar_lea.vmem %s51, %s1131
      $region120: #{forward.1} parent=111 // pred_fallthru
        _
      // Predicated region
      $region121: #{forward.1} parent=111 // pred_check
        %p1133 = pneg %p663
      $region122: #{forward.1} parent=111 // pred_check_branch
        %1135 = sbr.rel (%p1133) target = $region124
      $region123: #{forward.1} parent=111 // pred_region
        %p1136 = scmp.lt.s32.totalorder %s87, 1
        %s1137 = scalar_select %p1136, %s87, 1
        %s1138 = smul.addr %s1137, 4
        %s1139 = smul.addr %s1138, 4
        %s1140 = scalar_lea.vmem %s53, %s1139
      $region124: #{forward.1} parent=111 // pred_fallthru
        _
      // Predicated region
      $region125: #{forward.1} parent=111 // pred_check
        %p1141 = pneg %p689
      $region126: #{forward.1} parent=111 // pred_check_branch
        %1143 = sbr.rel (%p1141) target = $region128
      $region127: #{forward.1} parent=111 // pred_region
        %p1144 = scmp.lt.s32.totalorder %s87, 1
        %s1145 = scalar_select %p1144, %s87, 1
        %s1146 = scalar_lea.vmem %s55, %s1145
      $region128: #{forward.1} parent=111 // pred_fallthru
        _
      // Predicated region
      $region129: #{forward.1} parent=111 // pred_check
        %p1147 = pneg %p715
      $region130: #{forward.1} parent=111 // pred_check_branch
        %1149 = sbr.rel (%p1147) target = $region132
      $region131: #{forward.1} parent=111 // pred_region
        %p1150 = scmp.lt.s32.totalorder %s87, 1
        %s1151 = scalar_select %p1150, %s87, 1
        %s1152 = smul.addr %s1151, 4
        %s1153 = smul.addr %s1152, 4
        %s1154 = scalar_lea.vmem %s57, %s1153
      $region132: #{forward.1} parent=111 // pred_fallthru
        _
      // Predicated region
      $region133: #{forward.1} parent=111 // pred_check
        %p1155 = pneg %p741
      $region134: #{forward.1} parent=111 // pred_check_branch
        %1157 = sbr.rel (%p1155) target = $region136
      $region135: #{forward.1} parent=111 // pred_region
        %p1158 = scmp.lt.s32.totalorder %s87, 1
        %s1159 = scalar_select %p1158, %s87, 1
        %s1160 = scalar_lea.vmem %s59, %s1159
      $region136: #{forward.1} parent=111 // pred_fallthru
        _
      // Predicated region
      $region137: #{forward.1} parent=111 // pred_check
        %p1161 = pneg %p767
      $region138: #{forward.1} parent=111 // pred_check_branch
        %1163 = sbr.rel (%p1161) target = $region140
      $region139: #{forward.1} parent=111 // pred_region
        %p1164 = scmp.lt.s32.totalorder %s87, 1
        %s1165 = scalar_select %p1164, %s87, 1
        %s1166 = smul.addr %s1165, 4
        %s1167 = smul.addr %s1166, 4
        %s1168 = scalar_lea.vmem %s61, %s1167
      $region140: #{forward.1} parent=111 // pred_fallthru
        _
      // Predicated region
      $region141: #{forward.1} parent=111 // pred_check
        %p1169 = pneg %p793
      $region142: #{forward.1} parent=111 // pred_check_branch
        %1171 = sbr.rel (%p1169) target = $region144
      $region143: #{forward.1} parent=111 // pred_region
        %p1172 = scmp.lt.s32.totalorder %s87, 1
        %s1173 = scalar_select %p1172, %s87, 1
        %s1174 = scalar_lea.vmem %s63, %s1173
      $region144: #{forward.1} parent=111 // pred_fallthru
        _
      // Predicated region
      $region145: #{forward.1} parent=111 // pred_check
        %p1175 = pneg %p819
      $region146: #{forward.1} parent=111 // pred_check_branch
        %1177 = sbr.rel (%p1175) target = $region148
      $region147: #{forward.1} parent=111 // pred_region
        %p1178 = scmp.lt.s32.totalorder %s87, 1
        %s1179 = scalar_select %p1178, %s87, 1
        %s1180 = scalar_lea.vmem %s65, %s1179
      $region148: #{forward.1} parent=111 // pred_fallthru
        _
      // Predicated region
      $region149: #{forward.1} parent=111 // pred_check
        %p1181 = pneg %p845
      $region150: #{forward.1} parent=111 // pred_check_branch
        %1183 = sbr.rel (%p1181) target = $region152
      $region151: #{forward.1} parent=111 // pred_region
        %p1184 = scmp.lt.s32.totalorder %s87, 1
        %s1185 = scalar_select %p1184, %s87, 1
        %s1186 = scalar_lea.vmem %s67, %s1185
      $region152: #{forward.1} parent=111 // pred_fallthru
        _
      // Predicated region
      $region153: #{forward.1} parent=111 // pred_check
        %p1187 = pneg %p871
      $region154: #{forward.1} parent=111 // pred_check_branch
        %1189 = sbr.rel (%p1187) target = $region156
      $region155: #{forward.1} parent=111 // pred_region
        %p1190 = scmp.lt.s32.totalorder %s87, 1
        %s1191 = scalar_select %p1190, %s87, 1
        %s1192 = smul.addr %s1191, 4
        %s1193 = smul.addr %s1192, 4
        %s1194 = scalar_lea.vmem %s69, %s1193
      $region156: #{forward.1} parent=111 // pred_fallthru
        _
      // Predicated region
      $region157: #{forward.1} parent=111 // pred_check
        %p1195 = pneg %p897
      $region158: #{forward.1} parent=111 // pred_check_branch
        %1197 = sbr.rel (%p1195) target = $region160
      $region159: #{forward.1} parent=111 // pred_region
        %p1198 = scmp.lt.s32.totalorder %s87, 1
        %s1199 = scalar_select %p1198, %s87, 1
        %s1200 = scalar_lea.vmem %s71, %s1199
      $region160: #{forward.1} parent=111 // pred_fallthru
        _
      // Predicated region
      $region161: #{forward.1} parent=111 // pred_check
        %p1201 = pneg %p923
      $region162: #{forward.1} parent=111 // pred_check_branch
        %1203 = sbr.rel (%p1201) target = $region164
      $region163: #{forward.1} parent=111 // pred_region
        %p1204 = scmp.lt.s32.totalorder %s87, 1
        %s1205 = scalar_select %p1204, %s87, 1
        %s1206 = smul.addr %s1205, 4
        %s1207 = smul.addr %s1206, 4
        %s1208 = scalar_lea.vmem %s73, %s1207
      $region164: #{forward.1} parent=111 // pred_fallthru
        _
      // Predicated region
      $region165: #{forward.1} parent=111 // pred_check
        %p1209 = pneg %p949
      $region166: #{forward.1} parent=111 // pred_check_branch
        %1211 = sbr.rel (%p1209) target = $region168
      $region167: #{forward.1} parent=111 // pred_region
        %p1212 = scmp.lt.s32.totalorder %s87, 1
        %s1213 = scalar_select %p1212, %s87, 1
        %s1214 = scalar_lea.vmem %s75, %s1213
      $region168: #{forward.1} parent=111 // pred_fallthru
        _
      // Predicated region
      $region169: #{forward.1} parent=111 // pred_check
        %p1215 = pneg %p975
      $region170: #{forward.1} parent=111 // pred_check_branch
        %1217 = sbr.rel (%p1215) target = $region172
      $region171: #{forward.1} parent=111 // pred_region
        %p1218 = scmp.lt.s32.totalorder %s87, 1
        %s1219 = scalar_select %p1218, %s87, 1
        %s1220 = scalar_lea.vmem %s77, %s1219
      $region172: #{forward.1} parent=111 // pred_fallthru
        _
      // Predicated region
      $region173: #{forward.1} parent=111 // pred_check
        %p1221 = pneg %p1001
      $region174: #{forward.1} parent=111 // pred_check_branch
        %1223 = sbr.rel (%p1221) target = $region176
      $region175: #{forward.1} parent=111 // pred_region
        %p1224 = scmp.lt.s32.totalorder %s87, 1
        %s1225 = scalar_select %p1224, %s87, 1
        %s1226 = scalar_lea.vmem %s79, %s1225
      $region176: #{forward.1} parent=111 // pred_fallthru
        _
    $region112: #{forward.1} parent=5 // pred_fallthru
      _
    %p1227 = scmp.le.s32.totalorder 1, %s87
    %p1228 = scmp.lt.s32.totalorder %s87, 3
    %p1229 = pnand %p1227, %p1228
    %p1230 = pneg %p1229
    // Predicated region
    $region177: #{forward.1} parent=5 // pred_check
      _
    $region178: #{forward.1} parent=5 // pred_check_branch
      %1232 = sbr.rel (%p1229) target = $region180
    $region179: #{forward.1} parent=5 // pred_region
      %s1233 = ssub.s32 %s87, 1
      %p1234 = pneg %p108
      %p1235 = pneg %p105
      %p1236 = pneg %p129
      %p1237 = pneg %p126
      %p1238 = pneg %p150
      %p1239 = pneg %p147
      %p1240 = pneg %p171
      %p1241 = pneg %p168
      %p1242 = pneg %p192
      %p1243 = pneg %p189
      %p1244 = pneg %p213
      %p1245 = pneg %p210
      %p1246 = pneg %p234
      %p1247 = pneg %p231
      %p1248 = pneg %p255
      %p1249 = pneg %p252
      %p1250 = pneg %p276
      %p1251 = pneg %p273
      %p1252 = pneg %p297
      %p1253 = pneg %p294
      %p1254 = pneg %p318
      %p1255 = pneg %p315
      %p1256 = pneg %p339
      %p1257 = pneg %p336
      %p1258 = pneg %p360
      %p1259 = pneg %p357
      %p1260 = pneg %p381
      %p1261 = pneg %p378
      %p1262 = pneg %p402
      %p1263 = pneg %p399
      %p1264 = pneg %p423
      %p1265 = pneg %p420
      %p1266 = pneg %p444
      %p1267 = pneg %p441
      %p1268 = pneg %p465
      %p1269 = pneg %p462
      %p1270 = pneg %p486
      %p1271 = pneg %p483
      %p1272 = pneg %p507
      %p1273 = pneg %p504
      %p1274 = pneg %p528
      %p1275 = pneg %p525
      %p1276 = pneg %p549
      %p1277 = pneg %p546
      %p1278 = pneg %p570
      %p1279 = pneg %p567
      %p1280 = pneg %p591
      %p1281 = pneg %p588
      %p1282 = scmp.lt.s32.totalorder %s92, 1
      %s1283 = scalar_select %p1282, %s92, 1
      %s1284 = smul.addr %s1283, 4
      %s1285 = smul.addr %s1284, 4
      %s1286 = scalar_lea.vmem %s49, %s1285
      %p1287 = pneg %p617
      %p1288 = pneg %p614
      %p1289 = scmp.lt.s32.totalorder %s92, 1
      %s1290 = scalar_select %p1289, %s92, 1
      %s1291 = scalar_lea.vmem %s51, %s1290
      %p1292 = pneg %p643
      %p1293 = pneg %p640
      %p1294 = scmp.lt.s32.totalorder %s92, 1
      %s1295 = scalar_select %p1294, %s92, 1
      %s1296 = smul.addr %s1295, 4
      %s1297 = smul.addr %s1296, 4
      %s1298 = scalar_lea.vmem %s53, %s1297
      %p1299 = pneg %p669
      %p1300 = pneg %p666
      %p1301 = scmp.lt.s32.totalorder %s92, 1
      %s1302 = scalar_select %p1301, %s92, 1
      %s1303 = scalar_lea.vmem %s55, %s1302
      %p1304 = pneg %p695
      %p1305 = pneg %p692
      %p1306 = scmp.lt.s32.totalorder %s92, 1
      %s1307 = scalar_select %p1306, %s92, 1
      %s1308 = smul.addr %s1307, 4
      %s1309 = smul.addr %s1308, 4
      %s1310 = scalar_lea.vmem %s57, %s1309
      %p1311 = pneg %p721
      %p1312 = pneg %p718
      %p1313 = scmp.lt.s32.totalorder %s92, 1
      %s1314 = scalar_select %p1313, %s92, 1
      %s1315 = scalar_lea.vmem %s59, %s1314
      %p1316 = pneg %p747
      %p1317 = pneg %p744
      %p1318 = scmp.lt.s32.totalorder %s92, 1
      %s1319 = scalar_select %p1318, %s92, 1
      %s1320 = smul.addr %s1319, 4
      %s1321 = smul.addr %s1320, 4
      %s1322 = scalar_lea.vmem %s61, %s1321
      %p1323 = pneg %p773
      %p1324 = pneg %p770
      %p1325 = scmp.lt.s32.totalorder %s92, 1
      %s1326 = scalar_select %p1325, %s92, 1
      %s1327 = scalar_lea.vmem %s63, %s1326
      %p1328 = pneg %p799
      %p1329 = pneg %p796
      %p1330 = scmp.lt.s32.totalorder %s92, 1
      %s1331 = scalar_select %p1330, %s92, 1
      %s1332 = scalar_lea.vmem %s65, %s1331
      %p1333 = pneg %p825
      %p1334 = pneg %p822
      %p1335 = scmp.lt.s32.totalorder %s92, 1
      %s1336 = scalar_select %p1335, %s92, 1
      %s1337 = scalar_lea.vmem %s67, %s1336
      %p1338 = pneg %p851
      %p1339 = pneg %p848
      %p1340 = scmp.lt.s32.totalorder %s92, 1
      %s1341 = scalar_select %p1340, %s92, 1
      %s1342 = smul.addr %s1341, 4
      %s1343 = smul.addr %s1342, 4
      %s1344 = scalar_lea.vmem %s69, %s1343
      %p1345 = pneg %p877
      %p1346 = pneg %p874
      %p1347 = scmp.lt.s32.totalorder %s92, 1
      %s1348 = scalar_select %p1347, %s92, 1
      %s1349 = scalar_lea.vmem %s71, %s1348
      %p1350 = pneg %p903
      %p1351 = pneg %p900
      %p1352 = scmp.lt.s32.totalorder %s92, 1
      %s1353 = scalar_select %p1352, %s92, 1
      %s1354 = smul.addr %s1353, 4
      %s1355 = smul.addr %s1354, 4
      %s1356 = scalar_lea.vmem %s73, %s1355
      %p1357 = pneg %p929
      %p1358 = pneg %p926
      %p1359 = scmp.lt.s32.totalorder %s92, 1
      %s1360 = scalar_select %p1359, %s92, 1
      %s1361 = scalar_lea.vmem %s75, %s1360
      %p1362 = pneg %p955
      %p1363 = pneg %p952
      %p1364 = scmp.lt.s32.totalorder %s92, 1
      %s1365 = scalar_select %p1364, %s92, 1
      %s1366 = scalar_lea.vmem %s77, %s1365
      %p1367 = pneg %p981
      %p1368 = pneg %p978
      %p1369 = scmp.lt.s32.totalorder %s92, 1
      %s1370 = scalar_select %p1369, %s92, 1
      %s1371 = scalar_lea.vmem %s79, %s1370
      %p1372 = pneg %p1007
      %p1373 = pneg %p1004
      %p1374 = pneg %p1028
      %p1375 = pneg %p1025
      %p1376 = scmp.lt.s32.totalorder %s92, 1
      %s1377 = scalar_select %p1376, %s92, 1
      %s1378 = smul.addr %s1377, 4
      %s1379 = smul.addr %s1378, 4
      %s1380 = scalar_lea.vmem %s49, %s1379
      %p1381 = scmp.lt.s32.totalorder %s92, 1
      %s1382 = scalar_select %p1381, %s92, 1
      %s1383 = scalar_lea.vmem %s51, %s1382
      %p1384 = scmp.lt.s32.totalorder %s92, 1
      %s1385 = scalar_select %p1384, %s92, 1
      %s1386 = smul.addr %s1385, 4
      %s1387 = smul.addr %s1386, 4
      %s1388 = scalar_lea.vmem %s53, %s1387
      %p1389 = scmp.lt.s32.totalorder %s92, 1
      %s1390 = scalar_select %p1389, %s92, 1
      %s1391 = scalar_lea.vmem %s55, %s1390
      %p1392 = scmp.lt.s32.totalorder %s92, 1
      %s1393 = scalar_select %p1392, %s92, 1
      %s1394 = smul.addr %s1393, 4
      %s1395 = smul.addr %s1394, 4
      %s1396 = scalar_lea.vmem %s57, %s1395
      %p1397 = scmp.lt.s32.totalorder %s92, 1
      %s1398 = scalar_select %p1397, %s92, 1
      %s1399 = scalar_lea.vmem %s59, %s1398
      %p1400 = scmp.lt.s32.totalorder %s92, 1
      %s1401 = scalar_select %p1400, %s92, 1
      %s1402 = smul.addr %s1401, 4
      %s1403 = smul.addr %s1402, 4
      %s1404 = scalar_lea.vmem %s61, %s1403
      %p1405 = scmp.lt.s32.totalorder %s92, 1
      %s1406 = scalar_select %p1405, %s92, 1
      %s1407 = scalar_lea.vmem %s63, %s1406
      %p1408 = scmp.lt.s32.totalorder %s92, 1
      %s1409 = scalar_select %p1408, %s92, 1
      %s1410 = scalar_lea.vmem %s65, %s1409
      %p1411 = scmp.lt.s32.totalorder %s92, 1
      %s1412 = scalar_select %p1411, %s92, 1
      %s1413 = scalar_lea.vmem %s67, %s1412
      %p1414 = scmp.lt.s32.totalorder %s92, 1
      %s1415 = scalar_select %p1414, %s92, 1
      %s1416 = smul.addr %s1415, 4
      %s1417 = smul.addr %s1416, 4
      %s1418 = scalar_lea.vmem %s69, %s1417
      %p1419 = scmp.lt.s32.totalorder %s92, 1
      %s1420 = scalar_select %p1419, %s92, 1
      %s1421 = scalar_lea.vmem %s71, %s1420
      %p1422 = scmp.lt.s32.totalorder %s92, 1
      %s1423 = scalar_select %p1422, %s92, 1
      %s1424 = smul.addr %s1423, 4
      %s1425 = smul.addr %s1424, 4
      %s1426 = scalar_lea.vmem %s73, %s1425
      %p1427 = scmp.lt.s32.totalorder %s92, 1
      %s1428 = scalar_select %p1427, %s92, 1
      %s1429 = scalar_lea.vmem %s75, %s1428
      %p1430 = scmp.lt.s32.totalorder %s92, 1
      %s1431 = scalar_select %p1430, %s92, 1
      %s1432 = scalar_lea.vmem %s77, %s1431
      %p1433 = scmp.lt.s32.totalorder %s92, 1
      %s1434 = scalar_select %p1433, %s92, 1
      %s1435 = scalar_lea.vmem %s79, %s1434
      %p1437 = scmp.eq.s32.totalorder %s92, 0
      // Predicated region
      $region181: #{forward.1} parent=179 // pred_check
        %p1438 = pneg %p1437
      $region182: #{forward.1} parent=179 // pred_check_branch
        %1440 = sbr.rel (%p1438) target = $region184
      $region183: #{forward.1} parent=179 // pred_region
        %v1441 = vld [vmem:[%s1] sm:$0xff]
        %v1443 = vrot.slane %v1441, 7
        %vm1445 = vcmask 1040384
        %v1446 = vsel %vm1445, 0.0, %v1443
        %v1447 = vsel %vm1445, %v1443, 0.0
        %v1448 = vpack.c.bf16 %v1446, %v1446
        %v1449 = vpack.c.bf16 %v1447, %v1447
        %v1450 = vld [vmem:[%s13] sm:$0x1]
        %v1451 = vld [vmem:[%s11] sm:$0x3]
        %vm1452 = vcmask 23552
        %v1454 = vsel %vm1452, %v1448, 0
        %vm1456 = vcmask 1041408
        %v1457 = vsel %vm1445, 4294967295, 65535
        %v1458 = vsel %vm1456, %v1457, 0
        %v1460 = vand.u32 %v1451, %v1458
        %1462 = vmatpush.bf16.msra.mxu0 0
        %1463 = vmatpush.bf16.msra.mxu0 0
        %1464 = vmatpush.bf16.msra.mxu0 0
        %1465 = vmatpush.bf16.msra.mxu0 0
        %1466 = vmatpush.bf16.msra.mxu0 0
        %1467 = vmatpush.bf16.msra.mxu0 0
        %1468 = vmatpush.bf16.msra.mxu0 0
        %1469 = vmatpush.bf16.msra.mxu0 %v1460
        %1470 = vmatmul.bf16.gmra.mxu0 %v1454
        %v1471 = vpop.f32.mrf.mxu0
        %v1472 = vadd.f32 0.0, %v1471
        %v1473 = vpop.f32.mrf.mxu0
        %1474 = vdwg.mxu0
        %v1476 = vperm.slane %v1450, 0
        %v1478 = vadd.f32 %v1476, %v1472
        %s1479 = scalar_lea.vmem %s11, 2
        %v1480 = vld [vmem:[%s1479] sm:$0x3]
        %v1483 = vunpack.c.l.b16 %v1448
        %v1484 = vunpack.c.l.b16 %v1449
        %v1485 = vpack.c.b16 %v1484, %v1483
        %v1487 = vshrl.u32 %v1485, 16
        %v1489 = vshll.u32 %v1485, 16
        %v1491 = vrot.slane %v1489, 1
        %v1492 = vor.u32 %v1487, %v1491
        %v1494 = vsel %vm1452, %v1492, 0
        %v1497 = vand.u32 %v1480, %v1458
        %1499 = vmatpush.bf16.msra.mxu0 0
        %1500 = vmatpush.bf16.msra.mxu0 0
        %1501 = vmatpush.bf16.msra.mxu0 0
        %1502 = vmatpush.bf16.msra.mxu0 0
        %1503 = vmatpush.bf16.msra.mxu0 0
        %1504 = vmatpush.bf16.msra.mxu0 0
        %1505 = vmatpush.bf16.msra.mxu0 0
        %1506 = vmatpush.bf16.msra.mxu0 %v1497
        %1507 = vmatmul.bf16.gmra.mxu0 %v1494
        %v1508 = vpop.f32.mrf.mxu0
        %v1509 = vadd.f32 0.0, %v1508
        %v1510 = vpop.f32.mrf.mxu0
        %1511 = vdwg.mxu0
        %v1512 = vadd.f32 %v1478, %v1509
        %s1513 = scalar_lea.vmem %s11, 4
        %v1514 = vld [vmem:[%s1513] sm:$0x3]
        %v1515 = vrot.slane %v1485, 1
        %v1517 = vsel %vm1452, %v1515, 0
        %v1520 = vand.u32 %v1514, %v1458
        %1522 = vmatpush.bf16.msra.mxu0 0
        %1523 = vmatpush.bf16.msra.mxu0 0
        %1524 = vmatpush.bf16.msra.mxu0 0
        %1525 = vmatpush.bf16.msra.mxu0 0
        %1526 = vmatpush.bf16.msra.mxu0 0
        %1527 = vmatpush.bf16.msra.mxu0 0
        %1528 = vmatpush.bf16.msra.mxu0 0
        %1529 = vmatpush.bf16.msra.mxu0 %v1520
        %1530 = vmatmul.bf16.gmra.mxu0 %v1517
        %v1531 = vpop.f32.mrf.mxu0
        %v1532 = vadd.f32 0.0, %v1531
        %v1533 = vpop.f32.mrf.mxu0
        %1534 = vdwg.mxu0
        %v1535 = vadd.f32 %v1512, %v1532
        %v1536 = vmax.f32 %v1535, 0.0
        %vm1537 = vcmp.ne.f32.partialorder %v1535, %v1535
        %v1538 = vadd.f32 %v1535, 0.0
        %v1539 = vand.u32 2147483647, %v1535
        %v1540 = vsub.f32 0.0, %v1539
        %v1541 = vmul.f32 %v1540, 1.442695
        %v1542 = vpow.pop %v1541
        %v1543 = vadd.f32 %v1542, 1.0
        %v1544 = vlog2.pop %v1543
        %v1545 = vmul.f32 %v1544, 0.6931472
        %v1546 = vmul.f32 -0.5, %v1542
        %v1547 = vadd.f32 %v1546, 1.0
        %v1548 = vmul.f32 %v1547, %v1542
        %v1549 = vand.u32 2147483647, %v1542
        %vm1550 = vcmp.lt.f32.partialorder %v1549, 0.0004427343
        %v1551 = vsel %vm1550, %v1548, %v1545
        %v1552 = vadd.f32 %v1536, %v1551
        %v1553 = vsel %vm1537, %v1538, %v1552
        %v1554 = vtanh.pop %v1553
        %v1555 = vmul.f32 %v1535, %v1554
        %v1557 = vrot.slane %v1555, 6
        %v1559 = vsel %vm1456, 0.0, %v1557
        %v1560 = vsel %vm1456, %v1557, 0.0
        %v1561 = vpack.c.bf16 %v1559, %v1559
        %v1562 = vpack.c.bf16 %v1560, %v1560
        %v1563 = vld [vmem:[%s17] sm:$0x1]
        %v1564 = vld [vmem:[%s15] sm:$0xf]
        %v1565 = vld [vmem:[%s15 + $0x4] sm:$0xf]
        %v1566 = vld [vmem:[%s15 + $0x8] sm:$0xf]
        %v1567 = vld [vmem:[%s15 + $0xc] sm:$0xf]
        %v1568 = vld [vmem:[%s15 + $0x10] sm:$0xf]
        %v1569 = vld [vmem:[%s15 + $0x14] sm:$0xf]
        %v1570 = vld [vmem:[%s15 + $0x18] sm:$0xf]
        %v1571 = vld [vmem:[%s15 + $0x1c] sm:$0xf]
        %v1580 = vunpack.c.l.b16 %v1564
        %v1581 = vunpack.c.l.b16 %v1565
        %v1582 = vunpack.c.l.b16 %v1566
        %v1583 = vunpack.c.l.b16 %v1567
        %v1584 = vunpack.c.l.b16 %v1568
        %v1585 = vunpack.c.l.b16 %v1569
        %v1586 = vunpack.c.l.b16 %v1570
        %v1587 = vunpack.c.l.b16 %v1571
        %v1588 = vpack.c.b16 %v1581, %v1580
        %v1589 = vpack.c.b16 %v1583, %v1582
        %v1590 = vpack.c.b16 %v1585, %v1584
        %v1591 = vpack.c.b16 %v1587, %v1586
        %vm1596 = vcmask 523264
        %v1598 = vsel %vm1596, %v1561, 0
        %1600 = vmatpush.bf16.msra.mxu0 0
        %1601 = vmatpush.bf16.msra.mxu0 0
        %1602 = vmatpush.bf16.msra.mxu0 0
        %1603 = vmatpush.bf16.msra.mxu0 0
        %1604 = vmatpush.bf16.msra.mxu0 %v1591
        %1605 = vmatpush.bf16.msra.mxu0 %v1590
        %1606 = vmatpush.bf16.msra.mxu0 %v1589
        %1607 = vmatpush.bf16.msra.mxu0 %v1588
        %1608 = vmatmul.bf16.gmra.mxu0 %v1598
        %v1609 = vpop.f32.mrf.mxu0
        %v1610 = vadd.f32 0.0, %v1609
        %v1611 = vpop.f32.mrf.mxu0
        %1612 = vdwg.mxu0
        %v1614 = vperm.slane %v1563, 0
        %v1616 = vadd.f32 %v1614, %v1610
        %s1617 = scalar_lea.vmem %s15, 32
        %v1618 = vld [vmem:[%s1617] sm:$0xf]
        %v1619 = vld [vmem:[%s1617 + $0x4] sm:$0xf]
        %v1620 = vld [vmem:[%s1617 + $0x8] sm:$0xf]
        %v1621 = vld [vmem:[%s1617 + $0xc] sm:$0xf]
        %v1622 = vld [vmem:[%s1617 + $0x10] sm:$0xf]
        %v1623 = vld [vmem:[%s1617 + $0x14] sm:$0xf]
        %v1624 = vld [vmem:[%s1617 + $0x18] sm:$0xf]
        %v1625 = vld [vmem:[%s1617 + $0x1c] sm:$0xf]
        %v1628 = vunpack.c.l.b16 %v1561
        %v1629 = vunpack.c.l.b16 %v1562
        %v1630 = vpack.c.b16 %v1629, %v1628
        %v1631 = vrot.slane %v1630, 1
        %v1640 = vunpack.c.l.b16 %v1618
        %v1641 = vunpack.c.l.b16 %v1619
        %v1642 = vunpack.c.l.b16 %v1620
        %v1643 = vunpack.c.l.b16 %v1621
        %v1644 = vunpack.c.l.b16 %v1622
        %v1645 = vunpack.c.l.b16 %v1623
        %v1646 = vunpack.c.l.b16 %v1624
        %v1647 = vunpack.c.l.b16 %v1625
        %v1648 = vpack.c.b16 %v1641, %v1640
        %v1649 = vpack.c.b16 %v1643, %v1642
        %v1650 = vpack.c.b16 %v1645, %v1644
        %v1651 = vpack.c.b16 %v1647, %v1646
        %v1657 = vsel %vm1596, %v1631, 0
        %1659 = vmatpush.bf16.msra.mxu0 0
        %1660 = vmatpush.bf16.msra.mxu0 0
        %1661 = vmatpush.bf16.msra.mxu0 0
        %1662 = vmatpush.bf16.msra.mxu0 0
        %1663 = vmatpush.bf16.msra.mxu0 %v1651
        %1664 = vmatpush.bf16.msra.mxu0 %v1650
        %1665 = vmatpush.bf16.msra.mxu0 %v1649
        %1666 = vmatpush.bf16.msra.mxu0 %v1648
        %1667 = vmatmul.bf16.gmra.mxu0 %v1657
        %v1668 = vpop.f32.mrf.mxu0
        %v1669 = vadd.f32 0.0, %v1668
        %v1670 = vpop.f32.mrf.mxu0
        %1671 = vdwg.mxu0
        %v1672 = vadd.f32 %v1616, %v1669
        %s1673 = scalar_lea.vmem %s15, 64
        %v1674 = vld [vmem:[%s1673] sm:$0xf]
        %v1675 = vld [vmem:[%s1673 + $0x4] sm:$0xf]
        %v1676 = vld [vmem:[%s1673 + $0x8] sm:$0xf]
        %v1677 = vld [vmem:[%s1673 + $0xc] sm:$0xf]
        %v1678 = vld [vmem:[%s1673 + $0x10] sm:$0xf]
        %v1679 = vld [vmem:[%s1673 + $0x14] sm:$0xf]
        %v1680 = vld [vmem:[%s1673 + $0x18] sm:$0xf]
        %v1681 = vld [vmem:[%s1673 + $0x1c] sm:$0xf]
        %v1682 = vrot.slane %v1630, 2
        %v1691 = vunpack.c.l.b16 %v1674
        %v1692 = vunpack.c.l.b16 %v1675
        %v1693 = vunpack.c.l.b16 %v1676
        %v1694 = vunpack.c.l.b16 %v1677
        %v1695 = vunpack.c.l.b16 %v1678
        %v1696 = vunpack.c.l.b16 %v1679
        %v1697 = vunpack.c.l.b16 %v1680
        %v1698 = vunpack.c.l.b16 %v1681
        %v1699 = vpack.c.b16 %v1692, %v1691
        %v1700 = vpack.c.b16 %v1694, %v1693
        %v1701 = vpack.c.b16 %v1696, %v1695
        %v1702 = vpack.c.b16 %v1698, %v1697
        %v1708 = vsel %vm1596, %v1682, 0
        %1710 = vmatpush.bf16.msra.mxu0 0
        %1711 = vmatpush.bf16.msra.mxu0 0
        %1712 = vmatpush.bf16.msra.mxu0 0
        %1713 = vmatpush.bf16.msra.mxu0 0
        %1714 = vmatpush.bf16.msra.mxu0 %v1702
        %1715 = vmatpush.bf16.msra.mxu0 %v1701
        %1716 = vmatpush.bf16.msra.mxu0 %v1700
        %1717 = vmatpush.bf16.msra.mxu0 %v1699
        %1718 = vmatmul.bf16.gmra.mxu0 %v1708
        %v1719 = vpop.f32.mrf.mxu0
        %v1720 = vadd.f32 0.0, %v1719
        %v1721 = vpop.f32.mrf.mxu0
        %1722 = vdwg.mxu0
        %v1723 = vadd.f32 %v1672, %v1720
        %v1724 = vmax.f32 %v1723, 0.0
        %vm1725 = vcmp.ne.f32.partialorder %v1723, %v1723
        %v1726 = vadd.f32 %v1723, 0.0
        %v1727 = vand.u32 2147483647, %v1723
        %v1728 = vsub.f32 0.0, %v1727
        %v1729 = vmul.f32 %v1728, 1.442695
        %v1730 = vpow.pop %v1729
        %v1731 = vadd.f32 %v1730, 1.0
        %v1732 = vlog2.pop %v1731
        %v1733 = vmul.f32 %v1732, 0.6931472
        %v1734 = vmul.f32 -0.5, %v1730
        %v1735 = vadd.f32 %v1734, 1.0
        %v1736 = vmul.f32 %v1735, %v1730
        %v1737 = vand.u32 2147483647, %v1730
        %vm1738 = vcmp.lt.f32.partialorder %v1737, 0.0004427343
        %v1739 = vsel %vm1738, %v1736, %v1733
        %v1740 = vadd.f32 %v1724, %v1739
        %v1741 = vsel %vm1725, %v1726, %v1740
        %v1742 = vtanh.pop %v1741
        %v1743 = vmul.f32 %v1723, %v1742
        %v1744 = vld [vmem:[%s3] sm:$0xf]
        %v1746 = vrot.slane %v1744, 7
        %v1748 = vsel %vm1445, 0.0, %v1746
        %vm1749 = vcmask 1044480
        %v1750 = vsel %vm1749, %v1748, 0.0
        %v1751 = vpack.c.bf16 %v1750, %v1750
        %v1752 = vld [vmem:[%s21] sm:$0x1]
        %v1753 = vld [vmem:[%s19] sm:$0x3]
        %v1755 = vsel %vm1452, %v1751, 0
        %v1758 = vand.u32 %v1753, %v1458
        %1760 = vmatpush.bf16.msra.mxu0 0
        %1761 = vmatpush.bf16.msra.mxu0 0
        %1762 = vmatpush.bf16.msra.mxu0 0
        %1763 = vmatpush.bf16.msra.mxu0 0
        %1764 = vmatpush.bf16.msra.mxu0 0
        %1765 = vmatpush.bf16.msra.mxu0 0
        %1766 = vmatpush.bf16.msra.mxu0 0
        %1767 = vmatpush.bf16.msra.mxu0 %v1758
        %1768 = vmatmul.bf16.gmra.mxu0 %v1755
        %v1769 = vpop.f32.mrf.mxu0
        %v1770 = vadd.f32 0.0, %v1769
        %v1771 = vpop.f32.mrf.mxu0
        %1772 = vdwg.mxu0
        %v1774 = vperm.slane %v1752, 0
        %v1776 = vadd.f32 %v1774, %v1770
        %s1777 = scalar_lea.vmem %s19, 2
        %v1778 = vld [vmem:[%s1777] sm:$0x3]
        %v1780 = vunpack.c.l.b16 %v1751
        %v1781 = vpack.c.b16 %v1780, %v1780
        %v1783 = vshrl.u32 %v1781, 16
        %v1785 = vshll.u32 %v1781, 16
        %v1787 = vrot.slane %v1785, 1
        %v1788 = vor.u32 %v1783, %v1787
        %v1790 = vsel %vm1452, %v1788, 0
        %v1793 = vand.u32 %v1778, %v1458
        %1795 = vmatpush.bf16.msra.mxu0 0
        %1796 = vmatpush.bf16.msra.mxu0 0
        %1797 = vmatpush.bf16.msra.mxu0 0
        %1798 = vmatpush.bf16.msra.mxu0 0
        %1799 = vmatpush.bf16.msra.mxu0 0
        %1800 = vmatpush.bf16.msra.mxu0 0
        %1801 = vmatpush.bf16.msra.mxu0 0
        %1802 = vmatpush.bf16.msra.mxu0 %v1793
        %1803 = vmatmul.bf16.gmra.mxu0 %v1790
        %v1804 = vpop.f32.mrf.mxu0
        %v1805 = vadd.f32 0.0, %v1804
        %v1806 = vpop.f32.mrf.mxu0
        %1807 = vdwg.mxu0
        %v1808 = vadd.f32 %v1776, %v1805
        %s1809 = scalar_lea.vmem %s19, 4
        %v1810 = vld [vmem:[%s1809] sm:$0x3]
        %v1811 = vrot.slane %v1781, 1
        %v1813 = vsel %vm1452, %v1811, 0
        %v1816 = vand.u32 %v1810, %v1458
        %1818 = vmatpush.bf16.msra.mxu0 0
        %1819 = vmatpush.bf16.msra.mxu0 0
        %1820 = vmatpush.bf16.msra.mxu0 0
        %1821 = vmatpush.bf16.msra.mxu0 0
        %1822 = vmatpush.bf16.msra.mxu0 0
        %1823 = vmatpush.bf16.msra.mxu0 0
        %1824 = vmatpush.bf16.msra.mxu0 0
        %1825 = vmatpush.bf16.msra.mxu0 %v1816
        %1826 = vmatmul.bf16.gmra.mxu0 %v1813
        %v1827 = vpop.f32.mrf.mxu0
        %v1828 = vadd.f32 0.0, %v1827
        %v1829 = vpop.f32.mrf.mxu0
        %1830 = vdwg.mxu0
        %v1831 = vadd.f32 %v1808, %v1828
        %v1832 = vmax.f32 %v1831, 0.0
        %vm1833 = vcmp.ne.f32.partialorder %v1831, %v1831
        %v1834 = vadd.f32 %v1831, 0.0
        %v1835 = vand.u32 2147483647, %v1831
        %v1836 = vsub.f32 0.0, %v1835
        %v1837 = vmul.f32 %v1836, 1.442695
        %v1838 = vpow.pop %v1837
        %v1839 = vadd.f32 %v1838, 1.0
        %v1840 = vlog2.pop %v1839
        %v1841 = vmul.f32 %v1840, 0.6931472
        %v1842 = vmul.f32 -0.5, %v1838
        %v1843 = vadd.f32 %v1842, 1.0
        %v1844 = vmul.f32 %v1843, %v1838
        %v1845 = vand.u32 2147483647, %v1838
        %vm1846 = vcmp.lt.f32.partialorder %v1845, 0.0004427343
        %v1847 = vsel %vm1846, %v1844, %v1841
        %v1848 = vadd.f32 %v1832, %v1847
        %v1849 = vsel %vm1833, %v1834, %v1848
        %v1850 = vtanh.pop %v1849
        %v1851 = vmul.f32 %v1831, %v1850
        %v1853 = vrot.slane %v1851, 5
        %vm1855 = vcmask 1042432
        %v1856 = vsel %vm1855, 0.0, %v1853
        %vm1857 = vcmask 1046528
        %v1858 = vsel %vm1857, %v1856, 0.0
        %v1859 = vpack.c.bf16 %v1858, %v1858
        %v1860 = vpack.c.bf16 0.0, 0.0
        %v1861 = vld [vmem:[%s25] sm:$0x1]
        %v1862 = vld [vmem:[%s23] sm:$0xf]
        %v1863 = vld [vmem:[%s23 + $0x4] sm:$0xf]
        %v1864 = vld [vmem:[%s23 + $0x8] sm:$0xf]
        %v1865 = vld [vmem:[%s23 + $0xc] sm:$0xf]
        %v1866 = vld [vmem:[%s23 + $0x10] sm:$0xf]
        %v1867 = vld [vmem:[%s23 + $0x14] sm:$0xf]
        %v1868 = vld [vmem:[%s23 + $0x18] sm:$0xf]
        %v1869 = vld [vmem:[%s23 + $0x1c] sm:$0xf]
        %v1878 = vunpack.c.l.b16 %v1862
        %v1879 = vunpack.c.l.b16 %v1863
        %v1880 = vunpack.c.l.b16 %v1864
        %v1881 = vunpack.c.l.b16 %v1865
        %v1882 = vunpack.c.l.b16 %v1866
        %v1883 = vunpack.c.l.b16 %v1867
        %v1884 = vunpack.c.l.b16 %v1868
        %v1885 = vunpack.c.l.b16 %v1869
        %v1886 = vpack.c.b16 %v1879, %v1878
        %v1887 = vpack.c.b16 %v1881, %v1880
        %v1888 = vpack.c.b16 %v1883, %v1882
        %v1889 = vpack.c.b16 %v1885, %v1884
        %v1895 = vsel %vm1596, %v1859, 0
        %1897 = vmatpush.bf16.msra.mxu0 0
        %1898 = vmatpush.bf16.msra.mxu0 0
        %1899 = vmatpush.bf16.msra.mxu0 0
        %1900 = vmatpush.bf16.msra.mxu0 0
        %1901 = vmatpush.bf16.msra.mxu0 %v1889
        %1902 = vmatpush.bf16.msra.mxu0 %v1888
        %1903 = vmatpush.bf16.msra.mxu0 %v1887
        %1904 = vmatpush.bf16.msra.mxu0 %v1886
        %1905 = vmatmul.bf16.gmra.mxu0 %v1895
        %v1906 = vpop.f32.mrf.mxu0
        %v1907 = vadd.f32 0.0, %v1906
        %v1908 = vpop.f32.mrf.mxu0
        %1909 = vdwg.mxu0
        %v1911 = vperm.slane %v1861, 0
        %v1913 = vadd.f32 %v1911, %v1907
        %s1914 = scalar_lea.vmem %s23, 32
        %v1915 = vld [vmem:[%s1914] sm:$0xf]
        %v1916 = vld [vmem:[%s1914 + $0x4] sm:$0xf]
        %v1917 = vld [vmem:[%s1914 + $0x8] sm:$0xf]
        %v1918 = vld [vmem:[%s1914 + $0xc] sm:$0xf]
        %v1919 = vld [vmem:[%s1914 + $0x10] sm:$0xf]
        %v1920 = vld [vmem:[%s1914 + $0x14] sm:$0xf]
        %v1921 = vld [vmem:[%s1914 + $0x18] sm:$0xf]
        %v1922 = vld [vmem:[%s1914 + $0x1c] sm:$0xf]
        %v1924 = vunpack.c.l.b16 %v1859
        %v1925 = vpack.c.b16 %v1924, %v1924
        %v1927 = vshrl.u32 %v1925, 16
        %v1929 = vrot.slane %v1927, 1
        %v1930 = vshll.u32 %v1925, 16
        %v1932 = vrot.slane %v1930, 2
        %v1933 = vor.u32 %v1929, %v1932
        %v1942 = vunpack.c.l.b16 %v1915
        %v1943 = vunpack.c.l.b16 %v1916
        %v1944 = vunpack.c.l.b16 %v1917
        %v1945 = vunpack.c.l.b16 %v1918
        %v1946 = vunpack.c.l.b16 %v1919
        %v1947 = vunpack.c.l.b16 %v1920
        %v1948 = vunpack.c.l.b16 %v1921
        %v1949 = vunpack.c.l.b16 %v1922
        %v1950 = vpack.c.b16 %v1943, %v1942
        %v1951 = vpack.c.b16 %v1945, %v1944
        %v1952 = vpack.c.b16 %v1947, %v1946
        %v1953 = vpack.c.b16 %v1949, %v1948
        %v1959 = vsel %vm1596, %v1933, 0
        %1961 = vmatpush.bf16.msra.mxu0 0
        %1962 = vmatpush.bf16.msra.mxu0 0
        %1963 = vmatpush.bf16.msra.mxu0 0
        %1964 = vmatpush.bf16.msra.mxu0 0
        %1965 = vmatpush.bf16.msra.mxu0 %v1953
        %1966 = vmatpush.bf16.msra.mxu0 %v1952
        %1967 = vmatpush.bf16.msra.mxu0 %v1951
        %1968 = vmatpush.bf16.msra.mxu0 %v1950
        %1969 = vmatmul.bf16.gmra.mxu0 %v1959
        %v1970 = vpop.f32.mrf.mxu0
        %v1971 = vadd.f32 0.0, %v1970
        %v1972 = vpop.f32.mrf.mxu0
        %1973 = vdwg.mxu0
        %v1974 = vadd.f32 %v1913, %v1971
        %s1975 = scalar_lea.vmem %s23, 64
        %v1976 = vld [vmem:[%s1975] sm:$0xf]
        %v1977 = vld [vmem:[%s1975 + $0x4] sm:$0xf]
        %v1978 = vld [vmem:[%s1975 + $0x8] sm:$0xf]
        %v1979 = vld [vmem:[%s1975 + $0xc] sm:$0xf]
        %v1980 = vld [vmem:[%s1975 + $0x10] sm:$0xf]
        %v1981 = vld [vmem:[%s1975 + $0x14] sm:$0xf]
        %v1982 = vld [vmem:[%s1975 + $0x18] sm:$0xf]
        %v1983 = vld [vmem:[%s1975 + $0x1c] sm:$0xf]
        %v1985 = vunpack.c.l.b16 %v1860
        %v1986 = vpack.c.b16 %v1985, %v1924
        %v1987 = vrot.slane %v1986, 3
        %v1996 = vunpack.c.l.b16 %v1976
        %v1997 = vunpack.c.l.b16 %v1977
        %v1998 = vunpack.c.l.b16 %v1978
        %v1999 = vunpack.c.l.b16 %v1979
        %v2000 = vunpack.c.l.b16 %v1980
        %v2001 = vunpack.c.l.b16 %v1981
        %v2002 = vunpack.c.l.b16 %v1982
        %v2003 = vunpack.c.l.b16 %v1983
        %v2004 = vpack.c.b16 %v1997, %v1996
        %v2005 = vpack.c.b16 %v1999, %v1998
        %v2006 = vpack.c.b16 %v2001, %v2000
        %v2007 = vpack.c.b16 %v2003, %v2002
        %v2013 = vsel %vm1596, %v1987, 0
        %2015 = vmatpush.bf16.msra.mxu0 0
        %2016 = vmatpush.bf16.msra.mxu0 0
        %2017 = vmatpush.bf16.msra.mxu0 0
        %2018 = vmatpush.bf16.msra.mxu0 0
        %2019 = vmatpush.bf16.msra.mxu0 %v2007
        %2020 = vmatpush.bf16.msra.mxu0 %v2006
        %2021 = vmatpush.bf16.msra.mxu0 %v2005
        %2022 = vmatpush.bf16.msra.mxu0 %v2004
        %2023 = vmatmul.bf16.gmra.mxu0 %v2013
        %v2024 = vpop.f32.mrf.mxu0
        %v2025 = vadd.f32 0.0, %v2024
        %v2026 = vpop.f32.mrf.mxu0
        %2027 = vdwg.mxu0
        %v2028 = vadd.f32 %v1974, %v2025
        %v2029 = vmax.f32 %v2028, 0.0
        %vm2030 = vcmp.ne.f32.partialorder %v2028, %v2028
        %v2031 = vadd.f32 %v2028, 0.0
        %v2032 = vand.u32 2147483647, %v2028
        %v2033 = vsub.f32 0.0, %v2032
        %v2034 = vmul.f32 %v2033, 1.442695
        %v2035 = vpow.pop %v2034
        %v2036 = vadd.f32 %v2035, 1.0
        %v2037 = vlog2.pop %v2036
        %v2038 = vmul.f32 %v2037, 0.6931472
        %v2039 = vmul.f32 -0.5, %v2035
        %v2040 = vadd.f32 %v2039, 1.0
        %v2041 = vmul.f32 %v2040, %v2035
        %v2042 = vand.u32 2147483647, %v2035
        %vm2043 = vcmp.lt.f32.partialorder %v2042, 0.0004427343
        %v2044 = vsel %vm2043, %v2041, %v2038
        %v2045 = vadd.f32 %v2029, %v2044
        %v2046 = vsel %vm2030, %v2031, %v2045
        %v2047 = vtanh.pop %v2046
        %v2048 = vmul.f32 %v2028, %v2047
        %v2050 = vrot.slane %v2048, 5
        %v2052 = vsel %vm1855, 0.0, %v2050
        %v2053 = vsel %vm1857, %v2052, 0.0
        %v2054 = vpack.c.bf16 %v2053, %v2053
        %v2055 = vld [vmem:[%s29] sm:$0x1]
        %v2056 = vld [vmem:[%s27] sm:$0xf]
        %v2057 = vld [vmem:[%s27 + $0x4] sm:$0xf]
        %v2058 = vld [vmem:[%s27 + $0x8] sm:$0xf]
        %v2059 = vld [vmem:[%s27 + $0xc] sm:$0xf]
        %v2064 = vunpack.c.l.b16 %v2056
        %v2065 = vunpack.c.l.b16 %v2057
        %v2066 = vunpack.c.l.b16 %v2058
        %v2067 = vunpack.c.l.b16 %v2059
        %v2068 = vpack.c.b16 %v2065, %v2064
        %v2069 = vpack.c.b16 %v2067, %v2066
        %vm2072 = vcmask 261120
        %v2074 = vsel %vm2072, %v2054, 0
        %2076 = vmatpush.bf16.msra.mxu0 0
        %2077 = vmatpush.bf16.msra.mxu0 0
        %2078 = vmatpush.bf16.msra.mxu0 0
        %2079 = vmatpush.bf16.msra.mxu0 0
        %2080 = vmatpush.bf16.msra.mxu0 0
        %2081 = vmatpush.bf16.msra.mxu0 0
        %2082 = vmatpush.bf16.msra.mxu0 %v2069
        %2083 = vmatpush.bf16.msra.mxu0 %v2068
        %2084 = vmatmul.bf16.gmra.mxu0 %v2074
        %v2085 = vpop.f32.mrf.mxu0
        %v2086 = vadd.f32 0.0, %v2085
        %v2087 = vpop.f32.mrf.mxu0
        %2088 = vdwg.mxu0
        %v2090 = vperm.slane %v2055, 0
        %v2092 = vadd.f32 %v2090, %v2086
        %s2093 = scalar_lea.vmem %s27, 16
        %v2094 = vld [vmem:[%s2093] sm:$0xf]
        %v2095 = vld [vmem:[%s2093 + $0x4] sm:$0xf]
        %v2096 = vld [vmem:[%s2093 + $0x8] sm:$0xf]
        %v2097 = vld [vmem:[%s2093 + $0xc] sm:$0xf]
        %v2099 = vunpack.c.l.b16 %v2054
        %v2100 = vpack.c.b16 %v2099, %v2099
        %v2102 = vshrl.u32 %v2100, 16
        %v2104 = vrot.slane %v2102, 1
        %v2105 = vshll.u32 %v2100, 16
        %v2107 = vrot.slane %v2105, 2
        %v2108 = vor.u32 %v2104, %v2107
        %v2113 = vunpack.c.l.b16 %v2094
        %v2114 = vunpack.c.l.b16 %v2095
        %v2115 = vunpack.c.l.b16 %v2096
        %v2116 = vunpack.c.l.b16 %v2097
        %v2117 = vpack.c.b16 %v2114, %v2113
        %v2118 = vpack.c.b16 %v2116, %v2115
        %v2122 = vsel %vm2072, %v2108, 0
        %2124 = vmatpush.bf16.msra.mxu0 0
        %2125 = vmatpush.bf16.msra.mxu0 0
        %2126 = vmatpush.bf16.msra.mxu0 0
        %2127 = vmatpush.bf16.msra.mxu0 0
        %2128 = vmatpush.bf16.msra.mxu0 0
        %2129 = vmatpush.bf16.msra.mxu0 0
        %2130 = vmatpush.bf16.msra.mxu0 %v2118
        %2131 = vmatpush.bf16.msra.mxu0 %v2117
        %2132 = vmatmul.bf16.gmra.mxu0 %v2122
        %v2133 = vpop.f32.mrf.mxu0
        %v2134 = vadd.f32 0.0, %v2133
        %v2135 = vpop.f32.mrf.mxu0
        %2136 = vdwg.mxu0
        %v2137 = vadd.f32 %v2092, %v2134
        %s2138 = scalar_lea.vmem %s27, 32
        %v2139 = vld [vmem:[%s2138] sm:$0xf]
        %v2140 = vld [vmem:[%s2138 + $0x4] sm:$0xf]
        %v2141 = vld [vmem:[%s2138 + $0x8] sm:$0xf]
        %v2142 = vld [vmem:[%s2138 + $0xc] sm:$0xf]
        %v2143 = vpack.c.b16 %v1985, %v2099
        %v2144 = vrot.slane %v2143, 3
        %v2149 = vunpack.c.l.b16 %v2139
        %v2150 = vunpack.c.l.b16 %v2140
        %v2151 = vunpack.c.l.b16 %v2141
        %v2152 = vunpack.c.l.b16 %v2142
        %v2153 = vpack.c.b16 %v2150, %v2149
        %v2154 = vpack.c.b16 %v2152, %v2151
        %v2158 = vsel %vm2072, %v2144, 0
        %2160 = vmatpush.bf16.msra.mxu0 0
        %2161 = vmatpush.bf16.msra.mxu0 0
        %2162 = vmatpush.bf16.msra.mxu0 0
        %2163 = vmatpush.bf16.msra.mxu0 0
        %2164 = vmatpush.bf16.msra.mxu0 0
        %2165 = vmatpush.bf16.msra.mxu0 0
        %2166 = vmatpush.bf16.msra.mxu0 %v2154
        %2167 = vmatpush.bf16.msra.mxu0 %v2153
        %2168 = vmatmul.bf16.gmra.mxu0 %v2158
        %v2169 = vpop.f32.mrf.mxu0
        %v2170 = vadd.f32 0.0, %v2169
        %v2171 = vpop.f32.mrf.mxu0
        %2172 = vdwg.mxu0
        %v2173 = vadd.f32 %v2137, %v2170
        %v2174 = vmax.f32 %v2173, 0.0
        %vm2175 = vcmp.ne.f32.partialorder %v2173, %v2173
        %v2176 = vadd.f32 %v2173, 0.0
        %v2177 = vand.u32 2147483647, %v2173
        %v2178 = vsub.f32 0.0, %v2177
        %v2179 = vmul.f32 %v2178, 1.442695
        %v2180 = vpow.pop %v2179
        %v2181 = vadd.f32 %v2180, 1.0
        %v2182 = vlog2.pop %v2181
        %v2183 = vmul.f32 %v2182, 0.6931472
        %v2184 = vmul.f32 -0.5, %v2180
        %v2185 = vadd.f32 %v2184, 1.0
        %v2186 = vmul.f32 %v2185, %v2180
        %v2187 = vand.u32 2147483647, %v2180
        %vm2188 = vcmp.lt.f32.partialorder %v2187, 0.0004427343
        %v2189 = vsel %vm2188, %v2186, %v2183
        %v2190 = vadd.f32 %v2174, %v2189
        %v2191 = vsel %vm2175, %v2176, %v2190
        %v2192 = vtanh.pop %v2191
        %v2193 = vmul.f32 %v2173, %v2192
        %v2194 = vld [vmem:[%s7] sm:$0xff]
        %v2195 = vld [vmem:[%s7 + $0x8] sm:$0xff]
        %v2196 = vld [vmem:[%s31] sm:$0x3]
        %v2197 = vpack.c.bf16 %v2195, %v2194
        %v2198 = vld [vmem:[%s33] sm:$0x1]
        %v2200 = vperm.slane %v2198, 0
        %v2203 = vsel %vm1452, %v2197, 0
        %v2206 = vand.u32 %v2196, %v1458
        %2208 = vmatpush.bf16.msra.mxu0 0
        %2209 = vmatpush.bf16.msra.mxu0 0
        %2210 = vmatpush.bf16.msra.mxu0 0
        %2211 = vmatpush.bf16.msra.mxu0 0
        %2212 = vmatpush.bf16.msra.mxu0 0
        %2213 = vmatpush.bf16.msra.mxu0 0
        %2214 = vmatpush.bf16.msra.mxu0 0
        %2215 = vmatpush.bf16.msra.mxu0 %v2206
        %2216 = vmatmul.bf16.gmra.mxu0 %v2203
        %v2217 = vpop.f32.mrf.mxu0
        %v2218 = vadd.f32 %v2200, %v2217
        %v2219 = vpop.f32.mrf.mxu0
        %v2220 = vadd.f32 %v2200, %v2219
        %2221 = vdwg.mxu0
        %v2222 = vmax.f32 %v2218, 0.0
        %v2223 = vmax.f32 %v2220, 0.0
        %vm2224 = vcmp.ne.f32.partialorder %v2218, %v2218
        %vm2225 = vcmp.ne.f32.partialorder %v2220, %v2220
        %v2226 = vadd.f32 %v2218, 0.0
        %v2227 = vadd.f32 %v2220, 0.0
        %v2228 = vand.u32 2147483647, %v2218
        %v2229 = vand.u32 2147483647, %v2220
        %v2230 = vsub.f32 0.0, %v2228
        %v2231 = vsub.f32 0.0, %v2229
        %v2232 = vmul.f32 %v2230, 1.442695
        %v2233 = vpow.pop %v2232
        %v2234 = vmul.f32 %v2231, 1.442695
        %v2235 = vpow.pop %v2234
        %v2236 = vadd.f32 %v2233, 1.0
        %v2237 = vlog2.pop %v2236
        %v2238 = vmul.f32 %v2237, 0.6931472
        %v2239 = vmul.f32 -0.5, %v2233
        %v2240 = vadd.f32 %v2239, 1.0
        %v2241 = vmul.f32 %v2240, %v2233
        %v2242 = vand.u32 2147483647, %v2233
        %vm2243 = vcmp.lt.f32.partialorder %v2242, 0.0004427343
        %v2244 = vsel %vm2243, %v2241, %v2238
        %v2245 = vadd.f32 %v2235, 1.0
        %v2246 = vlog2.pop %v2245
        %v2247 = vmul.f32 %v2246, 0.6931472
        %v2248 = vmul.f32 -0.5, %v2235
        %v2249 = vadd.f32 %v2248, 1.0
        %v2250 = vmul.f32 %v2249, %v2235
        %v2251 = vand.u32 2147483647, %v2235
        %vm2252 = vcmp.lt.f32.partialorder %v2251, 0.0004427343
        %v2253 = vsel %vm2252, %v2250, %v2247
        %v2254 = vadd.f32 %v2222, %v2244
        %v2255 = vadd.f32 %v2223, %v2253
        %v2256 = vsel %vm2224, %v2226, %v2254
        %v2257 = vsel %vm2225, %v2227, %v2255
        %v2258 = vtanh.pop %v2256
        %v2259 = vtanh.pop %v2257
        %v2260 = vmul.f32 %v2218, %v2258
        %v2261 = vmul.f32 %v2220, %v2259
        %v2262 = vld [vmem:[%s35] sm:$0xf]
        %v2263 = vld [vmem:[%s35 + $0x4] sm:$0xf]
        %v2264 = vld [vmem:[%s35 + $0x8] sm:$0xf]
        %v2265 = vld [vmem:[%s35 + $0xc] sm:$0xf]
        %v2266 = vld [vmem:[%s35 + $0x10] sm:$0xf]
        %v2267 = vld [vmem:[%s35 + $0x14] sm:$0xf]
        %v2268 = vld [vmem:[%s35 + $0x18] sm:$0xf]
        %v2269 = vld [vmem:[%s35 + $0x1c] sm:$0xf]
        %v2270 = vpack.c.bf16 %v2261, %v2260
        %v2271 = vld [vmem:[%s37] sm:$0x1]
        %v2273 = vperm.slane %v2271, 0
        %v2283 = vunpack.c.l.b16 %v2262
        %v2284 = vunpack.c.l.b16 %v2263
        %v2285 = vunpack.c.l.b16 %v2264
        %v2286 = vunpack.c.l.b16 %v2265
        %v2287 = vunpack.c.l.b16 %v2266
        %v2288 = vunpack.c.l.b16 %v2267
        %v2289 = vunpack.c.l.b16 %v2268
        %v2290 = vunpack.c.l.b16 %v2269
        %v2291 = vpack.c.b16 %v2284, %v2283
        %v2292 = vpack.c.b16 %v2286, %v2285
        %v2293 = vpack.c.b16 %v2288, %v2287
        %v2294 = vpack.c.b16 %v2290, %v2289
        %v2300 = vsel %vm1596, %v2270, 0
        %2302 = vmatpush.bf16.msra.mxu0 0
        %2303 = vmatpush.bf16.msra.mxu0 0
        %2304 = vmatpush.bf16.msra.mxu0 0
        %2305 = vmatpush.bf16.msra.mxu0 0
        %2306 = vmatpush.bf16.msra.mxu0 %v2294
        %2307 = vmatpush.bf16.msra.mxu0 %v2293
        %2308 = vmatpush.bf16.msra.mxu0 %v2292
        %2309 = vmatpush.bf16.msra.mxu0 %v2291
        %2310 = vmatmul.bf16.gmra.mxu0 %v2300
        %v2311 = vpop.f32.mrf.mxu0
        %v2312 = vadd.f32 %v2273, %v2311
        %v2313 = vpop.f32.mrf.mxu0
        %v2314 = vadd.f32 %v2273, %v2313
        %2315 = vdwg.mxu0
        %v2316 = vmax.f32 %v2312, 0.0
        %v2317 = vmax.f32 %v2314, 0.0
        %vm2318 = vcmp.ne.f32.partialorder %v2312, %v2312
        %vm2319 = vcmp.ne.f32.partialorder %v2314, %v2314
        %v2320 = vadd.f32 %v2312, 0.0
        %v2321 = vadd.f32 %v2314, 0.0
        %v2322 = vand.u32 2147483647, %v2312
        %v2323 = vand.u32 2147483647, %v2314
        %v2324 = vsub.f32 0.0, %v2322
        %v2325 = vsub.f32 0.0, %v2323
        %v2326 = vmul.f32 %v2324, 1.442695
        %v2327 = vpow.pop %v2326
        %v2328 = vmul.f32 %v2325, 1.442695
        %v2329 = vpow.pop %v2328
        %v2330 = vadd.f32 %v2327, 1.0
        %v2331 = vlog2.pop %v2330
        %v2332 = vmul.f32 %v2331, 0.6931472
        %v2333 = vmul.f32 -0.5, %v2327
        %v2334 = vadd.f32 %v2333, 1.0
        %v2335 = vmul.f32 %v2334, %v2327
        %v2336 = vand.u32 2147483647, %v2327
        %vm2337 = vcmp.lt.f32.partialorder %v2336, 0.0004427343
        %v2338 = vsel %vm2337, %v2335, %v2332
        %v2339 = vadd.f32 %v2329, 1.0
        %v2340 = vlog2.pop %v2339
        %v2341 = vmul.f32 %v2340, 0.6931472
        %v2342 = vmul.f32 -0.5, %v2329
        %v2343 = vadd.f32 %v2342, 1.0
        %v2344 = vmul.f32 %v2343, %v2329
        %v2345 = vand.u32 2147483647, %v2329
        %vm2346 = vcmp.lt.f32.partialorder %v2345, 0.0004427343
        %v2347 = vsel %vm2346, %v2344, %v2341
        %v2348 = vadd.f32 %v2316, %v2338
        %v2349 = vadd.f32 %v2317, %v2347
        %v2350 = vsel %vm2318, %v2320, %v2348
        %v2351 = vsel %vm2319, %v2321, %v2349
        %v2352 = vtanh.pop %v2350
        %v2353 = vtanh.pop %v2351
        %v2354 = vmul.f32 %v2312, %v2352
        %v2355 = vmul.f32 %v2314, %v2353
        %v2356 = vld [vmem:[%s9] sm:$0x1]
        %v2357 = vld [vmem:[%s39] sm:$0xf]
        %v2358 = vld [vmem:[%s39 + $0x4] sm:$0xf]
        %v2359 = vld [vmem:[%s39 + $0x8] sm:$0xf]
        %v2360 = vld [vmem:[%s39 + $0xc] sm:$0xf]
        %v2361 = vpack.c.bf16 %v2356, %v2356
        %v2362 = vld [vmem:[%s41] sm:$0x1]
        %v2367 = vunpack.c.l.b16 %v2357
        %v2368 = vunpack.c.l.b16 %v2358
        %v2369 = vunpack.c.l.b16 %v2359
        %v2370 = vunpack.c.l.b16 %v2360
        %v2371 = vpack.c.b16 %v2368, %v2367
        %v2372 = vpack.c.b16 %v2370, %v2369
        %v2376 = vsel %vm2072, %v2361, 0
        %2378 = vmatpush.bf16.msra.mxu0 0
        %2379 = vmatpush.bf16.msra.mxu0 0
        %2380 = vmatpush.bf16.msra.mxu0 0
        %2381 = vmatpush.bf16.msra.mxu0 0
        %2382 = vmatpush.bf16.msra.mxu0 0
        %2383 = vmatpush.bf16.msra.mxu0 0
        %2384 = vmatpush.bf16.msra.mxu0 %v2372
        %2385 = vmatpush.bf16.msra.mxu0 %v2371
        %2386 = vmatmul.bf16.gmra.mxu0 %v2376
        %v2387 = vpop.f32.mrf.mxu0
        %v2388 = vadd.f32 %v2362, %v2387
        %v2389 = vpop.f32.mrf.mxu0
        %2390 = vdwg.mxu0
        %v2391 = vmax.f32 %v2388, 0.0
        %vm2392 = vcmp.ne.f32.partialorder %v2388, %v2388
        %v2393 = vadd.f32 %v2388, 0.0
        %v2394 = vand.u32 2147483647, %v2388
        %v2395 = vsub.f32 0.0, %v2394
        %v2396 = vmul.f32 %v2395, 1.442695
        %v2397 = vpow.pop %v2396
        %v2398 = vadd.f32 %v2397, 1.0
        %v2399 = vlog2.pop %v2398
        %v2400 = vmul.f32 %v2399, 0.6931472
        %v2401 = vmul.f32 -0.5, %v2397
        %v2402 = vadd.f32 %v2401, 1.0
        %v2403 = vmul.f32 %v2402, %v2397
        %v2404 = vand.u32 2147483647, %v2397
        %vm2405 = vcmp.lt.f32.partialorder %v2404, 0.0004427343
        %v2406 = vsel %vm2405, %v2403, %v2400
        %v2407 = vadd.f32 %v2391, %v2406
        %v2408 = vsel %vm2392, %v2393, %v2407
        %v2409 = vtanh.pop %v2408
        %v2410 = vmul.f32 %v2388, %v2409
        %v2411 = vld [vmem:[%s43] sm:$0xf]
        %v2412 = vld [vmem:[%s43 + $0x4] sm:$0xf]
        %v2413 = vld [vmem:[%s43 + $0x8] sm:$0xf]
        %v2414 = vld [vmem:[%s43 + $0xc] sm:$0xf]
        %v2415 = vld [vmem:[%s43 + $0x10] sm:$0xf]
        %v2416 = vld [vmem:[%s43 + $0x14] sm:$0xf]
        %v2417 = vld [vmem:[%s43 + $0x18] sm:$0xf]
        %v2418 = vld [vmem:[%s43 + $0x1c] sm:$0xf]
        %v2419 = vld [vmem:[%s43 + $0x20] sm:$0xf]
        %v2420 = vld [vmem:[%s43 + $0x24] sm:$0xf]
        %v2421 = vld [vmem:[%s43 + $0x28] sm:$0xf]
        %v2422 = vld [vmem:[%s43 + $0x2c] sm:$0xf]
        %v2423 = vld [vmem:[%s43 + $0x30] sm:$0xf]
        %v2424 = vld [vmem:[%s43 + $0x34] sm:$0xf]
        %v2425 = vld [vmem:[%s43 + $0x38] sm:$0xf]
        %v2426 = vld [vmem:[%s43 + $0x3c] sm:$0xf]
        %v2427 = vpack.c.bf16 %v2410, %v2410
        %v2428 = vld [vmem:[%s45] sm:$0x1]
        %v2445 = vunpack.c.l.b16 %v2411
        %v2446 = vunpack.c.l.b16 %v2412
        %v2447 = vunpack.c.l.b16 %v2413
        %v2448 = vunpack.c.l.b16 %v2414
        %v2449 = vunpack.c.l.b16 %v2415
        %v2450 = vunpack.c.l.b16 %v2416
        %v2451 = vunpack.c.l.b16 %v2417
        %v2452 = vunpack.c.l.b16 %v2418
        %v2453 = vunpack.c.l.b16 %v2419
        %v2454 = vunpack.c.l.b16 %v2420
        %v2455 = vunpack.c.l.b16 %v2421
        %v2456 = vunpack.c.l.b16 %v2422
        %v2457 = vunpack.c.l.b16 %v2423
        %v2458 = vunpack.c.l.b16 %v2424
        %v2459 = vunpack.c.l.b16 %v2425
        %v2460 = vunpack.c.l.b16 %v2426
        %v2461 = vpack.c.b16 %v2446, %v2445
        %v2462 = vpack.c.b16 %v2448, %v2447
        %v2463 = vpack.c.b16 %v2450, %v2449
        %v2464 = vpack.c.b16 %v2452, %v2451
        %v2465 = vpack.c.b16 %v2454, %v2453
        %v2466 = vpack.c.b16 %v2456, %v2455
        %v2467 = vpack.c.b16 %v2458, %v2457
        %v2468 = vpack.c.b16 %v2460, %v2459
        %2477 = vmatpush.bf16.msra.mxu0 %v2468
        %2478 = vmatpush.bf16.msra.mxu0 %v2467
        %2479 = vmatpush.bf16.msra.mxu0 %v2466
        %2480 = vmatpush.bf16.msra.mxu0 %v2465
        %2481 = vmatpush.bf16.msra.mxu0 %v2464
        %2482 = vmatpush.bf16.msra.mxu0 %v2463
        %2483 = vmatpush.bf16.msra.mxu0 %v2462
        %2484 = vmatpush.bf16.msra.mxu0 %v2461
        %2485 = vmatmul.bf16.gmra.mxu0 %v2427
        %v2486 = vpop.f32.mrf.mxu0
        %v2487 = vadd.f32 %v2428, %v2486
        %v2488 = vpop.f32.mrf.mxu0
        %2489 = vdwg.mxu0
        %vm2490 = vcmask 253952
        %2491 = vst.msk [vmem:[#allocation2] sm:$0x1] %vm2490, %v2487
        %vm2492 = vcmask 257024
        %2493 = vst.msk [vmem:[#allocation2 + $0x1] sm:$0xf] %vm2492, %v1743
        %2494 = vst.msk [vmem:[#allocation2 + $0x5] sm:$0xf] %vm2492, %v2193
        %2495 = vst.msk [vmem:[#allocation2 + $0x9] sm:$0xff] %vm2072, %v2354
        %2496 = vst.msk [vmem:[#allocation2 + $0x11] sm:$0xff] %vm2072, %v2355
        %v2497 = vld [vmem:[%s5] sm:$0xff]
        %v2498 = vld [vmem:[%s5 + $0x8] sm:$0xff]
        %v2501 = vrot.slane %v2497, 7
        %v2502 = vrot.slane %v2498, 7
        %v2503 = vsel %vm1445, %v2501, %v2502
        %v2507 = vsel %vm1445, 0.0, %v2501
        %v2508 = vsel %vm1445, %v2502, 0.0
        %v2509 = vpack.c.bf16 %v2507, %v2507
        %v2510 = vpack.c.bf16 %v2503, %v2503
        %v2511 = vpack.c.bf16 %v2508, %v2508
        %v2512 = vld [vmem:[%s21] sm:$0x1]
        %v2513 = vld [vmem:[%s19] sm:$0x3]
        %v2516 = vunpack.c.l.b16 %v2509
        %v2517 = vunpack.c.l.b16 %v2510
        %v2518 = vpack.c.b16 %v2517, %v2516
        %v2520 = vsel %vm1452, %v2518, 0
        %v2523 = vand.u32 %v2513, %v1458
        %2525 = vmatpush.bf16.msra.mxu0 0
        %2526 = vmatpush.bf16.msra.mxu0 0
        %2527 = vmatpush.bf16.msra.mxu0 0
        %2528 = vmatpush.bf16.msra.mxu0 0
        %2529 = vmatpush.bf16.msra.mxu0 0
        %2530 = vmatpush.bf16.msra.mxu0 0
        %2531 = vmatpush.bf16.msra.mxu0 0
        %2532 = vmatpush.bf16.msra.mxu0 %v2523
        %2533 = vmatmul.bf16.gmra.mxu0 %v2520
        %v2534 = vpop.f32.mrf.mxu0
        %v2535 = vadd.f32 0.0, %v2534
        %v2536 = vpop.f32.mrf.mxu0
        %v2537 = vadd.f32 0.0, %v2536
        %2538 = vdwg.mxu0
        %v2540 = vperm.slane %v2512, 0
        %v2542 = vadd.f32 %v2540, %v2535
        %v2543 = vadd.f32 %v2540, %v2537
        %v2544 = vld [vmem:[%s1777] sm:$0x3]
        %v2546 = vunpack.c.l.b16 %v2511
        %v2547 = vpack.c.b16 %v2546, %v2546
        %vm2548 = vsmask.f32 7424
        %v2549 = vshrl.u32 %v2518, 16
        %v2551 = vshll.u32 %v2518, 16
        %v2553 = vrot.slane %v2551, 1
        %v2554 = vor.u32 %v2549, %v2553
        %v2556 = vshll.u32 %v2547, 16
        %v2558 = vrot.slane %v2556, 1
        %v2559 = vsel %vm2548, %v2554, %v2558
        %v2561 = vsel %vm1452, %v2559, 0
        %v2564 = vand.u32 %v2544, %v1458
        %2566 = vmatpush.bf16.msra.mxu0 0
        %2567 = vmatpush.bf16.msra.mxu0 0
        %2568 = vmatpush.bf16.msra.mxu0 0
        %2569 = vmatpush.bf16.msra.mxu0 0
        %2570 = vmatpush.bf16.msra.mxu0 0
        %2571 = vmatpush.bf16.msra.mxu0 0
        %2572 = vmatpush.bf16.msra.mxu0 0
        %2573 = vmatpush.bf16.msra.mxu0 %v2564
        %2574 = vmatmul.bf16.gmra.mxu0 %v2561
        %v2575 = vpop.f32.mrf.mxu0
        %v2576 = vadd.f32 0.0, %v2575
        %v2577 = vpop.f32.mrf.mxu0
        %v2578 = vadd.f32 0.0, %v2577
        %2579 = vdwg.mxu0
        %v2580 = vadd.f32 %v2542, %v2576
        %v2581 = vadd.f32 %v2543, %v2578
        %v2582 = vld [vmem:[%s1809] sm:$0x3]
        %vm2583 = vcmask 1046528
        %v2584 = vrot.slane %v2518, 1
        %v2585 = vrot.slane %v2547, 1
        %v2586 = vsel %vm2583, %v2584, %v2585
        %v2588 = vsel %vm1452, %v2586, 0
        %v2591 = vand.u32 %v2582, %v1458
        %2593 = vmatpush.bf16.msra.mxu0 0
        %2594 = vmatpush.bf16.msra.mxu0 0
        %2595 = vmatpush.bf16.msra.mxu0 0
        %2596 = vmatpush.bf16.msra.mxu0 0
        %2597 = vmatpush.bf16.msra.mxu0 0
        %2598 = vmatpush.bf16.msra.mxu0 0
        %2599 = vmatpush.bf16.msra.mxu0 0
        %2600 = vmatpush.bf16.msra.mxu0 %v2591
        %2601 = vmatmul.bf16.gmra.mxu0 %v2588
        %v2602 = vpop.f32.mrf.mxu0
        %v2603 = vadd.f32 0.0, %v2602
        %v2604 = vpop.f32.mrf.mxu0
        %v2605 = vadd.f32 0.0, %v2604
        %2606 = vdwg.mxu0
        %v2607 = vadd.f32 %v2580, %v2603
        %v2608 = vadd.f32 %v2581, %v2605
        %v2609 = vmax.f32 %v2607, 0.0
        %v2610 = vmax.f32 %v2608, 0.0
        %vm2611 = vcmp.ne.f32.partialorder %v2607, %v2607
        %vm2612 = vcmp.ne.f32.partialorder %v2608, %v2608
        %v2613 = vadd.f32 %v2607, 0.0
        %v2614 = vadd.f32 %v2608, 0.0
        %v2615 = vand.u32 2147483647, %v2607
        %v2616 = vand.u32 2147483647, %v2608
        %v2617 = vsub.f32 0.0, %v2615
        %v2618 = vsub.f32 0.0, %v2616
        %v2619 = vmul.f32 %v2617, 1.442695
        %v2620 = vpow.pop %v2619
        %v2621 = vmul.f32 %v2618, 1.442695
        %v2622 = vpow.pop %v2621
        %v2623 = vadd.f32 %v2620, 1.0
        %v2624 = vlog2.pop %v2623
        %v2625 = vmul.f32 %v2624, 0.6931472
        %v2626 = vmul.f32 -0.5, %v2620
        %v2627 = vadd.f32 %v2626, 1.0
        %v2628 = vmul.f32 %v2627, %v2620
        %v2629 = vand.u32 2147483647, %v2620
        %vm2630 = vcmp.lt.f32.partialorder %v2629, 0.0004427343
        %v2631 = vsel %vm2630, %v2628, %v2625
        %v2632 = vadd.f32 %v2622, 1.0
        %v2633 = vlog2.pop %v2632
        %v2634 = vmul.f32 %v2633, 0.6931472
        %v2635 = vmul.f32 -0.5, %v2622
        %v2636 = vadd.f32 %v2635, 1.0
        %v2637 = vmul.f32 %v2636, %v2622
        %v2638 = vand.u32 2147483647, %v2622
        %vm2639 = vcmp.lt.f32.partialorder %v2638, 0.0004427343
        %v2640 = vsel %vm2639, %v2637, %v2634
        %v2641 = vadd.f32 %v2609, %v2631
        %v2642 = vadd.f32 %v2610, %v2640
        %v2643 = vsel %vm2611, %v2613, %v2641
        %v2644 = vsel %vm2612, %v2614, %v2642
        %v2645 = vtanh.pop %v2643
        %v2646 = vtanh.pop %v2644
        %v2647 = vmul.f32 %v2607, %v2645
        %v2648 = vmul.f32 %v2608, %v2646
        %v2651 = vrot.slane %v2647, 5
        %v2652 = vrot.slane %v2648, 5
        %v2653 = vsel %vm1855, %v2651, %v2652
        %v2657 = vsel %vm1855, 0.0, %v2651
        %v2658 = vsel %vm1855, %v2652, 0.0
        %v2659 = vpack.c.bf16 %v2657, %v2657
        %v2660 = vpack.c.bf16 %v2653, %v2653
        %v2661 = vpack.c.bf16 %v2658, %v2658
        %v2662 = vld [vmem:[%s25] sm:$0x1]
        %v2663 = vld [vmem:[%s23] sm:$0xf]
        %v2664 = vld [vmem:[%s23 + $0x4] sm:$0xf]
        %v2665 = vld [vmem:[%s23 + $0x8] sm:$0xf]
        %v2666 = vld [vmem:[%s23 + $0xc] sm:$0xf]
        %v2667 = vld [vmem:[%s23 + $0x10] sm:$0xf]
        %v2668 = vld [vmem:[%s23 + $0x14] sm:$0xf]
        %v2669 = vld [vmem:[%s23 + $0x18] sm:$0xf]
        %v2670 = vld [vmem:[%s23 + $0x1c] sm:$0xf]
        %v2673 = vunpack.c.l.b16 %v2659
        %v2674 = vunpack.c.l.b16 %v2660
        %v2675 = vpack.c.b16 %v2674, %v2673
        %v2684 = vunpack.c.l.b16 %v2663
        %v2685 = vunpack.c.l.b16 %v2664
        %v2686 = vunpack.c.l.b16 %v2665
        %v2687 = vunpack.c.l.b16 %v2666
        %v2688 = vunpack.c.l.b16 %v2667
        %v2689 = vunpack.c.l.b16 %v2668
        %v2690 = vunpack.c.l.b16 %v2669
        %v2691 = vunpack.c.l.b16 %v2670
        %v2692 = vpack.c.b16 %v2685, %v2684
        %v2693 = vpack.c.b16 %v2687, %v2686
        %v2694 = vpack.c.b16 %v2689, %v2688
        %v2695 = vpack.c.b16 %v2691, %v2690
        %v2701 = vsel %vm1596, %v2675, 0
        %2703 = vmatpush.bf16.msra.mxu0 0
        %2704 = vmatpush.bf16.msra.mxu0 0
        %2705 = vmatpush.bf16.msra.mxu0 0
        %2706 = vmatpush.bf16.msra.mxu0 0
        %2707 = vmatpush.bf16.msra.mxu0 %v2695
        %2708 = vmatpush.bf16.msra.mxu0 %v2694
        %2709 = vmatpush.bf16.msra.mxu0 %v2693
        %2710 = vmatpush.bf16.msra.mxu0 %v2692
        %2711 = vmatmul.bf16.gmra.mxu0 %v2701
        %v2712 = vpop.f32.mrf.mxu0
        %v2713 = vadd.f32 0.0, %v2712
        %v2714 = vpop.f32.mrf.mxu0
        %v2715 = vadd.f32 0.0, %v2714
        %2716 = vdwg.mxu0
        %v2718 = vperm.slane %v2662, 0
        %v2720 = vadd.f32 %v2718, %v2713
        %v2721 = vadd.f32 %v2718, %v2715
        %v2722 = vld [vmem:[%s1914] sm:$0xf]
        %v2723 = vld [vmem:[%s1914 + $0x4] sm:$0xf]
        %v2724 = vld [vmem:[%s1914 + $0x8] sm:$0xf]
        %v2725 = vld [vmem:[%s1914 + $0xc] sm:$0xf]
        %v2726 = vld [vmem:[%s1914 + $0x10] sm:$0xf]
        %v2727 = vld [vmem:[%s1914 + $0x14] sm:$0xf]
        %v2728 = vld [vmem:[%s1914 + $0x18] sm:$0xf]
        %v2729 = vld [vmem:[%s1914 + $0x1c] sm:$0xf]
        %v2731 = vunpack.c.l.b16 %v2661
        %v2732 = vpack.c.b16 %v2731, %v2731
        %vm2733 = vsmask.f32 6400
        %v2734 = vshrl.u32 %v2675, 16
        %v2736 = vrot.slane %v2734, 1
        %v2737 = vshll.u32 %v2675, 16
        %v2739 = vrot.slane %v2737, 2
        %v2740 = vor.u32 %v2736, %v2739
        %v2742 = vshrl.u32 %v2732, 16
        %v2744 = vrot.slane %v2742, 1
        %v2745 = vshll.u32 %v2732, 16
        %v2747 = vrot.slane %v2745, 2
        %v2748 = vor.u32 %v2744, %v2747
        %v2749 = vsel %vm2733, %v2740, %v2748
        %v2758 = vunpack.c.l.b16 %v2722
        %v2759 = vunpack.c.l.b16 %v2723
        %v2760 = vunpack.c.l.b16 %v2724
        %v2761 = vunpack.c.l.b16 %v2725
        %v2762 = vunpack.c.l.b16 %v2726
        %v2763 = vunpack.c.l.b16 %v2727
        %v2764 = vunpack.c.l.b16 %v2728
        %v2765 = vunpack.c.l.b16 %v2729
        %v2766 = vpack.c.b16 %v2759, %v2758
        %v2767 = vpack.c.b16 %v2761, %v2760
        %v2768 = vpack.c.b16 %v2763, %v2762
        %v2769 = vpack.c.b16 %v2765, %v2764
        %v2775 = vsel %vm1596, %v2749, 0
        %2777 = vmatpush.bf16.msra.mxu0 0
        %2778 = vmatpush.bf16.msra.mxu0 0
        %2779 = vmatpush.bf16.msra.mxu0 0
        %2780 = vmatpush.bf16.msra.mxu0 0
        %2781 = vmatpush.bf16.msra.mxu0 %v2769
        %2782 = vmatpush.bf16.msra.mxu0 %v2768
        %2783 = vmatpush.bf16.msra.mxu0 %v2767
        %2784 = vmatpush.bf16.msra.mxu0 %v2766
        %2785 = vmatmul.bf16.gmra.mxu0 %v2775
        %v2786 = vpop.f32.mrf.mxu0
        %v2787 = vadd.f32 0.0, %v2786
        %v2788 = vpop.f32.mrf.mxu0
        %v2789 = vadd.f32 0.0, %v2788
        %2790 = vdwg.mxu0
        %v2791 = vadd.f32 %v2720, %v2787
        %v2792 = vadd.f32 %v2721, %v2789
        %v2793 = vld [vmem:[%s1975] sm:$0xf]
        %v2794 = vld [vmem:[%s1975 + $0x4] sm:$0xf]
        %v2795 = vld [vmem:[%s1975 + $0x8] sm:$0xf]
        %v2796 = vld [vmem:[%s1975 + $0xc] sm:$0xf]
        %v2797 = vld [vmem:[%s1975 + $0x10] sm:$0xf]
        %v2798 = vld [vmem:[%s1975 + $0x14] sm:$0xf]
        %v2799 = vld [vmem:[%s1975 + $0x18] sm:$0xf]
        %v2800 = vld [vmem:[%s1975 + $0x1c] sm:$0xf]
        %vm2801 = vcmask 1044480
        %v2802 = vrot.slane %v2675, 3
        %v2803 = vrot.slane %v2732, 3
        %v2804 = vsel %vm2801, %v2802, %v2803
        %v2813 = vunpack.c.l.b16 %v2793
        %v2814 = vunpack.c.l.b16 %v2794
        %v2815 = vunpack.c.l.b16 %v2795
        %v2816 = vunpack.c.l.b16 %v2796
        %v2817 = vunpack.c.l.b16 %v2797
        %v2818 = vunpack.c.l.b16 %v2798
        %v2819 = vunpack.c.l.b16 %v2799
        %v2820 = vunpack.c.l.b16 %v2800
        %v2821 = vpack.c.b16 %v2814, %v2813
        %v2822 = vpack.c.b16 %v2816, %v2815
        %v2823 = vpack.c.b16 %v2818, %v2817
        %v2824 = vpack.c.b16 %v2820, %v2819
        %v2830 = vsel %vm1596, %v2804, 0
        %2832 = vmatpush.bf16.msra.mxu0 0
        %2833 = vmatpush.bf16.msra.mxu0 0
        %2834 = vmatpush.bf16.msra.mxu0 0
        %2835 = vmatpush.bf16.msra.mxu0 0
        %2836 = vmatpush.bf16.msra.mxu0 %v2824
        %2837 = vmatpush.bf16.msra.mxu0 %v2823
        %2838 = vmatpush.bf16.msra.mxu0 %v2822
        %2839 = vmatpush.bf16.msra.mxu0 %v2821
        %2840 = vmatmul.bf16.gmra.mxu0 %v2830
        %v2841 = vpop.f32.mrf.mxu0
        %v2842 = vadd.f32 0.0, %v2841
        %v2843 = vpop.f32.mrf.mxu0
        %v2844 = vadd.f32 0.0, %v2843
        %2845 = vdwg.mxu0
        %v2846 = vadd.f32 %v2791, %v2842
        %v2847 = vadd.f32 %v2792, %v2844
        %v2848 = vmax.f32 %v2846, 0.0
        %v2849 = vmax.f32 %v2847, 0.0
        %vm2850 = vcmp.ne.f32.partialorder %v2846, %v2846
        %vm2851 = vcmp.ne.f32.partialorder %v2847, %v2847
        %v2852 = vadd.f32 %v2846, 0.0
        %v2853 = vadd.f32 %v2847, 0.0
        %v2854 = vand.u32 2147483647, %v2846
        %v2855 = vand.u32 2147483647, %v2847
        %v2856 = vsub.f32 0.0, %v2854
        %v2857 = vsub.f32 0.0, %v2855
        %v2858 = vmul.f32 %v2856, 1.442695
        %v2859 = vpow.pop %v2858
        %v2860 = vmul.f32 %v2857, 1.442695
        %v2861 = vpow.pop %v2860
        %v2862 = vadd.f32 %v2859, 1.0
        %v2863 = vlog2.pop %v2862
        %v2864 = vmul.f32 %v2863, 0.6931472
        %v2865 = vmul.f32 -0.5, %v2859
        %v2866 = vadd.f32 %v2865, 1.0
        %v2867 = vmul.f32 %v2866, %v2859
        %v2868 = vand.u32 2147483647, %v2859
        %vm2869 = vcmp.lt.f32.partialorder %v2868, 0.0004427343
        %v2870 = vsel %vm2869, %v2867, %v2864
        %v2871 = vadd.f32 %v2861, 1.0
        %v2872 = vlog2.pop %v2871
        %v2873 = vmul.f32 %v2872, 0.6931472
        %v2874 = vmul.f32 -0.5, %v2861
        %v2875 = vadd.f32 %v2874, 1.0
        %v2876 = vmul.f32 %v2875, %v2861
        %v2877 = vand.u32 2147483647, %v2861
        %vm2878 = vcmp.lt.f32.partialorder %v2877, 0.0004427343
        %v2879 = vsel %vm2878, %v2876, %v2873
        %v2880 = vadd.f32 %v2848, %v2870
        %v2881 = vadd.f32 %v2849, %v2879
        %v2882 = vsel %vm2850, %v2852, %v2880
        %v2883 = vsel %vm2851, %v2853, %v2881
        %v2884 = vtanh.pop %v2882
        %v2885 = vtanh.pop %v2883
        %v2886 = vmul.f32 %v2846, %v2884
        %v2887 = vmul.f32 %v2847, %v2885
        %v2890 = vrot.slane %v2886, 5
        %v2891 = vrot.slane %v2887, 5
        %v2892 = vsel %vm1855, %v2890, %v2891
        %v2896 = vsel %vm1855, 0.0, %v2890
        %v2897 = vsel %vm1855, %v2891, 0.0
        %v2898 = vpack.c.bf16 %v2896, %v2896
        %v2899 = vpack.c.bf16 %v2892, %v2892
        %v2900 = vpack.c.bf16 %v2897, %v2897
        %v2901 = vld [vmem:[%s29] sm:$0x1]
        %v2902 = vld [vmem:[%s27] sm:$0xf]
        %v2903 = vld [vmem:[%s27 + $0x4] sm:$0xf]
        %v2904 = vld [vmem:[%s27 + $0x8] sm:$0xf]
        %v2905 = vld [vmem:[%s27 + $0xc] sm:$0xf]
        %v2908 = vunpack.c.l.b16 %v2898
        %v2909 = vunpack.c.l.b16 %v2899
        %v2910 = vpack.c.b16 %v2909, %v2908
        %v2915 = vunpack.c.l.b16 %v2902
        %v2916 = vunpack.c.l.b16 %v2903
        %v2917 = vunpack.c.l.b16 %v2904
        %v2918 = vunpack.c.l.b16 %v2905
        %v2919 = vpack.c.b16 %v2916, %v2915
        %v2920 = vpack.c.b16 %v2918, %v2917
        %v2924 = vsel %vm2072, %v2910, 0
        %2926 = vmatpush.bf16.msra.mxu0 0
        %2927 = vmatpush.bf16.msra.mxu0 0
        %2928 = vmatpush.bf16.msra.mxu0 0
        %2929 = vmatpush.bf16.msra.mxu0 0
        %2930 = vmatpush.bf16.msra.mxu0 0
        %2931 = vmatpush.bf16.msra.mxu0 0
        %2932 = vmatpush.bf16.msra.mxu0 %v2920
        %2933 = vmatpush.bf16.msra.mxu0 %v2919
        %2934 = vmatmul.bf16.gmra.mxu0 %v2924
        %v2935 = vpop.f32.mrf.mxu0
        %v2936 = vadd.f32 0.0, %v2935
        %v2937 = vpop.f32.mrf.mxu0
        %v2938 = vadd.f32 0.0, %v2937
        %2939 = vdwg.mxu0
        %v2941 = vperm.slane %v2901, 0
        %v2943 = vadd.f32 %v2941, %v2936
        %v2944 = vadd.f32 %v2941, %v2938
        %v2945 = vld [vmem:[%s2093] sm:$0xf]
        %v2946 = vld [vmem:[%s2093 + $0x4] sm:$0xf]
        %v2947 = vld [vmem:[%s2093 + $0x8] sm:$0xf]
        %v2948 = vld [vmem:[%s2093 + $0xc] sm:$0xf]
        %v2950 = vunpack.c.l.b16 %v2900
        %v2951 = vpack.c.b16 %v2950, %v2950
        %v2952 = vshrl.u32 %v2910, 16
        %v2954 = vrot.slane %v2952, 1
        %v2955 = vshll.u32 %v2910, 16
        %v2957 = vrot.slane %v2955, 2
        %v2958 = vor.u32 %v2954, %v2957
        %v2960 = vshrl.u32 %v2951, 16
        %v2962 = vrot.slane %v2960, 1
        %v2963 = vshll.u32 %v2951, 16
        %v2965 = vrot.slane %v2963, 2
        %v2966 = vor.u32 %v2962, %v2965
        %v2967 = vsel %vm2733, %v2958, %v2966
        %v2972 = vunpack.c.l.b16 %v2945
        %v2973 = vunpack.c.l.b16 %v2946
        %v2974 = vunpack.c.l.b16 %v2947
        %v2975 = vunpack.c.l.b16 %v2948
        %v2976 = vpack.c.b16 %v2973, %v2972
        %v2977 = vpack.c.b16 %v2975, %v2974
        %v2981 = vsel %vm2072, %v2967, 0
        %2983 = vmatpush.bf16.msra.mxu0 0
        %2984 = vmatpush.bf16.msra.mxu0 0
        %2985 = vmatpush.bf16.msra.mxu0 0
        %2986 = vmatpush.bf16.msra.mxu0 0
        %2987 = vmatpush.bf16.msra.mxu0 0
        %2988 = vmatpush.bf16.msra.mxu0 0
        %2989 = vmatpush.bf16.msra.mxu0 %v2977
        %2990 = vmatpush.bf16.msra.mxu0 %v2976
        %2991 = vmatmul.bf16.gmra.mxu0 %v2981
        %v2992 = vpop.f32.mrf.mxu0
        %v2993 = vadd.f32 0.0, %v2992
        %v2994 = vpop.f32.mrf.mxu0
        %v2995 = vadd.f32 0.0, %v2994
        %2996 = vdwg.mxu0
        %v2997 = vadd.f32 %v2943, %v2993
        %v2998 = vadd.f32 %v2944, %v2995
        %v2999 = vld [vmem:[%s2138] sm:$0xf]
        %v3000 = vld [vmem:[%s2138 + $0x4] sm:$0xf]
        %v3001 = vld [vmem:[%s2138 + $0x8] sm:$0xf]
        %v3002 = vld [vmem:[%s2138 + $0xc] sm:$0xf]
        %v3003 = vrot.slane %v2910, 3
        %v3004 = vrot.slane %v2951, 3
        %v3005 = vsel %vm2801, %v3003, %v3004
        %v3010 = vunpack.c.l.b16 %v2999
        %v3011 = vunpack.c.l.b16 %v3000
        %v3012 = vunpack.c.l.b16 %v3001
        %v3013 = vunpack.c.l.b16 %v3002
        %v3014 = vpack.c.b16 %v3011, %v3010
        %v3015 = vpack.c.b16 %v3013, %v3012
        %v3019 = vsel %vm2072, %v3005, 0
        %3021 = vmatpush.bf16.msra.mxu0 0
        %3022 = vmatpush.bf16.msra.mxu0 0
        %3023 = vmatpush.bf16.msra.mxu0 0
        %3024 = vmatpush.bf16.msra.mxu0 0
        %3025 = vmatpush.bf16.msra.mxu0 0
        %3026 = vmatpush.bf16.msra.mxu0 0
        %3027 = vmatpush.bf16.msra.mxu0 %v3015
        %3028 = vmatpush.bf16.msra.mxu0 %v3014
        %3029 = vmatmul.bf16.gmra.mxu0 %v3019
        %v3030 = vpop.f32.mrf.mxu0
        %v3031 = vadd.f32 0.0, %v3030
        %v3032 = vpop.f32.mrf.mxu0
        %v3033 = vadd.f32 0.0, %v3032
        %3034 = vdwg.mxu0
        %v3035 = vadd.f32 %v2997, %v3031
        %v3036 = vadd.f32 %v2998, %v3033
        %v3037 = vmax.f32 %v3035, 0.0
        %v3038 = vmax.f32 %v3036, 0.0
        %vm3039 = vcmp.ne.f32.partialorder %v3035, %v3035
        %vm3040 = vcmp.ne.f32.partialorder %v3036, %v3036
        %v3041 = vadd.f32 %v3035, 0.0
        %v3042 = vadd.f32 %v3036, 0.0
        %v3043 = vand.u32 2147483647, %v3035
        %v3044 = vand.u32 2147483647, %v3036
        %v3045 = vsub.f32 0.0, %v3043
        %v3046 = vsub.f32 0.0, %v3044
        %v3047 = vmul.f32 %v3045, 1.442695
        %v3048 = vpow.pop %v3047
        %v3049 = vmul.f32 %v3046, 1.442695
        %v3050 = vpow.pop %v3049
        %v3051 = vadd.f32 %v3048, 1.0
        %v3052 = vlog2.pop %v3051
        %v3053 = vmul.f32 %v3052, 0.6931472
        %v3054 = vmul.f32 -0.5, %v3048
        %v3055 = vadd.f32 %v3054, 1.0
        %v3056 = vmul.f32 %v3055, %v3048
        %v3057 = vand.u32 2147483647, %v3048
        %vm3058 = vcmp.lt.f32.partialorder %v3057, 0.0004427343
        %v3059 = vsel %vm3058, %v3056, %v3053
        %v3060 = vadd.f32 %v3050, 1.0
        %v3061 = vlog2.pop %v3060
        %v3062 = vmul.f32 %v3061, 0.6931472
        %v3063 = vmul.f32 -0.5, %v3050
        %v3064 = vadd.f32 %v3063, 1.0
        %v3065 = vmul.f32 %v3064, %v3050
        %v3066 = vand.u32 2147483647, %v3050
        %vm3067 = vcmp.lt.f32.partialorder %v3066, 0.0004427343
        %v3068 = vsel %vm3067, %v3065, %v3062
        %v3069 = vadd.f32 %v3037, %v3059
        %v3070 = vadd.f32 %v3038, %v3068
        %v3071 = vsel %vm3039, %v3041, %v3069
        %v3072 = vsel %vm3040, %v3042, %v3070
        %v3073 = vtanh.pop %v3071
        %v3074 = vtanh.pop %v3072
        %v3075 = vmul.f32 %v3035, %v3073
        %v3076 = vmul.f32 %v3036, %v3074
        %3077 = vst.msk [vmem:[#allocation3] sm:$0xff] %vm2072, %v3075
        %3078 = vst.msk [vmem:[#allocation3 + $0x8] sm:$0xff] %vm2072, %v3076
        %s3079 = scalar_lea.vmem %s1, 8
        %v3080 = vld [vmem:[%s3079] sm:$0xff]
        %v3082 = vrot.slane %v3080, 7
        %v3084 = vsel %vm1445, 0.0, %v3082
        %v3085 = vsel %vm1445, %v3082, 0.0
        %v3086 = vpack.c.bf16 %v3084, %v3084
        %v3087 = vpack.c.bf16 %v3085, %v3085
        %v3088 = vld [vmem:[%s13] sm:$0x1]
        %v3089 = vld [vmem:[%s11] sm:$0x3]
        %v3091 = vsel %vm1452, %v3086, 0
        %v3094 = vand.u32 %v3089, %v1458
        %3096 = vmatpush.bf16.msra.mxu0 0
        %3097 = vmatpush.bf16.msra.mxu0 0
        %3098 = vmatpush.bf16.msra.mxu0 0
        %3099 = vmatpush.bf16.msra.mxu0 0
        %3100 = vmatpush.bf16.msra.mxu0 0
        %3101 = vmatpush.bf16.msra.mxu0 0
        %3102 = vmatpush.bf16.msra.mxu0 0
        %3103 = vmatpush.bf16.msra.mxu0 %v3094
        %3104 = vmatmul.bf16.gmra.mxu0 %v3091
        %v3105 = vpop.f32.mrf.mxu0
        %v3106 = vadd.f32 0.0, %v3105
        %v3107 = vpop.f32.mrf.mxu0
        %3108 = vdwg.mxu0
        %v3110 = vperm.slane %v3088, 0
        %v3112 = vadd.f32 %v3110, %v3106
        %v3113 = vld [vmem:[%s1479] sm:$0x3]
        %v3116 = vunpack.c.l.b16 %v3086
        %v3117 = vunpack.c.l.b16 %v3087
        %v3118 = vpack.c.b16 %v3117, %v3116
        %v3120 = vshrl.u32 %v3118, 16
        %v3122 = vshll.u32 %v3118, 16
        %v3124 = vrot.slane %v3122, 1
        %v3125 = vor.u32 %v3120, %v3124
        %v3127 = vsel %vm1452, %v3125, 0
        %v3130 = vand.u32 %v3113, %v1458
        %3132 = vmatpush.bf16.msra.mxu0 0
        %3133 = vmatpush.bf16.msra.mxu0 0
        %3134 = vmatpush.bf16.msra.mxu0 0
        %3135 = vmatpush.bf16.msra.mxu0 0
        %3136 = vmatpush.bf16.msra.mxu0 0
        %3137 = vmatpush.bf16.msra.mxu0 0
        %3138 = vmatpush.bf16.msra.mxu0 0
        %3139 = vmatpush.bf16.msra.mxu0 %v3130
        %3140 = vmatmul.bf16.gmra.mxu0 %v3127
        %v3141 = vpop.f32.mrf.mxu0
        %v3142 = vadd.f32 0.0, %v3141
        %v3143 = vpop.f32.mrf.mxu0
        %3144 = vdwg.mxu0
        %v3145 = vadd.f32 %v3112, %v3142
        %v3146 = vld [vmem:[%s1513] sm:$0x3]
        %v3147 = vrot.slane %v3118, 1
        %v3149 = vsel %vm1452, %v3147, 0
        %v3152 = vand.u32 %v3146, %v1458
        %3154 = vmatpush.bf16.msra.mxu0 0
        %3155 = vmatpush.bf16.msra.mxu0 0
        %3156 = vmatpush.bf16.msra.mxu0 0
        %3157 = vmatpush.bf16.msra.mxu0 0
        %3158 = vmatpush.bf16.msra.mxu0 0
        %3159 = vmatpush.bf16.msra.mxu0 0
        %3160 = vmatpush.bf16.msra.mxu0 0
        %3161 = vmatpush.bf16.msra.mxu0 %v3152
        %3162 = vmatmul.bf16.gmra.mxu0 %v3149
        %v3163 = vpop.f32.mrf.mxu0
        %v3164 = vadd.f32 0.0, %v3163
        %v3165 = vpop.f32.mrf.mxu0
        %3166 = vdwg.mxu0
        %v3167 = vadd.f32 %v3145, %v3164
        %v3168 = vmax.f32 %v3167, 0.0
        %vm3169 = vcmp.ne.f32.partialorder %v3167, %v3167
        %v3170 = vadd.f32 %v3167, 0.0
        %v3171 = vand.u32 2147483647, %v3167
        %v3172 = vsub.f32 0.0, %v3171
        %v3173 = vmul.f32 %v3172, 1.442695
        %v3174 = vpow.pop %v3173
        %v3175 = vadd.f32 %v3174, 1.0
        %v3176 = vlog2.pop %v3175
        %v3177 = vmul.f32 %v3176, 0.6931472
        %v3178 = vmul.f32 -0.5, %v3174
        %v3179 = vadd.f32 %v3178, 1.0
        %v3180 = vmul.f32 %v3179, %v3174
        %v3181 = vand.u32 2147483647, %v3174
        %vm3182 = vcmp.lt.f32.partialorder %v3181, 0.0004427343
        %v3183 = vsel %vm3182, %v3180, %v3177
        %v3184 = vadd.f32 %v3168, %v3183
        %v3185 = vsel %vm3169, %v3170, %v3184
        %v3186 = vtanh.pop %v3185
        %v3187 = vmul.f32 %v3167, %v3186
        %v3189 = vrot.slane %v3187, 6
        %v3191 = vsel %vm1456, 0.0, %v3189
        %v3192 = vsel %vm1456, %v3189, 0.0
        %v3193 = vpack.c.bf16 %v3191, %v3191
        %v3194 = vpack.c.bf16 %v3192, %v3192
        %v3195 = vld [vmem:[%s17] sm:$0x1]
        %v3196 = vld [vmem:[%s15] sm:$0xf]
        %v3197 = vld [vmem:[%s15 + $0x4] sm:$0xf]
        %v3198 = vld [vmem:[%s15 + $0x8] sm:$0xf]
        %v3199 = vld [vmem:[%s15 + $0xc] sm:$0xf]
        %v3200 = vld [vmem:[%s15 + $0x10] sm:$0xf]
        %v3201 = vld [vmem:[%s15 + $0x14] sm:$0xf]
        %v3202 = vld [vmem:[%s15 + $0x18] sm:$0xf]
        %v3203 = vld [vmem:[%s15 + $0x1c] sm:$0xf]
        %v3212 = vunpack.c.l.b16 %v3196
        %v3213 = vunpack.c.l.b16 %v3197
        %v3214 = vunpack.c.l.b16 %v3198
        %v3215 = vunpack.c.l.b16 %v3199
        %v3216 = vunpack.c.l.b16 %v3200
        %v3217 = vunpack.c.l.b16 %v3201
        %v3218 = vunpack.c.l.b16 %v3202
        %v3219 = vunpack.c.l.b16 %v3203
        %v3220 = vpack.c.b16 %v3213, %v3212
        %v3221 = vpack.c.b16 %v3215, %v3214
        %v3222 = vpack.c.b16 %v3217, %v3216
        %v3223 = vpack.c.b16 %v3219, %v3218
        %v3229 = vsel %vm1596, %v3193, 0
        %3231 = vmatpush.bf16.msra.mxu0 0
        %3232 = vmatpush.bf16.msra.mxu0 0
        %3233 = vmatpush.bf16.msra.mxu0 0
        %3234 = vmatpush.bf16.msra.mxu0 0
        %3235 = vmatpush.bf16.msra.mxu0 %v3223
        %3236 = vmatpush.bf16.msra.mxu0 %v3222
        %3237 = vmatpush.bf16.msra.mxu0 %v3221
        %3238 = vmatpush.bf16.msra.mxu0 %v3220
        %3239 = vmatmul.bf16.gmra.mxu0 %v3229
        %v3240 = vpop.f32.mrf.mxu0
        %v3241 = vadd.f32 0.0, %v3240
        %v3242 = vpop.f32.mrf.mxu0
        %3243 = vdwg.mxu0
        %v3245 = vperm.slane %v3195, 0
        %v3247 = vadd.f32 %v3245, %v3241
        %v3248 = vld [vmem:[%s1617] sm:$0xf]
        %v3249 = vld [vmem:[%s1617 + $0x4] sm:$0xf]
        %v3250 = vld [vmem:[%s1617 + $0x8] sm:$0xf]
        %v3251 = vld [vmem:[%s1617 + $0xc] sm:$0xf]
        %v3252 = vld [vmem:[%s1617 + $0x10] sm:$0xf]
        %v3253 = vld [vmem:[%s1617 + $0x14] sm:$0xf]
        %v3254 = vld [vmem:[%s1617 + $0x18] sm:$0xf]
        %v3255 = vld [vmem:[%s1617 + $0x1c] sm:$0xf]
        %v3258 = vunpack.c.l.b16 %v3193
        %v3259 = vunpack.c.l.b16 %v3194
        %v3260 = vpack.c.b16 %v3259, %v3258
        %v3261 = vrot.slane %v3260, 1
        %v3270 = vunpack.c.l.b16 %v3248
        %v3271 = vunpack.c.l.b16 %v3249
        %v3272 = vunpack.c.l.b16 %v3250
        %v3273 = vunpack.c.l.b16 %v3251
        %v3274 = vunpack.c.l.b16 %v3252
        %v3275 = vunpack.c.l.b16 %v3253
        %v3276 = vunpack.c.l.b16 %v3254
        %v3277 = vunpack.c.l.b16 %v3255
        %v3278 = vpack.c.b16 %v3271, %v3270
        %v3279 = vpack.c.b16 %v3273, %v3272
        %v3280 = vpack.c.b16 %v3275, %v3274
        %v3281 = vpack.c.b16 %v3277, %v3276
        %v3287 = vsel %vm1596, %v3261, 0
        %3289 = vmatpush.bf16.msra.mxu0 0
        %3290 = vmatpush.bf16.msra.mxu0 0
        %3291 = vmatpush.bf16.msra.mxu0 0
        %3292 = vmatpush.bf16.msra.mxu0 0
        %3293 = vmatpush.bf16.msra.mxu0 %v3281
        %3294 = vmatpush.bf16.msra.mxu0 %v3280
        %3295 = vmatpush.bf16.msra.mxu0 %v3279
        %3296 = vmatpush.bf16.msra.mxu0 %v3278
        %3297 = vmatmul.bf16.gmra.mxu0 %v3287
        %v3298 = vpop.f32.mrf.mxu0
        %v3299 = vadd.f32 0.0, %v3298
        %v3300 = vpop.f32.mrf.mxu0
        %3301 = vdwg.mxu0
        %v3302 = vadd.f32 %v3247, %v3299
        %v3303 = vld [vmem:[%s1673] sm:$0xf]
        %v3304 = vld [vmem:[%s1673 + $0x4] sm:$0xf]
        %v3305 = vld [vmem:[%s1673 + $0x8] sm:$0xf]
        %v3306 = vld [vmem:[%s1673 + $0xc] sm:$0xf]
        %v3307 = vld [vmem:[%s1673 + $0x10] sm:$0xf]
        %v3308 = vld [vmem:[%s1673 + $0x14] sm:$0xf]
        %v3309 = vld [vmem:[%s1673 + $0x18] sm:$0xf]
        %v3310 = vld [vmem:[%s1673 + $0x1c] sm:$0xf]
        %v3311 = vrot.slane %v3260, 2
        %v3320 = vunpack.c.l.b16 %v3303
        %v3321 = vunpack.c.l.b16 %v3304
        %v3322 = vunpack.c.l.b16 %v3305
        %v3323 = vunpack.c.l.b16 %v3306
        %v3324 = vunpack.c.l.b16 %v3307
        %v3325 = vunpack.c.l.b16 %v3308
        %v3326 = vunpack.c.l.b16 %v3309
        %v3327 = vunpack.c.l.b16 %v3310
        %v3328 = vpack.c.b16 %v3321, %v3320
        %v3329 = vpack.c.b16 %v3323, %v3322
        %v3330 = vpack.c.b16 %v3325, %v3324
        %v3331 = vpack.c.b16 %v3327, %v3326
        %v3337 = vsel %vm1596, %v3311, 0
        %3339 = vmatpush.bf16.msra.mxu0 0
        %3340 = vmatpush.bf16.msra.mxu0 0
        %3341 = vmatpush.bf16.msra.mxu0 0
        %3342 = vmatpush.bf16.msra.mxu0 0
        %3343 = vmatpush.bf16.msra.mxu0 %v3331
        %3344 = vmatpush.bf16.msra.mxu0 %v3330
        %3345 = vmatpush.bf16.msra.mxu0 %v3329
        %3346 = vmatpush.bf16.msra.mxu0 %v3328
        %3347 = vmatmul.bf16.gmra.mxu0 %v3337
        %v3348 = vpop.f32.mrf.mxu0
        %v3349 = vadd.f32 0.0, %v3348
        %v3350 = vpop.f32.mrf.mxu0
        %3351 = vdwg.mxu0
        %v3352 = vadd.f32 %v3302, %v3349
        %v3353 = vmax.f32 %v3352, 0.0
        %vm3354 = vcmp.ne.f32.partialorder %v3352, %v3352
        %v3355 = vadd.f32 %v3352, 0.0
        %v3356 = vand.u32 2147483647, %v3352
        %v3357 = vsub.f32 0.0, %v3356
        %v3358 = vmul.f32 %v3357, 1.442695
        %v3359 = vpow.pop %v3358
        %v3360 = vadd.f32 %v3359, 1.0
        %v3361 = vlog2.pop %v3360
        %v3362 = vmul.f32 %v3361, 0.6931472
        %v3363 = vmul.f32 -0.5, %v3359
        %v3364 = vadd.f32 %v3363, 1.0
        %v3365 = vmul.f32 %v3364, %v3359
        %v3366 = vand.u32 2147483647, %v3359
        %vm3367 = vcmp.lt.f32.partialorder %v3366, 0.0004427343
        %v3368 = vsel %vm3367, %v3365, %v3362
        %v3369 = vadd.f32 %v3353, %v3368
        %v3370 = vsel %vm3354, %v3355, %v3369
        %v3371 = vtanh.pop %v3370
        %v3372 = vmul.f32 %v3352, %v3371
        %s3373 = scalar_lea.vmem %s3, 4
        %v3374 = vld [vmem:[%s3373] sm:$0xf]
        %v3376 = vrot.slane %v3374, 7
        %v3378 = vsel %vm1445, 0.0, %v3376
        %v3379 = vsel %vm1749, %v3378, 0.0
        %v3380 = vpack.c.bf16 %v3379, %v3379
        %v3381 = vld [vmem:[%s21] sm:$0x1]
        %v3382 = vld [vmem:[%s19] sm:$0x3]
        %v3384 = vsel %vm1452, %v3380, 0
        %v3387 = vand.u32 %v3382, %v1458
        %3389 = vmatpush.bf16.msra.mxu0 0
        %3390 = vmatpush.bf16.msra.mxu0 0
        %3391 = vmatpush.bf16.msra.mxu0 0
        %3392 = vmatpush.bf16.msra.mxu0 0
        %3393 = vmatpush.bf16.msra.mxu0 0
        %3394 = vmatpush.bf16.msra.mxu0 0
        %3395 = vmatpush.bf16.msra.mxu0 0
        %3396 = vmatpush.bf16.msra.mxu0 %v3387
        %3397 = vmatmul.bf16.gmra.mxu0 %v3384
        %v3398 = vpop.f32.mrf.mxu0
        %v3399 = vadd.f32 0.0, %v3398
        %v3400 = vpop.f32.mrf.mxu0
        %3401 = vdwg.mxu0
        %v3403 = vperm.slane %v3381, 0
        %v3405 = vadd.f32 %v3403, %v3399
        %v3406 = vld [vmem:[%s1777] sm:$0x3]
        %v3408 = vunpack.c.l.b16 %v3380
        %v3409 = vpack.c.b16 %v3408, %v3408
        %v3411 = vshrl.u32 %v3409, 16
        %v3413 = vshll.u32 %v3409, 16
        %v3415 = vrot.slane %v3413, 1
        %v3416 = vor.u32 %v3411, %v3415
        %v3418 = vsel %vm1452, %v3416, 0
        %v3421 = vand.u32 %v3406, %v1458
        %3423 = vmatpush.bf16.msra.mxu0 0
        %3424 = vmatpush.bf16.msra.mxu0 0
        %3425 = vmatpush.bf16.msra.mxu0 0
        %3426 = vmatpush.bf16.msra.mxu0 0
        %3427 = vmatpush.bf16.msra.mxu0 0
        %3428 = vmatpush.bf16.msra.mxu0 0
        %3429 = vmatpush.bf16.msra.mxu0 0
        %3430 = vmatpush.bf16.msra.mxu0 %v3421
        %3431 = vmatmul.bf16.gmra.mxu0 %v3418
        %v3432 = vpop.f32.mrf.mxu0
        %v3433 = vadd.f32 0.0, %v3432
        %v3434 = vpop.f32.mrf.mxu0
        %3435 = vdwg.mxu0
        %v3436 = vadd.f32 %v3405, %v3433
        %v3437 = vld [vmem:[%s1809] sm:$0x3]
        %v3438 = vrot.slane %v3409, 1
        %v3440 = vsel %vm1452, %v3438, 0
        %v3443 = vand.u32 %v3437, %v1458
        %3445 = vmatpush.bf16.msra.mxu0 0
        %3446 = vmatpush.bf16.msra.mxu0 0
        %3447 = vmatpush.bf16.msra.mxu0 0
        %3448 = vmatpush.bf16.msra.mxu0 0
        %3449 = vmatpush.bf16.msra.mxu0 0
        %3450 = vmatpush.bf16.msra.mxu0 0
        %3451 = vmatpush.bf16.msra.mxu0 0
        %3452 = vmatpush.bf16.msra.mxu0 %v3443
        %3453 = vmatmul.bf16.gmra.mxu0 %v3440
        %v3454 = vpop.f32.mrf.mxu0
        %v3455 = vadd.f32 0.0, %v3454
        %v3456 = vpop.f32.mrf.mxu0
        %3457 = vdwg.mxu0
        %v3458 = vadd.f32 %v3436, %v3455
        %v3459 = vmax.f32 %v3458, 0.0
        %vm3460 = vcmp.ne.f32.partialorder %v3458, %v3458
        %v3461 = vadd.f32 %v3458, 0.0
        %v3462 = vand.u32 2147483647, %v3458
        %v3463 = vsub.f32 0.0, %v3462
        %v3464 = vmul.f32 %v3463, 1.442695
        %v3465 = vpow.pop %v3464
        %v3466 = vadd.f32 %v3465, 1.0
        %v3467 = vlog2.pop %v3466
        %v3468 = vmul.f32 %v3467, 0.6931472
        %v3469 = vmul.f32 -0.5, %v3465
        %v3470 = vadd.f32 %v3469, 1.0
        %v3471 = vmul.f32 %v3470, %v3465
        %v3472 = vand.u32 2147483647, %v3465
        %vm3473 = vcmp.lt.f32.partialorder %v3472, 0.0004427343
        %v3474 = vsel %vm3473, %v3471, %v3468
        %v3475 = vadd.f32 %v3459, %v3474
        %v3476 = vsel %vm3460, %v3461, %v3475
        %v3477 = vtanh.pop %v3476
        %v3478 = vmul.f32 %v3458, %v3477
        %v3480 = vrot.slane %v3478, 5
        %v3482 = vsel %vm1855, 0.0, %v3480
        %v3483 = vsel %vm1857, %v3482, 0.0
        %v3484 = vpack.c.bf16 %v3483, %v3483
        %v3485 = vld [vmem:[%s25] sm:$0x1]
        %v3486 = vld [vmem:[%s23] sm:$0xf]
        %v3487 = vld [vmem:[%s23 + $0x4] sm:$0xf]
        %v3488 = vld [vmem:[%s23 + $0x8] sm:$0xf]
        %v3489 = vld [vmem:[%s23 + $0xc] sm:$0xf]
        %v3490 = vld [vmem:[%s23 + $0x10] sm:$0xf]
        %v3491 = vld [vmem:[%s23 + $0x14] sm:$0xf]
        %v3492 = vld [vmem:[%s23 + $0x18] sm:$0xf]
        %v3493 = vld [vmem:[%s23 + $0x1c] sm:$0xf]
        %v3502 = vunpack.c.l.b16 %v3486
        %v3503 = vunpack.c.l.b16 %v3487
        %v3504 = vunpack.c.l.b16 %v3488
        %v3505 = vunpack.c.l.b16 %v3489
        %v3506 = vunpack.c.l.b16 %v3490
        %v3507 = vunpack.c.l.b16 %v3491
        %v3508 = vunpack.c.l.b16 %v3492
        %v3509 = vunpack.c.l.b16 %v3493
        %v3510 = vpack.c.b16 %v3503, %v3502
        %v3511 = vpack.c.b16 %v3505, %v3504
        %v3512 = vpack.c.b16 %v3507, %v3506
        %v3513 = vpack.c.b16 %v3509, %v3508
        %v3519 = vsel %vm1596, %v3484, 0
        %3521 = vmatpush.bf16.msra.mxu0 0
        %3522 = vmatpush.bf16.msra.mxu0 0
        %3523 = vmatpush.bf16.msra.mxu0 0
        %3524 = vmatpush.bf16.msra.mxu0 0
        %3525 = vmatpush.bf16.msra.mxu0 %v3513
        %3526 = vmatpush.bf16.msra.mxu0 %v3512
        %3527 = vmatpush.bf16.msra.mxu0 %v3511
        %3528 = vmatpush.bf16.msra.mxu0 %v3510
        %3529 = vmatmul.bf16.gmra.mxu0 %v3519
        %v3530 = vpop.f32.mrf.mxu0
        %v3531 = vadd.f32 0.0, %v3530
        %v3532 = vpop.f32.mrf.mxu0
        %3533 = vdwg.mxu0
        %v3535 = vperm.slane %v3485, 0
        %v3537 = vadd.f32 %v3535, %v3531
        %v3538 = vld [vmem:[%s1914] sm:$0xf]
        %v3539 = vld [vmem:[%s1914 + $0x4] sm:$0xf]
        %v3540 = vld [vmem:[%s1914 + $0x8] sm:$0xf]
        %v3541 = vld [vmem:[%s1914 + $0xc] sm:$0xf]
        %v3542 = vld [vmem:[%s1914 + $0x10] sm:$0xf]
        %v3543 = vld [vmem:[%s1914 + $0x14] sm:$0xf]
        %v3544 = vld [vmem:[%s1914 + $0x18] sm:$0xf]
        %v3545 = vld [vmem:[%s1914 + $0x1c] sm:$0xf]
        %v3547 = vunpack.c.l.b16 %v3484
        %v3548 = vpack.c.b16 %v3547, %v3547
        %v3550 = vshrl.u32 %v3548, 16
        %v3552 = vrot.slane %v3550, 1
        %v3553 = vshll.u32 %v3548, 16
        %v3555 = vrot.slane %v3553, 2
        %v3556 = vor.u32 %v3552, %v3555
        %v3565 = vunpack.c.l.b16 %v3538
        %v3566 = vunpack.c.l.b16 %v3539
        %v3567 = vunpack.c.l.b16 %v3540
        %v3568 = vunpack.c.l.b16 %v3541
        %v3569 = vunpack.c.l.b16 %v3542
        %v3570 = vunpack.c.l.b16 %v3543
        %v3571 = vunpack.c.l.b16 %v3544
        %v3572 = vunpack.c.l.b16 %v3545
        %v3573 = vpack.c.b16 %v3566, %v3565
        %v3574 = vpack.c.b16 %v3568, %v3567
        %v3575 = vpack.c.b16 %v3570, %v3569
        %v3576 = vpack.c.b16 %v3572, %v3571
        %v3582 = vsel %vm1596, %v3556, 0
        %3584 = vmatpush.bf16.msra.mxu0 0
        %3585 = vmatpush.bf16.msra.mxu0 0
        %3586 = vmatpush.bf16.msra.mxu0 0
        %3587 = vmatpush.bf16.msra.mxu0 0
        %3588 = vmatpush.bf16.msra.mxu0 %v3576
        %3589 = vmatpush.bf16.msra.mxu0 %v3575
        %3590 = vmatpush.bf16.msra.mxu0 %v3574
        %3591 = vmatpush.bf16.msra.mxu0 %v3573
        %3592 = vmatmul.bf16.gmra.mxu0 %v3582
        %v3593 = vpop.f32.mrf.mxu0
        %v3594 = vadd.f32 0.0, %v3593
        %v3595 = vpop.f32.mrf.mxu0
        %3596 = vdwg.mxu0
        %v3597 = vadd.f32 %v3537, %v3594
        %v3598 = vld [vmem:[%s1975] sm:$0xf]
        %v3599 = vld [vmem:[%s1975 + $0x4] sm:$0xf]
        %v3600 = vld [vmem:[%s1975 + $0x8] sm:$0xf]
        %v3601 = vld [vmem:[%s1975 + $0xc] sm:$0xf]
        %v3602 = vld [vmem:[%s1975 + $0x10] sm:$0xf]
        %v3603 = vld [vmem:[%s1975 + $0x14] sm:$0xf]
        %v3604 = vld [vmem:[%s1975 + $0x18] sm:$0xf]
        %v3605 = vld [vmem:[%s1975 + $0x1c] sm:$0xf]
        %v3606 = vpack.c.b16 %v1985, %v3547
        %v3607 = vrot.slane %v3606, 3
        %v3616 = vunpack.c.l.b16 %v3598
        %v3617 = vunpack.c.l.b16 %v3599
        %v3618 = vunpack.c.l.b16 %v3600
        %v3619 = vunpack.c.l.b16 %v3601
        %v3620 = vunpack.c.l.b16 %v3602
        %v3621 = vunpack.c.l.b16 %v3603
        %v3622 = vunpack.c.l.b16 %v3604
        %v3623 = vunpack.c.l.b16 %v3605
        %v3624 = vpack.c.b16 %v3617, %v3616
        %v3625 = vpack.c.b16 %v3619, %v3618
        %v3626 = vpack.c.b16 %v3621, %v3620
        %v3627 = vpack.c.b16 %v3623, %v3622
        %v3633 = vsel %vm1596, %v3607, 0
        %3635 = vmatpush.bf16.msra.mxu0 0
        %3636 = vmatpush.bf16.msra.mxu0 0
        %3637 = vmatpush.bf16.msra.mxu0 0
        %3638 = vmatpush.bf16.msra.mxu0 0
        %3639 = vmatpush.bf16.msra.mxu0 %v3627
        %3640 = vmatpush.bf16.msra.mxu0 %v3626
        %3641 = vmatpush.bf16.msra.mxu0 %v3625
        %3642 = vmatpush.bf16.msra.mxu0 %v3624
        %3643 = vmatmul.bf16.gmra.mxu0 %v3633
        %v3644 = vpop.f32.mrf.mxu0
        %v3645 = vadd.f32 0.0, %v3644
        %v3646 = vpop.f32.mrf.mxu0
        %3647 = vdwg.mxu0
        %v3648 = vadd.f32 %v3597, %v3645
        %v3649 = vmax.f32 %v3648, 0.0
        %vm3650 = vcmp.ne.f32.partialorder %v3648, %v3648
        %v3651 = vadd.f32 %v3648, 0.0
        %v3652 = vand.u32 2147483647, %v3648
        %v3653 = vsub.f32 0.0, %v3652
        %v3654 = vmul.f32 %v3653, 1.442695
        %v3655 = vpow.pop %v3654
        %v3656 = vadd.f32 %v3655, 1.0
        %v3657 = vlog2.pop %v3656
        %v3658 = vmul.f32 %v3657, 0.6931472
        %v3659 = vmul.f32 -0.5, %v3655
        %v3660 = vadd.f32 %v3659, 1.0
        %v3661 = vmul.f32 %v3660, %v3655
        %v3662 = vand.u32 2147483647, %v3655
        %vm3663 = vcmp.lt.f32.partialorder %v3662, 0.0004427343
        %v3664 = vsel %vm3663, %v3661, %v3658
        %v3665 = vadd.f32 %v3649, %v3664
        %v3666 = vsel %vm3650, %v3651, %v3665
        %v3667 = vtanh.pop %v3666
        %v3668 = vmul.f32 %v3648, %v3667
        %v3670 = vrot.slane %v3668, 5
        %v3672 = vsel %vm1855, 0.0, %v3670
        %v3673 = vsel %vm1857, %v3672, 0.0
        %v3674 = vpack.c.bf16 %v3673, %v3673
        %v3675 = vld [vmem:[%s29] sm:$0x1]
        %v3676 = vld [vmem:[%s27] sm:$0xf]
        %v3677 = vld [vmem:[%s27 + $0x4] sm:$0xf]
        %v3678 = vld [vmem:[%s27 + $0x8] sm:$0xf]
        %v3679 = vld [vmem:[%s27 + $0xc] sm:$0xf]
        %v3684 = vunpack.c.l.b16 %v3676
        %v3685 = vunpack.c.l.b16 %v3677
        %v3686 = vunpack.c.l.b16 %v3678
        %v3687 = vunpack.c.l.b16 %v3679
        %v3688 = vpack.c.b16 %v3685, %v3684
        %v3689 = vpack.c.b16 %v3687, %v3686
        %v3693 = vsel %vm2072, %v3674, 0
        %3695 = vmatpush.bf16.msra.mxu0 0
        %3696 = vmatpush.bf16.msra.mxu0 0
        %3697 = vmatpush.bf16.msra.mxu0 0
        %3698 = vmatpush.bf16.msra.mxu0 0
        %3699 = vmatpush.bf16.msra.mxu0 0
        %3700 = vmatpush.bf16.msra.mxu0 0
        %3701 = vmatpush.bf16.msra.mxu0 %v3689
        %3702 = vmatpush.bf16.msra.mxu0 %v3688
        %3703 = vmatmul.bf16.gmra.mxu0 %v3693
        %v3704 = vpop.f32.mrf.mxu0
        %v3705 = vadd.f32 0.0, %v3704
        %v3706 = vpop.f32.mrf.mxu0
        %3707 = vdwg.mxu0
        %v3709 = vperm.slane %v3675, 0
        %v3711 = vadd.f32 %v3709, %v3705
        %v3712 = vld [vmem:[%s2093] sm:$0xf]
        %v3713 = vld [vmem:[%s2093 + $0x4] sm:$0xf]
        %v3714 = vld [vmem:[%s2093 + $0x8] sm:$0xf]
        %v3715 = vld [vmem:[%s2093 + $0xc] sm:$0xf]
        %v3717 = vunpack.c.l.b16 %v3674
        %v3718 = vpack.c.b16 %v3717, %v3717
        %v3720 = vshrl.u32 %v3718, 16
        %v3722 = vrot.slane %v3720, 1
        %v3723 = vshll.u32 %v3718, 16
        %v3725 = vrot.slane %v3723, 2
        %v3726 = vor.u32 %v3722, %v3725
        %v3731 = vunpack.c.l.b16 %v3712
        %v3732 = vunpack.c.l.b16 %v3713
        %v3733 = vunpack.c.l.b16 %v3714
        %v3734 = vunpack.c.l.b16 %v3715
        %v3735 = vpack.c.b16 %v3732, %v3731
        %v3736 = vpack.c.b16 %v3734, %v3733
        %v3740 = vsel %vm2072, %v3726, 0
        %3742 = vmatpush.bf16.msra.mxu0 0
        %3743 = vmatpush.bf16.msra.mxu0 0
        %3744 = vmatpush.bf16.msra.mxu0 0
        %3745 = vmatpush.bf16.msra.mxu0 0
        %3746 = vmatpush.bf16.msra.mxu0 0
        %3747 = vmatpush.bf16.msra.mxu0 0
        %3748 = vmatpush.bf16.msra.mxu0 %v3736
        %3749 = vmatpush.bf16.msra.mxu0 %v3735
        %3750 = vmatmul.bf16.gmra.mxu0 %v3740
        %v3751 = vpop.f32.mrf.mxu0
        %v3752 = vadd.f32 0.0, %v3751
        %v3753 = vpop.f32.mrf.mxu0
        %3754 = vdwg.mxu0
        %v3755 = vadd.f32 %v3711, %v3752
        %v3756 = vld [vmem:[%s2138] sm:$0xf]
        %v3757 = vld [vmem:[%s2138 + $0x4] sm:$0xf]
        %v3758 = vld [vmem:[%s2138 + $0x8] sm:$0xf]
        %v3759 = vld [vmem:[%s2138 + $0xc] sm:$0xf]
        %v3760 = vpack.c.b16 %v1985, %v3717
        %v3761 = vrot.slane %v3760, 3
        %v3766 = vunpack.c.l.b16 %v3756
        %v3767 = vunpack.c.l.b16 %v3757
        %v3768 = vunpack.c.l.b16 %v3758
        %v3769 = vunpack.c.l.b16 %v3759
        %v3770 = vpack.c.b16 %v3767, %v3766
        %v3771 = vpack.c.b16 %v3769, %v3768
        %v3775 = vsel %vm2072, %v3761, 0
        %3777 = vmatpush.bf16.msra.mxu0 0
        %3778 = vmatpush.bf16.msra.mxu0 0
        %3779 = vmatpush.bf16.msra.mxu0 0
        %3780 = vmatpush.bf16.msra.mxu0 0
        %3781 = vmatpush.bf16.msra.mxu0 0
        %3782 = vmatpush.bf16.msra.mxu0 0
        %3783 = vmatpush.bf16.msra.mxu0 %v3771
        %3784 = vmatpush.bf16.msra.mxu0 %v3770
        %3785 = vmatmul.bf16.gmra.mxu0 %v3775
        %v3786 = vpop.f32.mrf.mxu0
        %v3787 = vadd.f32 0.0, %v3786
        %v3788 = vpop.f32.mrf.mxu0
        %3789 = vdwg.mxu0
        %v3790 = vadd.f32 %v3755, %v3787
        %v3791 = vmax.f32 %v3790, 0.0
        %vm3792 = vcmp.ne.f32.partialorder %v3790, %v3790
        %v3793 = vadd.f32 %v3790, 0.0
        %v3794 = vand.u32 2147483647, %v3790
        %v3795 = vsub.f32 0.0, %v3794
        %v3796 = vmul.f32 %v3795, 1.442695
        %v3797 = vpow.pop %v3796
        %v3798 = vadd.f32 %v3797, 1.0
        %v3799 = vlog2.pop %v3798
        %v3800 = vmul.f32 %v3799, 0.6931472
        %v3801 = vmul.f32 -0.5, %v3797
        %v3802 = vadd.f32 %v3801, 1.0
        %v3803 = vmul.f32 %v3802, %v3797
        %v3804 = vand.u32 2147483647, %v3797
        %vm3805 = vcmp.lt.f32.partialorder %v3804, 0.0004427343
        %v3806 = vsel %vm3805, %v3803, %v3800
        %v3807 = vadd.f32 %v3791, %v3806
        %v3808 = vsel %vm3792, %v3793, %v3807
        %v3809 = vtanh.pop %v3808
        %v3810 = vmul.f32 %v3790, %v3809
        %s3811 = scalar_lea.vmem %s7, 16
        %v3812 = vld [vmem:[%s3811] sm:$0xff]
        %v3813 = vld [vmem:[%s3811 + $0x8] sm:$0xff]
        %v3814 = vld [vmem:[%s31] sm:$0x3]
        %v3815 = vpack.c.bf16 %v3813, %v3812
        %v3816 = vld [vmem:[%s33] sm:$0x1]
        %v3818 = vperm.slane %v3816, 0
        %v3821 = vsel %vm1452, %v3815, 0
        %v3824 = vand.u32 %v3814, %v1458
        %3826 = vmatpush.bf16.msra.mxu0 0
        %3827 = vmatpush.bf16.msra.mxu0 0
        %3828 = vmatpush.bf16.msra.mxu0 0
        %3829 = vmatpush.bf16.msra.mxu0 0
        %3830 = vmatpush.bf16.msra.mxu0 0
        %3831 = vmatpush.bf16.msra.mxu0 0
        %3832 = vmatpush.bf16.msra.mxu0 0
        %3833 = vmatpush.bf16.msra.mxu0 %v3824
        %3834 = vmatmul.bf16.gmra.mxu0 %v3821
        %v3835 = vpop.f32.mrf.mxu0
        %v3836 = vadd.f32 %v3818, %v3835
        %v3837 = vpop.f32.mrf.mxu0
        %v3838 = vadd.f32 %v3818, %v3837
        %3839 = vdwg.mxu0
        %v3840 = vmax.f32 %v3836, 0.0
        %v3841 = vmax.f32 %v3838, 0.0
        %vm3842 = vcmp.ne.f32.partialorder %v3836, %v3836
        %vm3843 = vcmp.ne.f32.partialorder %v3838, %v3838
        %v3844 = vadd.f32 %v3836, 0.0
        %v3845 = vadd.f32 %v3838, 0.0
        %v3846 = vand.u32 2147483647, %v3836
        %v3847 = vand.u32 2147483647, %v3838
        %v3848 = vsub.f32 0.0, %v3846
        %v3849 = vsub.f32 0.0, %v3847
        %v3850 = vmul.f32 %v3848, 1.442695
        %v3851 = vpow.pop %v3850
        %v3852 = vmul.f32 %v3849, 1.442695
        %v3853 = vpow.pop %v3852
        %v3854 = vadd.f32 %v3851, 1.0
        %v3855 = vlog2.pop %v3854
        %v3856 = vmul.f32 %v3855, 0.6931472
        %v3857 = vmul.f32 -0.5, %v3851
        %v3858 = vadd.f32 %v3857, 1.0
        %v3859 = vmul.f32 %v3858, %v3851
        %v3860 = vand.u32 2147483647, %v3851
        %vm3861 = vcmp.lt.f32.partialorder %v3860, 0.0004427343
        %v3862 = vsel %vm3861, %v3859, %v3856
        %v3863 = vadd.f32 %v3853, 1.0
        %v3864 = vlog2.pop %v3863
        %v3865 = vmul.f32 %v3864, 0.6931472
        %v3866 = vmul.f32 -0.5, %v3853
        %v3867 = vadd.f32 %v3866, 1.0
        %v3868 = vmul.f32 %v3867, %v3853
        %v3869 = vand.u32 2147483647, %v3853
        %vm3870 = vcmp.lt.f32.partialorder %v3869, 0.0004427343
        %v3871 = vsel %vm3870, %v3868, %v3865
        %v3872 = vadd.f32 %v3840, %v3862
        %v3873 = vadd.f32 %v3841, %v3871
        %v3874 = vsel %vm3842, %v3844, %v3872
        %v3875 = vsel %vm3843, %v3845, %v3873
        %v3876 = vtanh.pop %v3874
        %v3877 = vtanh.pop %v3875
        %v3878 = vmul.f32 %v3836, %v3876
        %v3879 = vmul.f32 %v3838, %v3877
        %v3880 = vld [vmem:[%s35] sm:$0xf]
        %v3881 = vld [vmem:[%s35 + $0x4] sm:$0xf]
        %v3882 = vld [vmem:[%s35 + $0x8] sm:$0xf]
        %v3883 = vld [vmem:[%s35 + $0xc] sm:$0xf]
        %v3884 = vld [vmem:[%s35 + $0x10] sm:$0xf]
        %v3885 = vld [vmem:[%s35 + $0x14] sm:$0xf]
        %v3886 = vld [vmem:[%s35 + $0x18] sm:$0xf]
        %v3887 = vld [vmem:[%s35 + $0x1c] sm:$0xf]
        %v3888 = vpack.c.bf16 %v3879, %v3878
        %v3889 = vld [vmem:[%s37] sm:$0x1]
        %v3891 = vperm.slane %v3889, 0
        %v3901 = vunpack.c.l.b16 %v3880
        %v3902 = vunpack.c.l.b16 %v3881
        %v3903 = vunpack.c.l.b16 %v3882
        %v3904 = vunpack.c.l.b16 %v3883
        %v3905 = vunpack.c.l.b16 %v3884
        %v3906 = vunpack.c.l.b16 %v3885
        %v3907 = vunpack.c.l.b16 %v3886
        %v3908 = vunpack.c.l.b16 %v3887
        %v3909 = vpack.c.b16 %v3902, %v3901
        %v3910 = vpack.c.b16 %v3904, %v3903
        %v3911 = vpack.c.b16 %v3906, %v3905
        %v3912 = vpack.c.b16 %v3908, %v3907
        %v3918 = vsel %vm1596, %v3888, 0
        %3920 = vmatpush.bf16.msra.mxu0 0
        %3921 = vmatpush.bf16.msra.mxu0 0
        %3922 = vmatpush.bf16.msra.mxu0 0
        %3923 = vmatpush.bf16.msra.mxu0 0
        %3924 = vmatpush.bf16.msra.mxu0 %v3912
        %3925 = vmatpush.bf16.msra.mxu0 %v3911
        %3926 = vmatpush.bf16.msra.mxu0 %v3910
        %3927 = vmatpush.bf16.msra.mxu0 %v3909
        %3928 = vmatmul.bf16.gmra.mxu0 %v3918
        %v3929 = vpop.f32.mrf.mxu0
        %v3930 = vadd.f32 %v3891, %v3929
        %v3931 = vpop.f32.mrf.mxu0
        %v3932 = vadd.f32 %v3891, %v3931
        %3933 = vdwg.mxu0
        %v3934 = vmax.f32 %v3930, 0.0
        %v3935 = vmax.f32 %v3932, 0.0
        %vm3936 = vcmp.ne.f32.partialorder %v3930, %v3930
        %vm3937 = vcmp.ne.f32.partialorder %v3932, %v3932
        %v3938 = vadd.f32 %v3930, 0.0
        %v3939 = vadd.f32 %v3932, 0.0
        %v3940 = vand.u32 2147483647, %v3930
        %v3941 = vand.u32 2147483647, %v3932
        %v3942 = vsub.f32 0.0, %v3940
        %v3943 = vsub.f32 0.0, %v3941
        %v3944 = vmul.f32 %v3942, 1.442695
        %v3945 = vpow.pop %v3944
        %v3946 = vmul.f32 %v3943, 1.442695
        %v3947 = vpow.pop %v3946
        %v3948 = vadd.f32 %v3945, 1.0
        %v3949 = vlog2.pop %v3948
        %v3950 = vmul.f32 %v3949, 0.6931472
        %v3951 = vmul.f32 -0.5, %v3945
        %v3952 = vadd.f32 %v3951, 1.0
        %v3953 = vmul.f32 %v3952, %v3945
        %v3954 = vand.u32 2147483647, %v3945
        %vm3955 = vcmp.lt.f32.partialorder %v3954, 0.0004427343
        %v3956 = vsel %vm3955, %v3953, %v3950
        %v3957 = vadd.f32 %v3947, 1.0
        %v3958 = vlog2.pop %v3957
        %v3959 = vmul.f32 %v3958, 0.6931472
        %v3960 = vmul.f32 -0.5, %v3947
        %v3961 = vadd.f32 %v3960, 1.0
        %v3962 = vmul.f32 %v3961, %v3947
        %v3963 = vand.u32 2147483647, %v3947
        %vm3964 = vcmp.lt.f32.partialorder %v3963, 0.0004427343
        %v3965 = vsel %vm3964, %v3962, %v3959
        %v3966 = vadd.f32 %v3934, %v3956
        %v3967 = vadd.f32 %v3935, %v3965
        %v3968 = vsel %vm3936, %v3938, %v3966
        %v3969 = vsel %vm3937, %v3939, %v3967
        %v3970 = vtanh.pop %v3968
        %v3971 = vtanh.pop %v3969
        %v3972 = vmul.f32 %v3930, %v3970
        %v3973 = vmul.f32 %v3932, %v3971
        %s3974 = scalar_lea.vmem %s9, 1
        %v3975 = vld [vmem:[%s3974] sm:$0x1]
        %v3976 = vld [vmem:[%s39] sm:$0xf]
        %v3977 = vld [vmem:[%s39 + $0x4] sm:$0xf]
        %v3978 = vld [vmem:[%s39 + $0x8] sm:$0xf]
        %v3979 = vld [vmem:[%s39 + $0xc] sm:$0xf]
        %v3980 = vpack.c.bf16 %v3975, %v3975
        %v3981 = vld [vmem:[%s41] sm:$0x1]
        %v3986 = vunpack.c.l.b16 %v3976
        %v3987 = vunpack.c.l.b16 %v3977
        %v3988 = vunpack.c.l.b16 %v3978
        %v3989 = vunpack.c.l.b16 %v3979
        %v3990 = vpack.c.b16 %v3987, %v3986
        %v3991 = vpack.c.b16 %v3989, %v3988
        %v3995 = vsel %vm2072, %v3980, 0
        %3997 = vmatpush.bf16.msra.mxu0 0
        %3998 = vmatpush.bf16.msra.mxu0 0
        %3999 = vmatpush.bf16.msra.mxu0 0
        %4000 = vmatpush.bf16.msra.mxu0 0
        %4001 = vmatpush.bf16.msra.mxu0 0
        %4002 = vmatpush.bf16.msra.mxu0 0
        %4003 = vmatpush.bf16.msra.mxu0 %v3991
        %4004 = vmatpush.bf16.msra.mxu0 %v3990
        %4005 = vmatmul.bf16.gmra.mxu0 %v3995
        %v4006 = vpop.f32.mrf.mxu0
        %v4007 = vadd.f32 %v3981, %v4006
        %v4008 = vpop.f32.mrf.mxu0
        %4009 = vdwg.mxu0
        %v4010 = vmax.f32 %v4007, 0.0
        %vm4011 = vcmp.ne.f32.partialorder %v4007, %v4007
        %v4012 = vadd.f32 %v4007, 0.0
        %v4013 = vand.u32 2147483647, %v4007
        %v4014 = vsub.f32 0.0, %v4013
        %v4015 = vmul.f32 %v4014, 1.442695
        %v4016 = vpow.pop %v4015
        %v4017 = vadd.f32 %v4016, 1.0
        %v4018 = vlog2.pop %v4017
        %v4019 = vmul.f32 %v4018, 0.6931472
        %v4020 = vmul.f32 -0.5, %v4016
        %v4021 = vadd.f32 %v4020, 1.0
        %v4022 = vmul.f32 %v4021, %v4016
        %v4023 = vand.u32 2147483647, %v4016
        %vm4024 = vcmp.lt.f32.partialorder %v4023, 0.0004427343
        %v4025 = vsel %vm4024, %v4022, %v4019
        %v4026 = vadd.f32 %v4010, %v4025
        %v4027 = vsel %vm4011, %v4012, %v4026
        %v4028 = vtanh.pop %v4027
        %v4029 = vmul.f32 %v4007, %v4028
        %v4030 = vld [vmem:[%s43] sm:$0xf]
        %v4031 = vld [vmem:[%s43 + $0x4] sm:$0xf]
        %v4032 = vld [vmem:[%s43 + $0x8] sm:$0xf]
        %v4033 = vld [vmem:[%s43 + $0xc] sm:$0xf]
        %v4034 = vld [vmem:[%s43 + $0x10] sm:$0xf]
        %v4035 = vld [vmem:[%s43 + $0x14] sm:$0xf]
        %v4036 = vld [vmem:[%s43 + $0x18] sm:$0xf]
        %v4037 = vld [vmem:[%s43 + $0x1c] sm:$0xf]
        %v4038 = vld [vmem:[%s43 + $0x20] sm:$0xf]
        %v4039 = vld [vmem:[%s43 + $0x24] sm:$0xf]
        %v4040 = vld [vmem:[%s43 + $0x28] sm:$0xf]
        %v4041 = vld [vmem:[%s43 + $0x2c] sm:$0xf]
        %v4042 = vld [vmem:[%s43 + $0x30] sm:$0xf]
        %v4043 = vld [vmem:[%s43 + $0x34] sm:$0xf]
        %v4044 = vld [vmem:[%s43 + $0x38] sm:$0xf]
        %v4045 = vld [vmem:[%s43 + $0x3c] sm:$0xf]
        %v4046 = vpack.c.bf16 %v4029, %v4029
        %v4047 = vld [vmem:[%s45] sm:$0x1]
        %v4064 = vunpack.c.l.b16 %v4030
        %v4065 = vunpack.c.l.b16 %v4031
        %v4066 = vunpack.c.l.b16 %v4032
        %v4067 = vunpack.c.l.b16 %v4033
        %v4068 = vunpack.c.l.b16 %v4034
        %v4069 = vunpack.c.l.b16 %v4035
        %v4070 = vunpack.c.l.b16 %v4036
        %v4071 = vunpack.c.l.b16 %v4037
        %v4072 = vunpack.c.l.b16 %v4038
        %v4073 = vunpack.c.l.b16 %v4039
        %v4074 = vunpack.c.l.b16 %v4040
        %v4075 = vunpack.c.l.b16 %v4041
        %v4076 = vunpack.c.l.b16 %v4042
        %v4077 = vunpack.c.l.b16 %v4043
        %v4078 = vunpack.c.l.b16 %v4044
        %v4079 = vunpack.c.l.b16 %v4045
        %v4080 = vpack.c.b16 %v4065, %v4064
        %v4081 = vpack.c.b16 %v4067, %v4066
        %v4082 = vpack.c.b16 %v4069, %v4068
        %v4083 = vpack.c.b16 %v4071, %v4070
        %v4084 = vpack.c.b16 %v4073, %v4072
        %v4085 = vpack.c.b16 %v4075, %v4074
        %v4086 = vpack.c.b16 %v4077, %v4076
        %v4087 = vpack.c.b16 %v4079, %v4078
        %4096 = vmatpush.bf16.msra.mxu0 %v4087
        %4097 = vmatpush.bf16.msra.mxu0 %v4086
        %4098 = vmatpush.bf16.msra.mxu0 %v4085
        %4099 = vmatpush.bf16.msra.mxu0 %v4084
        %4100 = vmatpush.bf16.msra.mxu0 %v4083
        %4101 = vmatpush.bf16.msra.mxu0 %v4082
        %4102 = vmatpush.bf16.msra.mxu0 %v4081
        %4103 = vmatpush.bf16.msra.mxu0 %v4080
        %4104 = vmatmul.bf16.gmra.mxu0 %v4046
        %v4105 = vpop.f32.mrf.mxu0
        %v4106 = vadd.f32 %v4047, %v4105
        %v4107 = vpop.f32.mrf.mxu0
        %4108 = vdwg.mxu0
        %s4109 = scalar_lea.vmem [#allocation2], 32
        %4110 = vst.msk [vmem:[%s4109] sm:$0x1] %vm2490, %v4106
        %4111 = vst.msk [vmem:[%s4109 + $0x1] sm:$0xf] %vm2492, %v3372
        %4112 = vst.msk [vmem:[%s4109 + $0x5] sm:$0xf] %vm2492, %v3810
        %4113 = vst.msk [vmem:[%s4109 + $0x9] sm:$0xff] %vm2072, %v3972
        %4114 = vst.msk [vmem:[%s4109 + $0x11] sm:$0xff] %vm2072, %v3973
        %s4115 = scalar_lea.vmem %s5, 16
        %v4116 = vld [vmem:[%s4115] sm:$0xff]
        %v4117 = vld [vmem:[%s4115 + $0x8] sm:$0xff]
        %v4120 = vrot.slane %v4116, 7
        %v4121 = vrot.slane %v4117, 7
        %v4122 = vsel %vm1445, %v4120, %v4121
        %v4126 = vsel %vm1445, 0.0, %v4120
        %v4127 = vsel %vm1445, %v4121, 0.0
        %v4128 = vpack.c.bf16 %v4126, %v4126
        %v4129 = vpack.c.bf16 %v4122, %v4122
        %v4130 = vpack.c.bf16 %v4127, %v4127
        %v4131 = vld [vmem:[%s21] sm:$0x1]
        %v4132 = vld [vmem:[%s19] sm:$0x3]
        %v4135 = vunpack.c.l.b16 %v4128
        %v4136 = vunpack.c.l.b16 %v4129
        %v4137 = vpack.c.b16 %v4136, %v4135
        %v4139 = vsel %vm1452, %v4137, 0
        %v4142 = vand.u32 %v4132, %v1458
        %4144 = vmatpush.bf16.msra.mxu0 0
        %4145 = vmatpush.bf16.msra.mxu0 0
        %4146 = vmatpush.bf16.msra.mxu0 0
        %4147 = vmatpush.bf16.msra.mxu0 0
        %4148 = vmatpush.bf16.msra.mxu0 0
        %4149 = vmatpush.bf16.msra.mxu0 0
        %4150 = vmatpush.bf16.msra.mxu0 0
        %4151 = vmatpush.bf16.msra.mxu0 %v4142
        %4152 = vmatmul.bf16.gmra.mxu0 %v4139
        %v4153 = vpop.f32.mrf.mxu0
        %v4154 = vadd.f32 0.0, %v4153
        %v4155 = vpop.f32.mrf.mxu0
        %v4156 = vadd.f32 0.0, %v4155
        %4157 = vdwg.mxu0
        %v4159 = vperm.slane %v4131, 0
        %v4161 = vadd.f32 %v4159, %v4154
        %v4162 = vadd.f32 %v4159, %v4156
        %v4163 = vld [vmem:[%s1777] sm:$0x3]
        %v4165 = vunpack.c.l.b16 %v4130
        %v4166 = vpack.c.b16 %v4165, %v4165
        %v4167 = vshrl.u32 %v4137, 16
        %v4169 = vshll.u32 %v4137, 16
        %v4171 = vrot.slane %v4169, 1
        %v4172 = vor.u32 %v4167, %v4171
        %v4174 = vshll.u32 %v4166, 16
        %v4176 = vrot.slane %v4174, 1
        %v4177 = vsel %vm2548, %v4172, %v4176
        %v4179 = vsel %vm1452, %v4177, 0
        %v4182 = vand.u32 %v4163, %v1458
        %4184 = vmatpush.bf16.msra.mxu0 0
        %4185 = vmatpush.bf16.msra.mxu0 0
        %4186 = vmatpush.bf16.msra.mxu0 0
        %4187 = vmatpush.bf16.msra.mxu0 0
        %4188 = vmatpush.bf16.msra.mxu0 0
        %4189 = vmatpush.bf16.msra.mxu0 0
        %4190 = vmatpush.bf16.msra.mxu0 0
        %4191 = vmatpush.bf16.msra.mxu0 %v4182
        %4192 = vmatmul.bf16.gmra.mxu0 %v4179
        %v4193 = vpop.f32.mrf.mxu0
        %v4194 = vadd.f32 0.0, %v4193
        %v4195 = vpop.f32.mrf.mxu0
        %v4196 = vadd.f32 0.0, %v4195
        %4197 = vdwg.mxu0
        %v4198 = vadd.f32 %v4161, %v4194
        %v4199 = vadd.f32 %v4162, %v4196
        %v4200 = vld [vmem:[%s1809] sm:$0x3]
        %v4201 = vrot.slane %v4137, 1
        %v4202 = vrot.slane %v4166, 1
        %v4203 = vsel %vm2583, %v4201, %v4202
        %v4205 = vsel %vm1452, %v4203, 0
        %v4208 = vand.u32 %v4200, %v1458
        %4210 = vmatpush.bf16.msra.mxu0 0
        %4211 = vmatpush.bf16.msra.mxu0 0
        %4212 = vmatpush.bf16.msra.mxu0 0
        %4213 = vmatpush.bf16.msra.mxu0 0
        %4214 = vmatpush.bf16.msra.mxu0 0
        %4215 = vmatpush.bf16.msra.mxu0 0
        %4216 = vmatpush.bf16.msra.mxu0 0
        %4217 = vmatpush.bf16.msra.mxu0 %v4208
        %4218 = vmatmul.bf16.gmra.mxu0 %v4205
        %v4219 = vpop.f32.mrf.mxu0
        %v4220 = vadd.f32 0.0, %v4219
        %v4221 = vpop.f32.mrf.mxu0
        %v4222 = vadd.f32 0.0, %v4221
        %4223 = vdwg.mxu0
        %v4224 = vadd.f32 %v4198, %v4220
        %v4225 = vadd.f32 %v4199, %v4222
        %v4226 = vmax.f32 %v4224, 0.0
        %v4227 = vmax.f32 %v4225, 0.0
        %vm4228 = vcmp.ne.f32.partialorder %v4224, %v4224
        %vm4229 = vcmp.ne.f32.partialorder %v4225, %v4225
        %v4230 = vadd.f32 %v4224, 0.0
        %v4231 = vadd.f32 %v4225, 0.0
        %v4232 = vand.u32 2147483647, %v4224
        %v4233 = vand.u32 2147483647, %v4225
        %v4234 = vsub.f32 0.0, %v4232
        %v4235 = vsub.f32 0.0, %v4233
        %v4236 = vmul.f32 %v4234, 1.442695
        %v4237 = vpow.pop %v4236
        %v4238 = vmul.f32 %v4235, 1.442695
        %v4239 = vpow.pop %v4238
        %v4240 = vadd.f32 %v4237, 1.0
        %v4241 = vlog2.pop %v4240
        %v4242 = vmul.f32 %v4241, 0.6931472
        %v4243 = vmul.f32 -0.5, %v4237
        %v4244 = vadd.f32 %v4243, 1.0
        %v4245 = vmul.f32 %v4244, %v4237
        %v4246 = vand.u32 2147483647, %v4237
        %vm4247 = vcmp.lt.f32.partialorder %v4246, 0.0004427343
        %v4248 = vsel %vm4247, %v4245, %v4242
        %v4249 = vadd.f32 %v4239, 1.0
        %v4250 = vlog2.pop %v4249
        %v4251 = vmul.f32 %v4250, 0.6931472
        %v4252 = vmul.f32 -0.5, %v4239
        %v4253 = vadd.f32 %v4252, 1.0
        %v4254 = vmul.f32 %v4253, %v4239
        %v4255 = vand.u32 2147483647, %v4239
        %vm4256 = vcmp.lt.f32.partialorder %v4255, 0.0004427343
        %v4257 = vsel %vm4256, %v4254, %v4251
        %v4258 = vadd.f32 %v4226, %v4248
        %v4259 = vadd.f32 %v4227, %v4257
        %v4260 = vsel %vm4228, %v4230, %v4258
        %v4261 = vsel %vm4229, %v4231, %v4259
        %v4262 = vtanh.pop %v4260
        %v4263 = vtanh.pop %v4261
        %v4264 = vmul.f32 %v4224, %v4262
        %v4265 = vmul.f32 %v4225, %v4263
        %v4268 = vrot.slane %v4264, 5
        %v4269 = vrot.slane %v4265, 5
        %v4270 = vsel %vm1855, %v4268, %v4269
        %v4274 = vsel %vm1855, 0.0, %v4268
        %v4275 = vsel %vm1855, %v4269, 0.0
        %v4276 = vpack.c.bf16 %v4274, %v4274
        %v4277 = vpack.c.bf16 %v4270, %v4270
        %v4278 = vpack.c.bf16 %v4275, %v4275
        %v4279 = vld [vmem:[%s25] sm:$0x1]
        %v4280 = vld [vmem:[%s23] sm:$0xf]
        %v4281 = vld [vmem:[%s23 + $0x4] sm:$0xf]
        %v4282 = vld [vmem:[%s23 + $0x8] sm:$0xf]
        %v4283 = vld [vmem:[%s23 + $0xc] sm:$0xf]
        %v4284 = vld [vmem:[%s23 + $0x10] sm:$0xf]
        %v4285 = vld [vmem:[%s23 + $0x14] sm:$0xf]
        %v4286 = vld [vmem:[%s23 + $0x18] sm:$0xf]
        %v4287 = vld [vmem:[%s23 + $0x1c] sm:$0xf]
        %v4290 = vunpack.c.l.b16 %v4276
        %v4291 = vunpack.c.l.b16 %v4277
        %v4292 = vpack.c.b16 %v4291, %v4290
        %v4301 = vunpack.c.l.b16 %v4280
        %v4302 = vunpack.c.l.b16 %v4281
        %v4303 = vunpack.c.l.b16 %v4282
        %v4304 = vunpack.c.l.b16 %v4283
        %v4305 = vunpack.c.l.b16 %v4284
        %v4306 = vunpack.c.l.b16 %v4285
        %v4307 = vunpack.c.l.b16 %v4286
        %v4308 = vunpack.c.l.b16 %v4287
        %v4309 = vpack.c.b16 %v4302, %v4301
        %v4310 = vpack.c.b16 %v4304, %v4303
        %v4311 = vpack.c.b16 %v4306, %v4305
        %v4312 = vpack.c.b16 %v4308, %v4307
        %v4318 = vsel %vm1596, %v4292, 0
        %4320 = vmatpush.bf16.msra.mxu0 0
        %4321 = vmatpush.bf16.msra.mxu0 0
        %4322 = vmatpush.bf16.msra.mxu0 0
        %4323 = vmatpush.bf16.msra.mxu0 0
        %4324 = vmatpush.bf16.msra.mxu0 %v4312
        %4325 = vmatpush.bf16.msra.mxu0 %v4311
        %4326 = vmatpush.bf16.msra.mxu0 %v4310
        %4327 = vmatpush.bf16.msra.mxu0 %v4309
        %4328 = vmatmul.bf16.gmra.mxu0 %v4318
        %v4329 = vpop.f32.mrf.mxu0
        %v4330 = vadd.f32 0.0, %v4329
        %v4331 = vpop.f32.mrf.mxu0
        %v4332 = vadd.f32 0.0, %v4331
        %4333 = vdwg.mxu0
        %v4335 = vperm.slane %v4279, 0
        %v4337 = vadd.f32 %v4335, %v4330
        %v4338 = vadd.f32 %v4335, %v4332
        %v4339 = vld [vmem:[%s1914] sm:$0xf]
        %v4340 = vld [vmem:[%s1914 + $0x4] sm:$0xf]
        %v4341 = vld [vmem:[%s1914 + $0x8] sm:$0xf]
        %v4342 = vld [vmem:[%s1914 + $0xc] sm:$0xf]
        %v4343 = vld [vmem:[%s1914 + $0x10] sm:$0xf]
        %v4344 = vld [vmem:[%s1914 + $0x14] sm:$0xf]
        %v4345 = vld [vmem:[%s1914 + $0x18] sm:$0xf]
        %v4346 = vld [vmem:[%s1914 + $0x1c] sm:$0xf]
        %v4348 = vunpack.c.l.b16 %v4278
        %v4349 = vpack.c.b16 %v4348, %v4348
        %v4350 = vshrl.u32 %v4292, 16
        %v4352 = vrot.slane %v4350, 1
        %v4353 = vshll.u32 %v4292, 16
        %v4355 = vrot.slane %v4353, 2
        %v4356 = vor.u32 %v4352, %v4355
        %v4358 = vshrl.u32 %v4349, 16
        %v4360 = vrot.slane %v4358, 1
        %v4361 = vshll.u32 %v4349, 16
        %v4363 = vrot.slane %v4361, 2
        %v4364 = vor.u32 %v4360, %v4363
        %v4365 = vsel %vm2733, %v4356, %v4364
        %v4374 = vunpack.c.l.b16 %v4339
        %v4375 = vunpack.c.l.b16 %v4340
        %v4376 = vunpack.c.l.b16 %v4341
        %v4377 = vunpack.c.l.b16 %v4342
        %v4378 = vunpack.c.l.b16 %v4343
        %v4379 = vunpack.c.l.b16 %v4344
        %v4380 = vunpack.c.l.b16 %v4345
        %v4381 = vunpack.c.l.b16 %v4346
        %v4382 = vpack.c.b16 %v4375, %v4374
        %v4383 = vpack.c.b16 %v4377, %v4376
        %v4384 = vpack.c.b16 %v4379, %v4378
        %v4385 = vpack.c.b16 %v4381, %v4380
        %v4391 = vsel %vm1596, %v4365, 0
        %4393 = vmatpush.bf16.msra.mxu0 0
        %4394 = vmatpush.bf16.msra.mxu0 0
        %4395 = vmatpush.bf16.msra.mxu0 0
        %4396 = vmatpush.bf16.msra.mxu0 0
        %4397 = vmatpush.bf16.msra.mxu0 %v4385
        %4398 = vmatpush.bf16.msra.mxu0 %v4384
        %4399 = vmatpush.bf16.msra.mxu0 %v4383
        %4400 = vmatpush.bf16.msra.mxu0 %v4382
        %4401 = vmatmul.bf16.gmra.mxu0 %v4391
        %v4402 = vpop.f32.mrf.mxu0
        %v4403 = vadd.f32 0.0, %v4402
        %v4404 = vpop.f32.mrf.mxu0
        %v4405 = vadd.f32 0.0, %v4404
        %4406 = vdwg.mxu0
        %v4407 = vadd.f32 %v4337, %v4403
        %v4408 = vadd.f32 %v4338, %v4405
        %v4409 = vld [vmem:[%s1975] sm:$0xf]
        %v4410 = vld [vmem:[%s1975 + $0x4] sm:$0xf]
        %v4411 = vld [vmem:[%s1975 + $0x8] sm:$0xf]
        %v4412 = vld [vmem:[%s1975 + $0xc] sm:$0xf]
        %v4413 = vld [vmem:[%s1975 + $0x10] sm:$0xf]
        %v4414 = vld [vmem:[%s1975 + $0x14] sm:$0xf]
        %v4415 = vld [vmem:[%s1975 + $0x18] sm:$0xf]
        %v4416 = vld [vmem:[%s1975 + $0x1c] sm:$0xf]
        %v4417 = vrot.slane %v4292, 3
        %v4418 = vrot.slane %v4349, 3
        %v4419 = vsel %vm2801, %v4417, %v4418
        %v4428 = vunpack.c.l.b16 %v4409
        %v4429 = vunpack.c.l.b16 %v4410
        %v4430 = vunpack.c.l.b16 %v4411
        %v4431 = vunpack.c.l.b16 %v4412
        %v4432 = vunpack.c.l.b16 %v4413
        %v4433 = vunpack.c.l.b16 %v4414
        %v4434 = vunpack.c.l.b16 %v4415
        %v4435 = vunpack.c.l.b16 %v4416
        %v4436 = vpack.c.b16 %v4429, %v4428
        %v4437 = vpack.c.b16 %v4431, %v4430
        %v4438 = vpack.c.b16 %v4433, %v4432
        %v4439 = vpack.c.b16 %v4435, %v4434
        %v4445 = vsel %vm1596, %v4419, 0
        %4447 = vmatpush.bf16.msra.mxu0 0
        %4448 = vmatpush.bf16.msra.mxu0 0
        %4449 = vmatpush.bf16.msra.mxu0 0
        %4450 = vmatpush.bf16.msra.mxu0 0
        %4451 = vmatpush.bf16.msra.mxu0 %v4439
        %4452 = vmatpush.bf16.msra.mxu0 %v4438
        %4453 = vmatpush.bf16.msra.mxu0 %v4437
        %4454 = vmatpush.bf16.msra.mxu0 %v4436
        %4455 = vmatmul.bf16.gmra.mxu0 %v4445
        %v4456 = vpop.f32.mrf.mxu0
        %v4457 = vadd.f32 0.0, %v4456
        %v4458 = vpop.f32.mrf.mxu0
        %v4459 = vadd.f32 0.0, %v4458
        %4460 = vdwg.mxu0
        %v4461 = vadd.f32 %v4407, %v4457
        %v4462 = vadd.f32 %v4408, %v4459
        %v4463 = vmax.f32 %v4461, 0.0
        %v4464 = vmax.f32 %v4462, 0.0
        %vm4465 = vcmp.ne.f32.partialorder %v4461, %v4461
        %vm4466 = vcmp.ne.f32.partialorder %v4462, %v4462
        %v4467 = vadd.f32 %v4461, 0.0
        %v4468 = vadd.f32 %v4462, 0.0
        %v4469 = vand.u32 2147483647, %v4461
        %v4470 = vand.u32 2147483647, %v4462
        %v4471 = vsub.f32 0.0, %v4469
        %v4472 = vsub.f32 0.0, %v4470
        %v4473 = vmul.f32 %v4471, 1.442695
        %v4474 = vpow.pop %v4473
        %v4475 = vmul.f32 %v4472, 1.442695
        %v4476 = vpow.pop %v4475
        %v4477 = vadd.f32 %v4474, 1.0
        %v4478 = vlog2.pop %v4477
        %v4479 = vmul.f32 %v4478, 0.6931472
        %v4480 = vmul.f32 -0.5, %v4474
        %v4481 = vadd.f32 %v4480, 1.0
        %v4482 = vmul.f32 %v4481, %v4474
        %v4483 = vand.u32 2147483647, %v4474
        %vm4484 = vcmp.lt.f32.partialorder %v4483, 0.0004427343
        %v4485 = vsel %vm4484, %v4482, %v4479
        %v4486 = vadd.f32 %v4476, 1.0
        %v4487 = vlog2.pop %v4486
        %v4488 = vmul.f32 %v4487, 0.6931472
        %v4489 = vmul.f32 -0.5, %v4476
        %v4490 = vadd.f32 %v4489, 1.0
        %v4491 = vmul.f32 %v4490, %v4476
        %v4492 = vand.u32 2147483647, %v4476
        %vm4493 = vcmp.lt.f32.partialorder %v4492, 0.0004427343
        %v4494 = vsel %vm4493, %v4491, %v4488
        %v4495 = vadd.f32 %v4463, %v4485
        %v4496 = vadd.f32 %v4464, %v4494
        %v4497 = vsel %vm4465, %v4467, %v4495
        %v4498 = vsel %vm4466, %v4468, %v4496
        %v4499 = vtanh.pop %v4497
        %v4500 = vtanh.pop %v4498
        %v4501 = vmul.f32 %v4461, %v4499
        %v4502 = vmul.f32 %v4462, %v4500
        %v4505 = vrot.slane %v4501, 5
        %v4506 = vrot.slane %v4502, 5
        %v4507 = vsel %vm1855, %v4505, %v4506
        %v4511 = vsel %vm1855, 0.0, %v4505
        %v4512 = vsel %vm1855, %v4506, 0.0
        %v4513 = vpack.c.bf16 %v4511, %v4511
        %v4514 = vpack.c.bf16 %v4507, %v4507
        %v4515 = vpack.c.bf16 %v4512, %v4512
        %v4516 = vld [vmem:[%s29] sm:$0x1]
        %v4517 = vld [vmem:[%s27] sm:$0xf]
        %v4518 = vld [vmem:[%s27 + $0x4] sm:$0xf]
        %v4519 = vld [vmem:[%s27 + $0x8] sm:$0xf]
        %v4520 = vld [vmem:[%s27 + $0xc] sm:$0xf]
        %v4523 = vunpack.c.l.b16 %v4513
        %v4524 = vunpack.c.l.b16 %v4514
        %v4525 = vpack.c.b16 %v4524, %v4523
        %v4530 = vunpack.c.l.b16 %v4517
        %v4531 = vunpack.c.l.b16 %v4518
        %v4532 = vunpack.c.l.b16 %v4519
        %v4533 = vunpack.c.l.b16 %v4520
        %v4534 = vpack.c.b16 %v4531, %v4530
        %v4535 = vpack.c.b16 %v4533, %v4532
        %v4539 = vsel %vm2072, %v4525, 0
        %4541 = vmatpush.bf16.msra.mxu0 0
        %4542 = vmatpush.bf16.msra.mxu0 0
        %4543 = vmatpush.bf16.msra.mxu0 0
        %4544 = vmatpush.bf16.msra.mxu0 0
        %4545 = vmatpush.bf16.msra.mxu0 0
        %4546 = vmatpush.bf16.msra.mxu0 0
        %4547 = vmatpush.bf16.msra.mxu0 %v4535
        %4548 = vmatpush.bf16.msra.mxu0 %v4534
        %4549 = vmatmul.bf16.gmra.mxu0 %v4539
        %v4550 = vpop.f32.mrf.mxu0
        %v4551 = vadd.f32 0.0, %v4550
        %v4552 = vpop.f32.mrf.mxu0
        %v4553 = vadd.f32 0.0, %v4552
        %4554 = vdwg.mxu0
        %v4556 = vperm.slane %v4516, 0
        %v4558 = vadd.f32 %v4556, %v4551
        %v4559 = vadd.f32 %v4556, %v4553
        %v4560 = vld [vmem:[%s2093] sm:$0xf]
        %v4561 = vld [vmem:[%s2093 + $0x4] sm:$0xf]
        %v4562 = vld [vmem:[%s2093 + $0x8] sm:$0xf]
        %v4563 = vld [vmem:[%s2093 + $0xc] sm:$0xf]
        %v4565 = vunpack.c.l.b16 %v4515
        %v4566 = vpack.c.b16 %v4565, %v4565
        %v4567 = vshrl.u32 %v4525, 16
        %v4569 = vrot.slane %v4567, 1
        %v4570 = vshll.u32 %v4525, 16
        %v4572 = vrot.slane %v4570, 2
        %v4573 = vor.u32 %v4569, %v4572
        %v4575 = vshrl.u32 %v4566, 16
        %v4577 = vrot.slane %v4575, 1
        %v4578 = vshll.u32 %v4566, 16
        %v4580 = vrot.slane %v4578, 2
        %v4581 = vor.u32 %v4577, %v4580
        %v4582 = vsel %vm2733, %v4573, %v4581
        %v4587 = vunpack.c.l.b16 %v4560
        %v4588 = vunpack.c.l.b16 %v4561
        %v4589 = vunpack.c.l.b16 %v4562
        %v4590 = vunpack.c.l.b16 %v4563
        %v4591 = vpack.c.b16 %v4588, %v4587
        %v4592 = vpack.c.b16 %v4590, %v4589
        %v4596 = vsel %vm2072, %v4582, 0
        %4598 = vmatpush.bf16.msra.mxu0 0
        %4599 = vmatpush.bf16.msra.mxu0 0
        %4600 = vmatpush.bf16.msra.mxu0 0
        %4601 = vmatpush.bf16.msra.mxu0 0
        %4602 = vmatpush.bf16.msra.mxu0 0
        %4603 = vmatpush.bf16.msra.mxu0 0
        %4604 = vmatpush.bf16.msra.mxu0 %v4592
        %4605 = vmatpush.bf16.msra.mxu0 %v4591
        %4606 = vmatmul.bf16.gmra.mxu0 %v4596
        %v4607 = vpop.f32.mrf.mxu0
        %v4608 = vadd.f32 0.0, %v4607
        %v4609 = vpop.f32.mrf.mxu0
        %v4610 = vadd.f32 0.0, %v4609
        %4611 = vdwg.mxu0
        %v4612 = vadd.f32 %v4558, %v4608
        %v4613 = vadd.f32 %v4559, %v4610
        %v4614 = vld [vmem:[%s2138] sm:$0xf]
        %v4615 = vld [vmem:[%s2138 + $0x4] sm:$0xf]
        %v4616 = vld [vmem:[%s2138 + $0x8] sm:$0xf]
        %v4617 = vld [vmem:[%s2138 + $0xc] sm:$0xf]
        %v4618 = vrot.slane %v4525, 3
        %v4619 = vrot.slane %v4566, 3
        %v4620 = vsel %vm2801, %v4618, %v4619
        %v4625 = vunpack.c.l.b16 %v4614
        %v4626 = vunpack.c.l.b16 %v4615
        %v4627 = vunpack.c.l.b16 %v4616
        %v4628 = vunpack.c.l.b16 %v4617
        %v4629 = vpack.c.b16 %v4626, %v4625
        %v4630 = vpack.c.b16 %v4628, %v4627
        %v4634 = vsel %vm2072, %v4620, 0
        %4636 = vmatpush.bf16.msra.mxu0 0
        %4637 = vmatpush.bf16.msra.mxu0 0
        %4638 = vmatpush.bf16.msra.mxu0 0
        %4639 = vmatpush.bf16.msra.mxu0 0
        %4640 = vmatpush.bf16.msra.mxu0 0
        %4641 = vmatpush.bf16.msra.mxu0 0
        %4642 = vmatpush.bf16.msra.mxu0 %v4630
        %4643 = vmatpush.bf16.msra.mxu0 %v4629
        %4644 = vmatmul.bf16.gmra.mxu0 %v4634
        %v4645 = vpop.f32.mrf.mxu0
        %v4646 = vadd.f32 0.0, %v4645
        %v4647 = vpop.f32.mrf.mxu0
        %v4648 = vadd.f32 0.0, %v4647
        %4649 = vdwg.mxu0
        %v4650 = vadd.f32 %v4612, %v4646
        %v4651 = vadd.f32 %v4613, %v4648
        %v4652 = vmax.f32 %v4650, 0.0
        %v4653 = vmax.f32 %v4651, 0.0
        %vm4654 = vcmp.ne.f32.partialorder %v4650, %v4650
        %vm4655 = vcmp.ne.f32.partialorder %v4651, %v4651
        %v4656 = vadd.f32 %v4650, 0.0
        %v4657 = vadd.f32 %v4651, 0.0
        %v4658 = vand.u32 2147483647, %v4650
        %v4659 = vand.u32 2147483647, %v4651
        %v4660 = vsub.f32 0.0, %v4658
        %v4661 = vsub.f32 0.0, %v4659
        %v4662 = vmul.f32 %v4660, 1.442695
        %v4663 = vpow.pop %v4662
        %v4664 = vmul.f32 %v4661, 1.442695
        %v4665 = vpow.pop %v4664
        %v4666 = vadd.f32 %v4663, 1.0
        %v4667 = vlog2.pop %v4666
        %v4668 = vmul.f32 %v4667, 0.6931472
        %v4669 = vmul.f32 -0.5, %v4663
        %v4670 = vadd.f32 %v4669, 1.0
        %v4671 = vmul.f32 %v4670, %v4663
        %v4672 = vand.u32 2147483647, %v4663
        %vm4673 = vcmp.lt.f32.partialorder %v4672, 0.0004427343
        %v4674 = vsel %vm4673, %v4671, %v4668
        %v4675 = vadd.f32 %v4665, 1.0
        %v4676 = vlog2.pop %v4675
        %v4677 = vmul.f32 %v4676, 0.6931472
        %v4678 = vmul.f32 -0.5, %v4665
        %v4679 = vadd.f32 %v4678, 1.0
        %v4680 = vmul.f32 %v4679, %v4665
        %v4681 = vand.u32 2147483647, %v4665
        %vm4682 = vcmp.lt.f32.partialorder %v4681, 0.0004427343
        %v4683 = vsel %vm4682, %v4680, %v4677
        %v4684 = vadd.f32 %v4652, %v4674
        %v4685 = vadd.f32 %v4653, %v4683
        %v4686 = vsel %vm4654, %v4656, %v4684
        %v4687 = vsel %vm4655, %v4657, %v4685
        %v4688 = vtanh.pop %v4686
        %v4689 = vtanh.pop %v4687
        %v4690 = vmul.f32 %v4650, %v4688
        %v4691 = vmul.f32 %v4651, %v4689
        %s4692 = scalar_lea.vmem [#allocation3], 16
        %4693 = vst.msk [vmem:[%s4692] sm:$0xff] %vm2072, %v4690
        %4694 = vst.msk [vmem:[%s4692 + $0x8] sm:$0xff] %vm2072, %v4691
      $region184: #{forward.1} parent=179 // pred_fallthru
        _
      %v4695 = vld [vmem:[%s1380] sm:$0xf]
      %v4696 = vld [vmem:[%s1380 + $0x4] sm:$0xf]
      %v4697 = vld [vmem:[%s1380 + $0x8] sm:$0xf]
      %v4698 = vld [vmem:[%s1380 + $0xc] sm:$0xf]
      %v4699 = vld [vmem:[%s1388] sm:$0xf]
      %v4700 = vld [vmem:[%s1388 + $0x4] sm:$0xf]
      %v4701 = vld [vmem:[%s1388 + $0x8] sm:$0xf]
      %v4702 = vld [vmem:[%s1388 + $0xc] sm:$0xf]
      %v4703 = vld [vmem:[%s1396] sm:$0xf]
      %v4704 = vld [vmem:[%s1396 + $0x4] sm:$0xf]
      %v4705 = vld [vmem:[%s1396 + $0x8] sm:$0xf]
      %v4706 = vld [vmem:[%s1396 + $0xc] sm:$0xf]
      %v4707 = vld [vmem:[%s1383] sm:$0x1]
      %v4708 = vld [vmem:[%s1391] sm:$0x1]
      %v4709 = vld [vmem:[%s1399] sm:$0x1]
      %v4710 = vld [vmem:[%s1404] sm:$0xf]
      %v4711 = vld [vmem:[%s1404 + $0x4] sm:$0xf]
      %v4712 = vld [vmem:[%s1404 + $0x8] sm:$0xf]
      %v4713 = vld [vmem:[%s1404 + $0xc] sm:$0xf]
      %v4714 = vld [vmem:[%s1407] sm:$0x1]
      %v4715 = vld [vmem:[%s1410] sm:$0x1]
      %v4716 = vld [vmem:[%s1413] sm:$0x1]
      %v4717 = vld [vmem:[%s1418] sm:$0xf]
      %v4718 = vld [vmem:[%s1418 + $0x4] sm:$0xf]
      %v4719 = vld [vmem:[%s1418 + $0x8] sm:$0xf]
      %v4720 = vld [vmem:[%s1418 + $0xc] sm:$0xf]
      %v4721 = vld [vmem:[%s1421] sm:$0x1]
      %v4722 = vld [vmem:[%s1426] sm:$0xf]
      %v4723 = vld [vmem:[%s1426 + $0x4] sm:$0xf]
      %v4724 = vld [vmem:[%s1426 + $0x8] sm:$0xf]
      %v4725 = vld [vmem:[%s1426 + $0xc] sm:$0xf]
      %v4726 = vld [vmem:[%s1429] sm:$0x1]
      %v4727 = vld [vmem:[%s1432] sm:$0x1]
      %v4728 = vld [vmem:[%s1435] sm:$0x1]
      %v4729 = vld [vmem:[#allocation3] sm:$0xff]
      %v4730 = vld [vmem:[#allocation3 + $0x8] sm:$0xff]
      %v4731 = vld [vmem:[#allocation2] sm:$0xff]
      %v4732 = vld [vmem:[#allocation2 + $0x8] sm:$0xff]
      %v4733 = vld [vmem:[#allocation2 + $0x10] sm:$0xff]
      %v4734 = vld [vmem:[#allocation2 + $0x18] sm:$0x1]
      %v4735 = vpack.c.bf16 %v4730, %v4729
      %v4737 = vperm.slane %v4707, 0
      %v4743 = vunpack.c.l.b16 %v4695
      %v4744 = vunpack.c.l.b16 %v4696
      %v4745 = vunpack.c.l.b16 %v4697
      %v4746 = vunpack.c.l.b16 %v4698
      %v4747 = vpack.c.b16 %v4744, %v4743
      %v4748 = vpack.c.b16 %v4746, %v4745
      %vm4751 = vcmask 261120
      %v4753 = vsel %vm4751, %v4735, 0
      %4755 = vmatpush.bf16.msra.mxu0 0
      %4756 = vmatpush.bf16.msra.mxu0 0
      %4757 = vmatpush.bf16.msra.mxu0 0
      %4758 = vmatpush.bf16.msra.mxu0 0
      %4759 = vmatpush.bf16.msra.mxu0 0
      %4760 = vmatpush.bf16.msra.mxu0 0
      %4761 = vmatpush.bf16.msra.mxu0 %v4748
      %4762 = vmatpush.bf16.msra.mxu0 %v4747
      %4763 = vmatmul.bf16.gmra.mxu0 %v4753
      %v4764 = vpop.f32.mrf.mxu0
      %v4765 = vadd.f32 %v4737, %v4764
      %v4766 = vpop.f32.mrf.mxu0
      %v4767 = vadd.f32 %v4737, %v4766
      %4768 = vdwg.mxu0
      %v4769 = vmul.f32 %v4765, 0.35355338
      %v4770 = vmul.f32 %v4767, 0.35355338
      %v4771 = vpack.c.bf16 %v4769, %v4769
      %v4772 = vpack.c.bf16 %v4770, %v4770
      %v4773 = vpack.c.bf16 %v4732, %v4731
      %v4774 = vpack.c.bf16 %v4734, %v4733
      %v4776 = vperm.slane %v4708, 0
      %v4782 = vunpack.c.l.b16 %v4699
      %v4783 = vunpack.c.l.b16 %v4700
      %v4784 = vunpack.c.l.b16 %v4701
      %v4785 = vunpack.c.l.b16 %v4702
      %v4786 = vpack.c.b16 %v4783, %v4782
      %v4787 = vpack.c.b16 %v4785, %v4784
      %v4791 = vsel %vm4751, %v4773, 0
      %v4794 = vsel %vm4751, %v4774, 0
      %4796 = vmatpush.bf16.msra.mxu0 0
      %4797 = vmatpush.bf16.msra.mxu0 0
      %4798 = vmatpush.bf16.msra.mxu0 0
      %4799 = vmatpush.bf16.msra.mxu0 0
      %4800 = vmatpush.bf16.msra.mxu0 0
      %4801 = vmatpush.bf16.msra.mxu0 0
      %4802 = vmatpush.bf16.msra.mxu0 %v4787
      %4803 = vmatpush.bf16.msra.mxu0 %v4786
      %4804 = vmatmul.bf16.gmra.mxu0 %v4791
      %v4805 = vpop.f32.mrf.mxu0
      %v4806 = vadd.f32 %v4776, %v4805
      %v4807 = vpop.f32.mrf.mxu0
      %v4808 = vadd.f32 %v4776, %v4807
      %4809 = vmatmul.bf16.gmra.mxu0 %v4794
      %v4810 = vpop.f32.mrf.mxu0
      %v4811 = vadd.f32 %v4776, %v4810
      %v4812 = vpop.f32.mrf.mxu0
      %v4813 = vadd.f32 %v4776, %v4812
      %4814 = vdwg.mxu0
      %v4815 = vpack.c.bf16 %v4806, %v4806
      %v4816 = vpack.c.bf16 %v4808, %v4808
      %v4817 = vpack.c.bf16 %v4811, %v4811
      %v4818 = vpack.c.bf16 %v4813, %v4813
      %v4820 = vperm.slane %v4709, 0
      %v4826 = vunpack.c.l.b16 %v4703
      %v4827 = vunpack.c.l.b16 %v4704
      %v4828 = vunpack.c.l.b16 %v4705
      %v4829 = vunpack.c.l.b16 %v4706
      %v4830 = vpack.c.b16 %v4827, %v4826
      %v4831 = vpack.c.b16 %v4829, %v4828
      %4834 = vmatpush.bf16.msra.mxu0 0
      %4835 = vmatpush.bf16.msra.mxu0 0
      %4836 = vmatpush.bf16.msra.mxu0 0
      %4837 = vmatpush.bf16.msra.mxu0 0
      %4838 = vmatpush.bf16.msra.mxu0 0
      %4839 = vmatpush.bf16.msra.mxu0 0
      %4840 = vmatpush.bf16.msra.mxu0 %v4831
      %4841 = vmatpush.bf16.msra.mxu0 %v4830
      %4842 = vmatmul.bf16.gmra.mxu0 %v4791
      %v4843 = vpop.f32.mrf.mxu0
      %v4844 = vadd.f32 %v4820, %v4843
      %v4845 = vpop.f32.mrf.mxu0
      %v4846 = vadd.f32 %v4820, %v4845
      %4847 = vmatmul.bf16.gmra.mxu0 %v4794
      %v4848 = vpop.f32.mrf.mxu0
      %v4849 = vadd.f32 %v4820, %v4848
      %v4850 = vpop.f32.mrf.mxu0
      %v4851 = vadd.f32 %v4820, %v4850
      %4852 = vdwg.mxu0
      %v4853 = vpack.c.bf16 %v4844, %v4844
      %v4854 = vpack.c.bf16 %v4846, %v4846
      %v4855 = vpack.c.bf16 %v4849, %v4849
      %v4856 = vpack.c.bf16 %v4851, %v4851
      %v4859 = vunpack.c.l.b16 %v4771
      %v4860 = vunpack.c.l.b16 %v4772
      %v4861 = vpack.c.b16 %v4860, %v4859
      %v4866 = vunpack.c.l.b16 %v4815
      %v4867 = vunpack.c.l.b16 %v4816
      %v4868 = vunpack.c.l.b16 %v4817
      %v4869 = vunpack.c.l.b16 %v4818
      %v4870 = vpack.c.b16 %v4867, %v4866
      %v4871 = vpack.c.b16 %v4869, %v4868
      %vm4872 = vcmask 64512
      %v4874 = vsel %vm4872, %v4861, 0
      %v4877 = vsel %vm4872, %v4870, 0
      %v4880 = vsel %vm4872, %v4871, 0
      %4882 = vmatpush.bf16.xpose.msra.mxu0 0
      %4883 = vmatpush.bf16.xpose.msra.mxu0 0
      %4884 = vmatpush.bf16.xpose.msra.mxu0 0
      %4885 = vmatpush.bf16.xpose.msra.mxu0 0
      %4886 = vmatpush.bf16.xpose.msra.mxu0 0
      %4887 = vmatpush.bf16.xpose.msra.mxu0 0
      %4888 = vmatpush.bf16.xpose.msra.mxu0 %v4880
      %4889 = vmatpush.bf16.xpose.msra.mxu0 %v4877
      %4890 = vmatmul.bf16.gmra.mxu0 %v4874
      %v4891 = vpop.f32.mrf.mxu0
      %v4892 = vadd.f32 0.0, %v4891
      %v4893 = vpop.f32.mrf.mxu0
      %v4894 = vadd.f32 0.0, %v4893
      %4895 = vdwg.mxu0
      %vm4896 = vcmask 203776
      %v4897 = vsel %vm4896, %v4892, -inf
      %4898 = vmax.xlane.f32.xlu0 %v4897
      %v4899 = vpop.xlane.xlu0 %4898
      %v4900 = vsel %vm4896, %v4894, -inf
      %4901 = vmax.xlane.f32.xlu0 %v4900
      %v4902 = vpop.xlane.xlu0 %4901
      %v4903 = vsub.f32 %v4892, %v4899
      %v4904 = vsub.f32 %v4894, %v4902
      %v4905 = vmul.f32 %v4903, 1.442695
      %v4906 = vpow.pop %v4905
      %v4907 = vmul.f32 %v4904, 1.442695
      %v4908 = vpow.pop %v4907
      %v4909 = vsel %vm4896, %v4906, 0.0
      %4910 = vadd.xlane.f32.xlu0 %v4909
      %v4911 = vpop.xlane.xlu0 %4910
      %v4912 = vsel %vm4896, %v4908, 0.0
      %4913 = vadd.xlane.f32.xlu0 %v4912
      %v4914 = vpop.xlane.xlu0 %4913
      %v4915 = vrcp.pop %v4911
      %v4916 = vrcp.pop %v4914
      %v4917 = vmul.f32 %v4906, %v4915
      %v4918 = vmul.f32 %v4908, %v4916
      %v4919 = vpack.c.bf16 %v4918, %v4917
      %v4924 = vunpack.c.l.b16 %v4853
      %v4925 = vunpack.c.l.b16 %v4854
      %v4926 = vunpack.c.l.b16 %v4855
      %v4927 = vunpack.c.l.b16 %v4856
      %v4928 = vpack.c.b16 %v4925, %v4924
      %v4929 = vpack.c.b16 %v4927, %v4926
      %v4932 = vsel %vm4896, %v4919, 0
      %vm4934 = vcmask 1043456
      %vm4935 = vcmask 1044480
      %v4936 = vsel %vm4934, 4294967295, 65535
      %v4937 = vsel %vm4935, %v4936, 0
      %v4939 = vand.u32 %v4929, %v4937
      %4941 = vmatpush.bf16.msra.mxu0 0
      %4942 = vmatpush.bf16.msra.mxu0 0
      %4943 = vmatpush.bf16.msra.mxu0 0
      %4944 = vmatpush.bf16.msra.mxu0 0
      %4945 = vmatpush.bf16.msra.mxu0 0
      %4946 = vmatpush.bf16.msra.mxu0 0
      %4947 = vmatpush.bf16.msra.mxu0 %v4939
      %4948 = vmatpush.bf16.msra.mxu0 %v4928
      %4949 = vmatmul.bf16.gmra.mxu0 %v4932
      %v4950 = vpop.f32.mrf.mxu0
      %v4951 = vadd.f32 0.0, %v4950
      %v4952 = vpop.f32.mrf.mxu0
      %v4953 = vadd.f32 0.0, %v4952
      %4954 = vdwg.mxu0
      %v4955 = vpack.c.bf16 %v4953, %v4951
      %4956 = vrot.lane.b32.xlu0 %v4861, 120
      %v4957 = vpop.permute.xlu0 %4956
      %4958 = vrot.lane.b32.xlu0 %v4870, 120
      %v4959 = vpop.permute.xlu0 %4958
      %4960 = vrot.lane.b32.xlu0 %v4871, 120
      %v4961 = vpop.permute.xlu0 %4960
      %v4963 = vsel %vm4872, %v4957, 0
      %v4966 = vsel %vm4872, %v4959, 0
      %v4969 = vsel %vm4872, %v4961, 0
      %4971 = vmatpush.bf16.xpose.msra.mxu0 0
      %4972 = vmatpush.bf16.xpose.msra.mxu0 0
      %4973 = vmatpush.bf16.xpose.msra.mxu0 0
      %4974 = vmatpush.bf16.xpose.msra.mxu0 0
      %4975 = vmatpush.bf16.xpose.msra.mxu0 0
      %4976 = vmatpush.bf16.xpose.msra.mxu0 0
      %4977 = vmatpush.bf16.xpose.msra.mxu0 %v4969
      %4978 = vmatpush.bf16.xpose.msra.mxu0 %v4966
      %4979 = vmatmul.bf16.gmra.mxu0 %v4963
      %v4980 = vpop.f32.mrf.mxu0
      %v4981 = vadd.f32 0.0, %v4980
      %v4982 = vpop.f32.mrf.mxu0
      %v4983 = vadd.f32 0.0, %v4982
      %4984 = vdwg.mxu0
      %v4985 = vsel %vm4896, %v4981, -inf
      %4986 = vmax.xlane.f32.xlu0 %v4985
      %v4987 = vpop.xlane.xlu0 %4986
      %v4988 = vsel %vm4896, %v4983, -inf
      %4989 = vmax.xlane.f32.xlu0 %v4988
      %v4990 = vpop.xlane.xlu0 %4989
      %v4991 = vsub.f32 %v4981, %v4987
      %v4992 = vsub.f32 %v4983, %v4990
      %v4993 = vmul.f32 %v4991, 1.442695
      %v4994 = vpow.pop %v4993
      %v4995 = vmul.f32 %v4992, 1.442695
      %v4996 = vpow.pop %v4995
      %v4997 = vsel %vm4896, %v4994, 0.0
      %4998 = vadd.xlane.f32.xlu0 %v4997
      %v4999 = vpop.xlane.xlu0 %4998
      %v5000 = vsel %vm4896, %v4996, 0.0
      %5001 = vadd.xlane.f32.xlu0 %v5000
      %v5002 = vpop.xlane.xlu0 %5001
      %v5003 = vrcp.pop %v4999
      %v5004 = vrcp.pop %v5002
      %v5005 = vmul.f32 %v4994, %v5003
      %v5006 = vmul.f32 %v4996, %v5004
      %v5007 = vpack.c.bf16 %v5006, %v5005
      %5008 = vrot.lane.b32.xlu0 %v4928, 120
      %v5009 = vpop.permute.xlu0 %5008
      %5010 = vrot.lane.b32.xlu0 %v4929, 120
      %v5011 = vpop.permute.xlu0 %5010
      %v5014 = vsel %vm4896, %v5007, 0
      %v5017 = vand.u32 %v5011, %v4937
      %5019 = vmatpush.bf16.msra.mxu0 0
      %5020 = vmatpush.bf16.msra.mxu0 0
      %5021 = vmatpush.bf16.msra.mxu0 0
      %5022 = vmatpush.bf16.msra.mxu0 0
      %5023 = vmatpush.bf16.msra.mxu0 0
      %5024 = vmatpush.bf16.msra.mxu0 0
      %5025 = vmatpush.bf16.msra.mxu0 %v5017
      %5026 = vmatpush.bf16.msra.mxu0 %v5009
      %5027 = vmatmul.bf16.gmra.mxu0 %v5014
      %v5028 = vpop.f32.mrf.mxu0
      %v5029 = vadd.f32 0.0, %v5028
      %v5030 = vpop.f32.mrf.mxu0
      %v5031 = vadd.f32 0.0, %v5030
      %5032 = vdwg.mxu0
      %v5033 = vpack.c.bf16 %v5031, %v5029
      %v5035 = vsel %vm4872, %v5033, 0
      %v5038 = vsel %vm4934, %v4711, 0
      %5040 = vmatpush.bf16.msra.mxu0 0
      %5041 = vmatpush.bf16.msra.mxu0 0
      %5042 = vmatpush.bf16.msra.mxu0 0
      %5043 = vmatpush.bf16.msra.mxu0 0
      %5044 = vmatpush.bf16.msra.mxu0 0
      %5045 = vmatpush.bf16.msra.mxu0 0
      %5046 = vmatpush.bf16.msra.mxu0 0
      %5047 = vmatpush.bf16.msra.mxu0 %v5038
      %5048 = vmatmul.bf16.gmra.mxu0 %v5035
      %v5049 = vpop.f32.mrf.mxu0
      %v5050 = vadd.f32 0.0, %v5049
      %v5051 = vpop.f32.mrf.mxu0
      %v5052 = vadd.f32 0.0, %v5051
      %5053 = vdwg.mxu0
      %v5055 = vsel %vm4872, %v4955, 0
      %v5058 = vsel %vm4934, %v4710, 0
      %5060 = vmatpush.bf16.msra.mxu0 0
      %5061 = vmatpush.bf16.msra.mxu0 0
      %5062 = vmatpush.bf16.msra.mxu0 0
      %5063 = vmatpush.bf16.msra.mxu0 0
      %5064 = vmatpush.bf16.msra.mxu0 0
      %5065 = vmatpush.bf16.msra.mxu0 0
      %5066 = vmatpush.bf16.msra.mxu0 0
      %5067 = vmatpush.bf16.msra.mxu0 %v5058
      %5068 = vmatmul.bf16.gmra.mxu0 %v5055
      %v5069 = vpop.f32.mrf.mxu0
      %v5070 = vadd.f32 %v5050, %v5069
      %v5071 = vpop.f32.mrf.mxu0
      %v5072 = vadd.f32 %v5052, %v5071
      %5073 = vdwg.mxu0
      %5074 = vrot.lane.b32.xlu0 %v4861, 112
      %v5075 = vpop.permute.xlu0 %5074
      %5076 = vrot.lane.b32.xlu0 %v4870, 112
      %v5077 = vpop.permute.xlu0 %5076
      %5078 = vrot.lane.b32.xlu0 %v4871, 112
      %v5079 = vpop.permute.xlu0 %5078
      %v5081 = vsel %vm4872, %v5075, 0
      %v5084 = vsel %vm4872, %v5077, 0
      %v5087 = vsel %vm4872, %v5079, 0
      %5089 = vmatpush.bf16.xpose.msra.mxu0 0
      %5090 = vmatpush.bf16.xpose.msra.mxu0 0
      %5091 = vmatpush.bf16.xpose.msra.mxu0 0
      %5092 = vmatpush.bf16.xpose.msra.mxu0 0
      %5093 = vmatpush.bf16.xpose.msra.mxu0 0
      %5094 = vmatpush.bf16.xpose.msra.mxu0 0
      %5095 = vmatpush.bf16.xpose.msra.mxu0 %v5087
      %5096 = vmatpush.bf16.xpose.msra.mxu0 %v5084
      %5097 = vmatmul.bf16.gmra.mxu0 %v5081
      %v5098 = vpop.f32.mrf.mxu0
      %v5099 = vadd.f32 0.0, %v5098
      %v5100 = vpop.f32.mrf.mxu0
      %v5101 = vadd.f32 0.0, %v5100
      %5102 = vdwg.mxu0
      %v5103 = vsel %vm4896, %v5099, -inf
      %5104 = vmax.xlane.f32.xlu0 %v5103
      %v5105 = vpop.xlane.xlu0 %5104
      %v5106 = vsel %vm4896, %v5101, -inf
      %5107 = vmax.xlane.f32.xlu0 %v5106
      %v5108 = vpop.xlane.xlu0 %5107
      %v5109 = vsub.f32 %v5099, %v5105
      %v5110 = vsub.f32 %v5101, %v5108
      %v5111 = vmul.f32 %v5109, 1.442695
      %v5112 = vpow.pop %v5111
      %v5113 = vmul.f32 %v5110, 1.442695
      %v5114 = vpow.pop %v5113
      %v5115 = vsel %vm4896, %v5112, 0.0
      %5116 = vadd.xlane.f32.xlu0 %v5115
      %v5117 = vpop.xlane.xlu0 %5116
      %v5118 = vsel %vm4896, %v5114, 0.0
      %5119 = vadd.xlane.f32.xlu0 %v5118
      %v5120 = vpop.xlane.xlu0 %5119
      %v5121 = vrcp.pop %v5117
      %v5122 = vrcp.pop %v5120
      %v5123 = vmul.f32 %v5112, %v5121
      %v5124 = vmul.f32 %v5114, %v5122
      %v5125 = vpack.c.bf16 %v5124, %v5123
      %5126 = vrot.lane.b32.xlu0 %v4928, 112
      %v5127 = vpop.permute.xlu0 %5126
      %5128 = vrot.lane.b32.xlu0 %v4929, 112
      %v5129 = vpop.permute.xlu0 %5128
      %v5132 = vsel %vm4896, %v5125, 0
      %v5135 = vand.u32 %v5129, %v4937
      %5137 = vmatpush.bf16.msra.mxu0 0
      %5138 = vmatpush.bf16.msra.mxu0 0
      %5139 = vmatpush.bf16.msra.mxu0 0
      %5140 = vmatpush.bf16.msra.mxu0 0
      %5141 = vmatpush.bf16.msra.mxu0 0
      %5142 = vmatpush.bf16.msra.mxu0 0
      %5143 = vmatpush.bf16.msra.mxu0 %v5135
      %5144 = vmatpush.bf16.msra.mxu0 %v5127
      %5145 = vmatmul.bf16.gmra.mxu0 %v5132
      %v5146 = vpop.f32.mrf.mxu0
      %v5147 = vadd.f32 0.0, %v5146
      %v5148 = vpop.f32.mrf.mxu0
      %v5149 = vadd.f32 0.0, %v5148
      %5150 = vdwg.mxu0
      %v5151 = vpack.c.bf16 %v5149, %v5147
      %v5153 = vsel %vm4872, %v5151, 0
      %v5156 = vsel %vm4934, %v4712, 0
      %5158 = vmatpush.bf16.msra.mxu0 0
      %5159 = vmatpush.bf16.msra.mxu0 0
      %5160 = vmatpush.bf16.msra.mxu0 0
      %5161 = vmatpush.bf16.msra.mxu0 0
      %5162 = vmatpush.bf16.msra.mxu0 0
      %5163 = vmatpush.bf16.msra.mxu0 0
      %5164 = vmatpush.bf16.msra.mxu0 0
      %5165 = vmatpush.bf16.msra.mxu0 %v5156
      %5166 = vmatmul.bf16.gmra.mxu0 %v5153
      %v5167 = vpop.f32.mrf.mxu0
      %v5168 = vadd.f32 0.0, %v5167
      %v5169 = vpop.f32.mrf.mxu0
      %v5170 = vadd.f32 0.0, %v5169
      %5171 = vdwg.mxu0
      %v5172 = vadd.f32 %v5070, %v5168
      %v5173 = vadd.f32 %v5072, %v5170
      %5174 = vrot.lane.b32.xlu0 %v4861, 104
      %v5175 = vpop.permute.xlu0 %5174
      %5176 = vrot.lane.b32.xlu0 %v4870, 104
      %v5177 = vpop.permute.xlu0 %5176
      %5178 = vrot.lane.b32.xlu0 %v4871, 104
      %v5179 = vpop.permute.xlu0 %5178
      %v5181 = vsel %vm4872, %v5175, 0
      %v5184 = vsel %vm4872, %v5177, 0
      %v5187 = vsel %vm4872, %v5179, 0
      %5189 = vmatpush.bf16.xpose.msra.mxu0 0
      %5190 = vmatpush.bf16.xpose.msra.mxu0 0
      %5191 = vmatpush.bf16.xpose.msra.mxu0 0
      %5192 = vmatpush.bf16.xpose.msra.mxu0 0
      %5193 = vmatpush.bf16.xpose.msra.mxu0 0
      %5194 = vmatpush.bf16.xpose.msra.mxu0 0
      %5195 = vmatpush.bf16.xpose.msra.mxu0 %v5187
      %5196 = vmatpush.bf16.xpose.msra.mxu0 %v5184
      %5197 = vmatmul.bf16.gmra.mxu0 %v5181
      %v5198 = vpop.f32.mrf.mxu0
      %v5199 = vadd.f32 0.0, %v5198
      %v5200 = vpop.f32.mrf.mxu0
      %v5201 = vadd.f32 0.0, %v5200
      %5202 = vdwg.mxu0
      %v5203 = vsel %vm4896, %v5199, -inf
      %5204 = vmax.xlane.f32.xlu0 %v5203
      %v5205 = vpop.xlane.xlu0 %5204
      %v5206 = vsel %vm4896, %v5201, -inf
      %5207 = vmax.xlane.f32.xlu0 %v5206
      %v5208 = vpop.xlane.xlu0 %5207
      %v5209 = vsub.f32 %v5199, %v5205
      %v5210 = vsub.f32 %v5201, %v5208
      %v5211 = vmul.f32 %v5209, 1.442695
      %v5212 = vpow.pop %v5211
      %v5213 = vmul.f32 %v5210, 1.442695
      %v5214 = vpow.pop %v5213
      %v5215 = vsel %vm4896, %v5212, 0.0
      %5216 = vadd.xlane.f32.xlu0 %v5215
      %v5217 = vpop.xlane.xlu0 %5216
      %v5218 = vsel %vm4896, %v5214, 0.0
      %5219 = vadd.xlane.f32.xlu0 %v5218
      %v5220 = vpop.xlane.xlu0 %5219
      %v5221 = vrcp.pop %v5217
      %v5222 = vrcp.pop %v5220
      %v5223 = vmul.f32 %v5212, %v5221
      %v5224 = vmul.f32 %v5214, %v5222
      %v5225 = vpack.c.bf16 %v5224, %v5223
      %5226 = vrot.lane.b32.xlu0 %v4928, 104
      %v5227 = vpop.permute.xlu0 %5226
      %5228 = vrot.lane.b32.xlu0 %v4929, 104
      %v5229 = vpop.permute.xlu0 %5228
      %v5232 = vsel %vm4896, %v5225, 0
      %v5235 = vand.u32 %v5229, %v4937
      %5237 = vmatpush.bf16.msra.mxu0 0
      %5238 = vmatpush.bf16.msra.mxu0 0
      %5239 = vmatpush.bf16.msra.mxu0 0
      %5240 = vmatpush.bf16.msra.mxu0 0
      %5241 = vmatpush.bf16.msra.mxu0 0
      %5242 = vmatpush.bf16.msra.mxu0 0
      %5243 = vmatpush.bf16.msra.mxu0 %v5235
      %5244 = vmatpush.bf16.msra.mxu0 %v5227
      %5245 = vmatmul.bf16.gmra.mxu0 %v5232
      %v5246 = vpop.f32.mrf.mxu0
      %v5247 = vadd.f32 0.0, %v5246
      %v5248 = vpop.f32.mrf.mxu0
      %v5249 = vadd.f32 0.0, %v5248
      %5250 = vdwg.mxu0
      %v5251 = vpack.c.bf16 %v5249, %v5247
      %v5253 = vsel %vm4872, %v5251, 0
      %v5256 = vsel %vm4934, %v4713, 0
      %5258 = vmatpush.bf16.msra.mxu0 0
      %5259 = vmatpush.bf16.msra.mxu0 0
      %5260 = vmatpush.bf16.msra.mxu0 0
      %5261 = vmatpush.bf16.msra.mxu0 0
      %5262 = vmatpush.bf16.msra.mxu0 0
      %5263 = vmatpush.bf16.msra.mxu0 0
      %5264 = vmatpush.bf16.msra.mxu0 0
      %5265 = vmatpush.bf16.msra.mxu0 %v5256
      %5266 = vmatmul.bf16.gmra.mxu0 %v5253
      %v5267 = vpop.f32.mrf.mxu0
      %v5268 = vadd.f32 0.0, %v5267
      %v5269 = vpop.f32.mrf.mxu0
      %v5270 = vadd.f32 0.0, %v5269
      %5271 = vdwg.mxu0
      %v5272 = vadd.f32 %v5172, %v5268
      %v5273 = vadd.f32 %v5173, %v5270
      %v5275 = vperm.slane %v4714, 0
      %v5277 = vadd.f32 %v5272, %v5275
      %v5278 = vadd.f32 %v5273, %v5275
      %v5279 = vadd.f32 %v4729, %v5277
      %v5280 = vadd.f32 %v4730, %v5278
      %v5281 = vsel %vm4751, %v5279, 0.0
      %5282 = vadd.xlane.f32.xlu0 %v5281
      %v5283 = vpop.xlane.xlu0 %5282
      %v5284 = vsel %vm4751, %v5280, 0.0
      %5285 = vadd.xlane.f32.xlu0 %v5284
      %v5286 = vpop.xlane.xlu0 %5285
      %v5287 = vrcp.pop 32.0
      %v5288 = vmul.f32 32.0, %v5287
      %v5289 = vsub.f32 1.0, %v5288
      %v5290 = vmul.f32 %v5287, %v5289
      %v5291 = vadd.f32 %v5287, %v5290
      %vm5292 = vweird.f32 %v5287
      %v5293 = vsel %vm5292, %v5287, %v5291
      %v5294 = vmul.f32 %v5283, %v5293
      %v5295 = vmul.f32 %v5286, %v5293
      %v5296 = vsub.f32 %v5279, %v5294
      %v5297 = vsub.f32 %v5280, %v5295
      %v5298 = vmul.f32 %v5296, %v5296
      %v5299 = vmul.f32 %v5297, %v5297
      %v5300 = vsel %vm4751, %v5298, 0.0
      %5301 = vadd.xlane.f32.xlu0 %v5300
      %v5302 = vpop.xlane.xlu0 %5301
      %v5303 = vsel %vm4751, %v5299, 0.0
      %5304 = vadd.xlane.f32.xlu0 %v5303
      %v5305 = vpop.xlane.xlu0 %5304
      %v5306 = vmul.f32 %v5302, %v5293
      %v5307 = vmul.f32 %v5305, %v5293
      %v5308 = vadd.f32 %v5306, 1e-05
      %v5309 = vadd.f32 %v5307, 1e-05
      %v5310 = vrsqrt.pop %v5308
      %v5311 = vmul.f32 %v5310, %v5308
      %v5312 = vmul.f32 %v5311, %v5310
      %v5313 = vmul.f32 0.5, %v5312
      %v5314 = vsub.f32 1.5, %v5313
      %v5315 = vmul.f32 %v5310, %v5314
      %vm5316 = vweird.f32 %v5308
      %vm5317 = vweird.f32 %v5310
      %vm5318 = vmor %vm5316, %vm5317
      %v5319 = vsel %vm5318, %v5310, %v5315
      %v5320 = vrsqrt.pop %v5309
      %v5321 = vmul.f32 %v5320, %v5309
      %v5322 = vmul.f32 %v5321, %v5320
      %v5323 = vmul.f32 0.5, %v5322
      %v5324 = vsub.f32 1.5, %v5323
      %v5325 = vmul.f32 %v5320, %v5324
      %vm5326 = vweird.f32 %v5309
      %vm5327 = vweird.f32 %v5320
      %vm5328 = vmor %vm5326, %vm5327
      %v5329 = vsel %vm5328, %v5320, %v5325
      %v5330 = vmul.f32 %v5296, %v5319
      %v5331 = vmul.f32 %v5297, %v5329
      %v5333 = vperm.slane %v4715, 0
      %v5335 = vmul.f32 %v5330, %v5333
      %v5336 = vmul.f32 %v5331, %v5333
      %v5338 = vperm.slane %v4716, 0
      %v5340 = vadd.f32 %v5335, %v5338
      %v5341 = vadd.f32 %v5336, %v5338
      %v5342 = vpack.c.bf16 %v5341, %v5340
      %v5344 = vperm.slane %v4721, 0
      %v5350 = vunpack.c.l.b16 %v4717
      %v5351 = vunpack.c.l.b16 %v4718
      %v5352 = vunpack.c.l.b16 %v4719
      %v5353 = vunpack.c.l.b16 %v4720
      %v5354 = vpack.c.b16 %v5351, %v5350
      %v5355 = vpack.c.b16 %v5353, %v5352
      %v5359 = vsel %vm4751, %v5342, 0
      %5361 = vmatpush.bf16.msra.mxu0 0
      %5362 = vmatpush.bf16.msra.mxu0 0
      %5363 = vmatpush.bf16.msra.mxu0 0
      %5364 = vmatpush.bf16.msra.mxu0 0
      %5365 = vmatpush.bf16.msra.mxu0 0
      %5366 = vmatpush.bf16.msra.mxu0 0
      %5367 = vmatpush.bf16.msra.mxu0 %v5355
      %5368 = vmatpush.bf16.msra.mxu0 %v5354
      %5369 = vmatmul.bf16.gmra.mxu0 %v5359
      %v5370 = vpop.f32.mrf.mxu0
      %v5371 = vadd.f32 %v5344, %v5370
      %v5372 = vpop.f32.mrf.mxu0
      %v5373 = vadd.f32 %v5344, %v5372
      %5374 = vdwg.mxu0
      %v5375 = vmax.f32 %v5371, 0.0
      %v5376 = vmax.f32 %v5373, 0.0
      %v5377 = vpack.c.bf16 %v5376, %v5375
      %v5379 = vperm.slane %v4726, 0
      %v5385 = vunpack.c.l.b16 %v4722
      %v5386 = vunpack.c.l.b16 %v4723
      %v5387 = vunpack.c.l.b16 %v4724
      %v5388 = vunpack.c.l.b16 %v4725
      %v5389 = vpack.c.b16 %v5386, %v5385
      %v5390 = vpack.c.b16 %v5388, %v5387
      %v5394 = vsel %vm4751, %v5377, 0
      %5396 = vmatpush.bf16.msra.mxu0 0
      %5397 = vmatpush.bf16.msra.mxu0 0
      %5398 = vmatpush.bf16.msra.mxu0 0
      %5399 = vmatpush.bf16.msra.mxu0 0
      %5400 = vmatpush.bf16.msra.mxu0 0
      %5401 = vmatpush.bf16.msra.mxu0 0
      %5402 = vmatpush.bf16.msra.mxu0 %v5390
      %5403 = vmatpush.bf16.msra.mxu0 %v5389
      %5404 = vmatmul.bf16.gmra.mxu0 %v5394
      %v5405 = vpop.f32.mrf.mxu0
      %v5406 = vadd.f32 %v5379, %v5405
      %v5407 = vpop.f32.mrf.mxu0
      %v5408 = vadd.f32 %v5379, %v5407
      %5409 = vdwg.mxu0
      %v5410 = vadd.f32 %v5340, %v5406
      %v5411 = vadd.f32 %v5341, %v5408
      %v5412 = vsel %vm4751, %v5410, 0.0
      %5413 = vadd.xlane.f32.xlu0 %v5412
      %v5414 = vpop.xlane.xlu0 %5413
      %v5415 = vsel %vm4751, %v5411, 0.0
      %5416 = vadd.xlane.f32.xlu0 %v5415
      %v5417 = vpop.xlane.xlu0 %5416
      %v5418 = vmul.f32 %v5414, %v5293
      %v5419 = vmul.f32 %v5417, %v5293
      %v5420 = vsub.f32 %v5410, %v5418
      %v5421 = vsub.f32 %v5411, %v5419
      %v5422 = vmul.f32 %v5420, %v5420
      %v5423 = vmul.f32 %v5421, %v5421
      %v5424 = vsel %vm4751, %v5422, 0.0
      %5425 = vadd.xlane.f32.xlu0 %v5424
      %v5426 = vpop.xlane.xlu0 %5425
      %v5427 = vsel %vm4751, %v5423, 0.0
      %5428 = vadd.xlane.f32.xlu0 %v5427
      %v5429 = vpop.xlane.xlu0 %5428
      %v5430 = vmul.f32 %v5426, %v5293
      %v5431 = vmul.f32 %v5429, %v5293
      %v5432 = vadd.f32 %v5430, 1e-05
      %v5433 = vadd.f32 %v5431, 1e-05
      %v5434 = vrsqrt.pop %v5432
      %v5435 = vmul.f32 %v5434, %v5432
      %v5436 = vmul.f32 %v5435, %v5434
      %v5437 = vmul.f32 0.5, %v5436
      %v5438 = vsub.f32 1.5, %v5437
      %v5439 = vmul.f32 %v5434, %v5438
      %vm5440 = vweird.f32 %v5432
      %vm5441 = vweird.f32 %v5434
      %vm5442 = vmor %vm5440, %vm5441
      %v5443 = vsel %vm5442, %v5434, %v5439
      %v5444 = vrsqrt.pop %v5433
      %v5445 = vmul.f32 %v5444, %v5433
      %v5446 = vmul.f32 %v5445, %v5444
      %v5447 = vmul.f32 0.5, %v5446
      %v5448 = vsub.f32 1.5, %v5447
      %v5449 = vmul.f32 %v5444, %v5448
      %vm5450 = vweird.f32 %v5433
      %vm5451 = vweird.f32 %v5444
      %vm5452 = vmor %vm5450, %vm5451
      %v5453 = vsel %vm5452, %v5444, %v5449
      %v5454 = vmul.f32 %v5420, %v5443
      %v5455 = vmul.f32 %v5421, %v5453
      %v5457 = vperm.slane %v4727, 0
      %v5459 = vmul.f32 %v5454, %v5457
      %v5460 = vmul.f32 %v5455, %v5457
      %v5462 = vperm.slane %v4728, 0
      %v5464 = vadd.f32 %v5459, %v5462
      %v5465 = vadd.f32 %v5460, %v5462
      %5466 = vst.msk [vmem:[#allocation3] sm:$0xff] %vm4751, %v5464
      %5467 = vst.msk [vmem:[#allocation3 + $0x8] sm:$0xff] %vm4751, %v5465
      %s5468 = scalar_lea.vmem [#allocation3], 16
      %v5469 = vld [vmem:[%s5468] sm:$0xff]
      %v5470 = vld [vmem:[%s5468 + $0x8] sm:$0xff]
      %s5471 = scalar_lea.vmem [#allocation2], 32
      %v5472 = vld [vmem:[%s5471] sm:$0xff]
      %v5473 = vld [vmem:[%s5471 + $0x8] sm:$0xff]
      %v5474 = vld [vmem:[%s5471 + $0x10] sm:$0xff]
      %v5475 = vld [vmem:[%s5471 + $0x18] sm:$0x1]
      %v5476 = vpack.c.bf16 %v5470, %v5469
      %v5478 = vsel %vm4751, %v5476, 0
      %5480 = vmatpush.bf16.msra.mxu0 0
      %5481 = vmatpush.bf16.msra.mxu0 0
      %5482 = vmatpush.bf16.msra.mxu0 0
      %5483 = vmatpush.bf16.msra.mxu0 0
      %5484 = vmatpush.bf16.msra.mxu0 0
      %5485 = vmatpush.bf16.msra.mxu0 0
      %5486 = vmatpush.bf16.msra.mxu0 %v4748
      %5487 = vmatpush.bf16.msra.mxu0 %v4747
      %5488 = vmatmul.bf16.gmra.mxu0 %v5478
      %v5489 = vpop.f32.mrf.mxu0
      %v5490 = vadd.f32 %v4737, %v5489
      %v5491 = vpop.f32.mrf.mxu0
      %v5492 = vadd.f32 %v4737, %v5491
      %5493 = vdwg.mxu0
      %v5494 = vmul.f32 %v5490, 0.35355338
      %v5495 = vmul.f32 %v5492, 0.35355338
      %v5496 = vpack.c.bf16 %v5494, %v5494
      %v5497 = vpack.c.bf16 %v5495, %v5495
      %v5498 = vpack.c.bf16 %v5473, %v5472
      %v5499 = vpack.c.bf16 %v5475, %v5474
      %v5501 = vsel %vm4751, %v5498, 0
      %v5504 = vsel %vm4751, %v5499, 0
      %5506 = vmatpush.bf16.msra.mxu0 0
      %5507 = vmatpush.bf16.msra.mxu0 0
      %5508 = vmatpush.bf16.msra.mxu0 0
      %5509 = vmatpush.bf16.msra.mxu0 0
      %5510 = vmatpush.bf16.msra.mxu0 0
      %5511 = vmatpush.bf16.msra.mxu0 0
      %5512 = vmatpush.bf16.msra.mxu0 %v4787
      %5513 = vmatpush.bf16.msra.mxu0 %v4786
      %5514 = vmatmul.bf16.gmra.mxu0 %v5501
      %v5515 = vpop.f32.mrf.mxu0
      %v5516 = vadd.f32 %v4776, %v5515
      %v5517 = vpop.f32.mrf.mxu0
      %v5518 = vadd.f32 %v4776, %v5517
      %5519 = vmatmul.bf16.gmra.mxu0 %v5504
      %v5520 = vpop.f32.mrf.mxu0
      %v5521 = vadd.f32 %v4776, %v5520
      %v5522 = vpop.f32.mrf.mxu0
      %v5523 = vadd.f32 %v4776, %v5522
      %5524 = vdwg.mxu0
      %v5525 = vpack.c.bf16 %v5516, %v5516
      %v5526 = vpack.c.bf16 %v5518, %v5518
      %v5527 = vpack.c.bf16 %v5521, %v5521
      %v5528 = vpack.c.bf16 %v5523, %v5523
      %5529 = vmatpush.bf16.msra.mxu0 0
      %5530 = vmatpush.bf16.msra.mxu0 0
      %5531 = vmatpush.bf16.msra.mxu0 0
      %5532 = vmatpush.bf16.msra.mxu0 0
      %5533 = vmatpush.bf16.msra.mxu0 0
      %5534 = vmatpush.bf16.msra.mxu0 0
      %5535 = vmatpush.bf16.msra.mxu0 %v4831
      %5536 = vmatpush.bf16.msra.mxu0 %v4830
      %5537 = vmatmul.bf16.gmra.mxu0 %v5501
      %v5538 = vpop.f32.mrf.mxu0
      %v5539 = vadd.f32 %v4820, %v5538
      %v5540 = vpop.f32.mrf.mxu0
      %v5541 = vadd.f32 %v4820, %v5540
      %5542 = vmatmul.bf16.gmra.mxu0 %v5504
      %v5543 = vpop.f32.mrf.mxu0
      %v5544 = vadd.f32 %v4820, %v5543
      %v5545 = vpop.f32.mrf.mxu0
      %v5546 = vadd.f32 %v4820, %v5545
      %5547 = vdwg.mxu0
      %v5548 = vpack.c.bf16 %v5539, %v5539
      %v5549 = vpack.c.bf16 %v5541, %v5541
      %v5550 = vpack.c.bf16 %v5544, %v5544
      %v5551 = vpack.c.bf16 %v5546, %v5546
      %v5554 = vunpack.c.l.b16 %v5496
      %v5555 = vunpack.c.l.b16 %v5497
      %v5556 = vpack.c.b16 %v5555, %v5554
      %v5561 = vunpack.c.l.b16 %v5525
      %v5562 = vunpack.c.l.b16 %v5526
      %v5563 = vunpack.c.l.b16 %v5527
      %v5564 = vunpack.c.l.b16 %v5528
      %v5565 = vpack.c.b16 %v5562, %v5561
      %v5566 = vpack.c.b16 %v5564, %v5563
      %v5568 = vsel %vm4872, %v5556, 0
      %v5571 = vsel %vm4872, %v5565, 0
      %v5574 = vsel %vm4872, %v5566, 0
      %5576 = vmatpush.bf16.xpose.msra.mxu0 0
      %5577 = vmatpush.bf16.xpose.msra.mxu0 0
      %5578 = vmatpush.bf16.xpose.msra.mxu0 0
      %5579 = vmatpush.bf16.xpose.msra.mxu0 0
      %5580 = vmatpush.bf16.xpose.msra.mxu0 0
      %5581 = vmatpush.bf16.xpose.msra.mxu0 0
      %5582 = vmatpush.bf16.xpose.msra.mxu0 %v5574
      %5583 = vmatpush.bf16.xpose.msra.mxu0 %v5571
      %5584 = vmatmul.bf16.gmra.mxu0 %v5568
      %v5585 = vpop.f32.mrf.mxu0
      %v5586 = vadd.f32 0.0, %v5585
      %v5587 = vpop.f32.mrf.mxu0
      %v5588 = vadd.f32 0.0, %v5587
      %5589 = vdwg.mxu0
      %v5590 = vsel %vm4896, %v5586, -inf
      %5591 = vmax.xlane.f32.xlu0 %v5590
      %v5592 = vpop.xlane.xlu0 %5591
      %v5593 = vsel %vm4896, %v5588, -inf
      %5594 = vmax.xlane.f32.xlu0 %v5593
      %v5595 = vpop.xlane.xlu0 %5594
      %v5596 = vsub.f32 %v5586, %v5592
      %v5597 = vsub.f32 %v5588, %v5595
      %v5598 = vmul.f32 %v5596, 1.442695
      %v5599 = vpow.pop %v5598
      %v5600 = vmul.f32 %v5597, 1.442695
      %v5601 = vpow.pop %v5600
      %v5602 = vsel %vm4896, %v5599, 0.0
      %5603 = vadd.xlane.f32.xlu0 %v5602
      %v5604 = vpop.xlane.xlu0 %5603
      %v5605 = vsel %vm4896, %v5601, 0.0
      %5606 = vadd.xlane.f32.xlu0 %v5605
      %v5607 = vpop.xlane.xlu0 %5606
      %v5608 = vrcp.pop %v5604
      %v5609 = vrcp.pop %v5607
      %v5610 = vmul.f32 %v5599, %v5608
      %v5611 = vmul.f32 %v5601, %v5609
      %v5612 = vpack.c.bf16 %v5611, %v5610
      %v5617 = vunpack.c.l.b16 %v5548
      %v5618 = vunpack.c.l.b16 %v5549
      %v5619 = vunpack.c.l.b16 %v5550
      %v5620 = vunpack.c.l.b16 %v5551
      %v5621 = vpack.c.b16 %v5618, %v5617
      %v5622 = vpack.c.b16 %v5620, %v5619
      %v5625 = vsel %vm4896, %v5612, 0
      %v5628 = vand.u32 %v5622, %v4937
      %5630 = vmatpush.bf16.msra.mxu0 0
      %5631 = vmatpush.bf16.msra.mxu0 0
      %5632 = vmatpush.bf16.msra.mxu0 0
      %5633 = vmatpush.bf16.msra.mxu0 0
      %5634 = vmatpush.bf16.msra.mxu0 0
      %5635 = vmatpush.bf16.msra.mxu0 0
      %5636 = vmatpush.bf16.msra.mxu0 %v5628
      %5637 = vmatpush.bf16.msra.mxu0 %v5621
      %5638 = vmatmul.bf16.gmra.mxu0 %v5625
      %v5639 = vpop.f32.mrf.mxu0
      %v5640 = vadd.f32 0.0, %v5639
      %v5641 = vpop.f32.mrf.mxu0
      %v5642 = vadd.f32 0.0, %v5641
      %5643 = vdwg.mxu0
      %v5644 = vpack.c.bf16 %v5642, %v5640
      %5645 = vrot.lane.b32.xlu0 %v5556, 120
      %v5646 = vpop.permute.xlu0 %5645
      %5647 = vrot.lane.b32.xlu0 %v5565, 120
      %v5648 = vpop.permute.xlu0 %5647
      %5649 = vrot.lane.b32.xlu0 %v5566, 120
      %v5650 = vpop.permute.xlu0 %5649
      %v5652 = vsel %vm4872, %v5646, 0
      %v5655 = vsel %vm4872, %v5648, 0
      %v5658 = vsel %vm4872, %v5650, 0
      %5660 = vmatpush.bf16.xpose.msra.mxu0 0
      %5661 = vmatpush.bf16.xpose.msra.mxu0 0
      %5662 = vmatpush.bf16.xpose.msra.mxu0 0
      %5663 = vmatpush.bf16.xpose.msra.mxu0 0
      %5664 = vmatpush.bf16.xpose.msra.mxu0 0
      %5665 = vmatpush.bf16.xpose.msra.mxu0 0
      %5666 = vmatpush.bf16.xpose.msra.mxu0 %v5658
      %5667 = vmatpush.bf16.xpose.msra.mxu0 %v5655
      %5668 = vmatmul.bf16.gmra.mxu0 %v5652
      %v5669 = vpop.f32.mrf.mxu0
      %v5670 = vadd.f32 0.0, %v5669
      %v5671 = vpop.f32.mrf.mxu0
      %v5672 = vadd.f32 0.0, %v5671
      %5673 = vdwg.mxu0
      %v5674 = vsel %vm4896, %v5670, -inf
      %5675 = vmax.xlane.f32.xlu0 %v5674
      %v5676 = vpop.xlane.xlu0 %5675
      %v5677 = vsel %vm4896, %v5672, -inf
      %5678 = vmax.xlane.f32.xlu0 %v5677
      %v5679 = vpop.xlane.xlu0 %5678
      %v5680 = vsub.f32 %v5670, %v5676
      %v5681 = vsub.f32 %v5672, %v5679
      %v5682 = vmul.f32 %v5680, 1.442695
      %v5683 = vpow.pop %v5682
      %v5684 = vmul.f32 %v5681, 1.442695
      %v5685 = vpow.pop %v5684
      %v5686 = vsel %vm4896, %v5683, 0.0
      %5687 = vadd.xlane.f32.xlu0 %v5686
      %v5688 = vpop.xlane.xlu0 %5687
      %v5689 = vsel %vm4896, %v5685, 0.0
      %5690 = vadd.xlane.f32.xlu0 %v5689
      %v5691 = vpop.xlane.xlu0 %5690
      %v5692 = vrcp.pop %v5688
      %v5693 = vrcp.pop %v5691
      %v5694 = vmul.f32 %v5683, %v5692
      %v5695 = vmul.f32 %v5685, %v5693
      %v5696 = vpack.c.bf16 %v5695, %v5694
      %5697 = vrot.lane.b32.xlu0 %v5621, 120
      %v5698 = vpop.permute.xlu0 %5697
      %5699 = vrot.lane.b32.xlu0 %v5622, 120
      %v5700 = vpop.permute.xlu0 %5699
      %v5703 = vsel %vm4896, %v5696, 0
      %v5706 = vand.u32 %v5700, %v4937
      %5708 = vmatpush.bf16.msra.mxu0 0
      %5709 = vmatpush.bf16.msra.mxu0 0
      %5710 = vmatpush.bf16.msra.mxu0 0
      %5711 = vmatpush.bf16.msra.mxu0 0
      %5712 = vmatpush.bf16.msra.mxu0 0
      %5713 = vmatpush.bf16.msra.mxu0 0
      %5714 = vmatpush.bf16.msra.mxu0 %v5706
      %5715 = vmatpush.bf16.msra.mxu0 %v5698
      %5716 = vmatmul.bf16.gmra.mxu0 %v5703
      %v5717 = vpop.f32.mrf.mxu0
      %v5718 = vadd.f32 0.0, %v5717
      %v5719 = vpop.f32.mrf.mxu0
      %v5720 = vadd.f32 0.0, %v5719
      %5721 = vdwg.mxu0
      %v5722 = vpack.c.bf16 %v5720, %v5718
      %v5724 = vsel %vm4872, %v5722, 0
      %5726 = vmatpush.bf16.msra.mxu0 0
      %5727 = vmatpush.bf16.msra.mxu0 0
      %5728 = vmatpush.bf16.msra.mxu0 0
      %5729 = vmatpush.bf16.msra.mxu0 0
      %5730 = vmatpush.bf16.msra.mxu0 0
      %5731 = vmatpush.bf16.msra.mxu0 0
      %5732 = vmatpush.bf16.msra.mxu0 0
      %5733 = vmatpush.bf16.msra.mxu0 %v5038
      %5734 = vmatmul.bf16.gmra.mxu0 %v5724
      %v5735 = vpop.f32.mrf.mxu0
      %v5736 = vadd.f32 0.0, %v5735
      %v5737 = vpop.f32.mrf.mxu0
      %v5738 = vadd.f32 0.0, %v5737
      %5739 = vdwg.mxu0
      %v5741 = vsel %vm4872, %v5644, 0
      %5743 = vmatpush.bf16.msra.mxu0 0
      %5744 = vmatpush.bf16.msra.mxu0 0
      %5745 = vmatpush.bf16.msra.mxu0 0
      %5746 = vmatpush.bf16.msra.mxu0 0
      %5747 = vmatpush.bf16.msra.mxu0 0
      %5748 = vmatpush.bf16.msra.mxu0 0
      %5749 = vmatpush.bf16.msra.mxu0 0
      %5750 = vmatpush.bf16.msra.mxu0 %v5058
      %5751 = vmatmul.bf16.gmra.mxu0 %v5741
      %v5752 = vpop.f32.mrf.mxu0
      %v5753 = vadd.f32 %v5736, %v5752
      %v5754 = vpop.f32.mrf.mxu0
      %v5755 = vadd.f32 %v5738, %v5754
      %5756 = vdwg.mxu0
      %5757 = vrot.lane.b32.xlu0 %v5556, 112
      %v5758 = vpop.permute.xlu0 %5757
      %5759 = vrot.lane.b32.xlu0 %v5565, 112
      %v5760 = vpop.permute.xlu0 %5759
      %5761 = vrot.lane.b32.xlu0 %v5566, 112
      %v5762 = vpop.permute.xlu0 %5761
      %v5764 = vsel %vm4872, %v5758, 0
      %v5767 = vsel %vm4872, %v5760, 0
      %v5770 = vsel %vm4872, %v5762, 0
      %5772 = vmatpush.bf16.xpose.msra.mxu0 0
      %5773 = vmatpush.bf16.xpose.msra.mxu0 0
      %5774 = vmatpush.bf16.xpose.msra.mxu0 0
      %5775 = vmatpush.bf16.xpose.msra.mxu0 0
      %5776 = vmatpush.bf16.xpose.msra.mxu0 0
      %5777 = vmatpush.bf16.xpose.msra.mxu0 0
      %5778 = vmatpush.bf16.xpose.msra.mxu0 %v5770
      %5779 = vmatpush.bf16.xpose.msra.mxu0 %v5767
      %5780 = vmatmul.bf16.gmra.mxu0 %v5764
      %v5781 = vpop.f32.mrf.mxu0
      %v5782 = vadd.f32 0.0, %v5781
      %v5783 = vpop.f32.mrf.mxu0
      %v5784 = vadd.f32 0.0, %v5783
      %5785 = vdwg.mxu0
      %v5786 = vsel %vm4896, %v5782, -inf
      %5787 = vmax.xlane.f32.xlu0 %v5786
      %v5788 = vpop.xlane.xlu0 %5787
      %v5789 = vsel %vm4896, %v5784, -inf
      %5790 = vmax.xlane.f32.xlu0 %v5789
      %v5791 = vpop.xlane.xlu0 %5790
      %v5792 = vsub.f32 %v5782, %v5788
      %v5793 = vsub.f32 %v5784, %v5791
      %v5794 = vmul.f32 %v5792, 1.442695
      %v5795 = vpow.pop %v5794
      %v5796 = vmul.f32 %v5793, 1.442695
      %v5797 = vpow.pop %v5796
      %v5798 = vsel %vm4896, %v5795, 0.0
      %5799 = vadd.xlane.f32.xlu0 %v5798
      %v5800 = vpop.xlane.xlu0 %5799
      %v5801 = vsel %vm4896, %v5797, 0.0
      %5802 = vadd.xlane.f32.xlu0 %v5801
      %v5803 = vpop.xlane.xlu0 %5802
      %v5804 = vrcp.pop %v5800
      %v5805 = vrcp.pop %v5803
      %v5806 = vmul.f32 %v5795, %v5804
      %v5807 = vmul.f32 %v5797, %v5805
      %v5808 = vpack.c.bf16 %v5807, %v5806
      %5809 = vrot.lane.b32.xlu0 %v5621, 112
      %v5810 = vpop.permute.xlu0 %5809
      %5811 = vrot.lane.b32.xlu0 %v5622, 112
      %v5812 = vpop.permute.xlu0 %5811
      %v5815 = vsel %vm4896, %v5808, 0
      %v5818 = vand.u32 %v5812, %v4937
      %5820 = vmatpush.bf16.msra.mxu0 0
      %5821 = vmatpush.bf16.msra.mxu0 0
      %5822 = vmatpush.bf16.msra.mxu0 0
      %5823 = vmatpush.bf16.msra.mxu0 0
      %5824 = vmatpush.bf16.msra.mxu0 0
      %5825 = vmatpush.bf16.msra.mxu0 0
      %5826 = vmatpush.bf16.msra.mxu0 %v5818
      %5827 = vmatpush.bf16.msra.mxu0 %v5810
      %5828 = vmatmul.bf16.gmra.mxu0 %v5815
      %v5829 = vpop.f32.mrf.mxu0
      %v5830 = vadd.f32 0.0, %v5829
      %v5831 = vpop.f32.mrf.mxu0
      %v5832 = vadd.f32 0.0, %v5831
      %5833 = vdwg.mxu0
      %v5834 = vpack.c.bf16 %v5832, %v5830
      %v5836 = vsel %vm4872, %v5834, 0
      %5838 = vmatpush.bf16.msra.mxu0 0
      %5839 = vmatpush.bf16.msra.mxu0 0
      %5840 = vmatpush.bf16.msra.mxu0 0
      %5841 = vmatpush.bf16.msra.mxu0 0
      %5842 = vmatpush.bf16.msra.mxu0 0
      %5843 = vmatpush.bf16.msra.mxu0 0
      %5844 = vmatpush.bf16.msra.mxu0 0
      %5845 = vmatpush.bf16.msra.mxu0 %v5156
      %5846 = vmatmul.bf16.gmra.mxu0 %v5836
      %v5847 = vpop.f32.mrf.mxu0
      %v5848 = vadd.f32 0.0, %v5847
      %v5849 = vpop.f32.mrf.mxu0
      %v5850 = vadd.f32 0.0, %v5849
      %5851 = vdwg.mxu0
      %v5852 = vadd.f32 %v5753, %v5848
      %v5853 = vadd.f32 %v5755, %v5850
      %5854 = vrot.lane.b32.xlu0 %v5556, 104
      %v5855 = vpop.permute.xlu0 %5854
      %5856 = vrot.lane.b32.xlu0 %v5565, 104
      %v5857 = vpop.permute.xlu0 %5856
      %5858 = vrot.lane.b32.xlu0 %v5566, 104
      %v5859 = vpop.permute.xlu0 %5858
      %v5861 = vsel %vm4872, %v5855, 0
      %v5864 = vsel %vm4872, %v5857, 0
      %v5867 = vsel %vm4872, %v5859, 0
      %5869 = vmatpush.bf16.xpose.msra.mxu0 0
      %5870 = vmatpush.bf16.xpose.msra.mxu0 0
      %5871 = vmatpush.bf16.xpose.msra.mxu0 0
      %5872 = vmatpush.bf16.xpose.msra.mxu0 0
      %5873 = vmatpush.bf16.xpose.msra.mxu0 0
      %5874 = vmatpush.bf16.xpose.msra.mxu0 0
      %5875 = vmatpush.bf16.xpose.msra.mxu0 %v5867
      %5876 = vmatpush.bf16.xpose.msra.mxu0 %v5864
      %5877 = vmatmul.bf16.gmra.mxu0 %v5861
      %v5878 = vpop.f32.mrf.mxu0
      %v5879 = vadd.f32 0.0, %v5878
      %v5880 = vpop.f32.mrf.mxu0
      %v5881 = vadd.f32 0.0, %v5880
      %5882 = vdwg.mxu0
      %v5883 = vsel %vm4896, %v5879, -inf
      %5884 = vmax.xlane.f32.xlu0 %v5883
      %v5885 = vpop.xlane.xlu0 %5884
      %v5886 = vsel %vm4896, %v5881, -inf
      %5887 = vmax.xlane.f32.xlu0 %v5886
      %v5888 = vpop.xlane.xlu0 %5887
      %v5889 = vsub.f32 %v5879, %v5885
      %v5890 = vsub.f32 %v5881, %v5888
      %v5891 = vmul.f32 %v5889, 1.442695
      %v5892 = vpow.pop %v5891
      %v5893 = vmul.f32 %v5890, 1.442695
      %v5894 = vpow.pop %v5893
      %v5895 = vsel %vm4896, %v5892, 0.0
      %5896 = vadd.xlane.f32.xlu0 %v5895
      %v5897 = vpop.xlane.xlu0 %5896
      %v5898 = vsel %vm4896, %v5894, 0.0
      %5899 = vadd.xlane.f32.xlu0 %v5898
      %v5900 = vpop.xlane.xlu0 %5899
      %v5901 = vrcp.pop %v5897
      %v5902 = vrcp.pop %v5900
      %v5903 = vmul.f32 %v5892, %v5901
      %v5904 = vmul.f32 %v5894, %v5902
      %v5905 = vpack.c.bf16 %v5904, %v5903
      %5906 = vrot.lane.b32.xlu0 %v5621, 104
      %v5907 = vpop.permute.xlu0 %5906
      %5908 = vrot.lane.b32.xlu0 %v5622, 104
      %v5909 = vpop.permute.xlu0 %5908
      %v5912 = vsel %vm4896, %v5905, 0
      %v5915 = vand.u32 %v5909, %v4937
      %5917 = vmatpush.bf16.msra.mxu0 0
      %5918 = vmatpush.bf16.msra.mxu0 0
      %5919 = vmatpush.bf16.msra.mxu0 0
      %5920 = vmatpush.bf16.msra.mxu0 0
      %5921 = vmatpush.bf16.msra.mxu0 0
      %5922 = vmatpush.bf16.msra.mxu0 0
      %5923 = vmatpush.bf16.msra.mxu0 %v5915
      %5924 = vmatpush.bf16.msra.mxu0 %v5907
      %5925 = vmatmul.bf16.gmra.mxu0 %v5912
      %v5926 = vpop.f32.mrf.mxu0
      %v5927 = vadd.f32 0.0, %v5926
      %v5928 = vpop.f32.mrf.mxu0
      %v5929 = vadd.f32 0.0, %v5928
      %5930 = vdwg.mxu0
      %v5931 = vpack.c.bf16 %v5929, %v5927
      %v5933 = vsel %vm4872, %v5931, 0
      %5935 = vmatpush.bf16.msra.mxu0 0
      %5936 = vmatpush.bf16.msra.mxu0 0
      %5937 = vmatpush.bf16.msra.mxu0 0
      %5938 = vmatpush.bf16.msra.mxu0 0
      %5939 = vmatpush.bf16.msra.mxu0 0
      %5940 = vmatpush.bf16.msra.mxu0 0
      %5941 = vmatpush.bf16.msra.mxu0 0
      %5942 = vmatpush.bf16.msra.mxu0 %v5256
      %5943 = vmatmul.bf16.gmra.mxu0 %v5933
      %v5944 = vpop.f32.mrf.mxu0
      %v5945 = vadd.f32 0.0, %v5944
      %v5946 = vpop.f32.mrf.mxu0
      %v5947 = vadd.f32 0.0, %v5946
      %5948 = vdwg.mxu0
      %v5949 = vadd.f32 %v5852, %v5945
      %v5950 = vadd.f32 %v5853, %v5947
      %v5951 = vadd.f32 %v5949, %v5275
      %v5952 = vadd.f32 %v5950, %v5275
      %v5953 = vadd.f32 %v5469, %v5951
      %v5954 = vadd.f32 %v5470, %v5952
      %v5955 = vsel %vm4751, %v5953, 0.0
      %5956 = vadd.xlane.f32.xlu0 %v5955
      %v5957 = vpop.xlane.xlu0 %5956
      %v5958 = vsel %vm4751, %v5954, 0.0
      %5959 = vadd.xlane.f32.xlu0 %v5958
      %v5960 = vpop.xlane.xlu0 %5959
      %v5961 = vmul.f32 %v5957, %v5293
      %v5962 = vmul.f32 %v5960, %v5293
      %v5963 = vsub.f32 %v5953, %v5961
      %v5964 = vsub.f32 %v5954, %v5962
      %v5965 = vmul.f32 %v5963, %v5963
      %v5966 = vmul.f32 %v5964, %v5964
      %v5967 = vsel %vm4751, %v5965, 0.0
      %5968 = vadd.xlane.f32.xlu0 %v5967
      %v5969 = vpop.xlane.xlu0 %5968
      %v5970 = vsel %vm4751, %v5966, 0.0
      %5971 = vadd.xlane.f32.xlu0 %v5970
      %v5972 = vpop.xlane.xlu0 %5971
      %v5973 = vmul.f32 %v5969, %v5293
      %v5974 = vmul.f32 %v5972, %v5293
      %v5975 = vadd.f32 %v5973, 1e-05
      %v5976 = vadd.f32 %v5974, 1e-05
      %v5977 = vrsqrt.pop %v5975
      %v5978 = vmul.f32 %v5977, %v5975
      %v5979 = vmul.f32 %v5978, %v5977
      %v5980 = vmul.f32 0.5, %v5979
      %v5981 = vsub.f32 1.5, %v5980
      %v5982 = vmul.f32 %v5977, %v5981
      %vm5983 = vweird.f32 %v5975
      %vm5984 = vweird.f32 %v5977
      %vm5985 = vmor %vm5983, %vm5984
      %v5986 = vsel %vm5985, %v5977, %v5982
      %v5987 = vrsqrt.pop %v5976
      %v5988 = vmul.f32 %v5987, %v5976
      %v5989 = vmul.f32 %v5988, %v5987
      %v5990 = vmul.f32 0.5, %v5989
      %v5991 = vsub.f32 1.5, %v5990
      %v5992 = vmul.f32 %v5987, %v5991
      %vm5993 = vweird.f32 %v5976
      %vm5994 = vweird.f32 %v5987
      %vm5995 = vmor %vm5993, %vm5994
      %v5996 = vsel %vm5995, %v5987, %v5992
      %v5997 = vmul.f32 %v5963, %v5986
      %v5998 = vmul.f32 %v5964, %v5996
      %v5999 = vmul.f32 %v5997, %v5333
      %v6000 = vmul.f32 %v5998, %v5333
      %v6001 = vadd.f32 %v5999, %v5338
      %v6002 = vadd.f32 %v6000, %v5338
      %v6003 = vpack.c.bf16 %v6002, %v6001
      %v6005 = vsel %vm4751, %v6003, 0
      %6007 = vmatpush.bf16.msra.mxu0 0
      %6008 = vmatpush.bf16.msra.mxu0 0
      %6009 = vmatpush.bf16.msra.mxu0 0
      %6010 = vmatpush.bf16.msra.mxu0 0
      %6011 = vmatpush.bf16.msra.mxu0 0
      %6012 = vmatpush.bf16.msra.mxu0 0
      %6013 = vmatpush.bf16.msra.mxu0 %v5355
      %6014 = vmatpush.bf16.msra.mxu0 %v5354
      %6015 = vmatmul.bf16.gmra.mxu0 %v6005
      %v6016 = vpop.f32.mrf.mxu0
      %v6017 = vadd.f32 %v5344, %v6016
      %v6018 = vpop.f32.mrf.mxu0
      %v6019 = vadd.f32 %v5344, %v6018
      %6020 = vdwg.mxu0
      %v6021 = vmax.f32 %v6017, 0.0
      %v6022 = vmax.f32 %v6019, 0.0
      %v6023 = vpack.c.bf16 %v6022, %v6021
      %v6025 = vsel %vm4751, %v6023, 0
      %6027 = vmatpush.bf16.msra.mxu0 0
      %6028 = vmatpush.bf16.msra.mxu0 0
      %6029 = vmatpush.bf16.msra.mxu0 0
      %6030 = vmatpush.bf16.msra.mxu0 0
      %6031 = vmatpush.bf16.msra.mxu0 0
      %6032 = vmatpush.bf16.msra.mxu0 0
      %6033 = vmatpush.bf16.msra.mxu0 %v5390
      %6034 = vmatpush.bf16.msra.mxu0 %v5389
      %6035 = vmatmul.bf16.gmra.mxu0 %v6025
      %v6036 = vpop.f32.mrf.mxu0
      %v6037 = vadd.f32 %v5379, %v6036
      %v6038 = vpop.f32.mrf.mxu0
      %v6039 = vadd.f32 %v5379, %v6038
      %6040 = vdwg.mxu0
      %v6041 = vadd.f32 %v6001, %v6037
      %v6042 = vadd.f32 %v6002, %v6039
      %v6043 = vsel %vm4751, %v6041, 0.0
      %6044 = vadd.xlane.f32.xlu0 %v6043
      %v6045 = vpop.xlane.xlu0 %6044
      %v6046 = vsel %vm4751, %v6042, 0.0
      %6047 = vadd.xlane.f32.xlu0 %v6046
      %v6048 = vpop.xlane.xlu0 %6047
      %v6049 = vmul.f32 %v6045, %v5293
      %v6050 = vmul.f32 %v6048, %v5293
      %v6051 = vsub.f32 %v6041, %v6049
      %v6052 = vsub.f32 %v6042, %v6050
      %v6053 = vmul.f32 %v6051, %v6051
      %v6054 = vmul.f32 %v6052, %v6052
      %v6055 = vsel %vm4751, %v6053, 0.0
      %6056 = vadd.xlane.f32.xlu0 %v6055
      %v6057 = vpop.xlane.xlu0 %6056
      %v6058 = vsel %vm4751, %v6054, 0.0
      %6059 = vadd.xlane.f32.xlu0 %v6058
      %v6060 = vpop.xlane.xlu0 %6059
      %v6061 = vmul.f32 %v6057, %v5293
      %v6062 = vmul.f32 %v6060, %v5293
      %v6063 = vadd.f32 %v6061, 1e-05
      %v6064 = vadd.f32 %v6062, 1e-05
      %v6065 = vrsqrt.pop %v6063
      %v6066 = vmul.f32 %v6065, %v6063
      %v6067 = vmul.f32 %v6066, %v6065
      %v6068 = vmul.f32 0.5, %v6067
      %v6069 = vsub.f32 1.5, %v6068
      %v6070 = vmul.f32 %v6065, %v6069
      %vm6071 = vweird.f32 %v6063
      %vm6072 = vweird.f32 %v6065
      %vm6073 = vmor %vm6071, %vm6072
      %v6074 = vsel %vm6073, %v6065, %v6070
      %v6075 = vrsqrt.pop %v6064
      %v6076 = vmul.f32 %v6075, %v6064
      %v6077 = vmul.f32 %v6076, %v6075
      %v6078 = vmul.f32 0.5, %v6077
      %v6079 = vsub.f32 1.5, %v6078
      %v6080 = vmul.f32 %v6075, %v6079
      %vm6081 = vweird.f32 %v6064
      %vm6082 = vweird.f32 %v6075
      %vm6083 = vmor %vm6081, %vm6082
      %v6084 = vsel %vm6083, %v6075, %v6080
      %v6085 = vmul.f32 %v6051, %v6074
      %v6086 = vmul.f32 %v6052, %v6084
      %v6087 = vmul.f32 %v6085, %v5457
      %v6088 = vmul.f32 %v6086, %v5457
      %v6089 = vadd.f32 %v6087, %v5462
      %v6090 = vadd.f32 %v6088, %v5462
      %6091 = vst.msk [vmem:[%s5468] sm:$0xff] %vm4751, %v6089
      %6092 = vst.msk [vmem:[%s5468 + $0x8] sm:$0xff] %vm4751, %v6090
      %p6093 = scmp.eq.s32.totalorder %s92, 1
      // Predicated region
      $region185: #{forward.1} parent=179 // pred_check
        %p6094 = pneg %p6093
      $region186: #{forward.1} parent=179 // pred_check_branch
        %6096 = sbr.rel (%p6094) target = $region188
      $region187: #{forward.1} parent=179 // pred_region
        %v6097 = vld [vmem:[#allocation3] sm:$0xff]
        %v6098 = vld [vmem:[#allocation3 + $0x8] sm:$0xff]
        %v6099 = vld [vmem:[%s47] sm:$0xf]
        %v6100 = vld [vmem:[%s47 + $0x4] sm:$0xf]
        %v6101 = vld [vmem:[%s47 + $0x8] sm:$0xf]
        %v6102 = vld [vmem:[%s47 + $0xc] sm:$0xf]
        %v6103 = vpack.c.bf16 %v6098, %v6097
        %v6108 = vunpack.c.l.b16 %v6099
        %v6109 = vunpack.c.l.b16 %v6100
        %v6110 = vunpack.c.l.b16 %v6101
        %v6111 = vunpack.c.l.b16 %v6102
        %v6112 = vpack.c.b16 %v6109, %v6108
        %v6113 = vpack.c.b16 %v6111, %v6110
        %v6117 = vsel %vm4751, %v6103, 0
        %6119 = vmatpush.bf16.msra.mxu0 0
        %6120 = vmatpush.bf16.msra.mxu0 0
        %6121 = vmatpush.bf16.msra.mxu0 0
        %6122 = vmatpush.bf16.msra.mxu0 0
        %6123 = vmatpush.bf16.msra.mxu0 0
        %6124 = vmatpush.bf16.msra.mxu0 0
        %6125 = vmatpush.bf16.msra.mxu0 %v6113
        %6126 = vmatpush.bf16.msra.mxu0 %v6112
        %6127 = vmatmul.bf16.gmra.mxu0 %v6117
        %v6128 = vpop.f32.mrf.mxu0
        %v6129 = vadd.f32 0.0, %v6128
        %v6130 = vpop.f32.mrf.mxu0
        %v6131 = vadd.f32 0.0, %v6130
        %6132 = vdwg.mxu0
        %vm6133 = vcmask 130048
        %v6134 = vsel %vm6133, %v6129, -inf
        %v6135 = vsel %vm6133, %v6131, -inf
        %v6136 = vmax.f32 %v6134, %v6135
        %v6137 = vrot.slane %v6136, 4
        %v6138 = vmax.f32 %v6136, %v6137
        %v6139 = vrot.slane %v6138, 2
        %v6140 = vmax.f32 %v6138, %v6139
        %v6141 = vrot.slane %v6140, 1
        %v6142 = vmax.f32 %v6140, %v6141
        %v6143 = vsub.f32 %v6129, %v6142
        %v6144 = vsub.f32 %v6131, %v6142
        %v6145 = vmul.f32 %v6143, 1.442695
        %v6146 = vpow.pop %v6145
        %v6147 = vmul.f32 %v6144, 1.442695
        %v6148 = vpow.pop %v6147
        %v6149 = vsel %vm6133, %v6146, 0.0
        %v6150 = vsel %vm6133, %v6148, 0.0
        %v6151 = vadd.f32 %v6149, %v6150
        %v6152 = vrot.slane %v6151, 4
        %v6153 = vadd.f32 %v6151, %v6152
        %v6154 = vrot.slane %v6153, 2
        %v6155 = vadd.f32 %v6153, %v6154
        %v6156 = vrot.slane %v6155, 1
        %v6157 = vadd.f32 %v6155, %v6156
        %v6158 = vrcp.pop %v6157
        %v6159 = vmul.f32 %v6146, %v6158
        %v6160 = vmul.f32 %v6148, %v6158
        %v6161 = vld [vmem:[%s5] sm:$0xff]
        %v6162 = vld [vmem:[%s5 + $0x8] sm:$0xff]
        %6163 = vxpose.xlu0.b32.start [1/16] %v6159, 128
        %6164 = vxpose.xlu0.b32.cont [2/16] %v6160, 128
        %6165 = vxpose.xlu0.b32.cont [3/16] 0.0, 128
        %6166 = vxpose.xlu0.b32.cont [4/16] 0.0, 128
        %6167 = vxpose.xlu0.b32.cont [5/16] 0.0, 128
        %6168 = vxpose.xlu0.b32.cont [6/16] 0.0, 128
        %6169 = vxpose.xlu0.b32.cont [7/16] 0.0, 128
        %6170 = vxpose.xlu0.b32.cont [8/16] 0.0, 128
        %6171 = vxpose.xlu0.b32.cont [9/16] 0.0, 128
        %6172 = vxpose.xlu0.b32.cont [10/16] 0.0, 128
        %6173 = vxpose.xlu0.b32.cont [11/16] 0.0, 128
        %6174 = vxpose.xlu0.b32.cont [12/16] 0.0, 128
        %6175 = vxpose.xlu0.b32.cont [13/16] 0.0, 128
        %6176 = vxpose.xlu0.b32.cont [14/16] 0.0, 128
        %6177 = vxpose.xlu0.b32.cont [15/16] 0.0, 128
        %6178 = vxpose.xlu0.b32.end [16/16] 0.0, 128
        %v6179 = vpop.trf.xlu0
        %v6180 = vpop.trf.xlu0
        %v6181 = vpop.trf.xlu0
        %v6182 = vpop.trf.xlu0
        %v6183 = vpop.trf.xlu0
        %v6184 = vpop.trf.xlu0
        %v6185 = vpop.trf.xlu0
        %v6186 = vpop.trf.xlu0
        %v6187 = vpop.trf.xlu0
        %v6188 = vpop.trf.xlu0
        %v6189 = vpop.trf.xlu0
        %v6190 = vpop.trf.xlu0
        %v6191 = vpop.trf.xlu0
        %v6192 = vpop.trf.xlu0
        %v6193 = vpop.trf.xlu0
        %v6194 = vpop.trf.xlu0
        %v6196 = vsel %vm6133, %v6179, 0
        %v6199 = vsel %vm6133, %v6180, 0
        %6201 = vmatpush.msra.mxu0 0.0
        %6202 = vmatpush.msra.mxu0 0.0
        %6203 = vmatpush.msra.mxu0 0.0
        %6204 = vmatpush.msra.mxu0 0.0
        %6205 = vmatpush.msra.mxu0 0.0
        %6206 = vmatpush.msra.mxu0 0.0
        %6207 = vmatpush.msra.mxu0 0.0
        %6208 = vmatpush.msra.mxu0 0.0
        %6209 = vmatpush.msra.mxu0 0.0
        %6210 = vmatpush.msra.mxu0 0.0
        %6211 = vmatpush.msra.mxu0 0.0
        %6212 = vmatpush.msra.mxu0 0.0
        %6213 = vmatpush.msra.mxu0 0.0
        %6214 = vmatpush.msra.mxu0 0.0
        %6215 = vmatpush.msra.mxu0 %v6162
        %6216 = vmatpush.msra.mxu0 %v6161
        %6217 = vmatmul.f32.gmra.mxu0 %v6196
        %v6218 = vpop.f32.mrf.mxu0
        %v6219 = vadd.f32 0.0, %v6218
        %6220 = vmatmul.f32.gmra.mxu0 %v6199
        %v6221 = vpop.f32.mrf.mxu0
        %v6222 = vadd.f32 0.0, %v6221
        %6223 = vdwg.mxu0
        %vm6224 = vcmask 23552
        %6225 = vst.msk [vmem:[%s81] sm:$0xff] %vm6224, %v6219
        %6226 = vst.msk [vmem:[%s81 + $0x8] sm:$0xff] %vm6224, %v6222
        %v6227 = vld [vmem:[%s5468] sm:$0xff]
        %v6228 = vld [vmem:[%s5468 + $0x8] sm:$0xff]
        %v6229 = vld [vmem:[%s47] sm:$0xf]
        %v6230 = vld [vmem:[%s47 + $0x4] sm:$0xf]
        %v6231 = vld [vmem:[%s47 + $0x8] sm:$0xf]
        %v6232 = vld [vmem:[%s47 + $0xc] sm:$0xf]
        %v6233 = vpack.c.bf16 %v6228, %v6227
        %v6238 = vunpack.c.l.b16 %v6229
        %v6239 = vunpack.c.l.b16 %v6230
        %v6240 = vunpack.c.l.b16 %v6231
        %v6241 = vunpack.c.l.b16 %v6232
        %v6242 = vpack.c.b16 %v6239, %v6238
        %v6243 = vpack.c.b16 %v6241, %v6240
        %v6247 = vsel %vm4751, %v6233, 0
        %6249 = vmatpush.bf16.msra.mxu0 0
        %6250 = vmatpush.bf16.msra.mxu0 0
        %6251 = vmatpush.bf16.msra.mxu0 0
        %6252 = vmatpush.bf16.msra.mxu0 0
        %6253 = vmatpush.bf16.msra.mxu0 0
        %6254 = vmatpush.bf16.msra.mxu0 0
        %6255 = vmatpush.bf16.msra.mxu0 %v6243
        %6256 = vmatpush.bf16.msra.mxu0 %v6242
        %6257 = vmatmul.bf16.gmra.mxu0 %v6247
        %v6258 = vpop.f32.mrf.mxu0
        %v6259 = vadd.f32 0.0, %v6258
        %v6260 = vpop.f32.mrf.mxu0
        %v6261 = vadd.f32 0.0, %v6260
        %6262 = vdwg.mxu0
        %v6263 = vsel %vm6133, %v6259, -inf
        %v6264 = vsel %vm6133, %v6261, -inf
        %v6265 = vmax.f32 %v6263, %v6264
        %v6266 = vrot.slane %v6265, 4
        %v6267 = vmax.f32 %v6265, %v6266
        %v6268 = vrot.slane %v6267, 2
        %v6269 = vmax.f32 %v6267, %v6268
        %v6270 = vrot.slane %v6269, 1
        %v6271 = vmax.f32 %v6269, %v6270
        %v6272 = vsub.f32 %v6259, %v6271
        %v6273 = vsub.f32 %v6261, %v6271
        %v6274 = vmul.f32 %v6272, 1.442695
        %v6275 = vpow.pop %v6274
        %v6276 = vmul.f32 %v6273, 1.442695
        %v6277 = vpow.pop %v6276
        %v6278 = vsel %vm6133, %v6275, 0.0
        %v6279 = vsel %vm6133, %v6277, 0.0
        %v6280 = vadd.f32 %v6278, %v6279
        %v6281 = vrot.slane %v6280, 4
        %v6282 = vadd.f32 %v6280, %v6281
        %v6283 = vrot.slane %v6282, 2
        %v6284 = vadd.f32 %v6282, %v6283
        %v6285 = vrot.slane %v6284, 1
        %v6286 = vadd.f32 %v6284, %v6285
        %v6287 = vrcp.pop %v6286
        %v6288 = vmul.f32 %v6275, %v6287
        %v6289 = vmul.f32 %v6277, %v6287
        %s6290 = scalar_lea.vmem %s5, 16
        %v6291 = vld [vmem:[%s6290] sm:$0xff]
        %v6292 = vld [vmem:[%s6290 + $0x8] sm:$0xff]
        %6293 = vxpose.xlu0.b32.start [1/16] %v6288, 128
        %6294 = vxpose.xlu0.b32.cont [2/16] %v6289, 128
        %6295 = vxpose.xlu0.b32.cont [3/16] 0.0, 128
        %6296 = vxpose.xlu0.b32.cont [4/16] 0.0, 128
        %6297 = vxpose.xlu0.b32.cont [5/16] 0.0, 128
        %6298 = vxpose.xlu0.b32.cont [6/16] 0.0, 128
        %6299 = vxpose.xlu0.b32.cont [7/16] 0.0, 128
        %6300 = vxpose.xlu0.b32.cont [8/16] 0.0, 128
        %6301 = vxpose.xlu0.b32.cont [9/16] 0.0, 128
        %6302 = vxpose.xlu0.b32.cont [10/16] 0.0, 128
        %6303 = vxpose.xlu0.b32.cont [11/16] 0.0, 128
        %6304 = vxpose.xlu0.b32.cont [12/16] 0.0, 128
        %6305 = vxpose.xlu0.b32.cont [13/16] 0.0, 128
        %6306 = vxpose.xlu0.b32.cont [14/16] 0.0, 128
        %6307 = vxpose.xlu0.b32.cont [15/16] 0.0, 128
        %6308 = vxpose.xlu0.b32.end [16/16] 0.0, 128
        %v6309 = vpop.trf.xlu0
        %v6310 = vpop.trf.xlu0
        %v6311 = vpop.trf.xlu0
        %v6312 = vpop.trf.xlu0
        %v6313 = vpop.trf.xlu0
        %v6314 = vpop.trf.xlu0
        %v6315 = vpop.trf.xlu0
        %v6316 = vpop.trf.xlu0
        %v6317 = vpop.trf.xlu0
        %v6318 = vpop.trf.xlu0
        %v6319 = vpop.trf.xlu0
        %v6320 = vpop.trf.xlu0
        %v6321 = vpop.trf.xlu0
        %v6322 = vpop.trf.xlu0
        %v6323 = vpop.trf.xlu0
        %v6324 = vpop.trf.xlu0
        %v6326 = vsel %vm6133, %v6309, 0
        %v6329 = vsel %vm6133, %v6310, 0
        %6331 = vmatpush.msra.mxu0 0.0
        %6332 = vmatpush.msra.mxu0 0.0
        %6333 = vmatpush.msra.mxu0 0.0
        %6334 = vmatpush.msra.mxu0 0.0
        %6335 = vmatpush.msra.mxu0 0.0
        %6336 = vmatpush.msra.mxu0 0.0
        %6337 = vmatpush.msra.mxu0 0.0
        %6338 = vmatpush.msra.mxu0 0.0
        %6339 = vmatpush.msra.mxu0 0.0
        %6340 = vmatpush.msra.mxu0 0.0
        %6341 = vmatpush.msra.mxu0 0.0
        %6342 = vmatpush.msra.mxu0 0.0
        %6343 = vmatpush.msra.mxu0 0.0
        %6344 = vmatpush.msra.mxu0 0.0
        %6345 = vmatpush.msra.mxu0 %v6292
        %6346 = vmatpush.msra.mxu0 %v6291
        %6347 = vmatmul.f32.gmra.mxu0 %v6326
        %v6348 = vpop.f32.mrf.mxu0
        %v6349 = vadd.f32 0.0, %v6348
        %6350 = vmatmul.f32.gmra.mxu0 %v6329
        %v6351 = vpop.f32.mrf.mxu0
        %v6352 = vadd.f32 0.0, %v6351
        %6353 = vdwg.mxu0
        %s6354 = scalar_lea.vmem %s81, 16
        %6355 = vst.msk [vmem:[%s6354] sm:$0xff] %vm6224, %v6349
        %6356 = vst.msk [vmem:[%s6354 + $0x8] sm:$0xff] %vm6224, %v6352
      $region188: #{forward.1} parent=179 // pred_fallthru
        _
      // Predicated region
      $region189: #{forward.1} parent=179 // pred_check
        %p6357 = pneg %p1025
      $region190: #{forward.1} parent=179 // pred_check_branch
        %6359 = sbr.rel (%p6357) target = $region192
      $region191: #{forward.1} parent=179 // pred_region
        _
      $region192: #{forward.1} parent=179 // pred_fallthru
        _
      // Predicated region
      $region193: #{forward.1} parent=179 // pred_check
        %p6360 = pneg %p1025
      $region194: #{forward.1} parent=179 // pred_check_branch
        %6362 = sbr.rel (%p6360) target = $region196
      $region195: #{forward.1} parent=179 // pred_region
        _
      $region196: #{forward.1} parent=179 // pred_fallthru
        _
    $region180: #{forward.1} parent=5 // pred_fallthru
      _
    %p6363 = scmp.le.s32.totalorder 2, %s87
    // Predicated region
    $region197: #{forward.1} parent=5 // pred_check
      %p6364 = pneg %p6363
    $region198: #{forward.1} parent=5 // pred_check_branch
      %6366 = sbr.rel (%p6364) target = $region200
    $region199: #{forward.1} parent=5 // pred_region
      %s6367 = ssub.s32 %s87, 2
    $region200: #{forward.1} parent=5 // pred_fallthru
      _
  $region6: #{forward.1} parent=0 // loop_footer
    %s91 = sadd.s32 1, %s87
  $region7: #{forward.1} parent=0 // loop_footer_branch
    %86 = sbr.rel target = $region3
  $region8: #{forward.1} parent=0 // loop_exit
    _

</llo_original>
